<compile_context>
chip_gen: v7x
topology: tpu7x:2x2x1
jax: 0.10.0
libtpu: 0.0.40
codegen_flags: <defaults>
</compile_context>

<pallas_src>
import functools

import jax
import jax.numpy as jnp
from jax.experimental import pallas as pl
from jax.experimental.pallas import tpu as pltpu


# ---------------------------------------------------------------------------
# Bidirectional LSTM layer — both directions fused in ONE kernel.
# ---------------------------------------------------------------------------
def bilstm_kernel(x_ref, wih_ref, b_ref, whh_f_ref, whh_b_ref, o_ref,
                  xp_sc, hf_out_sc, hb_out_sc):
    # x_ref   : (S, B, I)   time-major input
    # wih_ref : (I, 8H)     fused input weights: cols [0,4H) fwd (i,f,g,o), [4H,8H) bwd
    # b_ref   : (1, 8H)     fused bias (b_ih + b_hh), same column layout
    # whh_*   : (H, 4H)     per-direction recurrent weights (gate order i, f, g, o)
    # o_ref   : (S, B, 2H)  fwd -> [:, :, :H], bwd -> [:, :, H:]
    S, B, I = x_ref.shape
    H4 = whh_f_ref.shape[1]
    H = H4 // 4

    # ---- hoisted lane-dense input projection for ALL timesteps, both dirs ----
    x2d = x_ref[...].reshape(S * B, I).astype(jnp.bfloat16)
    xp_sc[...] = (jnp.dot(x2d, wih_ref[...].astype(jnp.bfloat16),
                          preferred_element_type=jnp.float32)
                  + b_ref[...]).reshape(S, B, 2 * H4)

    # loop-invariant recurrent weights (casts hoisted out of the recurrence)
    whh_f = whh_f_ref[...].astype(jnp.bfloat16)
    whh_b = whh_b_ref[...].astype(jnp.bfloat16)

    def cell(pre, c):
        i_g = jax.nn.sigmoid(pre[:, 0 * H:1 * H])
        f_g = jax.nn.sigmoid(pre[:, 1 * H:2 * H])
        g_g = jnp.tanh(pre[:, 2 * H:3 * H])
        o_g = jax.nn.sigmoid(pre[:, 3 * H:4 * H])
        c_new = f_g * c + i_g * g_g
        h_new = o_g * jnp.tanh(c_new)
        return h_new, c_new

    def step(t, carry):
        h_f, c_f, h_b, c_b = carry
        tb = S - 1 - t
        xp_f = xp_sc[t]          # (B, 8H)  full-width dynamic load
        xp_b = xp_sc[tb]

        # forward direction at time t
        pre_f = xp_f[:, :H4] + jnp.dot(h_f.astype(jnp.bfloat16), whh_f,
                                       preferred_element_type=jnp.float32)
        h_f, c_f = cell(pre_f, c_f)
        hf_out_sc[t] = h_f

        # backward direction at time S-1-t (independent work -> pipelines on the MXU)
        pre_b = xp_b[:, H4:] + jnp.dot(h_b.astype(jnp.bfloat16), whh_b,
                                       preferred_element_type=jnp.float32)
        h_b, c_b = cell(pre_b, c_b)
        hb_out_sc[tb] = h_b
        return (h_f, c_f, h_b, c_b)

    zeros = jnp.zeros((B, H), jnp.float32)
    jax.lax.fori_loop(0, S, step, (zeros, zeros, zeros, zeros))

    # single bulk full-width store of the concatenated directions
    o_ref[...] = jnp.concatenate([hf_out_sc[...], hb_out_sc[...]], axis=-1)


def bilstm_layer(x_tm, p):
    S, B, _ = x_tm.shape
    H = p['whh_f'].shape[0]
    return pl.pallas_call(
        bilstm_kernel,
        out_shape=jax.ShapeDtypeStruct((S, B, 2 * H), jnp.float32),
        in_specs=[pl.BlockSpec(memory_space=pltpu.MemorySpace.VMEM)] * 5,
        out_specs=pl.BlockSpec(memory_space=pltpu.MemorySpace.VMEM),
        scratch_shapes=[pltpu.VMEM((S, B, 8 * H), jnp.float32),   # x-proj (fwd|bwd)
                        pltpu.VMEM((S, B, H), jnp.float32),       # fwd hidden stream
                        pltpu.VMEM((S, B, H), jnp.float32)],      # bwd hidden stream
        compiler_params=pltpu.CompilerParams(vmem_limit_bytes=64 * 1024 * 1024),
    )(x_tm, p['wih'], p['b'], p['whh_f'], p['whh_b'])


# ---------------------------------------------------------------------------
# TransformerEncoderLayer (post-norm, ReLU, no dropout) — one fused kernel.
# ---------------------------------------------------------------------------
def _layernorm(x, g, b, eps=1e-5):
    mu = jnp.mean(x, axis=-1, keepdims=True)
    var = jnp.mean((x - mu) ** 2, axis=-1, keepdims=True)
    return (x - mu) * jax.lax.rsqrt(var + eps) * g + b


def enc_kernel(x_ref, wqkv_ref, bqkv_ref, wo_ref, bo_ref,
               g1_ref, be1_ref, w1_ref, b1_ref, w2_ref, b2_ref,
               g2_ref, be2_ref, o_ref, *, nheads):
    # x_ref: (Bt, S, D); wqkv: (D, 3D); wo: (D, D); w1: (D, F); w2: (F, D)
    B, S, D = x_ref.shape
    dh = D // nheads
    scale = 1.0 / (dh ** 0.5)
    N = B * S

    x2d = x_ref[...].reshape(N, D)

    # fused, lane-dense QKV projection over the flattened (B*S, D) slab
    qkv = jnp.dot(x2d.astype(jnp.bfloat16), wqkv_ref[...].astype(jnp.bfloat16),
                  preferred_element_type=jnp.float32) + bqkv_ref[...]
    q = (qkv[:, 0 * D:1 * D] * scale).reshape(B, S, D)   # scale hoisted once
    k = qkv[:, 1 * D:2 * D].reshape(B, S, D)
    v = qkv[:, 2 * D:3 * D].reshape(B, S, D)

    # per-head attention (each head needs its own softmax); projections stay fused.
    ctx = []
    for h in range(nheads):
        qh = q[:, :, h * dh:(h + 1) * dh].astype(jnp.bfloat16)
        kh = k[:, :, h * dh:(h + 1) * dh].astype(jnp.bfloat16)
        vh = v[:, :, h * dh:(h + 1) * dh].astype(jnp.bfloat16)
        s = jnp.einsum('bqe,bke->bqk', qh, kh,
                       preferred_element_type=jnp.float32)
        s = s - jnp.max(s, axis=-1, keepdims=True)
        p = jnp.exp(s)
        p = p * pl.reciprocal(jnp.sum(p, axis=-1, keepdims=True), approx=True)
        ctx.append(jnp.einsum('bqk,bke->bqe', p.astype(jnp.bfloat16), vh,
                              preferred_element_type=jnp.float32))
    ctx2d = jnp.concatenate(ctx, axis=-1).reshape(N, D)

    # single fused output projection
    attn = jnp.dot(ctx2d.astype(jnp.bfloat16), wo_ref[...].astype(jnp.bfloat16),
                   preferred_element_type=jnp.float32) + bo_ref[...]

    # residual + layernorm 1
    y = _layernorm(x2d + attn, g1_ref[...], be1_ref[...])

    # feed-forward (ReLU), flattened over (B*S)
    ff = jnp.maximum(
        jnp.dot(y.astype(jnp.bfloat16), w1_ref[...].astype(jnp.bfloat16),
                preferred_element_type=jnp.float32) + b1_ref[...], 0.0)
    ff = jnp.dot(ff.astype(jnp.bfloat16), w2_ref[...].astype(jnp.bfloat16),
                 preferred_element_type=jnp.float32) + b2_ref[...]

    # residual + layernorm 2
    o_ref[...] = _layernorm(y + ff, g2_ref[...], be2_ref[...]).reshape(B, S, D)


def encoder_layer(x, p, nheads):
    B, S, D = x.shape
    Bt = min(B, 8)
    assert B % Bt == 0
    kernel = functools.partial(enc_kernel, nheads=nheads)
    weights = (p['wqkv'], p['bqkv'], p['wo'], p['bo'],
               p['ln1_g'], p['ln1_b'], p['w1'], p['b1'],
               p['w2'], p['b2'], p['ln2_g'], p['ln2_b'])
    const2 = lambda i: (0, 0)
    return pl.pallas_call(
        kernel,
        out_shape=jax.ShapeDtypeStruct((B, S, D), jnp.float32),
        grid=(B // Bt,),
        in_specs=[pl.BlockSpec((Bt, S, D), lambda i: (i, 0, 0))]
                 + [pl.BlockSpec(w.shape, const2) for w in weights],
        out_specs=pl.BlockSpec((Bt, S, D), lambda i: (i, 0, 0)),
        compiler_params=pltpu.CompilerParams(
            dimension_semantics=("parallel",),
            vmem_limit_bytes=64 * 1024 * 1024),
    )(x, *weights)


# ---------------------------------------------------------------------------
# Parameter init (deterministic, synthetic) and full forward.
# ---------------------------------------------------------------------------
def init_params(key, ipt_dim, hid_dim, lr_num, nheads):
    d_model = 2 * hid_dim
    dim_ff = hid_dim

    def nrm(k, shape, scale=0.1):
        return scale * jax.random.normal(k, shape, dtype=jnp.float32)

    params = {'lstm': [], 'enc': []}
    for l in range(lr_num):
        in_dim = ipt_dim if l == 0 else 2 * hid_dim
        keys = jax.random.split(key, 7)
        key = keys[0]
        wih_f = nrm(keys[1], (in_dim, 4 * hid_dim))
        wih_b = nrm(keys[2], (in_dim, 4 * hid_dim))
        b_f = nrm(keys[3], (1, 4 * hid_dim))
        b_b = nrm(keys[4], (1, 4 * hid_dim))
        params['lstm'].append({
            'wih': jnp.concatenate([wih_f, wih_b], axis=1),   # (in_dim, 8H)
            'b':   jnp.concatenate([b_f, b_b], axis=1),       # (1, 8H)
            'whh_f': nrm(keys[5], (hid_dim, 4 * hid_dim)),
            'whh_b': nrm(keys[6], (hid_dim, 4 * hid_dim)),
        })

    for l in range(lr_num):
        keys = jax.random.split(key, 8)
        key = keys[0]
        params['enc'].append({
            'wqkv': nrm(keys[1], (d_model, 3 * d_model)),
            'bqkv': nrm(keys[2], (1, 3 * d_model)),
            'wo':   nrm(keys[3], (d_model, d_model)),
            'bo':   nrm(keys[4], (1, d_model)),
            'w1':   nrm(keys[5], (d_model, dim_ff)),
            'b1':   nrm(keys[6], (1, dim_ff)),
            'w2':   nrm(keys[7], (dim_ff, d_model)),
            'b2':   jnp.zeros((1, d_model), jnp.float32),
            'ln1_g': jnp.ones((1, d_model), jnp.float32),
            'ln1_b': jnp.zeros((1, d_model), jnp.float32),
            'ln2_g': jnp.ones((1, d_model), jnp.float32),
            'ln2_b': jnp.zeros((1, d_model), jnp.float32),
        })
    return params


def bilstm_att_forward(x, params, lr_num, nheads):
    # x: (B, S, ipt_dim) -> (B, 2*hid_dim)  (== opt[:, -1, :] in the torch module)
    B, S, _ = x.shape
    B_pad = ((B + 7) // 8) * 8            # pad batch to a full sublane
    if B_pad != B:
        x = jnp.pad(x, ((0, B_pad - B), (0, 0), (0, 0)))
    inp = jnp.transpose(x, (1, 0, 2)).astype(jnp.float32)   # time-major (S, Bp, I)
    for l in range(lr_num):
        inp = bilstm_layer(inp, params['lstm'][l])           # (S, Bp, 2H)
    opt = jnp.transpose(inp, (1, 0, 2))                      # (Bp, S, 2H)
    for l in range(lr_num):
        opt = encoder_layer(opt, params['enc'][l], nheads)
    return opt[:B, -1, :]


if __name__ == "__main__":
    B, S = 2, 8
    ipt_dim, hid_dim, lr_num, nheads = 16, 32, 2, 4

    key = jax.random.PRNGKey(0)
    kx, kp = jax.random.split(key)
    x = jax.random.normal(kx, (B, S, ipt_dim), dtype=jnp.float32)
    params = init_params(kp, ipt_dim, hid_dim, lr_num, nheads)

    fwd = jax.jit(functools.partial(bilstm_att_forward,
                                    lr_num=lr_num, nheads=nheads))
    out = jax.block_until_ready(fwd(x, params))
    assert out.shape == (B, 2 * hid_dim), out.shape
    assert bool(jnp.all(jnp.isfinite(out)))
    print("KERNEL_OK")
</pallas_src>

<mosaic_0001>
module attributes {stable_mosaic.version = 11 : i64} {
  func.func @bilstm_kernel(%arg0: memref<8x8x16xf32, #tpu.memory_space<vmem>>, %arg1: memref<16x256xf32, #tpu.memory_space<vmem>>, %arg2: memref<1x256xf32, #tpu.memory_space<vmem>>, %arg3: memref<32x128xf32, #tpu.memory_space<vmem>>, %arg4: memref<32x128xf32, #tpu.memory_space<vmem>>, %arg5: memref<8x8x64xf32, #tpu.memory_space<vmem>>, %arg6: memref<8x8x256xf32, #tpu.memory_space<vmem>>, %arg7: memref<8x8x32xf32, #tpu.memory_space<vmem>>, %arg8: memref<8x8x32xf32, #tpu.memory_space<vmem>>) attributes {dimension_semantics = [], scalar_prefetch = 0 : i64, scratch_operands = 3 : i64, tpu.core_type = #tpu.core_type<tc>} {
    %c0 = arith.constant 0 : index
    %c0_0 = arith.constant 0 : index
    %c0_1 = arith.constant 0 : index
    %0 = vector.load %arg0[%c0, %c0_0, %c0_1] : memref<8x8x16xf32, #tpu.memory_space<vmem>>, vector<8x8x16xf32>
    %1 = vector.shape_cast %0 : vector<8x8x16xf32> to vector<64x16xf32>
    %2 = arith.truncf %1 : vector<64x16xf32> to vector<64x16xbf16>
    %c0_2 = arith.constant 0 : index
    %c0_3 = arith.constant 0 : index
    %3 = vector.load %arg1[%c0_2, %c0_3] : memref<16x256xf32, #tpu.memory_space<vmem>>, vector<16x256xf32>
    %4 = arith.truncf %3 : vector<16x256xf32> to vector<16x256xbf16>
    %cst = arith.constant dense<0.000000e+00> : vector<64x256xf32>
    %5 = tpu.matmul %2, %4, %cst {dimension_numbers = #tpu.dot_dimension_numbers<[1], [0], [0], [1], [0, 0, 1, 1], [], []>} : vector<64x16xbf16>, vector<16x256xbf16>, vector<64x256xf32> -> vector<64x256xf32>
    %c0_4 = arith.constant 0 : index
    %c0_5 = arith.constant 0 : index
    %6 = vector.load %arg2[%c0_4, %c0_5] : memref<1x256xf32, #tpu.memory_space<vmem>>, vector<1x256xf32>
    %7 = vector.broadcast %6 : vector<1x256xf32> to vector<64x256xf32>
    %8 = arith.addf %5, %7 : vector<64x256xf32>
    %9 = vector.shape_cast %8 : vector<64x256xf32> to vector<8x8x256xf32>
    %c0_6 = arith.constant 0 : index
    %c0_7 = arith.constant 0 : index
    %c0_8 = arith.constant 0 : index
    %10 = vector.load %arg6[%c0_6, %c0_7, %c0_8] : memref<8x8x256xf32, #tpu.memory_space<vmem>>, vector<8x8x256xf32>
    tpu.vector_store %arg6[%c0_6, %c0_7, %c0_8], %9 {strides = array<i32>} : memref<8x8x256xf32, #tpu.memory_space<vmem>>, vector<8x8x256xf32>,
    %c0_9 = arith.constant 0 : index
    %c0_10 = arith.constant 0 : index
    %11 = vector.load %arg3[%c0_9, %c0_10] : memref<32x128xf32, #tpu.memory_space<vmem>>, vector<32x128xf32>
    %12 = arith.truncf %11 : vector<32x128xf32> to vector<32x128xbf16>
    %c0_11 = arith.constant 0 : index
    %c0_12 = arith.constant 0 : index
    %13 = vector.load %arg4[%c0_11, %c0_12] : memref<32x128xf32, #tpu.memory_space<vmem>>, vector<32x128xf32>
    %14 = arith.truncf %13 : vector<32x128xf32> to vector<32x128xbf16>
    %cst_13 = arith.constant 0.000000e+00 : f32
    %15 = vector.broadcast %cst_13 : f32 to vector<8x32xf32>
    %c0_i32 = arith.constant 0 : i32
    %c8_i32 = arith.constant 8 : i32
    %16 = arith.addi %c0_i32, %c8_i32 : i32
    %c1_i32 = arith.constant 1 : i32
    %17:4 = scf.for %arg9 = %c0_i32 to %16 step %c1_i32 iter_args(%arg10 = %15, %arg11 = %15, %arg12 = %15, %arg13 = %15) -> (vector<8x32xf32>, vector<8x32xf32>, vector<8x32xf32>, vector<8x32xf32>)  : i32 {
      %c7_i32 = arith.constant 7 : i32
      %22 = arith.subi %c7_i32, %arg9 : i32
      %23 = arith.index_cast %arg9 : i32 to index
      %c0_24 = arith.constant 0 : index
      %c0_25 = arith.constant 0 : index
      %24 = vector.load %arg6[%23, %c0_24, %c0_25] : memref<8x8x256xf32, #tpu.memory_space<vmem>>, vector<1x8x256xf32>
      %25 = vector.shape_cast %24 : vector<1x8x256xf32> to vector<8x256xf32>
      %26 = arith.index_cast %22 : i32 to index
      %c0_26 = arith.constant 0 : index
      %c0_27 = arith.constant 0 : index
      %27 = vector.load %arg6[%26, %c0_26, %c0_27] : memref<8x8x256xf32, #tpu.memory_space<vmem>>, vector<1x8x256xf32>
      %28 = vector.shape_cast %27 : vector<1x8x256xf32> to vector<8x256xf32>
      %29 = vector.extract_strided_slice %25 {offsets = [0, 0], sizes = [8, 128], strides = [1, 1]} : vector<8x256xf32> to vector<8x128xf32>
      %30 = arith.truncf %arg10 : vector<8x32xf32> to vector<8x32xbf16>
      %cst_28 = arith.constant dense<0.000000e+00> : vector<8x128xf32>
      %31 = tpu.matmul %30, %12, %cst_28 {dimension_numbers = #tpu.dot_dimension_numbers<[1], [0], [0], [1], [0, 0, 1, 1], [], []>} : vector<8x32xbf16>, vector<32x128xbf16>, vector<8x128xf32> -> vector<8x128xf32>
      %32 = arith.addf %29, %31 : vector<8x128xf32>
      %33 = vector.extract_strided_slice %32 {offsets = [0, 0], sizes = [8, 32], strides = [1, 1]} : vector<8x128xf32> to vector<8x32xf32>
      %34 = arith.negf %33 : vector<8x32xf32>
      %35 = math.exp %34 : vector<8x32xf32>
      %cst_29 = arith.constant 1.000000e+00 : f32
      %36 = vector.broadcast %cst_29 : f32 to vector<8x32xf32>
      %37 = arith.addf %36, %35 : vector<8x32xf32>
      %38 = arith.divf %36, %37 : vector<8x32xf32>
      %39 = vector.extract_strided_slice %32 {offsets = [0, 32], sizes = [8, 32], strides = [1, 1]} : vector<8x128xf32> to vector<8x32xf32>
      %40 = arith.negf %39 : vector<8x32xf32>
      %41 = math.exp %40 : vector<8x32xf32>
      %cst_30 = arith.constant 1.000000e+00 : f32
      %42 = vector.broadcast %cst_30 : f32 to vector<8x32xf32>
      %43 = arith.addf %42, %41 : vector<8x32xf32>
      %44 = arith.divf %42, %43 : vector<8x32xf32>
      %45 = vector.extract_strided_slice %32 {offsets = [0, 64], sizes = [8, 32], strides = [1, 1]} : vector<8x128xf32> to vector<8x32xf32>
      %46 = math.tanh %45 : vector<8x32xf32>
      %47 = vector.extract_strided_slice %32 {offsets = [0, 96], sizes = [8, 32], strides = [1, 1]} : vector<8x128xf32> to vector<8x32xf32>
      %48 = arith.negf %47 : vector<8x32xf32>
      %49 = math.exp %48 : vector<8x32xf32>
      %cst_31 = arith.constant 1.000000e+00 : f32
      %50 = vector.broadcast %cst_31 : f32 to vector<8x32xf32>
      %51 = arith.addf %50, %49 : vector<8x32xf32>
      %52 = arith.divf %50, %51 : vector<8x32xf32>
      %53 = arith.mulf %44, %arg11 : vector<8x32xf32>
      %54 = arith.mulf %38, %46 : vector<8x32xf32>
      %55 = arith.addf %53, %54 : vector<8x32xf32>
      %56 = math.tanh %55 : vector<8x32xf32>
      %57 = arith.mulf %52, %56 : vector<8x32xf32>
      %58 = arith.index_cast %arg9 : i32 to index
      %c0_32 = arith.constant 0 : index
      %c0_33 = arith.constant 0 : index
      %59 = vector.load %arg7[%58, %c0_32, %c0_33] : memref<8x8x32xf32, #tpu.memory_space<vmem>>, vector<1x8x32xf32>
      %60 = vector.shape_cast %59 : vector<1x8x32xf32> to vector<8x32xf32>
      %61 = vector.shape_cast %57 : vector<8x32xf32> to vector<1x8x32xf32>
      tpu.vector_store %arg7[%58, %c0_32, %c0_33], %61 {strides = array<i32>} : memref<8x8x32xf32, #tpu.memory_space<vmem>>, vector<1x8x32xf32>,
      %62 = vector.extract_strided_slice %28 {offsets = [0, 128], sizes = [8, 128], strides = [1, 1]} : vector<8x256xf32> to vector<8x128xf32>
      %63 = arith.truncf %arg12 : vector<8x32xf32> to vector<8x32xbf16>
      %cst_34 = arith.constant dense<0.000000e+00> : vector<8x128xf32>
      %64 = tpu.matmul %63, %14, %cst_34 {dimension_numbers = #tpu.dot_dimension_numbers<[1], [0], [0], [1], [0, 0, 1, 1], [], []>} : vector<8x32xbf16>, vector<32x128xbf16>, vector<8x128xf32> -> vector<8x128xf32>
      %65 = arith.addf %62, %64 : vector<8x128xf32>
      %66 = vector.extract_strided_slice %65 {offsets = [0, 0], sizes = [8, 32], strides = [1, 1]} : vector<8x128xf32> to vector<8x32xf32>
      %67 = arith.negf %66 : vector<8x32xf32>
      %68 = math.exp %67 : vector<8x32xf32>
      %cst_35 = arith.constant 1.000000e+00 : f32
      %69 = vector.broadcast %cst_35 : f32 to vector<8x32xf32>
      %70 = arith.addf %69, %68 : vector<8x32xf32>
      %71 = arith.divf %69, %70 : vector<8x32xf32>
      %72 = vector.extract_strided_slice %65 {offsets = [0, 32], sizes = [8, 32], strides = [1, 1]} : vector<8x128xf32> to vector<8x32xf32>
      %73 = arith.negf %72 : vector<8x32xf32>
      %74 = math.exp %73 : vector<8x32xf32>
      %cst_36 = arith.constant 1.000000e+00 : f32
      %75 = vector.broadcast %cst_36 : f32 to vector<8x32xf32>
      %76 = arith.addf %75, %74 : vector<8x32xf32>
      %77 = arith.divf %75, %76 : vector<8x32xf32>
      %78 = vector.extract_strided_slice %65 {offsets = [0, 64], sizes = [8, 32], strides = [1, 1]} : vector<8x128xf32> to vector<8x32xf32>
      %79 = math.tanh %78 : vector<8x32xf32>
      %80 = vector.extract_strided_slice %65 {offsets = [0, 96], sizes = [8, 32], strides = [1, 1]} : vector<8x128xf32> to vector<8x32xf32>
      %81 = arith.negf %80 : vector<8x32xf32>
      %82 = math.exp %81 : vector<8x32xf32>
      %cst_37 = arith.constant 1.000000e+00 : f32
      %83 = vector.broadcast %cst_37 : f32 to vector<8x32xf32>
      %84 = arith.addf %83, %82 : vector<8x32xf32>
      %85 = arith.divf %83, %84 : vector<8x32xf32>
      %86 = arith.mulf %77, %arg13 : vector<8x32xf32>
      %87 = arith.mulf %71, %79 : vector<8x32xf32>
      %88 = arith.addf %86, %87 : vector<8x32xf32>
      %89 = math.tanh %88 : vector<8x32xf32>
      %90 = arith.mulf %85, %89 : vector<8x32xf32>
      %91 = arith.index_cast %22 : i32 to index
      %c0_38 = arith.constant 0 : index
      %c0_39 = arith.constant 0 : index
      %92 = vector.load %arg8[%91, %c0_38, %c0_39] : memref<8x8x32xf32, #tpu.memory_space<vmem>>, vector<1x8x32xf32>
      %93 = vector.shape_cast %92 : vector<1x8x32xf32> to vector<8x32xf32>
      %94 = vector.shape_cast %90 : vector<8x32xf32> to vector<1x8x32xf32>
      tpu.vector_store %arg8[%91, %c0_38, %c0_39], %94 {strides = array<i32>} : memref<8x8x32xf32, #tpu.memory_space<vmem>>, vector<1x8x32xf32>,
      scf.yield %57, %55, %90, %88 : vector<8x32xf32>, vector<8x32xf32>, vector<8x32xf32>, vector<8x32xf32>
    }
    %c8_i32_14 = arith.constant 8 : i32
    %c0_15 = arith.constant 0 : index
    %c0_16 = arith.constant 0 : index
    %c0_17 = arith.constant 0 : index
    %18 = vector.load %arg7[%c0_15, %c0_16, %c0_17] : memref<8x8x32xf32, #tpu.memory_space<vmem>>, vector<8x8x32xf32>
    %c0_18 = arith.constant 0 : index
    %c0_19 = arith.constant 0 : index
    %c0_20 = arith.constant 0 : index
    %19 = vector.load %arg8[%c0_18, %c0_19, %c0_20] : memref<8x8x32xf32, #tpu.memory_space<vmem>>, vector<8x8x32xf32>
    %20 = tpu.concatenate %18, %19 in 2 : vector<8x8x32xf32>, vector<8x8x32xf32> -> vector<8x8x64xf32>
    %c0_21 = arith.constant 0 : index
    %c0_22 = arith.constant 0 : index
    %c0_23 = arith.constant 0 : index
    %21 = vector.load %arg5[%c0_21, %c0_22, %c0_23] : memref<8x8x64xf32, #tpu.memory_space<vmem>>, vector<8x8x64xf32>
    tpu.vector_store %arg5[%c0_21, %c0_22, %c0_23], %20 {strides = array<i32>} : memref<8x8x64xf32, #tpu.memory_space<vmem>>, vector<8x8x64xf32>,
    return
  }
}

module attributes {stable_mosaic.version = 11 : i64} {
  func.func @bilstm_kernel(%arg0: memref<8x8x64xf32, #tpu.memory_space<vmem>>, %arg1: memref<64x256xf32, #tpu.memory_space<vmem>>, %arg2: memref<1x256xf32, #tpu.memory_space<vmem>>, %arg3: memref<32x128xf32, #tpu.memory_space<vmem>>, %arg4: memref<32x128xf32, #tpu.memory_space<vmem>>, %arg5: memref<8x8x64xf32, #tpu.memory_space<vmem>>, %arg6: memref<8x8x256xf32, #tpu.memory_space<vmem>>, %arg7: memref<8x8x32xf32, #tpu.memory_space<vmem>>, %arg8: memref<8x8x32xf32, #tpu.memory_space<vmem>>) attributes {dimension_semantics = [], scalar_prefetch = 0 : i64, scratch_operands = 3 : i64, tpu.core_type = #tpu.core_type<tc>} {
    %c0 = arith.constant 0 : index
    %c0_0 = arith.constant 0 : index
    %c0_1 = arith.constant 0 : index
    %0 = vector.load %arg0[%c0, %c0_0, %c0_1] : memref<8x8x64xf32, #tpu.memory_space<vmem>>, vector<8x8x64xf32>
    %1 = vector.shape_cast %0 : vector<8x8x64xf32> to vector<64x64xf32>
    %2 = arith.truncf %1 : vector<64x64xf32> to vector<64x64xbf16>
    %c0_2 = arith.constant 0 : index
    %c0_3 = arith.constant 0 : index
    %3 = vector.load %arg1[%c0_2, %c0_3] : memref<64x256xf32, #tpu.memory_space<vmem>>, vector<64x256xf32>
    %4 = arith.truncf %3 : vector<64x256xf32> to vector<64x256xbf16>
    %cst = arith.constant dense<0.000000e+00> : vector<64x256xf32>
    %5 = tpu.matmul %2, %4, %cst {dimension_numbers = #tpu.dot_dimension_numbers<[1], [0], [0], [1], [0, 0, 1, 1], [], []>} : vector<64x64xbf16>, vector<64x256xbf16>, vector<64x256xf32> -> vector<64x256xf32>
    %c0_4 = arith.constant 0 : index
    %c0_5 = arith.constant 0 : index
    %6 = vector.load %arg2[%c0_4, %c0_5] : memref<1x256xf32, #tpu.memory_space<vmem>>, vector<1x256xf32>
    %7 = vector.broadcast %6 : vector<1x256xf32> to vector<64x256xf32>
    %8 = arith.addf %5, %7 : vector<64x256xf32>
    %9 = vector.shape_cast %8 : vector<64x256xf32> to vector<8x8x256xf32>
    %c0_6 = arith.constant 0 : index
    %c0_7 = arith.constant 0 : index
    %c0_8 = arith.constant 0 : index
    %10 = vector.load %arg6[%c0_6, %c0_7, %c0_8] : memref<8x8x256xf32, #tpu.memory_space<vmem>>, vector<8x8x256xf32>
    tpu.vector_store %arg6[%c0_6, %c0_7, %c0_8], %9 {strides = array<i32>} : memref<8x8x256xf32, #tpu.memory_space<vmem>>, vector<8x8x256xf32>,
    %c0_9 = arith.constant 0 : index
    %c0_10 = arith.constant 0 : index
    %11 = vector.load %arg3[%c0_9, %c0_10] : memref<32x128xf32, #tpu.memory_space<vmem>>, vector<32x128xf32>
    %12 = arith.truncf %11 : vector<32x128xf32> to vector<32x128xbf16>
    %c0_11 = arith.constant 0 : index
    %c0_12 = arith.constant 0 : index
    %13 = vector.load %arg4[%c0_11, %c0_12] : memref<32x128xf32, #tpu.memory_space<vmem>>, vector<32x128xf32>
    %14 = arith.truncf %13 : vector<32x128xf32> to vector<32x128xbf16>
    %cst_13 = arith.constant 0.000000e+00 : f32
    %15 = vector.broadcast %cst_13 : f32 to vector<8x32xf32>
    %c0_i32 = arith.constant 0 : i32
    %c8_i32 = arith.constant 8 : i32
    %16 = arith.addi %c0_i32, %c8_i32 : i32
    %c1_i32 = arith.constant 1 : i32
    %17:4 = scf.for %arg9 = %c0_i32 to %16 step %c1_i32 iter_args(%arg10 = %15, %arg11 = %15, %arg12 = %15, %arg13 = %15) -> (vector<8x32xf32>, vector<8x32xf32>, vector<8x32xf32>, vector<8x32xf32>)  : i32 {
      %c7_i32 = arith.constant 7 : i32
      %22 = arith.subi %c7_i32, %arg9 : i32
      %23 = arith.index_cast %arg9 : i32 to index
      %c0_24 = arith.constant 0 : index
      %c0_25 = arith.constant 0 : index
      %24 = vector.load %arg6[%23, %c0_24, %c0_25] : memref<8x8x256xf32, #tpu.memory_space<vmem>>, vector<1x8x256xf32>
      %25 = vector.shape_cast %24 : vector<1x8x256xf32> to vector<8x256xf32>
      %26 = arith.index_cast %22 : i32 to index
      %c0_26 = arith.constant 0 : index
      %c0_27 = arith.constant 0 : index
      %27 = vector.load %arg6[%26, %c0_26, %c0_27] : memref<8x8x256xf32, #tpu.memory_space<vmem>>, vector<1x8x256xf32>
      %28 = vector.shape_cast %27 : vector<1x8x256xf32> to vector<8x256xf32>
      %29 = vector.extract_strided_slice %25 {offsets = [0, 0], sizes = [8, 128], strides = [1, 1]} : vector<8x256xf32> to vector<8x128xf32>
      %30 = arith.truncf %arg10 : vector<8x32xf32> to vector<8x32xbf16>
      %cst_28 = arith.constant dense<0.000000e+00> : vector<8x128xf32>
      %31 = tpu.matmul %30, %12, %cst_28 {dimension_numbers = #tpu.dot_dimension_numbers<[1], [0], [0], [1], [0, 0, 1, 1], [], []>} : vector<8x32xbf16>, vector<32x128xbf16>, vector<8x128xf32> -> vector<8x128xf32>
      %32 = arith.addf %29, %31 : vector<8x128xf32>
      %33 = vector.extract_strided_slice %32 {offsets = [0, 0], sizes = [8, 32], strides = [1, 1]} : vector<8x128xf32> to vector<8x32xf32>
      %34 = arith.negf %33 : vector<8x32xf32>
      %35 = math.exp %34 : vector<8x32xf32>
      %cst_29 = arith.constant 1.000000e+00 : f32
      %36 = vector.broadcast %cst_29 : f32 to vector<8x32xf32>
      %37 = arith.addf %36, %35 : vector<8x32xf32>
      %38 = arith.divf %36, %37 : vector<8x32xf32>
      %39 = vector.extract_strided_slice %32 {offsets = [0, 32], sizes = [8, 32], strides = [1, 1]} : vector<8x128xf32> to vector<8x32xf32>
      %40 = arith.negf %39 : vector<8x32xf32>
      %41 = math.exp %40 : vector<8x32xf32>
      %cst_30 = arith.constant 1.000000e+00 : f32
      %42 = vector.broadcast %cst_30 : f32 to vector<8x32xf32>
      %43 = arith.addf %42, %41 : vector<8x32xf32>
      %44 = arith.divf %42, %43 : vector<8x32xf32>
      %45 = vector.extract_strided_slice %32 {offsets = [0, 64], sizes = [8, 32], strides = [1, 1]} : vector<8x128xf32> to vector<8x32xf32>
      %46 = math.tanh %45 : vector<8x32xf32>
      %47 = vector.extract_strided_slice %32 {offsets = [0, 96], sizes = [8, 32], strides = [1, 1]} : vector<8x128xf32> to vector<8x32xf32>
      %48 = arith.negf %47 : vector<8x32xf32>
      %49 = math.exp %48 : vector<8x32xf32>
      %cst_31 = arith.constant 1.000000e+00 : f32
      %50 = vector.broadcast %cst_31 : f32 to vector<8x32xf32>
      %51 = arith.addf %50, %49 : vector<8x32xf32>
      %52 = arith.divf %50, %51 : vector<8x32xf32>
      %53 = arith.mulf %44, %arg11 : vector<8x32xf32>
      %54 = arith.mulf %38, %46 : vector<8x32xf32>
      %55 = arith.addf %53, %54 : vector<8x32xf32>
      %56 = math.tanh %55 : vector<8x32xf32>
      %57 = arith.mulf %52, %56 : vector<8x32xf32>
      %58 = arith.index_cast %arg9 : i32 to index
      %c0_32 = arith.constant 0 : index
      %c0_33 = arith.constant 0 : index
      %59 = vector.load %arg7[%58, %c0_32, %c0_33] : memref<8x8x32xf32, #tpu.memory_space<vmem>>, vector<1x8x32xf32>
      %60 = vector.shape_cast %59 : vector<1x8x32xf32> to vector<8x32xf32>
      %61 = vector.shape_cast %57 : vector<8x32xf32> to vector<1x8x32xf32>
      tpu.vector_store %arg7[%58, %c0_32, %c0_33], %61 {strides = array<i32>} : memref<8x8x32xf32, #tpu.memory_space<vmem>>, vector<1x8x32xf32>,
      %62 = vector.extract_strided_slice %28 {offsets = [0, 128], sizes = [8, 128], strides = [1, 1]} : vector<8x256xf32> to vector<8x128xf32>
      %63 = arith.truncf %arg12 : vector<8x32xf32> to vector<8x32xbf16>
      %cst_34 = arith.constant dense<0.000000e+00> : vector<8x128xf32>
      %64 = tpu.matmul %63, %14, %cst_34 {dimension_numbers = #tpu.dot_dimension_numbers<[1], [0], [0], [1], [0, 0, 1, 1], [], []>} : vector<8x32xbf16>, vector<32x128xbf16>, vector<8x128xf32> -> vector<8x128xf32>
      %65 = arith.addf %62, %64 : vector<8x128xf32>
      %66 = vector.extract_strided_slice %65 {offsets = [0, 0], sizes = [8, 32], strides = [1, 1]} : vector<8x128xf32> to vector<8x32xf32>
      %67 = arith.negf %66 : vector<8x32xf32>
      %68 = math.exp %67 : vector<8x32xf32>
      %cst_35 = arith.constant 1.000000e+00 : f32
      %69 = vector.broadcast %cst_35 : f32 to vector<8x32xf32>
      %70 = arith.addf %69, %68 : vector<8x32xf32>
      %71 = arith.divf %69, %70 : vector<8x32xf32>
      %72 = vector.extract_strided_slice %65 {offsets = [0, 32], sizes = [8, 32], strides = [1, 1]} : vector<8x128xf32> to vector<8x32xf32>
      %73 = arith.negf %72 : vector<8x32xf32>
      %74 = math.exp %73 : vector<8x32xf32>
      %cst_36 = arith.constant 1.000000e+00 : f32
      %75 = vector.broadcast %cst_36 : f32 to vector<8x32xf32>
      %76 = arith.addf %75, %74 : vector<8x32xf32>
      %77 = arith.divf %75, %76 : vector<8x32xf32>
      %78 = vector.extract_strided_slice %65 {offsets = [0, 64], sizes = [8, 32], strides = [1, 1]} : vector<8x128xf32> to vector<8x32xf32>
      %79 = math.tanh %78 : vector<8x32xf32>
      %80 = vector.extract_strided_slice %65 {offsets = [0, 96], sizes = [8, 32], strides = [1, 1]} : vector<8x128xf32> to vector<8x32xf32>
      %81 = arith.negf %80 : vector<8x32xf32>
      %82 = math.exp %81 : vector<8x32xf32>
      %cst_37 = arith.constant 1.000000e+00 : f32
      %83 = vector.broadcast %cst_37 : f32 to vector<8x32xf32>
      %84 = arith.addf %83, %82 : vector<8x32xf32>
      %85 = arith.divf %83, %84 : vector<8x32xf32>
      %86 = arith.mulf %77, %arg13 : vector<8x32xf32>
      %87 = arith.mulf %71, %79 : vector<8x32xf32>
      %88 = arith.addf %86, %87 : vector<8x32xf32>
      %89 = math.tanh %88 : vector<8x32xf32>
      %90 = arith.mulf %85, %89 : vector<8x32xf32>
      %91 = arith.index_cast %22 : i32 to index
      %c0_38 = arith.constant 0 : index
      %c0_39 = arith.constant 0 : index
      %92 = vector.load %arg8[%91, %c0_38, %c0_39] : memref<8x8x32xf32, #tpu.memory_space<vmem>>, vector<1x8x32xf32>
      %93 = vector.shape_cast %92 : vector<1x8x32xf32> to vector<8x32xf32>
      %94 = vector.shape_cast %90 : vector<8x32xf32> to vector<1x8x32xf32>
      tpu.vector_store %arg8[%91, %c0_38, %c0_39], %94 {strides = array<i32>} : memref<8x8x32xf32, #tpu.memory_space<vmem>>, vector<1x8x32xf32>,
      scf.yield %57, %55, %90, %88 : vector<8x32xf32>, vector<8x32xf32>, vector<8x32xf32>, vector<8x32xf32>
    }
    %c8_i32_14 = arith.constant 8 : i32
    %c0_15 = arith.constant 0 : index
    %c0_16 = arith.constant 0 : index
    %c0_17 = arith.constant 0 : index
    %18 = vector.load %arg7[%c0_15, %c0_16, %c0_17] : memref<8x8x32xf32, #tpu.memory_space<vmem>>, vector<8x8x32xf32>
    %c0_18 = arith.constant 0 : index
    %c0_19 = arith.constant 0 : index
    %c0_20 = arith.constant 0 : index
    %19 = vector.load %arg8[%c0_18, %c0_19, %c0_20] : memref<8x8x32xf32, #tpu.memory_space<vmem>>, vector<8x8x32xf32>
    %20 = tpu.concatenate %18, %19 in 2 : vector<8x8x32xf32>, vector<8x8x32xf32> -> vector<8x8x64xf32>
    %c0_21 = arith.constant 0 : index
    %c0_22 = arith.constant 0 : index
    %c0_23 = arith.constant 0 : index
    %21 = vector.load %arg5[%c0_21, %c0_22, %c0_23] : memref<8x8x64xf32, #tpu.memory_space<vmem>>, vector<8x8x64xf32>
    tpu.vector_store %arg5[%c0_21, %c0_22, %c0_23], %20 {strides = array<i32>} : memref<8x8x64xf32, #tpu.memory_space<vmem>>, vector<8x8x64xf32>,
    return
  }
}

module attributes {stable_mosaic.version = 11 : i64} {
  func.func @enc_kernel(%arg0: i32, %arg1: memref<8x8x64xf32, #tpu.memory_space<vmem>>, %arg2: memref<64x192xf32, #tpu.memory_space<vmem>>, %arg3: memref<1x192xf32, #tpu.memory_space<vmem>>, %arg4: memref<64x64xf32, #tpu.memory_space<vmem>>, %arg5: memref<1x64xf32, #tpu.memory_space<vmem>>, %arg6: memref<1x64xf32, #tpu.memory_space<vmem>>, %arg7: memref<1x64xf32, #tpu.memory_space<vmem>>, %arg8: memref<64x32xf32, #tpu.memory_space<vmem>>, %arg9: memref<1x32xf32, #tpu.memory_space<vmem>>, %arg10: memref<32x64xf32, #tpu.memory_space<vmem>>, %arg11: memref<1x64xf32, #tpu.memory_space<vmem>>, %arg12: memref<1x64xf32, #tpu.memory_space<vmem>>, %arg13: memref<1x64xf32, #tpu.memory_space<vmem>>, %arg14: memref<8x8x64xf32, #tpu.memory_space<vmem>>) attributes {dimension_semantics = [#tpu.dimension_semantics<parallel>], iteration_bounds = array<i64: 1>, scalar_prefetch = 0 : i64, scratch_operands = 0 : i64, tpu.core_type = #tpu.core_type<tc>, window_params = [{transform_indices = @transform_0, window_bounds = array<i64: 8, 8, 64>}, {pipeline_mode = #tpu.pipeline_mode<synchronous>, transform_indices = @transform_1, window_bounds = array<i64: 64, 192>}, {pipeline_mode = #tpu.pipeline_mode<synchronous>, transform_indices = @transform_2, window_bounds = array<i64: 1, 192>}, {pipeline_mode = #tpu.pipeline_mode<synchronous>, transform_indices = @transform_3, window_bounds = array<i64: 64, 64>}, {pipeline_mode = #tpu.pipeline_mode<synchronous>, transform_indices = @transform_4, window_bounds = array<i64: 1, 64>}, {pipeline_mode = #tpu.pipeline_mode<synchronous>, transform_indices = @transform_5, window_bounds = array<i64: 1, 64>}, {pipeline_mode = #tpu.pipeline_mode<synchronous>, transform_indices = @transform_6, window_bounds = array<i64: 1, 64>}, {pipeline_mode = #tpu.pipeline_mode<synchronous>, transform_indices = @transform_7, window_bounds = array<i64: 64, 32>}, {pipeline_mode = #tpu.pipeline_mode<synchronous>, transform_indices = @transform_8, window_bounds = array<i64: 1, 32>}, {pipeline_mode = #tpu.pipeline_mode<synchronous>, transform_indices = @transform_9, window_bounds = array<i64: 32, 64>}, {pipeline_mode = #tpu.pipeline_mode<synchronous>, transform_indices = @transform_10, window_bounds = array<i64: 1, 64>}, {pipeline_mode = #tpu.pipeline_mode<synchronous>, transform_indices = @transform_11, window_bounds = array<i64: 1, 64>}, {pipeline_mode = #tpu.pipeline_mode<synchronous>, transform_indices = @transform_12, window_bounds = array<i64: 1, 64>}, {transform_indices = @transform_13, window_bounds = array<i64: 8, 8, 64>}]} {
    %c0 = arith.constant 0 : index
    %c0_0 = arith.constant 0 : index
    %c0_1 = arith.constant 0 : index
    %0 = vector.load %arg1[%c0, %c0_0, %c0_1] : memref<8x8x64xf32, #tpu.memory_space<vmem>>, vector<8x8x64xf32>
    %1 = vector.shape_cast %0 : vector<8x8x64xf32> to vector<64x64xf32>
    %2 = arith.truncf %1 : vector<64x64xf32> to vector<64x64xbf16>
    %c0_2 = arith.constant 0 : index
    %c0_3 = arith.constant 0 : index
    %3 = vector.load %arg2[%c0_2, %c0_3] : memref<64x192xf32, #tpu.memory_space<vmem>>, vector<64x192xf32>
    %4 = arith.truncf %3 : vector<64x192xf32> to vector<64x192xbf16>
    %cst = arith.constant dense<0.000000e+00> : vector<64x192xf32>
    %5 = tpu.matmul %2, %4, %cst {dimension_numbers = #tpu.dot_dimension_numbers<[1], [0], [0], [1], [0, 0, 1, 1], [], []>} : vector<64x64xbf16>, vector<64x192xbf16>, vector<64x192xf32> -> vector<64x192xf32>
    %c0_4 = arith.constant 0 : index
    %c0_5 = arith.constant 0 : index
    %6 = vector.load %arg3[%c0_4, %c0_5] : memref<1x192xf32, #tpu.memory_space<vmem>>, vector<1x192xf32>
    %7 = vector.broadcast %6 : vector<1x192xf32> to vector<64x192xf32>
    %8 = arith.addf %5, %7 : vector<64x192xf32>
    %9 = vector.extract_strided_slice %8 {offsets = [0, 0], sizes = [64, 64], strides = [1, 1]} : vector<64x192xf32> to vector<64x64xf32>
    %cst_6 = arith.constant 2.500000e-01 : f32
    %10 = vector.broadcast %cst_6 : f32 to vector<64x64xf32>
    %11 = arith.mulf %9, %10 : vector<64x64xf32>
    %12 = vector.shape_cast %11 : vector<64x64xf32> to vector<8x8x64xf32>
    %13 = vector.extract_strided_slice %8 {offsets = [0, 64], sizes = [64, 64], strides = [1, 1]} : vector<64x192xf32> to vector<64x64xf32>
    %14 = vector.shape_cast %13 : vector<64x64xf32> to vector<8x8x64xf32>
    %15 = vector.extract_strided_slice %8 {offsets = [0, 128], sizes = [64, 64], strides = [1, 1]} : vector<64x192xf32> to vector<64x64xf32>
    %16 = vector.shape_cast %15 : vector<64x64xf32> to vector<8x8x64xf32>
    %17 = vector.extract_strided_slice %12 {offsets = [0, 0, 0], sizes = [8, 8, 16], strides = [1, 1, 1]} : vector<8x8x64xf32> to vector<8x8x16xf32>
    %18 = arith.truncf %17 : vector<8x8x16xf32> to vector<8x8x16xbf16>
    %19 = vector.extract_strided_slice %14 {offsets = [0, 0, 0], sizes = [8, 8, 16], strides = [1, 1, 1]} : vector<8x8x64xf32> to vector<8x8x16xf32>
    %20 = arith.truncf %19 : vector<8x8x16xf32> to vector<8x8x16xbf16>
    %21 = vector.extract_strided_slice %16 {offsets = [0, 0, 0], sizes = [8, 8, 16], strides = [1, 1, 1]} : vector<8x8x64xf32> to vector<8x8x16xf32>
    %22 = arith.truncf %21 : vector<8x8x16xf32> to vector<8x8x16xbf16>
    "tpu.trace_start"() <{level = 10 : i32, message = "bqe,bke->bqk"}> : () -> ()
    %cst_7 = arith.constant dense<0.000000e+00> : vector<8x8x8xf32>
    %23 = tpu.matmul %18, %20, %cst_7 {dimension_numbers = #tpu.dot_dimension_numbers<[2], [2], [1], [1], [0, 0, 0, 1, 1, 1], [0], [0]>} : vector<8x8x16xbf16>, vector<8x8x16xbf16>, vector<8x8x8xf32> -> vector<8x8x8xf32>
    "tpu.trace_stop"() : () -> ()
    %cst_8 = arith.constant dense<0xFF800000> : vector<8x8xf32>
    %24 = vector.multi_reduction <maximumf>, %23, %cst_8 [2] : vector<8x8x8xf32> to vector<8x8xf32>
    %25 = vector.shape_cast %24 : vector<8x8xf32> to vector<8x8x1xf32>
    %26 = vector.broadcast %25 : vector<8x8x1xf32> to vector<8x8x8xf32>
    %27 = arith.subf %23, %26 : vector<8x8x8xf32>
    %28 = math.exp %27 : vector<8x8x8xf32>
    %cst_9 = arith.constant dense<0.000000e+00> : vector<8x8xf32>
    %29 = vector.multi_reduction <add>, %28, %cst_9 [2] : vector<8x8x8xf32> to vector<8x8xf32>
    %30 = vector.shape_cast %29 : vector<8x8xf32> to vector<8x8x1xf32>
    %31 = tpu.reciprocal %30 {approx = true} : vector<8x8x1xf32> -> vector<8x8x1xf32>
    %32 = vector.broadcast %31 : vector<8x8x1xf32> to vector<8x8x8xf32>
    %33 = arith.mulf %28, %32 : vector<8x8x8xf32>
    %34 = arith.truncf %33 : vector<8x8x8xf32> to vector<8x8x8xbf16>
    "tpu.trace_start"() <{level = 10 : i32, message = "bqk,bke->bqe"}> : () -> ()
    %cst_10 = arith.constant dense<0.000000e+00> : vector<8x8x16xf32>
    %35 = tpu.matmul %34, %22, %cst_10 {dimension_numbers = #tpu.dot_dimension_numbers<[2], [1], [1], [2], [0, 0, 0, 1, 1, 2], [0], [0]>} : vector<8x8x8xbf16>, vector<8x8x16xbf16>, vector<8x8x16xf32> -> vector<8x8x16xf32>
    "tpu.trace_stop"() : () -> ()
    %36 = vector.extract_strided_slice %12 {offsets = [0, 0, 16], sizes = [8, 8, 16], strides = [1, 1, 1]} : vector<8x8x64xf32> to vector<8x8x16xf32>
    %37 = arith.truncf %36 : vector<8x8x16xf32> to vector<8x8x16xbf16>
    %38 = vector.extract_strided_slice %14 {offsets = [0, 0, 16], sizes = [8, 8, 16], strides = [1, 1, 1]} : vector<8x8x64xf32> to vector<8x8x16xf32>
    %39 = arith.truncf %38 : vector<8x8x16xf32> to vector<8x8x16xbf16>
    %40 = vector.extract_strided_slice %16 {offsets = [0, 0, 16], sizes = [8, 8, 16], strides = [1, 1, 1]} : vector<8x8x64xf32> to vector<8x8x16xf32>
    %41 = arith.truncf %40 : vector<8x8x16xf32> to vector<8x8x16xbf16>
    "tpu.trace_start"() <{level = 10 : i32, message = "bqe,bke->bqk"}> : () -> ()
    %cst_11 = arith.constant dense<0.000000e+00> : vector<8x8x8xf32>
    %42 = tpu.matmul %37, %39, %cst_11 {dimension_numbers = #tpu.dot_dimension_numbers<[2], [2], [1], [1], [0, 0, 0, 1, 1, 1], [0], [0]>} : vector<8x8x16xbf16>, vector<8x8x16xbf16>, vector<8x8x8xf32> -> vector<8x8x8xf32>
    "tpu.trace_stop"() : () -> ()
    %cst_12 = arith.constant dense<0xFF800000> : vector<8x8xf32>
    %43 = vector.multi_reduction <maximumf>, %42, %cst_12 [2] : vector<8x8x8xf32> to vector<8x8xf32>
    %44 = vector.shape_cast %43 : vector<8x8xf32> to vector<8x8x1xf32>
    %45 = vector.broadcast %44 : vector<8x8x1xf32> to vector<8x8x8xf32>
    %46 = arith.subf %42, %45 : vector<8x8x8xf32>
    %47 = math.exp %46 : vector<8x8x8xf32>
    %cst_13 = arith.constant dense<0.000000e+00> : vector<8x8xf32>
    %48 = vector.multi_reduction <add>, %47, %cst_13 [2] : vector<8x8x8xf32> to vector<8x8xf32>
    %49 = vector.shape_cast %48 : vector<8x8xf32> to vector<8x8x1xf32>
    %50 = tpu.reciprocal %49 {approx = true} : vector<8x8x1xf32> -> vector<8x8x1xf32>
    %51 = vector.broadcast %50 : vector<8x8x1xf32> to vector<8x8x8xf32>
    %52 = arith.mulf %47, %51 : vector<8x8x8xf32>
    %53 = arith.truncf %52 : vector<8x8x8xf32> to vector<8x8x8xbf16>
    "tpu.trace_start"() <{level = 10 : i32, message = "bqk,bke->bqe"}> : () -> ()
    %cst_14 = arith.constant dense<0.000000e+00> : vector<8x8x16xf32>
    %54 = tpu.matmul %53, %41, %cst_14 {dimension_numbers = #tpu.dot_dimension_numbers<[2], [1], [1], [2], [0, 0, 0, 1, 1, 2], [0], [0]>} : vector<8x8x8xbf16>, vector<8x8x16xbf16>, vector<8x8x16xf32> -> vector<8x8x16xf32>
    "tpu.trace_stop"() : () -> ()
    %55 = vector.extract_strided_slice %12 {offsets = [0, 0, 32], sizes = [8, 8, 16], strides = [1, 1, 1]} : vector<8x8x64xf32> to vector<8x8x16xf32>
    %56 = arith.truncf %55 : vector<8x8x16xf32> to vector<8x8x16xbf16>
    %57 = vector.extract_strided_slice %14 {offsets = [0, 0, 32], sizes = [8, 8, 16], strides = [1, 1, 1]} : vector<8x8x64xf32> to vector<8x8x16xf32>
    %58 = arith.truncf %57 : vector<8x8x16xf32> to vector<8x8x16xbf16>
    %59 = vector.extract_strided_slice %16 {offsets = [0, 0, 32], sizes = [8, 8, 16], strides = [1, 1, 1]} : vector<8x8x64xf32> to vector<8x8x16xf32>
    %60 = arith.truncf %59 : vector<8x8x16xf32> to vector<8x8x16xbf16>
    "tpu.trace_start"() <{level = 10 : i32, message = "bqe,bke->bqk"}> : () -> ()
    %cst_15 = arith.constant dense<0.000000e+00> : vector<8x8x8xf32>
    %61 = tpu.matmul %56, %58, %cst_15 {dimension_numbers = #tpu.dot_dimension_numbers<[2], [2], [1], [1], [0, 0, 0, 1, 1, 1], [0], [0]>} : vector<8x8x16xbf16>, vector<8x8x16xbf16>, vector<8x8x8xf32> -> vector<8x8x8xf32>
    "tpu.trace_stop"() : () -> ()
    %cst_16 = arith.constant dense<0xFF800000> : vector<8x8xf32>
    %62 = vector.multi_reduction <maximumf>, %61, %cst_16 [2] : vector<8x8x8xf32> to vector<8x8xf32>
    %63 = vector.shape_cast %62 : vector<8x8xf32> to vector<8x8x1xf32>
    %64 = vector.broadcast %63 : vector<8x8x1xf32> to vector<8x8x8xf32>
    %65 = arith.subf %61, %64 : vector<8x8x8xf32>
    %66 = math.exp %65 : vector<8x8x8xf32>
    %cst_17 = arith.constant dense<0.000000e+00> : vector<8x8xf32>
    %67 = vector.multi_reduction <add>, %66, %cst_17 [2] : vector<8x8x8xf32> to vector<8x8xf32>
    %68 = vector.shape_cast %67 : vector<8x8xf32> to vector<8x8x1xf32>
    %69 = tpu.reciprocal %68 {approx = true} : vector<8x8x1xf32> -> vector<8x8x1xf32>
    %70 = vector.broadcast %69 : vector<8x8x1xf32> to vector<8x8x8xf32>
    %71 = arith.mulf %66, %70 : vector<8x8x8xf32>
    %72 = arith.truncf %71 : vector<8x8x8xf32> to vector<8x8x8xbf16>
    "tpu.trace_start"() <{level = 10 : i32, message = "bqk,bke->bqe"}> : () -> ()
    %cst_18 = arith.constant dense<0.000000e+00> : vector<8x8x16xf32>
    %73 = tpu.matmul %72, %60, %cst_18 {dimension_numbers = #tpu.dot_dimension_numbers<[2], [1], [1], [2], [0, 0, 0, 1, 1, 2], [0], [0]>} : vector<8x8x8xbf16>, vector<8x8x16xbf16>, vector<8x8x16xf32> -> vector<8x8x16xf32>
    "tpu.trace_stop"() : () -> ()
    %74 = vector.extract_strided_slice %12 {offsets = [0, 0, 48], sizes = [8, 8, 16], strides = [1, 1, 1]} : vector<8x8x64xf32> to vector<8x8x16xf32>
    %75 = arith.truncf %74 : vector<8x8x16xf32> to vector<8x8x16xbf16>
    %76 = vector.extract_strided_slice %14 {offsets = [0, 0, 48], sizes = [8, 8, 16], strides = [1, 1, 1]} : vector<8x8x64xf32> to vector<8x8x16xf32>
    %77 = arith.truncf %76 : vector<8x8x16xf32> to vector<8x8x16xbf16>
    %78 = vector.extract_strided_slice %16 {offsets = [0, 0, 48], sizes = [8, 8, 16], strides = [1, 1, 1]} : vector<8x8x64xf32> to vector<8x8x16xf32>
    %79 = arith.truncf %78 : vector<8x8x16xf32> to vector<8x8x16xbf16>
    "tpu.trace_start"() <{level = 10 : i32, message = "bqe,bke->bqk"}> : () -> ()
    %cst_19 = arith.constant dense<0.000000e+00> : vector<8x8x8xf32>
    %80 = tpu.matmul %75, %77, %cst_19 {dimension_numbers = #tpu.dot_dimension_numbers<[2], [2], [1], [1], [0, 0, 0, 1, 1, 1], [0], [0]>} : vector<8x8x16xbf16>, vector<8x8x16xbf16>, vector<8x8x8xf32> -> vector<8x8x8xf32>
    "tpu.trace_stop"() : () -> ()
    %cst_20 = arith.constant dense<0xFF800000> : vector<8x8xf32>
    %81 = vector.multi_reduction <maximumf>, %80, %cst_20 [2] : vector<8x8x8xf32> to vector<8x8xf32>
    %82 = vector.shape_cast %81 : vector<8x8xf32> to vector<8x8x1xf32>
    %83 = vector.broadcast %82 : vector<8x8x1xf32> to vector<8x8x8xf32>
    %84 = arith.subf %80, %83 : vector<8x8x8xf32>
    %85 = math.exp %84 : vector<8x8x8xf32>
    %cst_21 = arith.constant dense<0.000000e+00> : vector<8x8xf32>
    %86 = vector.multi_reduction <add>, %85, %cst_21 [2] : vector<8x8x8xf32> to vector<8x8xf32>
    %87 = vector.shape_cast %86 : vector<8x8xf32> to vector<8x8x1xf32>
    %88 = tpu.reciprocal %87 {approx = true} : vector<8x8x1xf32> -> vector<8x8x1xf32>
    %89 = vector.broadcast %88 : vector<8x8x1xf32> to vector<8x8x8xf32>
    %90 = arith.mulf %85, %89 : vector<8x8x8xf32>
    %91 = arith.truncf %90 : vector<8x8x8xf32> to vector<8x8x8xbf16>
    "tpu.trace_start"() <{level = 10 : i32, message = "bqk,bke->bqe"}> : () -> ()
    %cst_22 = arith.constant dense<0.000000e+00> : vector<8x8x16xf32>
    %92 = tpu.matmul %91, %79, %cst_22 {dimension_numbers = #tpu.dot_dimension_numbers<[2], [1], [1], [2], [0, 0, 0, 1, 1, 2], [0], [0]>} : vector<8x8x8xbf16>, vector<8x8x16xbf16>, vector<8x8x16xf32> -> vector<8x8x16xf32>
    "tpu.trace_stop"() : () -> ()
    %93 = tpu.concatenate %35, %54, %73, %92 in 2 : vector<8x8x16xf32>, vector<8x8x16xf32>, vector<8x8x16xf32>, vector<8x8x16xf32> -> vector<8x8x64xf32>
    %94 = vector.shape_cast %93 : vector<8x8x64xf32> to vector<64x64xf32>
    %95 = arith.truncf %94 : vector<64x64xf32> to vector<64x64xbf16>
    %c0_23 = arith.constant 0 : index
    %c0_24 = arith.constant 0 : index
    %96 = vector.load %arg4[%c0_23, %c0_24] : memref<64x64xf32, #tpu.memory_space<vmem>>, vector<64x64xf32>
    %97 = arith.truncf %96 : vector<64x64xf32> to vector<64x64xbf16>
    %cst_25 = arith.constant dense<0.000000e+00> : vector<64x64xf32>
    %98 = tpu.matmul %95, %97, %cst_25 {dimension_numbers = #tpu.dot_dimension_numbers<[1], [0], [0], [1], [0, 0, 1, 1], [], []>} : vector<64x64xbf16>, vector<64x64xbf16>, vector<64x64xf32> -> vector<64x64xf32>
    %c0_26 = arith.constant 0 : index
    %c0_27 = arith.constant 0 : index
    %99 = vector.load %arg5[%c0_26, %c0_27] : memref<1x64xf32, #tpu.memory_space<vmem>>, vector<1x64xf32>
    %100 = vector.broadcast %99 : vector<1x64xf32> to vector<64x64xf32>
    %101 = arith.addf %98, %100 : vector<64x64xf32>
    %102 = arith.addf %1, %101 : vector<64x64xf32>
    %c0_28 = arith.constant 0 : index
    %c0_29 = arith.constant 0 : index
    %103 = vector.load %arg6[%c0_28, %c0_29] : memref<1x64xf32, #tpu.memory_space<vmem>>, vector<1x64xf32>
    %c0_30 = arith.constant 0 : index
    %c0_31 = arith.constant 0 : index
    %104 = vector.load %arg7[%c0_30, %c0_31] : memref<1x64xf32, #tpu.memory_space<vmem>>, vector<1x64xf32>
    %cst_32 = arith.constant dense<0.000000e+00> : vector<64xf32>
    %105 = vector.multi_reduction <add>, %102, %cst_32 [1] : vector<64x64xf32> to vector<64xf32>
    %106 = vector.shape_cast %105 : vector<64xf32> to vector<64x1xf32>
    %cst_33 = arith.constant 6.400000e+01 : f32
    %107 = vector.broadcast %cst_33 : f32 to vector<64x1xf32>
    %108 = arith.divf %106, %107 : vector<64x1xf32>
    %109 = vector.broadcast %108 : vector<64x1xf32> to vector<64x64xf32>
    %110 = arith.subf %102, %109 : vector<64x64xf32>
    %111 = arith.mulf %110, %110 : vector<64x64xf32>
    %cst_34 = arith.constant dense<0.000000e+00> : vector<64xf32>
    %112 = vector.multi_reduction <add>, %111, %cst_34 [1] : vector<64x64xf32> to vector<64xf32>
    %113 = vector.shape_cast %112 : vector<64xf32> to vector<64x1xf32>
    %cst_35 = arith.constant 6.400000e+01 : f32
    %114 = vector.broadcast %cst_35 : f32 to vector<64x1xf32>
    %115 = arith.divf %113, %114 : vector<64x1xf32>
    %116 = vector.broadcast %108 : vector<64x1xf32> to vector<64x64xf32>
    %117 = arith.subf %102, %116 : vector<64x64xf32>
    %cst_36 = arith.constant 9.99999974E-6 : f32
    %118 = vector.broadcast %cst_36 : f32 to vector<64x1xf32>
    %119 = arith.addf %115, %118 : vector<64x1xf32>
    %120 = math.rsqrt %119 : vector<64x1xf32>
    %121 = vector.broadcast %120 : vector<64x1xf32> to vector<64x64xf32>
    %122 = arith.mulf %117, %121 : vector<64x64xf32>
    %123 = vector.broadcast %103 : vector<1x64xf32> to vector<64x64xf32>
    %124 = arith.mulf %122, %123 : vector<64x64xf32>
    %125 = vector.broadcast %104 : vector<1x64xf32> to vector<64x64xf32>
    %126 = arith.addf %124, %125 : vector<64x64xf32>
    %127 = arith.truncf %126 : vector<64x64xf32> to vector<64x64xbf16>
    %c0_37 = arith.constant 0 : index
    %c0_38 = arith.constant 0 : index
    %128 = vector.load %arg8[%c0_37, %c0_38] : memref<64x32xf32, #tpu.memory_space<vmem>>, vector<64x32xf32>
    %129 = arith.truncf %128 : vector<64x32xf32> to vector<64x32xbf16>
    %cst_39 = arith.constant dense<0.000000e+00> : vector<64x32xf32>
    %130 = tpu.matmul %127, %129, %cst_39 {dimension_numbers = #tpu.dot_dimension_numbers<[1], [0], [0], [1], [0, 0, 1, 1], [], []>} : vector<64x64xbf16>, vector<64x32xbf16>, vector<64x32xf32> -> vector<64x32xf32>
    %c0_40 = arith.constant 0 : index
    %c0_41 = arith.constant 0 : index
    %131 = vector.load %arg9[%c0_40, %c0_41] : memref<1x32xf32, #tpu.memory_space<vmem>>, vector<1x32xf32>
    %132 = vector.broadcast %131 : vector<1x32xf32> to vector<64x32xf32>
    %133 = arith.addf %130, %132 : vector<64x32xf32>
    %cst_42 = arith.constant 0.000000e+00 : f32
    %134 = vector.broadcast %cst_42 : f32 to vector<64x32xf32>
    %135 = arith.maximumf %133, %134 : vector<64x32xf32>
    %136 = arith.truncf %135 : vector<64x32xf32> to vector<64x32xbf16>
    %c0_43 = arith.constant 0 : index
    %c0_44 = arith.constant 0 : index
    %137 = vector.load %arg10[%c0_43, %c0_44] : memref<32x64xf32, #tpu.memory_space<vmem>>, vector<32x64xf32>
    %138 = arith.truncf %137 : vector<32x64xf32> to vector<32x64xbf16>
    %cst_45 = arith.constant dense<0.000000e+00> : vector<64x64xf32>
    %139 = tpu.matmul %136, %138, %cst_45 {dimension_numbers = #tpu.dot_dimension_numbers<[1], [0], [0], [1], [0, 0, 1, 1], [], []>} : vector<64x32xbf16>, vector<32x64xbf16>, vector<64x64xf32> -> vector<64x64xf32>
    %c0_46 = arith.constant 0 : index
    %c0_47 = arith.constant 0 : index
    %140 = vector.load %arg11[%c0_46, %c0_47] : memref<1x64xf32, #tpu.memory_space<vmem>>, vector<1x64xf32>
    %141 = vector.broadcast %140 : vector<1x64xf32> to vector<64x64xf32>
    %142 = arith.addf %139, %141 : vector<64x64xf32>
    %143 = arith.addf %126, %142 : vector<64x64xf32>
    %c0_48 = arith.constant 0 : index
    %c0_49 = arith.constant 0 : index
    %144 = vector.load %arg12[%c0_48, %c0_49] : memref<1x64xf32, #tpu.memory_space<vmem>>, vector<1x64xf32>
    %c0_50 = arith.constant 0 : index
    %c0_51 = arith.constant 0 : index
    %145 = vector.load %arg13[%c0_50, %c0_51] : memref<1x64xf32, #tpu.memory_space<vmem>>, vector<1x64xf32>
    %cst_52 = arith.constant dense<0.000000e+00> : vector<64xf32>
    %146 = vector.multi_reduction <add>, %143, %cst_52 [1] : vector<64x64xf32> to vector<64xf32>
    %147 = vector.shape_cast %146 : vector<64xf32> to vector<64x1xf32>
    %cst_53 = arith.constant 6.400000e+01 : f32
    %148 = vector.broadcast %cst_53 : f32 to vector<64x1xf32>
    %149 = arith.divf %147, %148 : vector<64x1xf32>
    %150 = vector.broadcast %149 : vector<64x1xf32> to vector<64x64xf32>
    %151 = arith.subf %143, %150 : vector<64x64xf32>
    %152 = arith.mulf %151, %151 : vector<64x64xf32>
    %cst_54 = arith.constant dense<0.000000e+00> : vector<64xf32>
    %153 = vector.multi_reduction <add>, %152, %cst_54 [1] : vector<64x64xf32> to vector<64xf32>
    %154 = vector.shape_cast %153 : vector<64xf32> to vector<64x1xf32>
    %cst_55 = arith.constant 6.400000e+01 : f32
    %155 = vector.broadcast %cst_55 : f32 to vector<64x1xf32>
    %156 = arith.divf %154, %155 : vector<64x1xf32>
    %157 = vector.broadcast %149 : vector<64x1xf32> to vector<64x64xf32>
    %158 = arith.subf %143, %157 : vector<64x64xf32>
    %cst_56 = arith.constant 9.99999974E-6 : f32
    %159 = vector.broadcast %cst_56 : f32 to vector<64x1xf32>
    %160 = arith.addf %156, %159 : vector<64x1xf32>
    %161 = math.rsqrt %160 : vector<64x1xf32>
    %162 = vector.broadcast %161 : vector<64x1xf32> to vector<64x64xf32>
    %163 = arith.mulf %158, %162 : vector<64x64xf32>
    %164 = vector.broadcast %144 : vector<1x64xf32> to vector<64x64xf32>
    %165 = arith.mulf %163, %164 : vector<64x64xf32>
    %166 = vector.broadcast %145 : vector<1x64xf32> to vector<64x64xf32>
    %167 = arith.addf %165, %166 : vector<64x64xf32>
    %168 = vector.shape_cast %167 : vector<64x64xf32> to vector<8x8x64xf32>
    %c0_57 = arith.constant 0 : index
    %c0_58 = arith.constant 0 : index
    %c0_59 = arith.constant 0 : index
    %169 = vector.load %arg14[%c0_57, %c0_58, %c0_59] : memref<8x8x64xf32, #tpu.memory_space<vmem>>, vector<8x8x64xf32>
    tpu.vector_store %arg14[%c0_57, %c0_58, %c0_59], %168 {strides = array<i32>} : memref<8x8x64xf32, #tpu.memory_space<vmem>>, vector<8x8x64xf32>,
    return
  }
  func.func @transform_0(%arg0: i32) -> (i32, i32, i32) {
    %c0_i32 = arith.constant 0 : i32
    %c0_i32_0 = arith.constant 0 : i32
    %c0_i32_1 = arith.constant 0 : i32
    return %arg0, %c0_i32, %c0_i32_0 : i32, i32, i32
  }
  func.func @transform_1(%arg0: i32) -> (i32, i32) {
    %c0_i32 = arith.constant 0 : i32
    %c0_i32_0 = arith.constant 0 : i32
    %c0_i32_1 = arith.constant 0 : i32
    return %c0_i32, %c0_i32_0 : i32, i32
  }
  func.func @transform_2(%arg0: i32) -> (i32, i32) {
    %c0_i32 = arith.constant 0 : i32
    %c0_i32_0 = arith.constant 0 : i32
    %c0_i32_1 = arith.constant 0 : i32
    return %c0_i32, %c0_i32_0 : i32, i32
  }
  func.func @transform_3(%arg0: i32) -> (i32, i32) {
    %c0_i32 = arith.constant 0 : i32
    %c0_i32_0 = arith.constant 0 : i32
    %c0_i32_1 = arith.constant 0 : i32
    return %c0_i32, %c0_i32_0 : i32, i32
  }
  func.func @transform_4(%arg0: i32) -> (i32, i32) {
    %c0_i32 = arith.constant 0 : i32
    %c0_i32_0 = arith.constant 0 : i32
    %c0_i32_1 = arith.constant 0 : i32
    return %c0_i32, %c0_i32_0 : i32, i32
  }
  func.func @transform_5(%arg0: i32) -> (i32, i32) {
    %c0_i32 = arith.constant 0 : i32
    %c0_i32_0 = arith.constant 0 : i32
    %c0_i32_1 = arith.constant 0 : i32
    return %c0_i32, %c0_i32_0 : i32, i32
  }
  func.func @transform_6(%arg0: i32) -> (i32, i32) {
    %c0_i32 = arith.constant 0 : i32
    %c0_i32_0 = arith.constant 0 : i32
    %c0_i32_1 = arith.constant 0 : i32
    return %c0_i32, %c0_i32_0 : i32, i32
  }
  func.func @transform_7(%arg0: i32) -> (i32, i32) {
    %c0_i32 = arith.constant 0 : i32
    %c0_i32_0 = arith.constant 0 : i32
    %c0_i32_1 = arith.constant 0 : i32
    return %c0_i32, %c0_i32_0 : i32, i32
  }
  func.func @transform_8(%arg0: i32) -> (i32, i32) {
    %c0_i32 = arith.constant 0 : i32
    %c0_i32_0 = arith.constant 0 : i32
    %c0_i32_1 = arith.constant 0 : i32
    return %c0_i32, %c0_i32_0 : i32, i32
  }
  func.func @transform_9(%arg0: i32) -> (i32, i32) {
    %c0_i32 = arith.constant 0 : i32
    %c0_i32_0 = arith.constant 0 : i32
    %c0_i32_1 = arith.constant 0 : i32
    return %c0_i32, %c0_i32_0 : i32, i32
  }
  func.func @transform_10(%arg0: i32) -> (i32, i32) {
    %c0_i32 = arith.constant 0 : i32
    %c0_i32_0 = arith.constant 0 : i32
    %c0_i32_1 = arith.constant 0 : i32
    return %c0_i32, %c0_i32_0 : i32, i32
  }
  func.func @transform_11(%arg0: i32) -> (i32, i32) {
    %c0_i32 = arith.constant 0 : i32
    %c0_i32_0 = arith.constant 0 : i32
    %c0_i32_1 = arith.constant 0 : i32
    return %c0_i32, %c0_i32_0 : i32, i32
  }
  func.func @transform_12(%arg0: i32) -> (i32, i32) {
    %c0_i32 = arith.constant 0 : i32
    %c0_i32_0 = arith.constant 0 : i32
    %c0_i32_1 = arith.constant 0 : i32
    return %c0_i32, %c0_i32_0 : i32, i32
  }
  func.func @transform_13(%arg0: i32) -> (i32, i32, i32) {
    %c0_i32 = arith.constant 0 : i32
    %c0_i32_0 = arith.constant 0 : i32
    %c0_i32_1 = arith.constant 0 : i32
    return %arg0, %c0_i32, %c0_i32_0 : i32, i32, i32
  }
}

</mosaic_0001>

<llo_original>
// kernel: bilstm_att_forward.4
$region0: #{bilstm_att_forward.4}
  #allocation0 [shape = 'u32[]', space=smem, size = 0x4, offset = 0x4, fixed_abs, tag = 'smem constant byte address 0x4 - core index']
  #allocation1 [shape = 'u32[144,128]{1,0:T(1,128)}', space=vmem, size = 0x12000, scoped, tag = 'internal scratch']
  #allocation2 [shape = 'f32[8,8,256]{2,1,0:T(8,128)}', space=vmem, size = 0x10000, scoped, tag = 'scratch operand']
  #allocation3 [shape = 'f32[8,8,32]{2,1,0:T(8,128)}', space=vmem, size = 0x8000, scoped, tag = 'scratch operand']
  #allocation4 [shape = 'f32[8,8,32]{2,1,0:T(8,128)}', space=vmem, size = 0x8000, scoped, tag = 'scratch operand']
  %s0 = inlined_call_operand.hbm [shape: f32[8,8,16], index: 0, kind: input, shape index: {}]
  %s1 = inlined_call_operand.hbm [shape: f32[16,256], index: 1, kind: input, shape index: {}]
  %s2 = inlined_call_operand.hbm [shape: f32[1,256], index: 2, kind: input, shape index: {}]
  %s3 = inlined_call_operand.hbm [shape: f32[32,128], index: 3, kind: input, shape index: {}]
  %s4 = inlined_call_operand.hbm [shape: f32[32,128], index: 4, kind: input, shape index: {}]
  %s5 = inlined_call_operand.hbm [shape: f32[8,8,64], index: 5, kind: output, shape index: {}]
  %s6 = sld [smem:[#allocation0]]
  $region57: #{bilstm_att_forward.4} parent=0
    _
  %s8 = ssub.s32 1, %s6
  %s9 = scalar_select 0, %s8, %s6
  $region1: #{bilstm_att_forward.4} parent=0
    #allocation5 [shape = 'u8[32768]{0}', space=vmem, size = 0x8000, scoped, tag = 'input window, operand 0, single buffered']
    #allocation6 [shape = 's32[1]{0}', space=sflag, size = 0x4, scoped, tag = 'scoped memory for bilstm_att_forward.4']
    #allocation7 [shape = 's32[1]{0}', space=sflag, size = 0x4, scoped, tag = 'scoped memory for bilstm_att_forward.4']
    #allocation8 [shape = 'u8[16384]{0}', space=vmem, size = 0x4000, scoped, tag = 'input window, operand 1, single buffered']
    #allocation9 [shape = 's32[1]{0}', space=sflag, size = 0x4, scoped, tag = 'scoped memory for bilstm_att_forward.4']
    #allocation10 [shape = 'u8[1024]{0}', space=vmem, size = 0x400, scoped, tag = 'input window, operand 2, single buffered']
    #allocation11 [shape = 'u8[16384]{0}', space=vmem, size = 0x4000, scoped, tag = 'input window, operand 3, single buffered']
    #allocation12 [shape = 's32[1]{0}', space=sflag, size = 0x4, scoped, tag = 'scoped memory for bilstm_att_forward.4']
    #allocation13 [shape = 'u8[16384]{0}', space=vmem, size = 0x4000, scoped, tag = 'input window, operand 4, single buffered']
    #allocation14 [shape = 'u8[32768]{0}', space=vmem, size = 0x8000, scoped, tag = 'output window, operand 0, single buffered']
    %10 = vsyncpa [#allocation6], 0
    %11 = vsyncpa [#allocation9], 0
    %12 = vsyncpa [#allocation12], 0
    %13 = vsyncpa [#allocation7], 0
    // Predicated region
    $region2: #{bilstm_att_forward.4} parent=1 // pred_check
      _
    $region3: #{bilstm_att_forward.4} parent=1 // pred_check_branch
      %15 = sbr.rel (0) target = $region5
    $region4: #{bilstm_att_forward.4} parent=1 // pred_region
      %s17 = ssub.s32 1024, 1024
      %18 = vsyncadd [#allocation6], %s17
      %s19 = sshll.u32 [#allocation5], 4
      %s20 = int_to_ptr.vmem [resolvable:$true] %s19
      %25 = dma.hbm_to_vmem [thread:$0]  %s0, 1024, %s20, [#allocation6], 128, 128, 8
    $region5: #{bilstm_att_forward.4} parent=1 // pred_fallthru
      _
    // Predicated region
    $region6: #{bilstm_att_forward.4} parent=1 // pred_check
      _
    $region7: #{bilstm_att_forward.4} parent=1 // pred_check_branch
      %27 = sbr.rel (0) target = $region9
    $region8: #{bilstm_att_forward.4} parent=1 // pred_region
      %s29 = ssub.s32 512, 512
      %30 = vsyncadd [#allocation9], %s29
      %s31 = sshll.u32 [#allocation8], 4
      %s32 = int_to_ptr.vmem [resolvable:$true] %s31
      %37 = dma.hbm_to_vmem [thread:$0]  %s1, 512, %s32, [#allocation9], 256, 256, 16
    $region9: #{bilstm_att_forward.4} parent=1 // pred_fallthru
      _
    // Predicated region
    $region10: #{bilstm_att_forward.4} parent=1 // pred_check
      _
    $region11: #{bilstm_att_forward.4} parent=1 // pred_check_branch
      %39 = sbr.rel (0) target = $region13
    $region12: #{bilstm_att_forward.4} parent=1 // pred_region
      %s41 = ssub.s32 32, 32
      %42 = vsyncadd [#allocation9], %s41
      %s44 = sshll.u32 [#allocation10], 4
      %s45 = int_to_ptr.vmem [resolvable:$true] %s44
      %47 = dma.hbm_to_vmem [thread:$0]  %s2, 32, %s45, [#allocation9]
    $region13: #{bilstm_att_forward.4} parent=1 // pred_fallthru
      _
    // Predicated region
    $region14: #{bilstm_att_forward.4} parent=1 // pred_check
      _
    $region15: #{bilstm_att_forward.4} parent=1 // pred_check_branch
      %49 = sbr.rel (0) target = $region17
    $region16: #{bilstm_att_forward.4} parent=1 // pred_region
      %s51 = ssub.s32 512, 512
      %52 = vsyncadd [#allocation12], %s51
      %s53 = sshll.u32 [#allocation11], 4
      %s54 = int_to_ptr.vmem [resolvable:$true] %s53
      %59 = dma.hbm_to_vmem [thread:$0]  %s3, 512, %s54, [#allocation12], 128, 128, 8
    $region17: #{bilstm_att_forward.4} parent=1 // pred_fallthru
      _
    // Predicated region
    $region18: #{bilstm_att_forward.4} parent=1 // pred_check
      _
    $region19: #{bilstm_att_forward.4} parent=1 // pred_check_branch
      %61 = sbr.rel (0) target = $region21
    $region20: #{bilstm_att_forward.4} parent=1 // pred_region
      %s63 = ssub.s32 512, 512
      %64 = vsyncadd [#allocation12], %s63
      %s65 = sshll.u32 [#allocation13], 4
      %s66 = int_to_ptr.vmem [resolvable:$true] %s65
      %71 = dma.hbm_to_vmem [thread:$0]  %s4, 512, %s66, [#allocation12], 128, 128, 8
    $region21: #{bilstm_att_forward.4} parent=1 // pred_fallthru
      _
    // Predicated region
    $region22: #{bilstm_att_forward.4} parent=1 // pred_check
      _
    $region23: #{bilstm_att_forward.4} parent=1 // pred_check_branch
      %73 = sbr.rel (0) target = $region25
    $region24: #{bilstm_att_forward.4} parent=1 // pred_region
      %74 = dma.done [#allocation6], 1024
    $region25: #{bilstm_att_forward.4} parent=1 // pred_fallthru
      _
    // Predicated region
    $region26: #{bilstm_att_forward.4} parent=1 // pred_check
      _
    $region27: #{bilstm_att_forward.4} parent=1 // pred_check_branch
      %76 = sbr.rel (0) target = $region29
    $region28: #{bilstm_att_forward.4} parent=1 // pred_region
      %77 = dma.done [#allocation9], 512
    $region29: #{bilstm_att_forward.4} parent=1 // pred_fallthru
      _
    // Predicated region
    $region30: #{bilstm_att_forward.4} parent=1 // pred_check
      _
    $region31: #{bilstm_att_forward.4} parent=1 // pred_check_branch
      %79 = sbr.rel (0) target = $region33
    $region32: #{bilstm_att_forward.4} parent=1 // pred_region
      %80 = dma.done [#allocation9], 32
    $region33: #{bilstm_att_forward.4} parent=1 // pred_fallthru
      _
    // Predicated region
    $region34: #{bilstm_att_forward.4} parent=1 // pred_check
      _
    $region35: #{bilstm_att_forward.4} parent=1 // pred_check_branch
      %82 = sbr.rel (0) target = $region37
    $region36: #{bilstm_att_forward.4} parent=1 // pred_region
      %83 = dma.done [#allocation12], 512
    $region37: #{bilstm_att_forward.4} parent=1 // pred_fallthru
      _
    // Predicated region
    $region38: #{bilstm_att_forward.4} parent=1 // pred_check
      _
    $region39: #{bilstm_att_forward.4} parent=1 // pred_check_branch
      %85 = sbr.rel (0) target = $region41
    $region40: #{bilstm_att_forward.4} parent=1 // pred_region
      %86 = dma.done [#allocation12], 512
    $region41: #{bilstm_att_forward.4} parent=1 // pred_fallthru
      _
    %v88 = vld [vmem:[#allocation5] sm:$0xff]
    %v89 = vld [vmem:[#allocation5 + $0x8] sm:$0xff]
    %v90 = vld [vmem:[#allocation5 + $0x10] sm:$0xff]
    %v91 = vld [vmem:[#allocation5 + $0x18] sm:$0xff]
    %v92 = vld [vmem:[#allocation5 + $0x20] sm:$0xff]
    %v93 = vld [vmem:[#allocation5 + $0x28] sm:$0xff]
    %v94 = vld [vmem:[#allocation5 + $0x30] sm:$0xff]
    %v95 = vld [vmem:[#allocation5 + $0x38] sm:$0xff]
    %v96 = vpack.c.bf16 %v89, %v88
    %v97 = vpack.c.bf16 %v91, %v90
    %v98 = vpack.c.bf16 %v93, %v92
    %v99 = vpack.c.bf16 %v95, %v94
    %v100 = vld [vmem:[#allocation8] sm:$0xff]
    %v101 = vld [vmem:[#allocation8 + $0x8] sm:$0xff]
    %v102 = vld [vmem:[#allocation8 + $0x10] sm:$0xff]
    %v103 = vld [vmem:[#allocation8 + $0x18] sm:$0xff]
    %v104 = vpack.c.bf16 %v102, %v100
    %v105 = vpack.c.bf16 %v103, %v101
    %v106 = vld [vmem:[#allocation10] sm:$0x3]
    %v108 = vlaneseq
    %v109 = vshrl.u32 %v108, 7
    %v110 = vsub.s32 0, %v109
    %v111 = vrot.slane %v106, %v110
    %v112 = vlaneseq
    %v113 = vshrl.u32 %v112, 7
    %v114 = vsub.s32 1, %v113
    %v115 = vrot.slane %v106, %v114
    %vm118 = vcmask 130048
    %v120 = vsel %vm118, %v96, 0
    %v123 = vsel %vm118, %v97, 0
    %v126 = vsel %vm118, %v98, 0
    %v129 = vsel %vm118, %v99, 0
    %131 = vmatprep.subr.bf16.mxu0 %v105
    %132 = vmatpush1.bf16.msra.mxu0 %v104
    %133 = vmatprep.subr.bf16.mxu0 0
    %134 = vmatpush1.bf16.msra.mxu0 0
    %135 = vmatprep.subr.bf16.mxu0 0
    %136 = vmatpush1.bf16.msra.mxu0 0
    %137 = vmatprep.subr.bf16.mxu0 0
    %138 = vmatpush1.bf16.msra.mxu0 0
    %139 = vmatprep.subr.bf16.mxu0 0
    %140 = vmatpush1.bf16.msra.mxu0 0
    %141 = vmatprep.subr.bf16.mxu0 0
    %142 = vmatpush1.bf16.msra.mxu0 0
    %143 = vmatprep.subr.bf16.mxu0 0
    %144 = vmatpush1.bf16.msra.mxu0 0
    %145 = vmatprep.subr.bf16.mxu0 0
    %146 = vmatpush1.bf16.msra.mxu0 0
    %147 = vmatprep.subr.bf16.mxu0 0
    %148 = vmatpush1.bf16.msra.mxu0 0
    %149 = vmatprep.subr.bf16.mxu0 0
    %150 = vmatpush1.bf16.msra.mxu0 0
    %151 = vmatprep.subr.bf16.mxu0 0
    %152 = vmatpush1.bf16.msra.mxu0 0
    %153 = vmatprep.subr.bf16.mxu0 0
    %154 = vmatpush1.bf16.msra.mxu0 0
    %155 = vmatprep.subr.bf16.mxu0 0
    %156 = vmatpush1.bf16.msra.mxu0 0
    %157 = vmatprep.subr.bf16.mxu0 0
    %158 = vmatpush1.bf16.msra.mxu0 0
    %159 = vmatprep.subr.bf16.mxu0 0
    %160 = vmatpush1.bf16.msra.mxu0 0
    %161 = vmatprep.subr.bf16.mxu0 0
    %162 = vmatpush1.bf16.msra.mxu0 0
    %163 = vmatprep.mubr.bf16.mxu0 0
    %164 = vmatmul.mubr.bf16.gmra.mrb[0].mxu0 %v120
    %v165 = vpop.f32.mrb[0].mxu0
    %v166 = vadd.f32 %v111, %v165
    %v167 = vpop.f32.mrb[0].mxu0
    %v168 = vadd.f32 %v115, %v167
    %v169 = vpop.f32.mrb[0].mxu0
    %v170 = vadd.f32 %v111, %v169
    %v171 = vpop.f32.mrb[0].mxu0
    %v172 = vadd.f32 %v115, %v171
    %173 = vmatprep.mubr.bf16.mxu0 0
    %174 = vmatmul.mubr.bf16.gmra.mrb[0].mxu0 %v123
    %v175 = vpop.f32.mrb[0].mxu0
    %v176 = vadd.f32 %v111, %v175
    %v177 = vpop.f32.mrb[0].mxu0
    %v178 = vadd.f32 %v115, %v177
    %v179 = vpop.f32.mrb[0].mxu0
    %v180 = vadd.f32 %v111, %v179
    %v181 = vpop.f32.mrb[0].mxu0
    %v182 = vadd.f32 %v115, %v181
    %183 = vmatprep.mubr.bf16.mxu0 0
    %184 = vmatmul.mubr.bf16.gmra.mrb[0].mxu0 %v126
    %v185 = vpop.f32.mrb[0].mxu0
    %v186 = vadd.f32 %v111, %v185
    %v187 = vpop.f32.mrb[0].mxu0
    %v188 = vadd.f32 %v115, %v187
    %v189 = vpop.f32.mrb[0].mxu0
    %v190 = vadd.f32 %v111, %v189
    %v191 = vpop.f32.mrb[0].mxu0
    %v192 = vadd.f32 %v115, %v191
    %193 = vmatprep.mubr.bf16.mxu0 0
    %194 = vmatmul.mubr.bf16.gmra.mrb[0].mxu0 %v129
    %v195 = vpop.f32.mrb[0].mxu0
    %v196 = vadd.f32 %v111, %v195
    %v197 = vpop.f32.mrb[0].mxu0
    %v198 = vadd.f32 %v115, %v197
    %v199 = vpop.f32.mrb[0].mxu0
    %v200 = vadd.f32 %v111, %v199
    %v201 = vpop.f32.mrb[0].mxu0
    %v202 = vadd.f32 %v115, %v201
    %203 = vdwg.mxu0
    %204 = vst [vmem:[#allocation2] sm:$0xff] %v166
    %205 = vst [vmem:[#allocation2 + $0x8] sm:$0xff] %v168
    %206 = vst [vmem:[#allocation2 + $0x10] sm:$0xff] %v170
    %207 = vst [vmem:[#allocation2 + $0x18] sm:$0xff] %v172
    %208 = vst [vmem:[#allocation2 + $0x20] sm:$0xff] %v176
    %209 = vst [vmem:[#allocation2 + $0x28] sm:$0xff] %v178
    %210 = vst [vmem:[#allocation2 + $0x30] sm:$0xff] %v180
    %211 = vst [vmem:[#allocation2 + $0x38] sm:$0xff] %v182
    %212 = vst [vmem:[#allocation2 + $0x40] sm:$0xff] %v186
    %213 = vst [vmem:[#allocation2 + $0x48] sm:$0xff] %v188
    %214 = vst [vmem:[#allocation2 + $0x50] sm:$0xff] %v190
    %215 = vst [vmem:[#allocation2 + $0x58] sm:$0xff] %v192
    %216 = vst [vmem:[#allocation2 + $0x60] sm:$0xff] %v196
    %217 = vst [vmem:[#allocation2 + $0x68] sm:$0xff] %v198
    %218 = vst [vmem:[#allocation2 + $0x70] sm:$0xff] %v200
    %219 = vst [vmem:[#allocation2 + $0x78] sm:$0xff] %v202
    %v220 = vld [vmem:[#allocation11] sm:$0xff]
    %v221 = vld [vmem:[#allocation11 + $0x8] sm:$0xff]
    %v222 = vld [vmem:[#allocation11 + $0x10] sm:$0xff]
    %v223 = vld [vmem:[#allocation11 + $0x18] sm:$0xff]
    %v224 = vpack.c.bf16 %v221, %v220
    %v225 = vpack.c.bf16 %v223, %v222
    %v226 = vld [vmem:[#allocation13] sm:$0xff]
    %v227 = vld [vmem:[#allocation13 + $0x8] sm:$0xff]
    %v228 = vld [vmem:[#allocation13 + $0x10] sm:$0xff]
    %v229 = vld [vmem:[#allocation13 + $0x18] sm:$0xff]
    %v230 = vpack.c.bf16 %v227, %v226
    %v231 = vpack.c.bf16 %v229, %v228
    loop: start=0, step=1, limit=8
    $region42: #{bilstm_att_forward.4} parent=1 // loop_pre_header
      _
    $region43: #{bilstm_att_forward.4} parent=1 // loop_header
      %s233 = sphi 0, %s237
      %p234 = scmp.ge.s32.totalorder %s233, 8
      %v238 = vphi 0.0, %v323
      %v239 = vphi 0.0, %v317
      %v240 = vphi 0.0, %v402
      %v241 = vphi 0.0, %v396
    $region44: #{bilstm_att_forward.4} parent=1 // loop_header_branch
      %236 = sbr.rel (%p234) target = $region48
    $region45: #{bilstm_att_forward.4} parent=1 // loop_body
      %s242 = ssub.s32 7, %s233
      %s243 = smul.u32 %s233, 2
      %s244 = smul.addr %s243, 8
      %s245 = scalar_lea.vmem [#allocation2], %s244
      %v246 = vld [vmem:[%s245] sm:$0xff]
      %s247 = smul.u32 %s242, 2
      %s248 = smul.addr %s247, 8
      %s249 = scalar_lea.vmem [#allocation2], %s248
      %v250 = vld [vmem:[%s249 + $0x8] sm:$0xff]
      %v251 = vpack.c.bf16 %v238, %v238
      %253 = vrot.lane.b32.xlu0 %v251, 32
      %v254 = vpop.permute.xlu0 %253
      %vm255 = vcmask 261120
      %v257 = vsel %vm255, %v254, 0
      %259 = vmatprep.subr.bf16.mxu0 0
      %260 = vmatpush1.bf16.msra.mxu0 %v224
      %261 = vmatprep.subr.bf16.mxu0 0
      %262 = vmatpush1.bf16.msra.mxu0 %v225
      %263 = vmatprep.subr.bf16.mxu0 0
      %264 = vmatpush1.bf16.msra.mxu0 0
      %265 = vmatprep.subr.bf16.mxu0 0
      %266 = vmatpush1.bf16.msra.mxu0 0
      %267 = vmatprep.subr.bf16.mxu0 0
      %268 = vmatpush1.bf16.msra.mxu0 0
      %269 = vmatprep.subr.bf16.mxu0 0
      %270 = vmatpush1.bf16.msra.mxu0 0
      %271 = vmatprep.subr.bf16.mxu0 0
      %272 = vmatpush1.bf16.msra.mxu0 0
      %273 = vmatprep.subr.bf16.mxu0 0
      %274 = vmatpush1.bf16.msra.mxu0 0
      %275 = vmatprep.subr.bf16.mxu0 0
      %276 = vmatpush1.bf16.msra.mxu0 0
      %277 = vmatprep.subr.bf16.mxu0 0
      %278 = vmatpush1.bf16.msra.mxu0 0
      %279 = vmatprep.subr.bf16.mxu0 0
      %280 = vmatpush1.bf16.msra.mxu0 0
      %281 = vmatprep.subr.bf16.mxu0 0
      %282 = vmatpush1.bf16.msra.mxu0 0
      %283 = vmatprep.subr.bf16.mxu0 0
      %284 = vmatpush1.bf16.msra.mxu0 0
      %285 = vmatprep.subr.bf16.mxu0 0
      %286 = vmatpush1.bf16.msra.mxu0 0
      %287 = vmatprep.subr.bf16.mxu0 0
      %288 = vmatpush1.bf16.msra.mxu0 0
      %289 = vmatprep.subr.bf16.mxu0 0
      %290 = vmatpush1.bf16.msra.mxu0 0
      %291 = vmatprep.mubr.bf16.mxu0 0
      %292 = vmatmul.mubr.bf16.gmra.mrb[0].mxu0 %v257
      %v293 = vpop.f32.mrb[0].mxu0
      %v294 = vadd.f32 0.0, %v293
      %v295 = vpop.f32.mrb[0].mxu0
      %v296 = vpop.f32.mrb[0].mxu0
      %v297 = vpop.f32.mrb[0].mxu0
      %298 = vdwg.mxu0
      %v299 = vadd.f32 %v246, %v294
      %v300 = vxor.u32 %v299, 2147483648
      %v301 = vmul.f32 %v300, 1.442695
      %v302 = vpow.pop %v301
      %v303 = vadd.f32 %v302, 1.0
      %v304 = vrcp.pop %v303
      %v305 = vmul.f32 1.0, %v304
      %v306 = vtanh.pop %v299
      %v307 = vmul.f32 %v305, %v239
      %309 = vrot.lane.b32.xlu0 %v306, 64
      %v310 = vpop.permute.xlu0 %309
      %v312 = vmul.f32 %v305, %v310
      %314 = vrot.lane.b32.xlu0 %v312, 32
      %v315 = vpop.permute.xlu0 %314
      %v317 = vadd.f32 %v307, %v315
      %v318 = vtanh.pop %v317
      %320 = vrot.lane.b32.xlu0 %v318, 64
      %v321 = vpop.permute.xlu0 %320
      %v323 = vmul.f32 %v305, %v321
      %325 = vrot.lane.b32.xlu0 %v323, 32
      %v326 = vpop.permute.xlu0 %325
      %s328 = smul.u32 %s233, 8
      %s329 = scalar_lea.vmem [#allocation3], %s328
      %330 = vst.msk [vmem:[%s329] sm:$0xff] %vm255, %v326
      %v331 = vpack.c.bf16 %v240, %v240
      %333 = vrot.lane.b32.xlu0 %v331, 32
      %v334 = vpop.permute.xlu0 %333
      %v336 = vsel %vm255, %v334, 0
      %338 = vmatprep.subr.bf16.mxu0 0
      %339 = vmatpush1.bf16.msra.mxu0 %v230
      %340 = vmatprep.subr.bf16.mxu0 0
      %341 = vmatpush1.bf16.msra.mxu0 %v231
      %342 = vmatprep.subr.bf16.mxu0 0
      %343 = vmatpush1.bf16.msra.mxu0 0
      %344 = vmatprep.subr.bf16.mxu0 0
      %345 = vmatpush1.bf16.msra.mxu0 0
      %346 = vmatprep.subr.bf16.mxu0 0
      %347 = vmatpush1.bf16.msra.mxu0 0
      %348 = vmatprep.subr.bf16.mxu0 0
      %349 = vmatpush1.bf16.msra.mxu0 0
      %350 = vmatprep.subr.bf16.mxu0 0
      %351 = vmatpush1.bf16.msra.mxu0 0
      %352 = vmatprep.subr.bf16.mxu0 0
      %353 = vmatpush1.bf16.msra.mxu0 0
      %354 = vmatprep.subr.bf16.mxu0 0
      %355 = vmatpush1.bf16.msra.mxu0 0
      %356 = vmatprep.subr.bf16.mxu0 0
      %357 = vmatpush1.bf16.msra.mxu0 0
      %358 = vmatprep.subr.bf16.mxu0 0
      %359 = vmatpush1.bf16.msra.mxu0 0
      %360 = vmatprep.subr.bf16.mxu0 0
      %361 = vmatpush1.bf16.msra.mxu0 0
      %362 = vmatprep.subr.bf16.mxu0 0
      %363 = vmatpush1.bf16.msra.mxu0 0
      %364 = vmatprep.subr.bf16.mxu0 0
      %365 = vmatpush1.bf16.msra.mxu0 0
      %366 = vmatprep.subr.bf16.mxu0 0
      %367 = vmatpush1.bf16.msra.mxu0 0
      %368 = vmatprep.subr.bf16.mxu0 0
      %369 = vmatpush1.bf16.msra.mxu0 0
      %370 = vmatprep.mubr.bf16.mxu0 0
      %371 = vmatmul.mubr.bf16.gmra.mrb[0].mxu0 %v336
      %v372 = vpop.f32.mrb[0].mxu0
      %v373 = vadd.f32 0.0, %v372
      %v374 = vpop.f32.mrb[0].mxu0
      %v375 = vpop.f32.mrb[0].mxu0
      %v376 = vpop.f32.mrb[0].mxu0
      %377 = vdwg.mxu0
      %v378 = vadd.f32 %v250, %v373
      %v379 = vxor.u32 %v378, 2147483648
      %v380 = vmul.f32 %v379, 1.442695
      %v381 = vpow.pop %v380
      %v382 = vadd.f32 %v381, 1.0
      %v383 = vrcp.pop %v382
      %v384 = vmul.f32 1.0, %v383
      %v385 = vtanh.pop %v378
      %v386 = vmul.f32 %v384, %v241
      %388 = vrot.lane.b32.xlu0 %v385, 64
      %v389 = vpop.permute.xlu0 %388
      %v391 = vmul.f32 %v384, %v389
      %393 = vrot.lane.b32.xlu0 %v391, 32
      %v394 = vpop.permute.xlu0 %393
      %v396 = vadd.f32 %v386, %v394
      %v397 = vtanh.pop %v396
      %399 = vrot.lane.b32.xlu0 %v397, 64
      %v400 = vpop.permute.xlu0 %399
      %v402 = vmul.f32 %v384, %v400
      %404 = vrot.lane.b32.xlu0 %v402, 32
      %v405 = vpop.permute.xlu0 %404
      %s407 = smul.u32 %s242, 8
      %s408 = scalar_lea.vmem [#allocation4], %s407
      %409 = vst.msk [vmem:[%s408] sm:$0xff] %vm255, %v405
    $region46: #{bilstm_att_forward.4} parent=1 // loop_footer
      %s237 = sadd.s32 1, %s233
    $region47: #{bilstm_att_forward.4} parent=1 // loop_footer_branch
      %232 = sbr.rel target = $region43
    $region48: #{bilstm_att_forward.4} parent=1 // loop_exit
      _
    %v410 = vld [vmem:[#allocation3] sm:$0xff]
    %v411 = vld [vmem:[#allocation3 + $0x8] sm:$0xff]
    %v412 = vld [vmem:[#allocation3 + $0x10] sm:$0xff]
    %v413 = vld [vmem:[#allocation3 + $0x18] sm:$0xff]
    %v414 = vld [vmem:[#allocation3 + $0x20] sm:$0xff]
    %v415 = vld [vmem:[#allocation3 + $0x28] sm:$0xff]
    %v416 = vld [vmem:[#allocation3 + $0x30] sm:$0xff]
    %v417 = vld [vmem:[#allocation3 + $0x38] sm:$0xff]
    %v418 = vld [vmem:[#allocation4] sm:$0xff]
    %v419 = vld [vmem:[#allocation4 + $0x8] sm:$0xff]
    %v420 = vld [vmem:[#allocation4 + $0x10] sm:$0xff]
    %v421 = vld [vmem:[#allocation4 + $0x18] sm:$0xff]
    %v422 = vld [vmem:[#allocation4 + $0x20] sm:$0xff]
    %v423 = vld [vmem:[#allocation4 + $0x28] sm:$0xff]
    %v424 = vld [vmem:[#allocation4 + $0x30] sm:$0xff]
    %v425 = vld [vmem:[#allocation4 + $0x38] sm:$0xff]
    %434 = vrot.lane.b32.xlu0 %v418, 32
    %v435 = vpop.permute.xlu0 %434
    %436 = vrot.lane.b32.xlu0 %v419, 32
    %v437 = vpop.permute.xlu0 %436
    %438 = vrot.lane.b32.xlu0 %v420, 32
    %v439 = vpop.permute.xlu0 %438
    %440 = vrot.lane.b32.xlu0 %v421, 32
    %v441 = vpop.permute.xlu0 %440
    %442 = vrot.lane.b32.xlu0 %v422, 32
    %v443 = vpop.permute.xlu0 %442
    %444 = vrot.lane.b32.xlu0 %v423, 32
    %v445 = vpop.permute.xlu0 %444
    %446 = vrot.lane.b32.xlu0 %v424, 32
    %v447 = vpop.permute.xlu0 %446
    %448 = vrot.lane.b32.xlu0 %v425, 32
    %v449 = vpop.permute.xlu0 %448
    %vm458 = vcmask 261120
    %v459 = vsel %vm458, %v410, %v435
    %v460 = vsel %vm458, %v411, %v437
    %v461 = vsel %vm458, %v412, %v439
    %v462 = vsel %vm458, %v413, %v441
    %v463 = vsel %vm458, %v414, %v443
    %v464 = vsel %vm458, %v415, %v445
    %v465 = vsel %vm458, %v416, %v447
    %v466 = vsel %vm458, %v417, %v449
    %vm467 = vcmask 523264
    %468 = vst.msk [vmem:[#allocation14] sm:$0xff] %vm467, %v459
    %469 = vst.msk [vmem:[#allocation14 + $0x8] sm:$0xff] %vm467, %v460
    %470 = vst.msk [vmem:[#allocation14 + $0x10] sm:$0xff] %vm467, %v461
    %471 = vst.msk [vmem:[#allocation14 + $0x18] sm:$0xff] %vm467, %v462
    %472 = vst.msk [vmem:[#allocation14 + $0x20] sm:$0xff] %vm467, %v463
    %473 = vst.msk [vmem:[#allocation14 + $0x28] sm:$0xff] %vm467, %v464
    %474 = vst.msk [vmem:[#allocation14 + $0x30] sm:$0xff] %vm467, %v465
    %475 = vst.msk [vmem:[#allocation14 + $0x38] sm:$0xff] %vm467, %v466
    // Predicated region
    $region49: #{bilstm_att_forward.4} parent=1 // pred_check
      _
    $region50: #{bilstm_att_forward.4} parent=1 // pred_check_branch
      %477 = sbr.rel (0) target = $region52
    $region51: #{bilstm_att_forward.4} parent=1 // pred_region
      %s479 = ssub.s32 1024, 1024
      %480 = vsyncadd [#allocation7], %s479
      %s481 = sshll.u32 [#allocation14], 4
      %s482 = int_to_ptr.vmem [resolvable:$true] %s481
      %487 = dma.vmem_to_hbm [thread:$0]  %s482, 1024, %s5, [#allocation7], 128, 128, 8
    $region52: #{bilstm_att_forward.4} parent=1 // pred_fallthru
      _
    // Predicated region
    $region53: #{bilstm_att_forward.4} parent=1 // pred_check
      _
    $region54: #{bilstm_att_forward.4} parent=1 // pred_check_branch
      %489 = sbr.rel (0) target = $region56
    $region55: #{bilstm_att_forward.4} parent=1 // pred_region
      %490 = dma.done [#allocation7], 1024
    $region56: #{bilstm_att_forward.4} parent=1 // pred_fallthru
      _
    %491 = vsyncpa [#allocation6], 1
    %492 = vsyncpa [#allocation9], 1
    %493 = vsyncpa [#allocation12], 1
    %494 = vsyncpa [#allocation7], 1

// kernel: bilstm_att_forward.5
$region0: #{bilstm_att_forward.5}
  #allocation0 [shape = 'u32[]', space=smem, size = 0x4, offset = 0x4, fixed_abs, tag = 'smem constant byte address 0x4 - core index']
  #allocation1 [shape = 'u32[144,128]{1,0:T(1,128)}', space=vmem, size = 0x12000, scoped, tag = 'internal scratch']
  #allocation2 [shape = 'f32[8,8,256]{2,1,0:T(8,128)}', space=vmem, size = 0x10000, scoped, tag = 'scratch operand']
  #allocation3 [shape = 'f32[8,8,32]{2,1,0:T(8,128)}', space=vmem, size = 0x8000, scoped, tag = 'scratch operand']
  #allocation4 [shape = 'f32[8,8,32]{2,1,0:T(8,128)}', space=vmem, size = 0x8000, scoped, tag = 'scratch operand']
  %s0 = inlined_call_operand.hbm [shape: f32[8,8,64], index: 0, kind: input, shape index: {}]
  %s1 = inlined_call_operand.hbm [shape: f32[64,256], index: 1, kind: input, shape index: {}]
  %s2 = inlined_call_operand.hbm [shape: f32[1,256], index: 2, kind: input, shape index: {}]
  %s3 = inlined_call_operand.hbm [shape: f32[32,128], index: 3, kind: input, shape index: {}]
  %s4 = inlined_call_operand.hbm [shape: f32[32,128], index: 4, kind: input, shape index: {}]
  %s5 = inlined_call_operand.hbm [shape: f32[8,8,64], index: 5, kind: output, shape index: {}]
  %s6 = sld [smem:[#allocation0]]
  $region57: #{bilstm_att_forward.5} parent=0
    _
  %s8 = ssub.s32 1, %s6
  %s9 = scalar_select 0, %s8, %s6
  $region1: #{bilstm_att_forward.5} parent=0
    #allocation5 [shape = 'u8[32768]{0}', space=vmem, size = 0x8000, scoped, tag = 'input window, operand 0, single buffered']
    #allocation6 [shape = 's32[1]{0}', space=sflag, size = 0x4, scoped, tag = 'scoped memory for bilstm_att_forward.5']
    #allocation7 [shape = 's32[1]{0}', space=sflag, size = 0x4, scoped, tag = 'scoped memory for bilstm_att_forward.5']
    #allocation8 [shape = 'u8[65536]{0}', space=vmem, size = 0x10000, scoped, tag = 'input window, operand 1, single buffered']
    #allocation9 [shape = 's32[1]{0}', space=sflag, size = 0x4, scoped, tag = 'scoped memory for bilstm_att_forward.5']
    #allocation10 [shape = 'u8[1024]{0}', space=vmem, size = 0x400, scoped, tag = 'input window, operand 2, single buffered']
    #allocation11 [shape = 'u8[16384]{0}', space=vmem, size = 0x4000, scoped, tag = 'input window, operand 3, single buffered']
    #allocation12 [shape = 's32[1]{0}', space=sflag, size = 0x4, scoped, tag = 'scoped memory for bilstm_att_forward.5']
    #allocation13 [shape = 'u8[16384]{0}', space=vmem, size = 0x4000, scoped, tag = 'input window, operand 4, single buffered']
    #allocation14 [shape = 'u8[32768]{0}', space=vmem, size = 0x8000, scoped, tag = 'output window, operand 0, single buffered']
    %10 = vsyncpa [#allocation6], 0
    %11 = vsyncpa [#allocation9], 0
    %12 = vsyncpa [#allocation12], 0
    %13 = vsyncpa [#allocation7], 0
    // Predicated region
    $region2: #{bilstm_att_forward.5} parent=1 // pred_check
      _
    $region3: #{bilstm_att_forward.5} parent=1 // pred_check_branch
      %15 = sbr.rel (0) target = $region5
    $region4: #{bilstm_att_forward.5} parent=1 // pred_region
      %s17 = ssub.s32 1024, 1024
      %18 = vsyncadd [#allocation6], %s17
      %s19 = sshll.u32 [#allocation5], 4
      %s20 = int_to_ptr.vmem [resolvable:$true] %s19
      %25 = dma.hbm_to_vmem [thread:$0]  %s0, 1024, %s20, [#allocation6], 128, 128, 8
    $region5: #{bilstm_att_forward.5} parent=1 // pred_fallthru
      _
    // Predicated region
    $region6: #{bilstm_att_forward.5} parent=1 // pred_check
      _
    $region7: #{bilstm_att_forward.5} parent=1 // pred_check_branch
      %27 = sbr.rel (0) target = $region9
    $region8: #{bilstm_att_forward.5} parent=1 // pred_region
      %s29 = ssub.s32 2048, 2048
      %30 = vsyncadd [#allocation9], %s29
      %s31 = sshll.u32 [#allocation8], 4
      %s32 = int_to_ptr.vmem [resolvable:$true] %s31
      %37 = dma.hbm_to_vmem [thread:$0]  %s1, 2048, %s32, [#allocation9], 256, 256, 16
    $region9: #{bilstm_att_forward.5} parent=1 // pred_fallthru
      _
    // Predicated region
    $region10: #{bilstm_att_forward.5} parent=1 // pred_check
      _
    $region11: #{bilstm_att_forward.5} parent=1 // pred_check_branch
      %39 = sbr.rel (0) target = $region13
    $region12: #{bilstm_att_forward.5} parent=1 // pred_region
      %s41 = ssub.s32 32, 32
      %42 = vsyncadd [#allocation9], %s41
      %s44 = sshll.u32 [#allocation10], 4
      %s45 = int_to_ptr.vmem [resolvable:$true] %s44
      %47 = dma.hbm_to_vmem [thread:$0]  %s2, 32, %s45, [#allocation9]
    $region13: #{bilstm_att_forward.5} parent=1 // pred_fallthru
      _
    // Predicated region
    $region14: #{bilstm_att_forward.5} parent=1 // pred_check
      _
    $region15: #{bilstm_att_forward.5} parent=1 // pred_check_branch
      %49 = sbr.rel (0) target = $region17
    $region16: #{bilstm_att_forward.5} parent=1 // pred_region
      %s51 = ssub.s32 512, 512
      %52 = vsyncadd [#allocation12], %s51
      %s53 = sshll.u32 [#allocation11], 4
      %s54 = int_to_ptr.vmem [resolvable:$true] %s53
      %59 = dma.hbm_to_vmem [thread:$0]  %s3, 512, %s54, [#allocation12], 128, 128, 8
    $region17: #{bilstm_att_forward.5} parent=1 // pred_fallthru
      _
    // Predicated region
    $region18: #{bilstm_att_forward.5} parent=1 // pred_check
      _
    $region19: #{bilstm_att_forward.5} parent=1 // pred_check_branch
      %61 = sbr.rel (0) target = $region21
    $region20: #{bilstm_att_forward.5} parent=1 // pred_region
      %s63 = ssub.s32 512, 512
      %64 = vsyncadd [#allocation12], %s63
      %s65 = sshll.u32 [#allocation13], 4
      %s66 = int_to_ptr.vmem [resolvable:$true] %s65
      %71 = dma.hbm_to_vmem [thread:$0]  %s4, 512, %s66, [#allocation12], 128, 128, 8
    $region21: #{bilstm_att_forward.5} parent=1 // pred_fallthru
      _
    // Predicated region
    $region22: #{bilstm_att_forward.5} parent=1 // pred_check
      _
    $region23: #{bilstm_att_forward.5} parent=1 // pred_check_branch
      %73 = sbr.rel (0) target = $region25
    $region24: #{bilstm_att_forward.5} parent=1 // pred_region
      %74 = dma.done [#allocation6], 1024
    $region25: #{bilstm_att_forward.5} parent=1 // pred_fallthru
      _
    // Predicated region
    $region26: #{bilstm_att_forward.5} parent=1 // pred_check
      _
    $region27: #{bilstm_att_forward.5} parent=1 // pred_check_branch
      %76 = sbr.rel (0) target = $region29
    $region28: #{bilstm_att_forward.5} parent=1 // pred_region
      %77 = dma.done [#allocation9], 2048
    $region29: #{bilstm_att_forward.5} parent=1 // pred_fallthru
      _
    // Predicated region
    $region30: #{bilstm_att_forward.5} parent=1 // pred_check
      _
    $region31: #{bilstm_att_forward.5} parent=1 // pred_check_branch
      %79 = sbr.rel (0) target = $region33
    $region32: #{bilstm_att_forward.5} parent=1 // pred_region
      %80 = dma.done [#allocation9], 32
    $region33: #{bilstm_att_forward.5} parent=1 // pred_fallthru
      _
    // Predicated region
    $region34: #{bilstm_att_forward.5} parent=1 // pred_check
      _
    $region35: #{bilstm_att_forward.5} parent=1 // pred_check_branch
      %82 = sbr.rel (0) target = $region37
    $region36: #{bilstm_att_forward.5} parent=1 // pred_region
      %83 = dma.done [#allocation12], 512
    $region37: #{bilstm_att_forward.5} parent=1 // pred_fallthru
      _
    // Predicated region
    $region38: #{bilstm_att_forward.5} parent=1 // pred_check
      _
    $region39: #{bilstm_att_forward.5} parent=1 // pred_check_branch
      %85 = sbr.rel (0) target = $region41
    $region40: #{bilstm_att_forward.5} parent=1 // pred_region
      %86 = dma.done [#allocation12], 512
    $region41: #{bilstm_att_forward.5} parent=1 // pred_fallthru
      _
    %v88 = vld [vmem:[#allocation5] sm:$0xff]
    %v89 = vld [vmem:[#allocation5 + $0x8] sm:$0xff]
    %v90 = vld [vmem:[#allocation5 + $0x10] sm:$0xff]
    %v91 = vld [vmem:[#allocation5 + $0x18] sm:$0xff]
    %v92 = vld [vmem:[#allocation5 + $0x20] sm:$0xff]
    %v93 = vld [vmem:[#allocation5 + $0x28] sm:$0xff]
    %v94 = vld [vmem:[#allocation5 + $0x30] sm:$0xff]
    %v95 = vld [vmem:[#allocation5 + $0x38] sm:$0xff]
    %v96 = vpack.c.bf16 %v89, %v88
    %v97 = vpack.c.bf16 %v91, %v90
    %v98 = vpack.c.bf16 %v93, %v92
    %v99 = vpack.c.bf16 %v95, %v94
    %v100 = vld [vmem:[#allocation8] sm:$0xff]
    %v101 = vld [vmem:[#allocation8 + $0x8] sm:$0xff]
    %v102 = vld [vmem:[#allocation8 + $0x10] sm:$0xff]
    %v103 = vld [vmem:[#allocation8 + $0x18] sm:$0xff]
    %v104 = vld [vmem:[#allocation8 + $0x20] sm:$0xff]
    %v105 = vld [vmem:[#allocation8 + $0x28] sm:$0xff]
    %v106 = vld [vmem:[#allocation8 + $0x30] sm:$0xff]
    %v107 = vld [vmem:[#allocation8 + $0x38] sm:$0xff]
    %v108 = vld [vmem:[#allocation8 + $0x40] sm:$0xff]
    %v109 = vld [vmem:[#allocation8 + $0x48] sm:$0xff]
    %v110 = vld [vmem:[#allocation8 + $0x50] sm:$0xff]
    %v111 = vld [vmem:[#allocation8 + $0x58] sm:$0xff]
    %v112 = vld [vmem:[#allocation8 + $0x60] sm:$0xff]
    %v113 = vld [vmem:[#allocation8 + $0x68] sm:$0xff]
    %v114 = vld [vmem:[#allocation8 + $0x70] sm:$0xff]
    %v115 = vld [vmem:[#allocation8 + $0x78] sm:$0xff]
    %v116 = vpack.c.bf16 %v102, %v100
    %v117 = vpack.c.bf16 %v103, %v101
    %v118 = vpack.c.bf16 %v106, %v104
    %v119 = vpack.c.bf16 %v107, %v105
    %v120 = vpack.c.bf16 %v110, %v108
    %v121 = vpack.c.bf16 %v111, %v109
    %v122 = vpack.c.bf16 %v114, %v112
    %v123 = vpack.c.bf16 %v115, %v113
    %v124 = vld [vmem:[#allocation10] sm:$0x3]
    %v126 = vlaneseq
    %v127 = vshrl.u32 %v126, 7
    %v128 = vsub.s32 0, %v127
    %v129 = vrot.slane %v124, %v128
    %v130 = vlaneseq
    %v131 = vshrl.u32 %v130, 7
    %v132 = vsub.s32 1, %v131
    %v133 = vrot.slane %v124, %v132
    %vm136 = vcmask 523264
    %v138 = vsel %vm136, %v96, 0
    %v141 = vsel %vm136, %v97, 0
    %v144 = vsel %vm136, %v98, 0
    %v147 = vsel %vm136, %v99, 0
    %149 = vmatprep.subr.bf16.mxu0 %v117
    %150 = vmatpush1.bf16.msra.mxu0 %v116
    %151 = vmatprep.subr.bf16.mxu0 %v119
    %152 = vmatpush1.bf16.msra.mxu0 %v118
    %153 = vmatprep.subr.bf16.mxu0 %v121
    %154 = vmatpush1.bf16.msra.mxu0 %v120
    %155 = vmatprep.subr.bf16.mxu0 %v123
    %156 = vmatpush1.bf16.msra.mxu0 %v122
    %157 = vmatprep.subr.bf16.mxu0 0
    %158 = vmatpush1.bf16.msra.mxu0 0
    %159 = vmatprep.subr.bf16.mxu0 0
    %160 = vmatpush1.bf16.msra.mxu0 0
    %161 = vmatprep.subr.bf16.mxu0 0
    %162 = vmatpush1.bf16.msra.mxu0 0
    %163 = vmatprep.subr.bf16.mxu0 0
    %164 = vmatpush1.bf16.msra.mxu0 0
    %165 = vmatprep.subr.bf16.mxu0 0
    %166 = vmatpush1.bf16.msra.mxu0 0
    %167 = vmatprep.subr.bf16.mxu0 0
    %168 = vmatpush1.bf16.msra.mxu0 0
    %169 = vmatprep.subr.bf16.mxu0 0
    %170 = vmatpush1.bf16.msra.mxu0 0
    %171 = vmatprep.subr.bf16.mxu0 0
    %172 = vmatpush1.bf16.msra.mxu0 0
    %173 = vmatprep.subr.bf16.mxu0 0
    %174 = vmatpush1.bf16.msra.mxu0 0
    %175 = vmatprep.subr.bf16.mxu0 0
    %176 = vmatpush1.bf16.msra.mxu0 0
    %177 = vmatprep.subr.bf16.mxu0 0
    %178 = vmatpush1.bf16.msra.mxu0 0
    %179 = vmatprep.subr.bf16.mxu0 0
    %180 = vmatpush1.bf16.msra.mxu0 0
    %181 = vmatprep.mubr.bf16.mxu0 0
    %182 = vmatmul.mubr.bf16.gmra.mrb[0].mxu0 %v138
    %v183 = vpop.f32.mrb[0].mxu0
    %v184 = vadd.f32 %v129, %v183
    %v185 = vpop.f32.mrb[0].mxu0
    %v186 = vadd.f32 %v133, %v185
    %v187 = vpop.f32.mrb[0].mxu0
    %v188 = vadd.f32 %v129, %v187
    %v189 = vpop.f32.mrb[0].mxu0
    %v190 = vadd.f32 %v133, %v189
    %191 = vmatprep.mubr.bf16.mxu0 0
    %192 = vmatmul.mubr.bf16.gmra.mrb[0].mxu0 %v141
    %v193 = vpop.f32.mrb[0].mxu0
    %v194 = vadd.f32 %v129, %v193
    %v195 = vpop.f32.mrb[0].mxu0
    %v196 = vadd.f32 %v133, %v195
    %v197 = vpop.f32.mrb[0].mxu0
    %v198 = vadd.f32 %v129, %v197
    %v199 = vpop.f32.mrb[0].mxu0
    %v200 = vadd.f32 %v133, %v199
    %201 = vmatprep.mubr.bf16.mxu0 0
    %202 = vmatmul.mubr.bf16.gmra.mrb[0].mxu0 %v144
    %v203 = vpop.f32.mrb[0].mxu0
    %v204 = vadd.f32 %v129, %v203
    %v205 = vpop.f32.mrb[0].mxu0
    %v206 = vadd.f32 %v133, %v205
    %v207 = vpop.f32.mrb[0].mxu0
    %v208 = vadd.f32 %v129, %v207
    %v209 = vpop.f32.mrb[0].mxu0
    %v210 = vadd.f32 %v133, %v209
    %211 = vmatprep.mubr.bf16.mxu0 0
    %212 = vmatmul.mubr.bf16.gmra.mrb[0].mxu0 %v147
    %v213 = vpop.f32.mrb[0].mxu0
    %v214 = vadd.f32 %v129, %v213
    %v215 = vpop.f32.mrb[0].mxu0
    %v216 = vadd.f32 %v133, %v215
    %v217 = vpop.f32.mrb[0].mxu0
    %v218 = vadd.f32 %v129, %v217
    %v219 = vpop.f32.mrb[0].mxu0
    %v220 = vadd.f32 %v133, %v219
    %221 = vdwg.mxu0
    %222 = vst [vmem:[#allocation2] sm:$0xff] %v184
    %223 = vst [vmem:[#allocation2 + $0x8] sm:$0xff] %v186
    %224 = vst [vmem:[#allocation2 + $0x10] sm:$0xff] %v188
    %225 = vst [vmem:[#allocation2 + $0x18] sm:$0xff] %v190
    %226 = vst [vmem:[#allocation2 + $0x20] sm:$0xff] %v194
    %227 = vst [vmem:[#allocation2 + $0x28] sm:$0xff] %v196
    %228 = vst [vmem:[#allocation2 + $0x30] sm:$0xff] %v198
    %229 = vst [vmem:[#allocation2 + $0x38] sm:$0xff] %v200
    %230 = vst [vmem:[#allocation2 + $0x40] sm:$0xff] %v204
    %231 = vst [vmem:[#allocation2 + $0x48] sm:$0xff] %v206
    %232 = vst [vmem:[#allocation2 + $0x50] sm:$0xff] %v208
    %233 = vst [vmem:[#allocation2 + $0x58] sm:$0xff] %v210
    %234 = vst [vmem:[#allocation2 + $0x60] sm:$0xff] %v214
    %235 = vst [vmem:[#allocation2 + $0x68] sm:$0xff] %v216
    %236 = vst [vmem:[#allocation2 + $0x70] sm:$0xff] %v218
    %237 = vst [vmem:[#allocation2 + $0x78] sm:$0xff] %v220
    %v238 = vld [vmem:[#allocation11] sm:$0xff]
    %v239 = vld [vmem:[#allocation11 + $0x8] sm:$0xff]
    %v240 = vld [vmem:[#allocation11 + $0x10] sm:$0xff]
    %v241 = vld [vmem:[#allocation11 + $0x18] sm:$0xff]
    %v242 = vpack.c.bf16 %v239, %v238
    %v243 = vpack.c.bf16 %v241, %v240
    %v244 = vld [vmem:[#allocation13] sm:$0xff]
    %v245 = vld [vmem:[#allocation13 + $0x8] sm:$0xff]
    %v246 = vld [vmem:[#allocation13 + $0x10] sm:$0xff]
    %v247 = vld [vmem:[#allocation13 + $0x18] sm:$0xff]
    %v248 = vpack.c.bf16 %v245, %v244
    %v249 = vpack.c.bf16 %v247, %v246
    loop: start=0, step=1, limit=8
    $region42: #{bilstm_att_forward.5} parent=1 // loop_pre_header
      _
    $region43: #{bilstm_att_forward.5} parent=1 // loop_header
      %s251 = sphi 0, %s255
      %p252 = scmp.ge.s32.totalorder %s251, 8
      %v256 = vphi 0.0, %v341
      %v257 = vphi 0.0, %v335
      %v258 = vphi 0.0, %v420
      %v259 = vphi 0.0, %v414
    $region44: #{bilstm_att_forward.5} parent=1 // loop_header_branch
      %254 = sbr.rel (%p252) target = $region48
    $region45: #{bilstm_att_forward.5} parent=1 // loop_body
      %s260 = ssub.s32 7, %s251
      %s261 = smul.u32 %s251, 2
      %s262 = smul.addr %s261, 8
      %s263 = scalar_lea.vmem [#allocation2], %s262
      %v264 = vld [vmem:[%s263] sm:$0xff]
      %s265 = smul.u32 %s260, 2
      %s266 = smul.addr %s265, 8
      %s267 = scalar_lea.vmem [#allocation2], %s266
      %v268 = vld [vmem:[%s267 + $0x8] sm:$0xff]
      %v269 = vpack.c.bf16 %v256, %v256
      %271 = vrot.lane.b32.xlu0 %v269, 32
      %v272 = vpop.permute.xlu0 %271
      %vm273 = vcmask 261120
      %v275 = vsel %vm273, %v272, 0
      %277 = vmatprep.subr.bf16.mxu0 0
      %278 = vmatpush1.bf16.msra.mxu0 %v242
      %279 = vmatprep.subr.bf16.mxu0 0
      %280 = vmatpush1.bf16.msra.mxu0 %v243
      %281 = vmatprep.subr.bf16.mxu0 0
      %282 = vmatpush1.bf16.msra.mxu0 0
      %283 = vmatprep.subr.bf16.mxu0 0
      %284 = vmatpush1.bf16.msra.mxu0 0
      %285 = vmatprep.subr.bf16.mxu0 0
      %286 = vmatpush1.bf16.msra.mxu0 0
      %287 = vmatprep.subr.bf16.mxu0 0
      %288 = vmatpush1.bf16.msra.mxu0 0
      %289 = vmatprep.subr.bf16.mxu0 0
      %290 = vmatpush1.bf16.msra.mxu0 0
      %291 = vmatprep.subr.bf16.mxu0 0
      %292 = vmatpush1.bf16.msra.mxu0 0
      %293 = vmatprep.subr.bf16.mxu0 0
      %294 = vmatpush1.bf16.msra.mxu0 0
      %295 = vmatprep.subr.bf16.mxu0 0
      %296 = vmatpush1.bf16.msra.mxu0 0
      %297 = vmatprep.subr.bf16.mxu0 0
      %298 = vmatpush1.bf16.msra.mxu0 0
      %299 = vmatprep.subr.bf16.mxu0 0
      %300 = vmatpush1.bf16.msra.mxu0 0
      %301 = vmatprep.subr.bf16.mxu0 0
      %302 = vmatpush1.bf16.msra.mxu0 0
      %303 = vmatprep.subr.bf16.mxu0 0
      %304 = vmatpush1.bf16.msra.mxu0 0
      %305 = vmatprep.subr.bf16.mxu0 0
      %306 = vmatpush1.bf16.msra.mxu0 0
      %307 = vmatprep.subr.bf16.mxu0 0
      %308 = vmatpush1.bf16.msra.mxu0 0
      %309 = vmatprep.mubr.bf16.mxu0 0
      %310 = vmatmul.mubr.bf16.gmra.mrb[0].mxu0 %v275
      %v311 = vpop.f32.mrb[0].mxu0
      %v312 = vadd.f32 0.0, %v311
      %v313 = vpop.f32.mrb[0].mxu0
      %v314 = vpop.f32.mrb[0].mxu0
      %v315 = vpop.f32.mrb[0].mxu0
      %316 = vdwg.mxu0
      %v317 = vadd.f32 %v264, %v312
      %v318 = vxor.u32 %v317, 2147483648
      %v319 = vmul.f32 %v318, 1.442695
      %v320 = vpow.pop %v319
      %v321 = vadd.f32 %v320, 1.0
      %v322 = vrcp.pop %v321
      %v323 = vmul.f32 1.0, %v322
      %v324 = vtanh.pop %v317
      %v325 = vmul.f32 %v323, %v257
      %327 = vrot.lane.b32.xlu0 %v324, 64
      %v328 = vpop.permute.xlu0 %327
      %v330 = vmul.f32 %v323, %v328
      %332 = vrot.lane.b32.xlu0 %v330, 32
      %v333 = vpop.permute.xlu0 %332
      %v335 = vadd.f32 %v325, %v333
      %v336 = vtanh.pop %v335
      %338 = vrot.lane.b32.xlu0 %v336, 64
      %v339 = vpop.permute.xlu0 %338
      %v341 = vmul.f32 %v323, %v339
      %343 = vrot.lane.b32.xlu0 %v341, 32
      %v344 = vpop.permute.xlu0 %343
      %s346 = smul.u32 %s251, 8
      %s347 = scalar_lea.vmem [#allocation3], %s346
      %348 = vst.msk [vmem:[%s347] sm:$0xff] %vm273, %v344
      %v349 = vpack.c.bf16 %v258, %v258
      %351 = vrot.lane.b32.xlu0 %v349, 32
      %v352 = vpop.permute.xlu0 %351
      %v354 = vsel %vm273, %v352, 0
      %356 = vmatprep.subr.bf16.mxu0 0
      %357 = vmatpush1.bf16.msra.mxu0 %v248
      %358 = vmatprep.subr.bf16.mxu0 0
      %359 = vmatpush1.bf16.msra.mxu0 %v249
      %360 = vmatprep.subr.bf16.mxu0 0
      %361 = vmatpush1.bf16.msra.mxu0 0
      %362 = vmatprep.subr.bf16.mxu0 0
      %363 = vmatpush1.bf16.msra.mxu0 0
      %364 = vmatprep.subr.bf16.mxu0 0
      %365 = vmatpush1.bf16.msra.mxu0 0
      %366 = vmatprep.subr.bf16.mxu0 0
      %367 = vmatpush1.bf16.msra.mxu0 0
      %368 = vmatprep.subr.bf16.mxu0 0
      %369 = vmatpush1.bf16.msra.mxu0 0
      %370 = vmatprep.subr.bf16.mxu0 0
      %371 = vmatpush1.bf16.msra.mxu0 0
      %372 = vmatprep.subr.bf16.mxu0 0
      %373 = vmatpush1.bf16.msra.mxu0 0
      %374 = vmatprep.subr.bf16.mxu0 0
      %375 = vmatpush1.bf16.msra.mxu0 0
      %376 = vmatprep.subr.bf16.mxu0 0
      %377 = vmatpush1.bf16.msra.mxu0 0
      %378 = vmatprep.subr.bf16.mxu0 0
      %379 = vmatpush1.bf16.msra.mxu0 0
      %380 = vmatprep.subr.bf16.mxu0 0
      %381 = vmatpush1.bf16.msra.mxu0 0
      %382 = vmatprep.subr.bf16.mxu0 0
      %383 = vmatpush1.bf16.msra.mxu0 0
      %384 = vmatprep.subr.bf16.mxu0 0
      %385 = vmatpush1.bf16.msra.mxu0 0
      %386 = vmatprep.subr.bf16.mxu0 0
      %387 = vmatpush1.bf16.msra.mxu0 0
      %388 = vmatprep.mubr.bf16.mxu0 0
      %389 = vmatmul.mubr.bf16.gmra.mrb[0].mxu0 %v354
      %v390 = vpop.f32.mrb[0].mxu0
      %v391 = vadd.f32 0.0, %v390
      %v392 = vpop.f32.mrb[0].mxu0
      %v393 = vpop.f32.mrb[0].mxu0
      %v394 = vpop.f32.mrb[0].mxu0
      %395 = vdwg.mxu0
      %v396 = vadd.f32 %v268, %v391
      %v397 = vxor.u32 %v396, 2147483648
      %v398 = vmul.f32 %v397, 1.442695
      %v399 = vpow.pop %v398
      %v400 = vadd.f32 %v399, 1.0
      %v401 = vrcp.pop %v400
      %v402 = vmul.f32 1.0, %v401
      %v403 = vtanh.pop %v396
      %v404 = vmul.f32 %v402, %v259
      %406 = vrot.lane.b32.xlu0 %v403, 64
      %v407 = vpop.permute.xlu0 %406
      %v409 = vmul.f32 %v402, %v407
      %411 = vrot.lane.b32.xlu0 %v409, 32
      %v412 = vpop.permute.xlu0 %411
      %v414 = vadd.f32 %v404, %v412
      %v415 = vtanh.pop %v414
      %417 = vrot.lane.b32.xlu0 %v415, 64
      %v418 = vpop.permute.xlu0 %417
      %v420 = vmul.f32 %v402, %v418
      %422 = vrot.lane.b32.xlu0 %v420, 32
      %v423 = vpop.permute.xlu0 %422
      %s425 = smul.u32 %s260, 8
      %s426 = scalar_lea.vmem [#allocation4], %s425
      %427 = vst.msk [vmem:[%s426] sm:$0xff] %vm273, %v423
    $region46: #{bilstm_att_forward.5} parent=1 // loop_footer
      %s255 = sadd.s32 1, %s251
    $region47: #{bilstm_att_forward.5} parent=1 // loop_footer_branch
      %250 = sbr.rel target = $region43
    $region48: #{bilstm_att_forward.5} parent=1 // loop_exit
      _
    %v428 = vld [vmem:[#allocation3] sm:$0xff]
    %v429 = vld [vmem:[#allocation3 + $0x8] sm:$0xff]
    %v430 = vld [vmem:[#allocation3 + $0x10] sm:$0xff]
    %v431 = vld [vmem:[#allocation3 + $0x18] sm:$0xff]
    %v432 = vld [vmem:[#allocation3 + $0x20] sm:$0xff]
    %v433 = vld [vmem:[#allocation3 + $0x28] sm:$0xff]
    %v434 = vld [vmem:[#allocation3 + $0x30] sm:$0xff]
    %v435 = vld [vmem:[#allocation3 + $0x38] sm:$0xff]
    %v436 = vld [vmem:[#allocation4] sm:$0xff]
    %v437 = vld [vmem:[#allocation4 + $0x8] sm:$0xff]
    %v438 = vld [vmem:[#allocation4 + $0x10] sm:$0xff]
    %v439 = vld [vmem:[#allocation4 + $0x18] sm:$0xff]
    %v440 = vld [vmem:[#allocation4 + $0x20] sm:$0xff]
    %v441 = vld [vmem:[#allocation4 + $0x28] sm:$0xff]
    %v442 = vld [vmem:[#allocation4 + $0x30] sm:$0xff]
    %v443 = vld [vmem:[#allocation4 + $0x38] sm:$0xff]
    %452 = vrot.lane.b32.xlu0 %v436, 32
    %v453 = vpop.permute.xlu0 %452
    %454 = vrot.lane.b32.xlu0 %v437, 32
    %v455 = vpop.permute.xlu0 %454
    %456 = vrot.lane.b32.xlu0 %v438, 32
    %v457 = vpop.permute.xlu0 %456
    %458 = vrot.lane.b32.xlu0 %v439, 32
    %v459 = vpop.permute.xlu0 %458
    %460 = vrot.lane.b32.xlu0 %v440, 32
    %v461 = vpop.permute.xlu0 %460
    %462 = vrot.lane.b32.xlu0 %v441, 32
    %v463 = vpop.permute.xlu0 %462
    %464 = vrot.lane.b32.xlu0 %v442, 32
    %v465 = vpop.permute.xlu0 %464
    %466 = vrot.lane.b32.xlu0 %v443, 32
    %v467 = vpop.permute.xlu0 %466
    %vm476 = vcmask 261120
    %v477 = vsel %vm476, %v428, %v453
    %v478 = vsel %vm476, %v429, %v455
    %v479 = vsel %vm476, %v430, %v457
    %v480 = vsel %vm476, %v431, %v459
    %v481 = vsel %vm476, %v432, %v461
    %v482 = vsel %vm476, %v433, %v463
    %v483 = vsel %vm476, %v434, %v465
    %v484 = vsel %vm476, %v435, %v467
    %485 = vst.msk [vmem:[#allocation14] sm:$0xff] %vm136, %v477
    %486 = vst.msk [vmem:[#allocation14 + $0x8] sm:$0xff] %vm136, %v478
    %487 = vst.msk [vmem:[#allocation14 + $0x10] sm:$0xff] %vm136, %v479
    %488 = vst.msk [vmem:[#allocation14 + $0x18] sm:$0xff] %vm136, %v480
    %489 = vst.msk [vmem:[#allocation14 + $0x20] sm:$0xff] %vm136, %v481
    %490 = vst.msk [vmem:[#allocation14 + $0x28] sm:$0xff] %vm136, %v482
    %491 = vst.msk [vmem:[#allocation14 + $0x30] sm:$0xff] %vm136, %v483
    %492 = vst.msk [vmem:[#allocation14 + $0x38] sm:$0xff] %vm136, %v484
    // Predicated region
    $region49: #{bilstm_att_forward.5} parent=1 // pred_check
      _
    $region50: #{bilstm_att_forward.5} parent=1 // pred_check_branch
      %494 = sbr.rel (0) target = $region52
    $region51: #{bilstm_att_forward.5} parent=1 // pred_region
      %s496 = ssub.s32 1024, 1024
      %497 = vsyncadd [#allocation7], %s496
      %s498 = sshll.u32 [#allocation14], 4
      %s499 = int_to_ptr.vmem [resolvable:$true] %s498
      %504 = dma.vmem_to_hbm [thread:$0]  %s499, 1024, %s5, [#allocation7], 128, 128, 8
    $region52: #{bilstm_att_forward.5} parent=1 // pred_fallthru
      _
    // Predicated region
    $region53: #{bilstm_att_forward.5} parent=1 // pred_check
      _
    $region54: #{bilstm_att_forward.5} parent=1 // pred_check_branch
      %506 = sbr.rel (0) target = $region56
    $region55: #{bilstm_att_forward.5} parent=1 // pred_region
      %507 = dma.done [#allocation7], 1024
    $region56: #{bilstm_att_forward.5} parent=1 // pred_fallthru
      _
    %508 = vsyncpa [#allocation6], 1
    %509 = vsyncpa [#allocation9], 1
    %510 = vsyncpa [#allocation12], 1
    %511 = vsyncpa [#allocation7], 1

// kernel: bilstm_att_forward.6
$region0: #{bilstm_att_forward.6}
  #allocation0 [shape = 'u32[]', space=smem, size = 0x4, offset = 0x4, fixed_abs, tag = 'smem constant byte address 0x4 - core index']
  #allocation1 [shape = 'u32[144,128]{1,0:T(1,128)}', space=vmem, size = 0x12000, scoped, tag = 'internal scratch']
  %s0 = inlined_call_operand.hbm [shape: f32[8,8,64], index: 0, kind: input, shape index: {}]
  %s1 = inlined_call_operand.hbm [shape: f32[64,192], index: 1, kind: input, shape index: {}]
  %s2 = inlined_call_operand.hbm [shape: f32[1,192], index: 2, kind: input, shape index: {}]
  %s3 = inlined_call_operand.hbm [shape: f32[64,64], index: 3, kind: input, shape index: {}]
  %s4 = inlined_call_operand.hbm [shape: f32[1,64], index: 4, kind: input, shape index: {}]
  %s5 = inlined_call_operand.hbm [shape: f32[1,64], index: 5, kind: input, shape index: {}]
  %s6 = inlined_call_operand.hbm [shape: f32[1,64], index: 6, kind: input, shape index: {}]
  %s7 = inlined_call_operand.hbm [shape: f32[64,32], index: 7, kind: input, shape index: {}]
  %s8 = inlined_call_operand.hbm [shape: f32[1,32], index: 8, kind: input, shape index: {}]
  %s9 = inlined_call_operand.hbm [shape: f32[32,64], index: 9, kind: input, shape index: {}]
  %s10 = inlined_call_operand.hbm [shape: f32[1,64], index: 10, kind: input, shape index: {}]
  %s11 = inlined_call_operand.hbm [shape: f32[1,64], index: 11, kind: input, shape index: {}]
  %s12 = inlined_call_operand.hbm [shape: f32[1,64], index: 12, kind: input, shape index: {}]
  %s13 = inlined_call_operand.hbm [shape: f32[8,8,64], index: 13, kind: output, shape index: {}]
  %s14 = sld [smem:[#allocation0]]
  $region114: #{bilstm_att_forward.6} parent=0
    _
  %s16 = ssub.s32 1, %s14
  %s17 = scalar_select 0, %s16, %s14
  $region1: #{bilstm_att_forward.6} parent=0
    #allocation2 [shape = 'u8[32768]{0}', space=vmem, size = 0x8000, scoped, tag = 'input window, operand 0, single buffered']
    #allocation3 [shape = 's32[1]{0}', space=sflag, size = 0x4, scoped, tag = 'scoped memory for bilstm_att_forward.6']
    #allocation4 [shape = 's32[1]{0}', space=sflag, size = 0x4, scoped, tag = 'scoped memory for bilstm_att_forward.6']
    #allocation5 [shape = 'u8[65536]{0}', space=vmem, size = 0x10000, scoped, tag = 'input window, operand 1, single buffered']
    #allocation6 [shape = 's32[1]{0}', space=sflag, size = 0x4, scoped, tag = 'scoped memory for bilstm_att_forward.6']
    #allocation7 [shape = 'u8[1024]{0}', space=vmem, size = 0x400, scoped, tag = 'input window, operand 2, single buffered']
    #allocation8 [shape = 'u8[32768]{0}', space=vmem, size = 0x8000, scoped, tag = 'input window, operand 3, single buffered']
    #allocation9 [shape = 's32[1]{0}', space=sflag, size = 0x4, scoped, tag = 'scoped memory for bilstm_att_forward.6']
    #allocation10 [shape = 'u8[512]{0}', space=vmem, size = 0x400, scoped, tag = 'input window, operand 4, single buffered']
    #allocation11 [shape = 'u8[512]{0}', space=vmem, size = 0x400, scoped, tag = 'input window, operand 5, single buffered']
    #allocation12 [shape = 's32[1]{0}', space=sflag, size = 0x4, scoped, tag = 'scoped memory for bilstm_att_forward.6']
    #allocation13 [shape = 'u8[512]{0}', space=vmem, size = 0x400, scoped, tag = 'input window, operand 6, single buffered']
    #allocation14 [shape = 'u8[32768]{0}', space=vmem, size = 0x8000, scoped, tag = 'input window, operand 7, single buffered']
    #allocation15 [shape = 's32[1]{0}', space=sflag, size = 0x4, scoped, tag = 'scoped memory for bilstm_att_forward.6']
    #allocation16 [shape = 'u8[512]{0}', space=vmem, size = 0x400, scoped, tag = 'input window, operand 8, single buffered']
    #allocation17 [shape = 'u8[16384]{0}', space=vmem, size = 0x4000, scoped, tag = 'input window, operand 9, single buffered']
    #allocation18 [shape = 's32[1]{0}', space=sflag, size = 0x4, scoped, tag = 'scoped memory for bilstm_att_forward.6']
    #allocation19 [shape = 'u8[512]{0}', space=vmem, size = 0x400, scoped, tag = 'input window, operand 10, single buffered']
    #allocation20 [shape = 'u8[512]{0}', space=vmem, size = 0x400, scoped, tag = 'input window, operand 11, single buffered']
    #allocation21 [shape = 's32[1]{0}', space=sflag, size = 0x4, scoped, tag = 'scoped memory for bilstm_att_forward.6']
    #allocation22 [shape = 'u8[512]{0}', space=vmem, size = 0x400, scoped, tag = 'input window, operand 12, single buffered']
    #allocation23 [shape = 'u8[32768]{0}', space=vmem, size = 0x8000, scoped, tag = 'output window, operand 0, single buffered']
    %18 = vsyncpa [#allocation3], 0
    %19 = vsyncpa [#allocation6], 0
    %20 = vsyncpa [#allocation9], 0
    %21 = vsyncpa [#allocation12], 0
    %22 = vsyncpa [#allocation15], 0
    %23 = vsyncpa [#allocation18], 0
    %24 = vsyncpa [#allocation21], 0
    %25 = vsyncpa [#allocation4], 0
    // Predicated region
    $region2: #{bilstm_att_forward.6} parent=1 // pred_check
      _
    $region3: #{bilstm_att_forward.6} parent=1 // pred_check_branch
      %27 = sbr.rel (0) target = $region5
    $region4: #{bilstm_att_forward.6} parent=1 // pred_region
      %s29 = ssub.s32 1024, 1024
      %30 = vsyncadd [#allocation3], %s29
      %s31 = sshll.u32 [#allocation2], 4
      %s32 = int_to_ptr.vmem [resolvable:$true] %s31
      %37 = dma.hbm_to_vmem [thread:$0]  %s0, 1024, %s32, [#allocation3], 128, 128, 8
    $region5: #{bilstm_att_forward.6} parent=1 // pred_fallthru
      _
    // Predicated region
    $region6: #{bilstm_att_forward.6} parent=1 // pred_check
      _
    $region7: #{bilstm_att_forward.6} parent=1 // pred_check_branch
      %39 = sbr.rel (0) target = $region9
    $region8: #{bilstm_att_forward.6} parent=1 // pred_region
      %s41 = ssub.s32 2048, 2048
      %42 = vsyncadd [#allocation6], %s41
      %s43 = sshll.u32 [#allocation5], 4
      %s44 = int_to_ptr.vmem [resolvable:$true] %s43
      %49 = dma.hbm_to_vmem [thread:$0]  %s1, 2048, %s44, [#allocation6], 256, 256, 16
    $region9: #{bilstm_att_forward.6} parent=1 // pred_fallthru
      _
    // Predicated region
    $region10: #{bilstm_att_forward.6} parent=1 // pred_check
      _
    $region11: #{bilstm_att_forward.6} parent=1 // pred_check_branch
      %51 = sbr.rel (0) target = $region13
    $region12: #{bilstm_att_forward.6} parent=1 // pred_region
      %s53 = ssub.s32 32, 32
      %54 = vsyncadd [#allocation6], %s53
      %s56 = sshll.u32 [#allocation7], 4
      %s57 = int_to_ptr.vmem [resolvable:$true] %s56
      %59 = dma.hbm_to_vmem [thread:$0]  %s2, 32, %s57, [#allocation6]
    $region13: #{bilstm_att_forward.6} parent=1 // pred_fallthru
      _
    // Predicated region
    $region14: #{bilstm_att_forward.6} parent=1 // pred_check
      _
    $region15: #{bilstm_att_forward.6} parent=1 // pred_check_branch
      %61 = sbr.rel (0) target = $region17
    $region16: #{bilstm_att_forward.6} parent=1 // pred_region
      %s63 = ssub.s32 1024, 1024
      %64 = vsyncadd [#allocation9], %s63
      %s65 = sshll.u32 [#allocation8], 4
      %s66 = int_to_ptr.vmem [resolvable:$true] %s65
      %71 = dma.hbm_to_vmem [thread:$0]  %s3, 1024, %s66, [#allocation9], 128, 128, 8
    $region17: #{bilstm_att_forward.6} parent=1 // pred_fallthru
      _
    // Predicated region
    $region18: #{bilstm_att_forward.6} parent=1 // pred_check
      _
    $region19: #{bilstm_att_forward.6} parent=1 // pred_check_branch
      %73 = sbr.rel (0) target = $region21
    $region20: #{bilstm_att_forward.6} parent=1 // pred_region
      %s75 = ssub.s32 16, 16
      %76 = vsyncadd [#allocation9], %s75
      %s78 = sshll.u32 [#allocation10], 4
      %s79 = int_to_ptr.vmem [resolvable:$true] %s78
      %81 = dma.hbm_to_vmem [thread:$0]  %s4, 16, %s79, [#allocation9]
    $region21: #{bilstm_att_forward.6} parent=1 // pred_fallthru
      _
    // Predicated region
    $region22: #{bilstm_att_forward.6} parent=1 // pred_check
      _
    $region23: #{bilstm_att_forward.6} parent=1 // pred_check_branch
      %83 = sbr.rel (0) target = $region25
    $region24: #{bilstm_att_forward.6} parent=1 // pred_region
      %s85 = ssub.s32 16, 16
      %86 = vsyncadd [#allocation12], %s85
      %s88 = sshll.u32 [#allocation11], 4
      %s89 = int_to_ptr.vmem [resolvable:$true] %s88
      %91 = dma.hbm_to_vmem [thread:$0]  %s5, 16, %s89, [#allocation12]
    $region25: #{bilstm_att_forward.6} parent=1 // pred_fallthru
      _
    // Predicated region
    $region26: #{bilstm_att_forward.6} parent=1 // pred_check
      _
    $region27: #{bilstm_att_forward.6} parent=1 // pred_check_branch
      %93 = sbr.rel (0) target = $region29
    $region28: #{bilstm_att_forward.6} parent=1 // pred_region
      %s95 = ssub.s32 16, 16
      %96 = vsyncadd [#allocation12], %s95
      %s98 = sshll.u32 [#allocation13], 4
      %s99 = int_to_ptr.vmem [resolvable:$true] %s98
      %101 = dma.hbm_to_vmem [thread:$0]  %s6, 16, %s99, [#allocation12]
    $region29: #{bilstm_att_forward.6} parent=1 // pred_fallthru
      _
    // Predicated region
    $region30: #{bilstm_att_forward.6} parent=1 // pred_check
      _
    $region31: #{bilstm_att_forward.6} parent=1 // pred_check_branch
      %103 = sbr.rel (0) target = $region33
    $region32: #{bilstm_att_forward.6} parent=1 // pred_region
      %s105 = ssub.s32 1024, 1024
      %106 = vsyncadd [#allocation15], %s105
      %s107 = sshll.u32 [#allocation14], 4
      %s108 = int_to_ptr.vmem [resolvable:$true] %s107
      %113 = dma.hbm_to_vmem [thread:$0]  %s7, 1024, %s108, [#allocation15], 128, 128, 8
    $region33: #{bilstm_att_forward.6} parent=1 // pred_fallthru
      _
    // Predicated region
    $region34: #{bilstm_att_forward.6} parent=1 // pred_check
      _
    $region35: #{bilstm_att_forward.6} parent=1 // pred_check_branch
      %115 = sbr.rel (0) target = $region37
    $region36: #{bilstm_att_forward.6} parent=1 // pred_region
      %s117 = ssub.s32 16, 16
      %118 = vsyncadd [#allocation15], %s117
      %s120 = sshll.u32 [#allocation16], 4
      %s121 = int_to_ptr.vmem [resolvable:$true] %s120
      %123 = dma.hbm_to_vmem [thread:$0]  %s8, 16, %s121, [#allocation15]
    $region37: #{bilstm_att_forward.6} parent=1 // pred_fallthru
      _
    // Predicated region
    $region38: #{bilstm_att_forward.6} parent=1 // pred_check
      _
    $region39: #{bilstm_att_forward.6} parent=1 // pred_check_branch
      %125 = sbr.rel (0) target = $region41
    $region40: #{bilstm_att_forward.6} parent=1 // pred_region
      %s127 = ssub.s32 512, 512
      %128 = vsyncadd [#allocation18], %s127
      %s129 = sshll.u32 [#allocation17], 4
      %s130 = int_to_ptr.vmem [resolvable:$true] %s129
      %135 = dma.hbm_to_vmem [thread:$0]  %s9, 512, %s130, [#allocation18], 128, 128, 8
    $region41: #{bilstm_att_forward.6} parent=1 // pred_fallthru
      _
    // Predicated region
    $region42: #{bilstm_att_forward.6} parent=1 // pred_check
      _
    $region43: #{bilstm_att_forward.6} parent=1 // pred_check_branch
      %137 = sbr.rel (0) target = $region45
    $region44: #{bilstm_att_forward.6} parent=1 // pred_region
      %s139 = ssub.s32 16, 16
      %140 = vsyncadd [#allocation18], %s139
      %s142 = sshll.u32 [#allocation19], 4
      %s143 = int_to_ptr.vmem [resolvable:$true] %s142
      %145 = dma.hbm_to_vmem [thread:$0]  %s10, 16, %s143, [#allocation18]
    $region45: #{bilstm_att_forward.6} parent=1 // pred_fallthru
      _
    // Predicated region
    $region46: #{bilstm_att_forward.6} parent=1 // pred_check
      _
    $region47: #{bilstm_att_forward.6} parent=1 // pred_check_branch
      %147 = sbr.rel (0) target = $region49
    $region48: #{bilstm_att_forward.6} parent=1 // pred_region
      %s149 = ssub.s32 16, 16
      %150 = vsyncadd [#allocation21], %s149
      %s152 = sshll.u32 [#allocation20], 4
      %s153 = int_to_ptr.vmem [resolvable:$true] %s152
      %155 = dma.hbm_to_vmem [thread:$0]  %s11, 16, %s153, [#allocation21]
    $region49: #{bilstm_att_forward.6} parent=1 // pred_fallthru
      _
    // Predicated region
    $region50: #{bilstm_att_forward.6} parent=1 // pred_check
      _
    $region51: #{bilstm_att_forward.6} parent=1 // pred_check_branch
      %157 = sbr.rel (0) target = $region53
    $region52: #{bilstm_att_forward.6} parent=1 // pred_region
      %s159 = ssub.s32 16, 16
      %160 = vsyncadd [#allocation21], %s159
      %s162 = sshll.u32 [#allocation22], 4
      %s163 = int_to_ptr.vmem [resolvable:$true] %s162
      %165 = dma.hbm_to_vmem [thread:$0]  %s12, 16, %s163, [#allocation21]
    $region53: #{bilstm_att_forward.6} parent=1 // pred_fallthru
      _
    // Predicated region
    $region54: #{bilstm_att_forward.6} parent=1 // pred_check
      _
    $region55: #{bilstm_att_forward.6} parent=1 // pred_check_branch
      %167 = sbr.rel (0) target = $region57
    $region56: #{bilstm_att_forward.6} parent=1 // pred_region
      %168 = dma.done [#allocation3], 1024
    $region57: #{bilstm_att_forward.6} parent=1 // pred_fallthru
      _
    // Predicated region
    $region58: #{bilstm_att_forward.6} parent=1 // pred_check
      _
    $region59: #{bilstm_att_forward.6} parent=1 // pred_check_branch
      %170 = sbr.rel (0) target = $region61
    $region60: #{bilstm_att_forward.6} parent=1 // pred_region
      %171 = dma.done [#allocation6], 2048
    $region61: #{bilstm_att_forward.6} parent=1 // pred_fallthru
      _
    // Predicated region
    $region62: #{bilstm_att_forward.6} parent=1 // pred_check
      _
    $region63: #{bilstm_att_forward.6} parent=1 // pred_check_branch
      %173 = sbr.rel (0) target = $region65
    $region64: #{bilstm_att_forward.6} parent=1 // pred_region
      %174 = dma.done [#allocation6], 32
    $region65: #{bilstm_att_forward.6} parent=1 // pred_fallthru
      _
    // Predicated region
    $region66: #{bilstm_att_forward.6} parent=1 // pred_check
      _
    $region67: #{bilstm_att_forward.6} parent=1 // pred_check_branch
      %176 = sbr.rel (0) target = $region69
    $region68: #{bilstm_att_forward.6} parent=1 // pred_region
      %177 = dma.done [#allocation9], 1024
    $region69: #{bilstm_att_forward.6} parent=1 // pred_fallthru
      _
    // Predicated region
    $region70: #{bilstm_att_forward.6} parent=1 // pred_check
      _
    $region71: #{bilstm_att_forward.6} parent=1 // pred_check_branch
      %179 = sbr.rel (0) target = $region73
    $region72: #{bilstm_att_forward.6} parent=1 // pred_region
      %180 = dma.done [#allocation9], 16
    $region73: #{bilstm_att_forward.6} parent=1 // pred_fallthru
      _
    // Predicated region
    $region74: #{bilstm_att_forward.6} parent=1 // pred_check
      _
    $region75: #{bilstm_att_forward.6} parent=1 // pred_check_branch
      %182 = sbr.rel (0) target = $region77
    $region76: #{bilstm_att_forward.6} parent=1 // pred_region
      %183 = dma.done [#allocation12], 16
    $region77: #{bilstm_att_forward.6} parent=1 // pred_fallthru
      _
    // Predicated region
    $region78: #{bilstm_att_forward.6} parent=1 // pred_check
      _
    $region79: #{bilstm_att_forward.6} parent=1 // pred_check_branch
      %185 = sbr.rel (0) target = $region81
    $region80: #{bilstm_att_forward.6} parent=1 // pred_region
      %186 = dma.done [#allocation12], 16
    $region81: #{bilstm_att_forward.6} parent=1 // pred_fallthru
      _
    // Predicated region
    $region82: #{bilstm_att_forward.6} parent=1 // pred_check
      _
    $region83: #{bilstm_att_forward.6} parent=1 // pred_check_branch
      %188 = sbr.rel (0) target = $region85
    $region84: #{bilstm_att_forward.6} parent=1 // pred_region
      %189 = dma.done [#allocation15], 1024
    $region85: #{bilstm_att_forward.6} parent=1 // pred_fallthru
      _
    // Predicated region
    $region86: #{bilstm_att_forward.6} parent=1 // pred_check
      _
    $region87: #{bilstm_att_forward.6} parent=1 // pred_check_branch
      %191 = sbr.rel (0) target = $region89
    $region88: #{bilstm_att_forward.6} parent=1 // pred_region
      %192 = dma.done [#allocation15], 16
    $region89: #{bilstm_att_forward.6} parent=1 // pred_fallthru
      _
    // Predicated region
    $region90: #{bilstm_att_forward.6} parent=1 // pred_check
      _
    $region91: #{bilstm_att_forward.6} parent=1 // pred_check_branch
      %194 = sbr.rel (0) target = $region93
    $region92: #{bilstm_att_forward.6} parent=1 // pred_region
      %195 = dma.done [#allocation18], 512
    $region93: #{bilstm_att_forward.6} parent=1 // pred_fallthru
      _
    // Predicated region
    $region94: #{bilstm_att_forward.6} parent=1 // pred_check
      _
    $region95: #{bilstm_att_forward.6} parent=1 // pred_check_branch
      %197 = sbr.rel (0) target = $region97
    $region96: #{bilstm_att_forward.6} parent=1 // pred_region
      %198 = dma.done [#allocation18], 16
    $region97: #{bilstm_att_forward.6} parent=1 // pred_fallthru
      _
    // Predicated region
    $region98: #{bilstm_att_forward.6} parent=1 // pred_check
      _
    $region99: #{bilstm_att_forward.6} parent=1 // pred_check_branch
      %200 = sbr.rel (0) target = $region101
    $region100: #{bilstm_att_forward.6} parent=1 // pred_region
      %201 = dma.done [#allocation21], 16
    $region101: #{bilstm_att_forward.6} parent=1 // pred_fallthru
      _
    // Predicated region
    $region102: #{bilstm_att_forward.6} parent=1 // pred_check
      _
    $region103: #{bilstm_att_forward.6} parent=1 // pred_check_branch
      %203 = sbr.rel (0) target = $region105
    $region104: #{bilstm_att_forward.6} parent=1 // pred_region
      %204 = dma.done [#allocation21], 16
    $region105: #{bilstm_att_forward.6} parent=1 // pred_fallthru
      _
    %v206 = vld [vmem:[#allocation2] sm:$0xff]
    %v207 = vld [vmem:[#allocation2 + $0x8] sm:$0xff]
    %v208 = vld [vmem:[#allocation2 + $0x10] sm:$0xff]
    %v209 = vld [vmem:[#allocation2 + $0x18] sm:$0xff]
    %v210 = vld [vmem:[#allocation2 + $0x20] sm:$0xff]
    %v211 = vld [vmem:[#allocation2 + $0x28] sm:$0xff]
    %v212 = vld [vmem:[#allocation2 + $0x30] sm:$0xff]
    %v213 = vld [vmem:[#allocation2 + $0x38] sm:$0xff]
    %v214 = vpack.c.bf16 %v207, %v206
    %v215 = vpack.c.bf16 %v209, %v208
    %v216 = vpack.c.bf16 %v211, %v210
    %v217 = vpack.c.bf16 %v213, %v212
    %v218 = vld [vmem:[#allocation5] sm:$0xff]
    %v219 = vld [vmem:[#allocation5 + $0x8] sm:$0xff]
    %v220 = vld [vmem:[#allocation5 + $0x10] sm:$0xff]
    %v221 = vld [vmem:[#allocation5 + $0x18] sm:$0xff]
    %v222 = vld [vmem:[#allocation5 + $0x20] sm:$0xff]
    %v223 = vld [vmem:[#allocation5 + $0x28] sm:$0xff]
    %v224 = vld [vmem:[#allocation5 + $0x30] sm:$0xff]
    %v225 = vld [vmem:[#allocation5 + $0x38] sm:$0xff]
    %v226 = vld [vmem:[#allocation5 + $0x40] sm:$0xff]
    %v227 = vld [vmem:[#allocation5 + $0x48] sm:$0xff]
    %v228 = vld [vmem:[#allocation5 + $0x50] sm:$0xff]
    %v229 = vld [vmem:[#allocation5 + $0x58] sm:$0xff]
    %v230 = vld [vmem:[#allocation5 + $0x60] sm:$0xff]
    %v231 = vld [vmem:[#allocation5 + $0x68] sm:$0xff]
    %v232 = vld [vmem:[#allocation5 + $0x70] sm:$0xff]
    %v233 = vld [vmem:[#allocation5 + $0x78] sm:$0xff]
    %v234 = vpack.c.bf16 %v220, %v218
    %v235 = vpack.c.bf16 %v221, %v219
    %v236 = vpack.c.bf16 %v224, %v222
    %v237 = vpack.c.bf16 %v225, %v223
    %v238 = vpack.c.bf16 %v228, %v226
    %v239 = vpack.c.bf16 %v229, %v227
    %v240 = vpack.c.bf16 %v232, %v230
    %v241 = vpack.c.bf16 %v233, %v231
    %v242 = vld [vmem:[#allocation7] sm:$0x3]
    %v244 = vlaneseq
    %v245 = vshrl.u32 %v244, 7
    %v246 = vsub.s32 0, %v245
    %v247 = vrot.slane %v242, %v246
    %v248 = vlaneseq
    %v249 = vshrl.u32 %v248, 7
    %v250 = vsub.s32 1, %v249
    %v251 = vrot.slane %v242, %v250
    %vm254 = vcmask 523264
    %v256 = vsel %vm254, %v214, 0
    %v259 = vsel %vm254, %v215, 0
    %v262 = vsel %vm254, %v216, 0
    %v265 = vsel %vm254, %v217, 0
    %267 = vmatprep.subr.bf16.mxu0 %v235
    %268 = vmatpush1.bf16.msra.mxu0 %v234
    %269 = vmatprep.subr.bf16.mxu0 %v237
    %270 = vmatpush1.bf16.msra.mxu0 %v236
    %271 = vmatprep.subr.bf16.mxu0 %v239
    %272 = vmatpush1.bf16.msra.mxu0 %v238
    %273 = vmatprep.subr.bf16.mxu0 %v241
    %274 = vmatpush1.bf16.msra.mxu0 %v240
    %275 = vmatprep.subr.bf16.mxu0 0
    %276 = vmatpush1.bf16.msra.mxu0 0
    %277 = vmatprep.subr.bf16.mxu0 0
    %278 = vmatpush1.bf16.msra.mxu0 0
    %279 = vmatprep.subr.bf16.mxu0 0
    %280 = vmatpush1.bf16.msra.mxu0 0
    %281 = vmatprep.subr.bf16.mxu0 0
    %282 = vmatpush1.bf16.msra.mxu0 0
    %283 = vmatprep.subr.bf16.mxu0 0
    %284 = vmatpush1.bf16.msra.mxu0 0
    %285 = vmatprep.subr.bf16.mxu0 0
    %286 = vmatpush1.bf16.msra.mxu0 0
    %287 = vmatprep.subr.bf16.mxu0 0
    %288 = vmatpush1.bf16.msra.mxu0 0
    %289 = vmatprep.subr.bf16.mxu0 0
    %290 = vmatpush1.bf16.msra.mxu0 0
    %291 = vmatprep.subr.bf16.mxu0 0
    %292 = vmatpush1.bf16.msra.mxu0 0
    %293 = vmatprep.subr.bf16.mxu0 0
    %294 = vmatpush1.bf16.msra.mxu0 0
    %295 = vmatprep.subr.bf16.mxu0 0
    %296 = vmatpush1.bf16.msra.mxu0 0
    %297 = vmatprep.subr.bf16.mxu0 0
    %298 = vmatpush1.bf16.msra.mxu0 0
    %299 = vmatprep.mubr.bf16.mxu0 0
    %300 = vmatmul.mubr.bf16.gmra.mrb[0].mxu0 %v256
    %v301 = vpop.f32.mrb[0].mxu0
    %v302 = vadd.f32 %v247, %v301
    %v303 = vpop.f32.mrb[0].mxu0
    %v304 = vadd.f32 %v251, %v303
    %v305 = vpop.f32.mrb[0].mxu0
    %v306 = vadd.f32 %v247, %v305
    %v307 = vpop.f32.mrb[0].mxu0
    %v308 = vadd.f32 %v251, %v307
    %309 = vmatprep.mubr.bf16.mxu0 0
    %310 = vmatmul.mubr.bf16.gmra.mrb[0].mxu0 %v259
    %v311 = vpop.f32.mrb[0].mxu0
    %v312 = vadd.f32 %v247, %v311
    %v313 = vpop.f32.mrb[0].mxu0
    %v314 = vadd.f32 %v251, %v313
    %v315 = vpop.f32.mrb[0].mxu0
    %v316 = vadd.f32 %v247, %v315
    %v317 = vpop.f32.mrb[0].mxu0
    %v318 = vadd.f32 %v251, %v317
    %319 = vmatprep.mubr.bf16.mxu0 0
    %320 = vmatmul.mubr.bf16.gmra.mrb[0].mxu0 %v262
    %v321 = vpop.f32.mrb[0].mxu0
    %v322 = vadd.f32 %v247, %v321
    %v323 = vpop.f32.mrb[0].mxu0
    %v324 = vadd.f32 %v251, %v323
    %v325 = vpop.f32.mrb[0].mxu0
    %v326 = vadd.f32 %v247, %v325
    %v327 = vpop.f32.mrb[0].mxu0
    %v328 = vadd.f32 %v251, %v327
    %329 = vmatprep.mubr.bf16.mxu0 0
    %330 = vmatmul.mubr.bf16.gmra.mrb[0].mxu0 %v265
    %v331 = vpop.f32.mrb[0].mxu0
    %v332 = vadd.f32 %v247, %v331
    %v333 = vpop.f32.mrb[0].mxu0
    %v334 = vadd.f32 %v251, %v333
    %v335 = vpop.f32.mrb[0].mxu0
    %v336 = vadd.f32 %v247, %v335
    %v337 = vpop.f32.mrb[0].mxu0
    %v338 = vadd.f32 %v251, %v337
    %339 = vdwg.mxu0
    %v340 = vmul.f32 %v302, 0.25
    %v341 = vmul.f32 %v306, 0.25
    %v342 = vmul.f32 %v312, 0.25
    %v343 = vmul.f32 %v316, 0.25
    %v344 = vmul.f32 %v322, 0.25
    %v345 = vmul.f32 %v326, 0.25
    %v346 = vmul.f32 %v332, 0.25
    %v347 = vmul.f32 %v336, 0.25
    %v348 = vpack.c.bf16 %v340, %v340
    %v349 = vpack.c.bf16 %v341, %v341
    %v350 = vpack.c.bf16 %v342, %v342
    %v351 = vpack.c.bf16 %v343, %v343
    %v352 = vpack.c.bf16 %v344, %v344
    %v353 = vpack.c.bf16 %v345, %v345
    %v354 = vpack.c.bf16 %v346, %v346
    %v355 = vpack.c.bf16 %v347, %v347
    %v356 = vpack.c.bf16 %v302, %v302
    %v357 = vpack.c.bf16 %v306, %v306
    %v358 = vpack.c.bf16 %v312, %v312
    %v359 = vpack.c.bf16 %v316, %v316
    %v360 = vpack.c.bf16 %v322, %v322
    %v361 = vpack.c.bf16 %v326, %v326
    %v362 = vpack.c.bf16 %v332, %v332
    %v363 = vpack.c.bf16 %v336, %v336
    %v364 = vpack.c.bf16 %v304, %v304
    %v365 = vpack.c.bf16 %v308, %v308
    %v366 = vpack.c.bf16 %v314, %v314
    %v367 = vpack.c.bf16 %v318, %v318
    %v368 = vpack.c.bf16 %v324, %v324
    %v369 = vpack.c.bf16 %v328, %v328
    %v370 = vpack.c.bf16 %v334, %v334
    %v371 = vpack.c.bf16 %v338, %v338
    %373 = vrot.lane.b32.xlu0 %v356, 64
    %v374 = vpop.permute.xlu0 %373
    %vm375 = vcmask 130048
    %v377 = vsel %vm375, %v348, 0
    %v380 = vsel %vm375, %v374, 0
    %382 = vmatprep.subr.bf16.mxu0 0
    %383 = vmatpush1.bf16.xpose.msra.mxu0 %v380
    %384 = vmatprep.subr.bf16.mxu0 0
    %385 = vmatpush1.bf16.xpose.msra.mxu0 0
    %386 = vmatprep.subr.bf16.mxu0 0
    %387 = vmatpush1.bf16.xpose.msra.mxu0 0
    %388 = vmatprep.subr.bf16.mxu0 0
    %389 = vmatpush1.bf16.xpose.msra.mxu0 0
    %390 = vmatprep.subr.bf16.mxu0 0
    %391 = vmatpush1.bf16.xpose.msra.mxu0 0
    %392 = vmatprep.subr.bf16.mxu0 0
    %393 = vmatpush1.bf16.xpose.msra.mxu0 0
    %394 = vmatprep.subr.bf16.mxu0 0
    %395 = vmatpush1.bf16.xpose.msra.mxu0 0
    %396 = vmatprep.subr.bf16.mxu0 0
    %397 = vmatpush1.bf16.xpose.msra.mxu0 0
    %398 = vmatprep.subr.bf16.mxu0 0
    %399 = vmatpush1.bf16.xpose.msra.mxu0 0
    %400 = vmatprep.subr.bf16.mxu0 0
    %401 = vmatpush1.bf16.xpose.msra.mxu0 0
    %402 = vmatprep.subr.bf16.mxu0 0
    %403 = vmatpush1.bf16.xpose.msra.mxu0 0
    %404 = vmatprep.subr.bf16.mxu0 0
    %405 = vmatpush1.bf16.xpose.msra.mxu0 0
    %406 = vmatprep.subr.bf16.mxu0 0
    %407 = vmatpush1.bf16.xpose.msra.mxu0 0
    %408 = vmatprep.subr.bf16.mxu0 0
    %409 = vmatpush1.bf16.xpose.msra.mxu0 0
    %410 = vmatprep.subr.bf16.mxu0 0
    %411 = vmatpush1.bf16.xpose.msra.mxu0 0
    %412 = vmatprep.subr.bf16.mxu0 0
    %413 = vmatpush1.bf16.xpose.msra.mxu0 0
    %414 = vmatprep.mubr.bf16.mxu0 0
    %415 = vmatmul.mubr.bf16.gmra.mrb[0].mxu0 %v377
    %v416 = vpop.f32.mrb[0].mxu0
    %v417 = vadd.f32 0.0, %v416
    %v418 = vpop.f32.mrb[0].mxu0
    %v419 = vpop.f32.mrb[0].mxu0
    %v420 = vpop.f32.mrb[0].mxu0
    %421 = vdwg.mxu0
    %423 = vrot.lane.b32.xlu0 %v357, 64
    %v424 = vpop.permute.xlu0 %423
    %v426 = vsel %vm375, %v349, 0
    %v429 = vsel %vm375, %v424, 0
    %431 = vmatprep.subr.bf16.mxu0 0
    %432 = vmatpush1.bf16.xpose.msra.mxu0 %v429
    %433 = vmatprep.subr.bf16.mxu0 0
    %434 = vmatpush1.bf16.xpose.msra.mxu0 0
    %435 = vmatprep.subr.bf16.mxu0 0
    %436 = vmatpush1.bf16.xpose.msra.mxu0 0
    %437 = vmatprep.subr.bf16.mxu0 0
    %438 = vmatpush1.bf16.xpose.msra.mxu0 0
    %439 = vmatprep.subr.bf16.mxu0 0
    %440 = vmatpush1.bf16.xpose.msra.mxu0 0
    %441 = vmatprep.subr.bf16.mxu0 0
    %442 = vmatpush1.bf16.xpose.msra.mxu0 0
    %443 = vmatprep.subr.bf16.mxu0 0
    %444 = vmatpush1.bf16.xpose.msra.mxu0 0
    %445 = vmatprep.subr.bf16.mxu0 0
    %446 = vmatpush1.bf16.xpose.msra.mxu0 0
    %447 = vmatprep.subr.bf16.mxu0 0
    %448 = vmatpush1.bf16.xpose.msra.mxu0 0
    %449 = vmatprep.subr.bf16.mxu0 0
    %450 = vmatpush1.bf16.xpose.msra.mxu0 0
    %451 = vmatprep.subr.bf16.mxu0 0
    %452 = vmatpush1.bf16.xpose.msra.mxu0 0
    %453 = vmatprep.subr.bf16.mxu0 0
    %454 = vmatpush1.bf16.xpose.msra.mxu0 0
    %455 = vmatprep.subr.bf16.mxu0 0
    %456 = vmatpush1.bf16.xpose.msra.mxu0 0
    %457 = vmatprep.subr.bf16.mxu0 0
    %458 = vmatpush1.bf16.xpose.msra.mxu0 0
    %459 = vmatprep.subr.bf16.mxu0 0
    %460 = vmatpush1.bf16.xpose.msra.mxu0 0
    %461 = vmatprep.subr.bf16.mxu0 0
    %462 = vmatpush1.bf16.xpose.msra.mxu0 0
    %463 = vmatprep.mubr.bf16.mxu0 0
    %464 = vmatmul.mubr.bf16.gmra.mrb[0].mxu0 %v426
    %v465 = vpop.f32.mrb[0].mxu0
    %v466 = vadd.f32 0.0, %v465
    %v467 = vpop.f32.mrb[0].mxu0
    %v468 = vpop.f32.mrb[0].mxu0
    %v469 = vpop.f32.mrb[0].mxu0
    %470 = vdwg.mxu0
    %472 = vrot.lane.b32.xlu0 %v358, 64
    %v473 = vpop.permute.xlu0 %472
    %v475 = vsel %vm375, %v350, 0
    %v478 = vsel %vm375, %v473, 0
    %480 = vmatprep.subr.bf16.mxu0 0
    %481 = vmatpush1.bf16.xpose.msra.mxu0 %v478
    %482 = vmatprep.subr.bf16.mxu0 0
    %483 = vmatpush1.bf16.xpose.msra.mxu0 0
    %484 = vmatprep.subr.bf16.mxu0 0
    %485 = vmatpush1.bf16.xpose.msra.mxu0 0
    %486 = vmatprep.subr.bf16.mxu0 0
    %487 = vmatpush1.bf16.xpose.msra.mxu0 0
    %488 = vmatprep.subr.bf16.mxu0 0
    %489 = vmatpush1.bf16.xpose.msra.mxu0 0
    %490 = vmatprep.subr.bf16.mxu0 0
    %491 = vmatpush1.bf16.xpose.msra.mxu0 0
    %492 = vmatprep.subr.bf16.mxu0 0
    %493 = vmatpush1.bf16.xpose.msra.mxu0 0
    %494 = vmatprep.subr.bf16.mxu0 0
    %495 = vmatpush1.bf16.xpose.msra.mxu0 0
    %496 = vmatprep.subr.bf16.mxu0 0
    %497 = vmatpush1.bf16.xpose.msra.mxu0 0
    %498 = vmatprep.subr.bf16.mxu0 0
    %499 = vmatpush1.bf16.xpose.msra.mxu0 0
    %500 = vmatprep.subr.bf16.mxu0 0
    %501 = vmatpush1.bf16.xpose.msra.mxu0 0
    %502 = vmatprep.subr.bf16.mxu0 0
    %503 = vmatpush1.bf16.xpose.msra.mxu0 0
    %504 = vmatprep.subr.bf16.mxu0 0
    %505 = vmatpush1.bf16.xpose.msra.mxu0 0
    %506 = vmatprep.subr.bf16.mxu0 0
    %507 = vmatpush1.bf16.xpose.msra.mxu0 0
    %508 = vmatprep.subr.bf16.mxu0 0
    %509 = vmatpush1.bf16.xpose.msra.mxu0 0
    %510 = vmatprep.subr.bf16.mxu0 0
    %511 = vmatpush1.bf16.xpose.msra.mxu0 0
    %512 = vmatprep.mubr.bf16.mxu0 0
    %513 = vmatmul.mubr.bf16.gmra.mrb[0].mxu0 %v475
    %v514 = vpop.f32.mrb[0].mxu0
    %v515 = vadd.f32 0.0, %v514
    %v516 = vpop.f32.mrb[0].mxu0
    %v517 = vpop.f32.mrb[0].mxu0
    %v518 = vpop.f32.mrb[0].mxu0
    %519 = vdwg.mxu0
    %521 = vrot.lane.b32.xlu0 %v359, 64
    %v522 = vpop.permute.xlu0 %521
    %v524 = vsel %vm375, %v351, 0
    %v527 = vsel %vm375, %v522, 0
    %529 = vmatprep.subr.bf16.mxu0 0
    %530 = vmatpush1.bf16.xpose.msra.mxu0 %v527
    %531 = vmatprep.subr.bf16.mxu0 0
    %532 = vmatpush1.bf16.xpose.msra.mxu0 0
    %533 = vmatprep.subr.bf16.mxu0 0
    %534 = vmatpush1.bf16.xpose.msra.mxu0 0
    %535 = vmatprep.subr.bf16.mxu0 0
    %536 = vmatpush1.bf16.xpose.msra.mxu0 0
    %537 = vmatprep.subr.bf16.mxu0 0
    %538 = vmatpush1.bf16.xpose.msra.mxu0 0
    %539 = vmatprep.subr.bf16.mxu0 0
    %540 = vmatpush1.bf16.xpose.msra.mxu0 0
    %541 = vmatprep.subr.bf16.mxu0 0
    %542 = vmatpush1.bf16.xpose.msra.mxu0 0
    %543 = vmatprep.subr.bf16.mxu0 0
    %544 = vmatpush1.bf16.xpose.msra.mxu0 0
    %545 = vmatprep.subr.bf16.mxu0 0
    %546 = vmatpush1.bf16.xpose.msra.mxu0 0
    %547 = vmatprep.subr.bf16.mxu0 0
    %548 = vmatpush1.bf16.xpose.msra.mxu0 0
    %549 = vmatprep.subr.bf16.mxu0 0
    %550 = vmatpush1.bf16.xpose.msra.mxu0 0
    %551 = vmatprep.subr.bf16.mxu0 0
    %552 = vmatpush1.bf16.xpose.msra.mxu0 0
    %553 = vmatprep.subr.bf16.mxu0 0
    %554 = vmatpush1.bf16.xpose.msra.mxu0 0
    %555 = vmatprep.subr.bf16.mxu0 0
    %556 = vmatpush1.bf16.xpose.msra.mxu0 0
    %557 = vmatprep.subr.bf16.mxu0 0
    %558 = vmatpush1.bf16.xpose.msra.mxu0 0
    %559 = vmatprep.subr.bf16.mxu0 0
    %560 = vmatpush1.bf16.xpose.msra.mxu0 0
    %561 = vmatprep.mubr.bf16.mxu0 0
    %562 = vmatmul.mubr.bf16.gmra.mrb[0].mxu0 %v524
    %v563 = vpop.f32.mrb[0].mxu0
    %v564 = vadd.f32 0.0, %v563
    %v565 = vpop.f32.mrb[0].mxu0
    %v566 = vpop.f32.mrb[0].mxu0
    %v567 = vpop.f32.mrb[0].mxu0
    %568 = vdwg.mxu0
    %570 = vrot.lane.b32.xlu0 %v360, 64
    %v571 = vpop.permute.xlu0 %570
    %v573 = vsel %vm375, %v352, 0
    %v576 = vsel %vm375, %v571, 0
    %578 = vmatprep.subr.bf16.mxu0 0
    %579 = vmatpush1.bf16.xpose.msra.mxu0 %v576
    %580 = vmatprep.subr.bf16.mxu0 0
    %581 = vmatpush1.bf16.xpose.msra.mxu0 0
    %582 = vmatprep.subr.bf16.mxu0 0
    %583 = vmatpush1.bf16.xpose.msra.mxu0 0
    %584 = vmatprep.subr.bf16.mxu0 0
    %585 = vmatpush1.bf16.xpose.msra.mxu0 0
    %586 = vmatprep.subr.bf16.mxu0 0
    %587 = vmatpush1.bf16.xpose.msra.mxu0 0
    %588 = vmatprep.subr.bf16.mxu0 0
    %589 = vmatpush1.bf16.xpose.msra.mxu0 0
    %590 = vmatprep.subr.bf16.mxu0 0
    %591 = vmatpush1.bf16.xpose.msra.mxu0 0
    %592 = vmatprep.subr.bf16.mxu0 0
    %593 = vmatpush1.bf16.xpose.msra.mxu0 0
    %594 = vmatprep.subr.bf16.mxu0 0
    %595 = vmatpush1.bf16.xpose.msra.mxu0 0
    %596 = vmatprep.subr.bf16.mxu0 0
    %597 = vmatpush1.bf16.xpose.msra.mxu0 0
    %598 = vmatprep.subr.bf16.mxu0 0
    %599 = vmatpush1.bf16.xpose.msra.mxu0 0
    %600 = vmatprep.subr.bf16.mxu0 0
    %601 = vmatpush1.bf16.xpose.msra.mxu0 0
    %602 = vmatprep.subr.bf16.mxu0 0
    %603 = vmatpush1.bf16.xpose.msra.mxu0 0
    %604 = vmatprep.subr.bf16.mxu0 0
    %605 = vmatpush1.bf16.xpose.msra.mxu0 0
    %606 = vmatprep.subr.bf16.mxu0 0
    %607 = vmatpush1.bf16.xpose.msra.mxu0 0
    %608 = vmatprep.subr.bf16.mxu0 0
    %609 = vmatpush1.bf16.xpose.msra.mxu0 0
    %610 = vmatprep.mubr.bf16.mxu0 0
    %611 = vmatmul.mubr.bf16.gmra.mrb[0].mxu0 %v573
    %v612 = vpop.f32.mrb[0].mxu0
    %v613 = vadd.f32 0.0, %v612
    %v614 = vpop.f32.mrb[0].mxu0
    %v615 = vpop.f32.mrb[0].mxu0
    %v616 = vpop.f32.mrb[0].mxu0
    %617 = vdwg.mxu0
    %619 = vrot.lane.b32.xlu0 %v361, 64
    %v620 = vpop.permute.xlu0 %619
    %v622 = vsel %vm375, %v353, 0
    %v625 = vsel %vm375, %v620, 0
    %627 = vmatprep.subr.bf16.mxu0 0
    %628 = vmatpush1.bf16.xpose.msra.mxu0 %v625
    %629 = vmatprep.subr.bf16.mxu0 0
    %630 = vmatpush1.bf16.xpose.msra.mxu0 0
    %631 = vmatprep.subr.bf16.mxu0 0
    %632 = vmatpush1.bf16.xpose.msra.mxu0 0
    %633 = vmatprep.subr.bf16.mxu0 0
    %634 = vmatpush1.bf16.xpose.msra.mxu0 0
    %635 = vmatprep.subr.bf16.mxu0 0
    %636 = vmatpush1.bf16.xpose.msra.mxu0 0
    %637 = vmatprep.subr.bf16.mxu0 0
    %638 = vmatpush1.bf16.xpose.msra.mxu0 0
    %639 = vmatprep.subr.bf16.mxu0 0
    %640 = vmatpush1.bf16.xpose.msra.mxu0 0
    %641 = vmatprep.subr.bf16.mxu0 0
    %642 = vmatpush1.bf16.xpose.msra.mxu0 0
    %643 = vmatprep.subr.bf16.mxu0 0
    %644 = vmatpush1.bf16.xpose.msra.mxu0 0
    %645 = vmatprep.subr.bf16.mxu0 0
    %646 = vmatpush1.bf16.xpose.msra.mxu0 0
    %647 = vmatprep.subr.bf16.mxu0 0
    %648 = vmatpush1.bf16.xpose.msra.mxu0 0
    %649 = vmatprep.subr.bf16.mxu0 0
    %650 = vmatpush1.bf16.xpose.msra.mxu0 0
    %651 = vmatprep.subr.bf16.mxu0 0
    %652 = vmatpush1.bf16.xpose.msra.mxu0 0
    %653 = vmatprep.subr.bf16.mxu0 0
    %654 = vmatpush1.bf16.xpose.msra.mxu0 0
    %655 = vmatprep.subr.bf16.mxu0 0
    %656 = vmatpush1.bf16.xpose.msra.mxu0 0
    %657 = vmatprep.subr.bf16.mxu0 0
    %658 = vmatpush1.bf16.xpose.msra.mxu0 0
    %659 = vmatprep.mubr.bf16.mxu0 0
    %660 = vmatmul.mubr.bf16.gmra.mrb[0].mxu0 %v622
    %v661 = vpop.f32.mrb[0].mxu0
    %v662 = vadd.f32 0.0, %v661
    %v663 = vpop.f32.mrb[0].mxu0
    %v664 = vpop.f32.mrb[0].mxu0
    %v665 = vpop.f32.mrb[0].mxu0
    %666 = vdwg.mxu0
    %668 = vrot.lane.b32.xlu0 %v362, 64
    %v669 = vpop.permute.xlu0 %668
    %v671 = vsel %vm375, %v354, 0
    %v674 = vsel %vm375, %v669, 0
    %676 = vmatprep.subr.bf16.mxu0 0
    %677 = vmatpush1.bf16.xpose.msra.mxu0 %v674
    %678 = vmatprep.subr.bf16.mxu0 0
    %679 = vmatpush1.bf16.xpose.msra.mxu0 0
    %680 = vmatprep.subr.bf16.mxu0 0
    %681 = vmatpush1.bf16.xpose.msra.mxu0 0
    %682 = vmatprep.subr.bf16.mxu0 0
    %683 = vmatpush1.bf16.xpose.msra.mxu0 0
    %684 = vmatprep.subr.bf16.mxu0 0
    %685 = vmatpush1.bf16.xpose.msra.mxu0 0
    %686 = vmatprep.subr.bf16.mxu0 0
    %687 = vmatpush1.bf16.xpose.msra.mxu0 0
    %688 = vmatprep.subr.bf16.mxu0 0
    %689 = vmatpush1.bf16.xpose.msra.mxu0 0
    %690 = vmatprep.subr.bf16.mxu0 0
    %691 = vmatpush1.bf16.xpose.msra.mxu0 0
    %692 = vmatprep.subr.bf16.mxu0 0
    %693 = vmatpush1.bf16.xpose.msra.mxu0 0
    %694 = vmatprep.subr.bf16.mxu0 0
    %695 = vmatpush1.bf16.xpose.msra.mxu0 0
    %696 = vmatprep.subr.bf16.mxu0 0
    %697 = vmatpush1.bf16.xpose.msra.mxu0 0
    %698 = vmatprep.subr.bf16.mxu0 0
    %699 = vmatpush1.bf16.xpose.msra.mxu0 0
    %700 = vmatprep.subr.bf16.mxu0 0
    %701 = vmatpush1.bf16.xpose.msra.mxu0 0
    %702 = vmatprep.subr.bf16.mxu0 0
    %703 = vmatpush1.bf16.xpose.msra.mxu0 0
    %704 = vmatprep.subr.bf16.mxu0 0
    %705 = vmatpush1.bf16.xpose.msra.mxu0 0
    %706 = vmatprep.subr.bf16.mxu0 0
    %707 = vmatpush1.bf16.xpose.msra.mxu0 0
    %708 = vmatprep.mubr.bf16.mxu0 0
    %709 = vmatmul.mubr.bf16.gmra.mrb[0].mxu0 %v671
    %v710 = vpop.f32.mrb[0].mxu0
    %v711 = vadd.f32 0.0, %v710
    %v712 = vpop.f32.mrb[0].mxu0
    %v713 = vpop.f32.mrb[0].mxu0
    %v714 = vpop.f32.mrb[0].mxu0
    %715 = vdwg.mxu0
    %717 = vrot.lane.b32.xlu0 %v363, 64
    %v718 = vpop.permute.xlu0 %717
    %v720 = vsel %vm375, %v355, 0
    %v723 = vsel %vm375, %v718, 0
    %725 = vmatprep.subr.bf16.mxu0 0
    %726 = vmatpush1.bf16.xpose.msra.mxu0 %v723
    %727 = vmatprep.subr.bf16.mxu0 0
    %728 = vmatpush1.bf16.xpose.msra.mxu0 0
    %729 = vmatprep.subr.bf16.mxu0 0
    %730 = vmatpush1.bf16.xpose.msra.mxu0 0
    %731 = vmatprep.subr.bf16.mxu0 0
    %732 = vmatpush1.bf16.xpose.msra.mxu0 0
    %733 = vmatprep.subr.bf16.mxu0 0
    %734 = vmatpush1.bf16.xpose.msra.mxu0 0
    %735 = vmatprep.subr.bf16.mxu0 0
    %736 = vmatpush1.bf16.xpose.msra.mxu0 0
    %737 = vmatprep.subr.bf16.mxu0 0
    %738 = vmatpush1.bf16.xpose.msra.mxu0 0
    %739 = vmatprep.subr.bf16.mxu0 0
    %740 = vmatpush1.bf16.xpose.msra.mxu0 0
    %741 = vmatprep.subr.bf16.mxu0 0
    %742 = vmatpush1.bf16.xpose.msra.mxu0 0
    %743 = vmatprep.subr.bf16.mxu0 0
    %744 = vmatpush1.bf16.xpose.msra.mxu0 0
    %745 = vmatprep.subr.bf16.mxu0 0
    %746 = vmatpush1.bf16.xpose.msra.mxu0 0
    %747 = vmatprep.subr.bf16.mxu0 0
    %748 = vmatpush1.bf16.xpose.msra.mxu0 0
    %749 = vmatprep.subr.bf16.mxu0 0
    %750 = vmatpush1.bf16.xpose.msra.mxu0 0
    %751 = vmatprep.subr.bf16.mxu0 0
    %752 = vmatpush1.bf16.xpose.msra.mxu0 0
    %753 = vmatprep.subr.bf16.mxu0 0
    %754 = vmatpush1.bf16.xpose.msra.mxu0 0
    %755 = vmatprep.subr.bf16.mxu0 0
    %756 = vmatpush1.bf16.xpose.msra.mxu0 0
    %757 = vmatprep.mubr.bf16.mxu0 0
    %758 = vmatmul.mubr.bf16.gmra.mrb[0].mxu0 %v720
    %v759 = vpop.f32.mrb[0].mxu0
    %v760 = vadd.f32 0.0, %v759
    %v761 = vpop.f32.mrb[0].mxu0
    %v762 = vpop.f32.mrb[0].mxu0
    %v763 = vpop.f32.mrb[0].mxu0
    %764 = vdwg.mxu0
    %vm765 = vcmask 64512
    %v766 = vsel %vm765, %v417, -inf
    %767 = vmax.xlane.f32.xlu0 %v766
    %v768 = vpop.xlane.xlu0 %767
    %v769 = vsel %vm765, %v466, -inf
    %770 = vmax.xlane.f32.xlu0 %v769
    %v771 = vpop.xlane.xlu0 %770
    %v772 = vsel %vm765, %v515, -inf
    %773 = vmax.xlane.f32.xlu0 %v772
    %v774 = vpop.xlane.xlu0 %773
    %v775 = vsel %vm765, %v564, -inf
    %776 = vmax.xlane.f32.xlu0 %v775
    %v777 = vpop.xlane.xlu0 %776
    %v778 = vsel %vm765, %v613, -inf
    %779 = vmax.xlane.f32.xlu0 %v778
    %v780 = vpop.xlane.xlu0 %779
    %v781 = vsel %vm765, %v662, -inf
    %782 = vmax.xlane.f32.xlu0 %v781
    %v783 = vpop.xlane.xlu0 %782
    %v784 = vsel %vm765, %v711, -inf
    %785 = vmax.xlane.f32.xlu0 %v784
    %v786 = vpop.xlane.xlu0 %785
    %v787 = vsel %vm765, %v760, -inf
    %788 = vmax.xlane.f32.xlu0 %v787
    %v789 = vpop.xlane.xlu0 %788
    %v790 = vsub.f32 %v417, %v768
    %v791 = vsub.f32 %v466, %v771
    %v792 = vsub.f32 %v515, %v774
    %v793 = vsub.f32 %v564, %v777
    %v794 = vsub.f32 %v613, %v780
    %v795 = vsub.f32 %v662, %v783
    %v796 = vsub.f32 %v711, %v786
    %v797 = vsub.f32 %v760, %v789
    %v798 = vmul.f32 %v790, 1.442695
    %v799 = vpow.pop %v798
    %v800 = vmul.f32 %v791, 1.442695
    %v801 = vpow.pop %v800
    %v802 = vmul.f32 %v792, 1.442695
    %v803 = vpow.pop %v802
    %v804 = vmul.f32 %v793, 1.442695
    %v805 = vpow.pop %v804
    %v806 = vmul.f32 %v794, 1.442695
    %v807 = vpow.pop %v806
    %v808 = vmul.f32 %v795, 1.442695
    %v809 = vpow.pop %v808
    %v810 = vmul.f32 %v796, 1.442695
    %v811 = vpow.pop %v810
    %v812 = vmul.f32 %v797, 1.442695
    %v813 = vpow.pop %v812
    %v814 = vsel %vm765, %v799, 0.0
    %815 = vadd.xlane.f32.xlu0 %v814
    %v816 = vpop.xlane.xlu0 %815
    %v817 = vsel %vm765, %v801, 0.0
    %818 = vadd.xlane.f32.xlu0 %v817
    %v819 = vpop.xlane.xlu0 %818
    %v820 = vsel %vm765, %v803, 0.0
    %821 = vadd.xlane.f32.xlu0 %v820
    %v822 = vpop.xlane.xlu0 %821
    %v823 = vsel %vm765, %v805, 0.0
    %824 = vadd.xlane.f32.xlu0 %v823
    %v825 = vpop.xlane.xlu0 %824
    %v826 = vsel %vm765, %v807, 0.0
    %827 = vadd.xlane.f32.xlu0 %v826
    %v828 = vpop.xlane.xlu0 %827
    %v829 = vsel %vm765, %v809, 0.0
    %830 = vadd.xlane.f32.xlu0 %v829
    %v831 = vpop.xlane.xlu0 %830
    %v832 = vsel %vm765, %v811, 0.0
    %833 = vadd.xlane.f32.xlu0 %v832
    %v834 = vpop.xlane.xlu0 %833
    %v835 = vsel %vm765, %v813, 0.0
    %836 = vadd.xlane.f32.xlu0 %v835
    %v837 = vpop.xlane.xlu0 %836
    %v838 = vrcp.pop %v816
    %v839 = vrcp.pop %v819
    %v840 = vrcp.pop %v822
    %v841 = vrcp.pop %v825
    %v842 = vrcp.pop %v828
    %v843 = vrcp.pop %v831
    %v844 = vrcp.pop %v834
    %v845 = vrcp.pop %v837
    %v846 = vmul.f32 %v799, %v838
    %v847 = vmul.f32 %v801, %v839
    %v848 = vmul.f32 %v803, %v840
    %v849 = vmul.f32 %v805, %v841
    %v850 = vmul.f32 %v807, %v842
    %v851 = vmul.f32 %v809, %v843
    %v852 = vmul.f32 %v811, %v844
    %v853 = vmul.f32 %v813, %v845
    %v854 = vpack.c.bf16 %v846, %v846
    %v855 = vpack.c.bf16 %v847, %v847
    %v856 = vpack.c.bf16 %v848, %v848
    %v857 = vpack.c.bf16 %v849, %v849
    %v858 = vpack.c.bf16 %v850, %v850
    %v859 = vpack.c.bf16 %v851, %v851
    %v860 = vpack.c.bf16 %v852, %v852
    %v861 = vpack.c.bf16 %v853, %v853
    %v863 = vsel %vm765, %v854, 0
    %vm865 = vcmask 1043456
    %v867 = vsel %vm865, %v364, 0
    %869 = vmatprep.subr.bf16.mxu0 0
    %870 = vmatpush1.bf16.msra.mxu0 %v867
    %871 = vmatprep.subr.bf16.mxu0 0
    %872 = vmatpush1.bf16.msra.mxu0 0
    %873 = vmatprep.subr.bf16.mxu0 0
    %874 = vmatpush1.bf16.msra.mxu0 0
    %875 = vmatprep.subr.bf16.mxu0 0
    %876 = vmatpush1.bf16.msra.mxu0 0
    %877 = vmatprep.subr.bf16.mxu0 0
    %878 = vmatpush1.bf16.msra.mxu0 0
    %879 = vmatprep.subr.bf16.mxu0 0
    %880 = vmatpush1.bf16.msra.mxu0 0
    %881 = vmatprep.subr.bf16.mxu0 0
    %882 = vmatpush1.bf16.msra.mxu0 0
    %883 = vmatprep.subr.bf16.mxu0 0
    %884 = vmatpush1.bf16.msra.mxu0 0
    %885 = vmatprep.subr.bf16.mxu0 0
    %886 = vmatpush1.bf16.msra.mxu0 0
    %887 = vmatprep.subr.bf16.mxu0 0
    %888 = vmatpush1.bf16.msra.mxu0 0
    %889 = vmatprep.subr.bf16.mxu0 0
    %890 = vmatpush1.bf16.msra.mxu0 0
    %891 = vmatprep.subr.bf16.mxu0 0
    %892 = vmatpush1.bf16.msra.mxu0 0
    %893 = vmatprep.subr.bf16.mxu0 0
    %894 = vmatpush1.bf16.msra.mxu0 0
    %895 = vmatprep.subr.bf16.mxu0 0
    %896 = vmatpush1.bf16.msra.mxu0 0
    %897 = vmatprep.subr.bf16.mxu0 0
    %898 = vmatpush1.bf16.msra.mxu0 0
    %899 = vmatprep.subr.bf16.mxu0 0
    %900 = vmatpush1.bf16.msra.mxu0 0
    %901 = vmatprep.mubr.bf16.mxu0 0
    %902 = vmatmul.mubr.bf16.gmra.mrb[0].mxu0 %v863
    %v903 = vpop.f32.mrb[0].mxu0
    %v904 = vadd.f32 0.0, %v903
    %v905 = vpop.f32.mrb[0].mxu0
    %v906 = vpop.f32.mrb[0].mxu0
    %v907 = vpop.f32.mrb[0].mxu0
    %908 = vdwg.mxu0
    %v910 = vsel %vm765, %v855, 0
    %v913 = vsel %vm865, %v365, 0
    %915 = vmatprep.subr.bf16.mxu0 0
    %916 = vmatpush1.bf16.msra.mxu0 %v913
    %917 = vmatprep.subr.bf16.mxu0 0
    %918 = vmatpush1.bf16.msra.mxu0 0
    %919 = vmatprep.subr.bf16.mxu0 0
    %920 = vmatpush1.bf16.msra.mxu0 0
    %921 = vmatprep.subr.bf16.mxu0 0
    %922 = vmatpush1.bf16.msra.mxu0 0
    %923 = vmatprep.subr.bf16.mxu0 0
    %924 = vmatpush1.bf16.msra.mxu0 0
    %925 = vmatprep.subr.bf16.mxu0 0
    %926 = vmatpush1.bf16.msra.mxu0 0
    %927 = vmatprep.subr.bf16.mxu0 0
    %928 = vmatpush1.bf16.msra.mxu0 0
    %929 = vmatprep.subr.bf16.mxu0 0
    %930 = vmatpush1.bf16.msra.mxu0 0
    %931 = vmatprep.subr.bf16.mxu0 0
    %932 = vmatpush1.bf16.msra.mxu0 0
    %933 = vmatprep.subr.bf16.mxu0 0
    %934 = vmatpush1.bf16.msra.mxu0 0
    %935 = vmatprep.subr.bf16.mxu0 0
    %936 = vmatpush1.bf16.msra.mxu0 0
    %937 = vmatprep.subr.bf16.mxu0 0
    %938 = vmatpush1.bf16.msra.mxu0 0
    %939 = vmatprep.subr.bf16.mxu0 0
    %940 = vmatpush1.bf16.msra.mxu0 0
    %941 = vmatprep.subr.bf16.mxu0 0
    %942 = vmatpush1.bf16.msra.mxu0 0
    %943 = vmatprep.subr.bf16.mxu0 0
    %944 = vmatpush1.bf16.msra.mxu0 0
    %945 = vmatprep.subr.bf16.mxu0 0
    %946 = vmatpush1.bf16.msra.mxu0 0
    %947 = vmatprep.mubr.bf16.mxu0 0
    %948 = vmatmul.mubr.bf16.gmra.mrb[0].mxu0 %v910
    %v949 = vpop.f32.mrb[0].mxu0
    %v950 = vadd.f32 0.0, %v949
    %v951 = vpop.f32.mrb[0].mxu0
    %v952 = vpop.f32.mrb[0].mxu0
    %v953 = vpop.f32.mrb[0].mxu0
    %954 = vdwg.mxu0
    %v956 = vsel %vm765, %v856, 0
    %v959 = vsel %vm865, %v366, 0
    %961 = vmatprep.subr.bf16.mxu0 0
    %962 = vmatpush1.bf16.msra.mxu0 %v959
    %963 = vmatprep.subr.bf16.mxu0 0
    %964 = vmatpush1.bf16.msra.mxu0 0
    %965 = vmatprep.subr.bf16.mxu0 0
    %966 = vmatpush1.bf16.msra.mxu0 0
    %967 = vmatprep.subr.bf16.mxu0 0
    %968 = vmatpush1.bf16.msra.mxu0 0
    %969 = vmatprep.subr.bf16.mxu0 0
    %970 = vmatpush1.bf16.msra.mxu0 0
    %971 = vmatprep.subr.bf16.mxu0 0
    %972 = vmatpush1.bf16.msra.mxu0 0
    %973 = vmatprep.subr.bf16.mxu0 0
    %974 = vmatpush1.bf16.msra.mxu0 0
    %975 = vmatprep.subr.bf16.mxu0 0
    %976 = vmatpush1.bf16.msra.mxu0 0
    %977 = vmatprep.subr.bf16.mxu0 0
    %978 = vmatpush1.bf16.msra.mxu0 0
    %979 = vmatprep.subr.bf16.mxu0 0
    %980 = vmatpush1.bf16.msra.mxu0 0
    %981 = vmatprep.subr.bf16.mxu0 0
    %982 = vmatpush1.bf16.msra.mxu0 0
    %983 = vmatprep.subr.bf16.mxu0 0
    %984 = vmatpush1.bf16.msra.mxu0 0
    %985 = vmatprep.subr.bf16.mxu0 0
    %986 = vmatpush1.bf16.msra.mxu0 0
    %987 = vmatprep.subr.bf16.mxu0 0
    %988 = vmatpush1.bf16.msra.mxu0 0
    %989 = vmatprep.subr.bf16.mxu0 0
    %990 = vmatpush1.bf16.msra.mxu0 0
    %991 = vmatprep.subr.bf16.mxu0 0
    %992 = vmatpush1.bf16.msra.mxu0 0
    %993 = vmatprep.mubr.bf16.mxu0 0
    %994 = vmatmul.mubr.bf16.gmra.mrb[0].mxu0 %v956
    %v995 = vpop.f32.mrb[0].mxu0
    %v996 = vadd.f32 0.0, %v995
    %v997 = vpop.f32.mrb[0].mxu0
    %v998 = vpop.f32.mrb[0].mxu0
    %v999 = vpop.f32.mrb[0].mxu0
    %1000 = vdwg.mxu0
    %v1002 = vsel %vm765, %v857, 0
    %v1005 = vsel %vm865, %v367, 0
    %1007 = vmatprep.subr.bf16.mxu0 0
    %1008 = vmatpush1.bf16.msra.mxu0 %v1005
    %1009 = vmatprep.subr.bf16.mxu0 0
    %1010 = vmatpush1.bf16.msra.mxu0 0
    %1011 = vmatprep.subr.bf16.mxu0 0
    %1012 = vmatpush1.bf16.msra.mxu0 0
    %1013 = vmatprep.subr.bf16.mxu0 0
    %1014 = vmatpush1.bf16.msra.mxu0 0
    %1015 = vmatprep.subr.bf16.mxu0 0
    %1016 = vmatpush1.bf16.msra.mxu0 0
    %1017 = vmatprep.subr.bf16.mxu0 0
    %1018 = vmatpush1.bf16.msra.mxu0 0
    %1019 = vmatprep.subr.bf16.mxu0 0
    %1020 = vmatpush1.bf16.msra.mxu0 0
    %1021 = vmatprep.subr.bf16.mxu0 0
    %1022 = vmatpush1.bf16.msra.mxu0 0
    %1023 = vmatprep.subr.bf16.mxu0 0
    %1024 = vmatpush1.bf16.msra.mxu0 0
    %1025 = vmatprep.subr.bf16.mxu0 0
    %1026 = vmatpush1.bf16.msra.mxu0 0
    %1027 = vmatprep.subr.bf16.mxu0 0
    %1028 = vmatpush1.bf16.msra.mxu0 0
    %1029 = vmatprep.subr.bf16.mxu0 0
    %1030 = vmatpush1.bf16.msra.mxu0 0
    %1031 = vmatprep.subr.bf16.mxu0 0
    %1032 = vmatpush1.bf16.msra.mxu0 0
    %1033 = vmatprep.subr.bf16.mxu0 0
    %1034 = vmatpush1.bf16.msra.mxu0 0
    %1035 = vmatprep.subr.bf16.mxu0 0
    %1036 = vmatpush1.bf16.msra.mxu0 0
    %1037 = vmatprep.subr.bf16.mxu0 0
    %1038 = vmatpush1.bf16.msra.mxu0 0
    %1039 = vmatprep.mubr.bf16.mxu0 0
    %1040 = vmatmul.mubr.bf16.gmra.mrb[0].mxu0 %v1002
    %v1041 = vpop.f32.mrb[0].mxu0
    %v1042 = vadd.f32 0.0, %v1041
    %v1043 = vpop.f32.mrb[0].mxu0
    %v1044 = vpop.f32.mrb[0].mxu0
    %v1045 = vpop.f32.mrb[0].mxu0
    %1046 = vdwg.mxu0
    %v1048 = vsel %vm765, %v858, 0
    %v1051 = vsel %vm865, %v368, 0
    %1053 = vmatprep.subr.bf16.mxu0 0
    %1054 = vmatpush1.bf16.msra.mxu0 %v1051
    %1055 = vmatprep.subr.bf16.mxu0 0
    %1056 = vmatpush1.bf16.msra.mxu0 0
    %1057 = vmatprep.subr.bf16.mxu0 0
    %1058 = vmatpush1.bf16.msra.mxu0 0
    %1059 = vmatprep.subr.bf16.mxu0 0
    %1060 = vmatpush1.bf16.msra.mxu0 0
    %1061 = vmatprep.subr.bf16.mxu0 0
    %1062 = vmatpush1.bf16.msra.mxu0 0
    %1063 = vmatprep.subr.bf16.mxu0 0
    %1064 = vmatpush1.bf16.msra.mxu0 0
    %1065 = vmatprep.subr.bf16.mxu0 0
    %1066 = vmatpush1.bf16.msra.mxu0 0
    %1067 = vmatprep.subr.bf16.mxu0 0
    %1068 = vmatpush1.bf16.msra.mxu0 0
    %1069 = vmatprep.subr.bf16.mxu0 0
    %1070 = vmatpush1.bf16.msra.mxu0 0
    %1071 = vmatprep.subr.bf16.mxu0 0
    %1072 = vmatpush1.bf16.msra.mxu0 0
    %1073 = vmatprep.subr.bf16.mxu0 0
    %1074 = vmatpush1.bf16.msra.mxu0 0
    %1075 = vmatprep.subr.bf16.mxu0 0
    %1076 = vmatpush1.bf16.msra.mxu0 0
    %1077 = vmatprep.subr.bf16.mxu0 0
    %1078 = vmatpush1.bf16.msra.mxu0 0
    %1079 = vmatprep.subr.bf16.mxu0 0
    %1080 = vmatpush1.bf16.msra.mxu0 0
    %1081 = vmatprep.subr.bf16.mxu0 0
    %1082 = vmatpush1.bf16.msra.mxu0 0
    %1083 = vmatprep.subr.bf16.mxu0 0
    %1084 = vmatpush1.bf16.msra.mxu0 0
    %1085 = vmatprep.mubr.bf16.mxu0 0
    %1086 = vmatmul.mubr.bf16.gmra.mrb[0].mxu0 %v1048
    %v1087 = vpop.f32.mrb[0].mxu0
    %v1088 = vadd.f32 0.0, %v1087
    %v1089 = vpop.f32.mrb[0].mxu0
    %v1090 = vpop.f32.mrb[0].mxu0
    %v1091 = vpop.f32.mrb[0].mxu0
    %1092 = vdwg.mxu0
    %v1094 = vsel %vm765, %v859, 0
    %v1097 = vsel %vm865, %v369, 0
    %1099 = vmatprep.subr.bf16.mxu0 0
    %1100 = vmatpush1.bf16.msra.mxu0 %v1097
    %1101 = vmatprep.subr.bf16.mxu0 0
    %1102 = vmatpush1.bf16.msra.mxu0 0
    %1103 = vmatprep.subr.bf16.mxu0 0
    %1104 = vmatpush1.bf16.msra.mxu0 0
    %1105 = vmatprep.subr.bf16.mxu0 0
    %1106 = vmatpush1.bf16.msra.mxu0 0
    %1107 = vmatprep.subr.bf16.mxu0 0
    %1108 = vmatpush1.bf16.msra.mxu0 0
    %1109 = vmatprep.subr.bf16.mxu0 0
    %1110 = vmatpush1.bf16.msra.mxu0 0
    %1111 = vmatprep.subr.bf16.mxu0 0
    %1112 = vmatpush1.bf16.msra.mxu0 0
    %1113 = vmatprep.subr.bf16.mxu0 0
    %1114 = vmatpush1.bf16.msra.mxu0 0
    %1115 = vmatprep.subr.bf16.mxu0 0
    %1116 = vmatpush1.bf16.msra.mxu0 0
    %1117 = vmatprep.subr.bf16.mxu0 0
    %1118 = vmatpush1.bf16.msra.mxu0 0
    %1119 = vmatprep.subr.bf16.mxu0 0
    %1120 = vmatpush1.bf16.msra.mxu0 0
    %1121 = vmatprep.subr.bf16.mxu0 0
    %1122 = vmatpush1.bf16.msra.mxu0 0
    %1123 = vmatprep.subr.bf16.mxu0 0
    %1124 = vmatpush1.bf16.msra.mxu0 0
    %1125 = vmatprep.subr.bf16.mxu0 0
    %1126 = vmatpush1.bf16.msra.mxu0 0
    %1127 = vmatprep.subr.bf16.mxu0 0
    %1128 = vmatpush1.bf16.msra.mxu0 0
    %1129 = vmatprep.subr.bf16.mxu0 0
    %1130 = vmatpush1.bf16.msra.mxu0 0
    %1131 = vmatprep.mubr.bf16.mxu0 0
    %1132 = vmatmul.mubr.bf16.gmra.mrb[0].mxu0 %v1094
    %v1133 = vpop.f32.mrb[0].mxu0
    %v1134 = vadd.f32 0.0, %v1133
    %v1135 = vpop.f32.mrb[0].mxu0
    %v1136 = vpop.f32.mrb[0].mxu0
    %v1137 = vpop.f32.mrb[0].mxu0
    %1138 = vdwg.mxu0
    %v1140 = vsel %vm765, %v860, 0
    %v1143 = vsel %vm865, %v370, 0
    %1145 = vmatprep.subr.bf16.mxu0 0
    %1146 = vmatpush1.bf16.msra.mxu0 %v1143
    %1147 = vmatprep.subr.bf16.mxu0 0
    %1148 = vmatpush1.bf16.msra.mxu0 0
    %1149 = vmatprep.subr.bf16.mxu0 0
    %1150 = vmatpush1.bf16.msra.mxu0 0
    %1151 = vmatprep.subr.bf16.mxu0 0
    %1152 = vmatpush1.bf16.msra.mxu0 0
    %1153 = vmatprep.subr.bf16.mxu0 0
    %1154 = vmatpush1.bf16.msra.mxu0 0
    %1155 = vmatprep.subr.bf16.mxu0 0
    %1156 = vmatpush1.bf16.msra.mxu0 0
    %1157 = vmatprep.subr.bf16.mxu0 0
    %1158 = vmatpush1.bf16.msra.mxu0 0
    %1159 = vmatprep.subr.bf16.mxu0 0
    %1160 = vmatpush1.bf16.msra.mxu0 0
    %1161 = vmatprep.subr.bf16.mxu0 0
    %1162 = vmatpush1.bf16.msra.mxu0 0
    %1163 = vmatprep.subr.bf16.mxu0 0
    %1164 = vmatpush1.bf16.msra.mxu0 0
    %1165 = vmatprep.subr.bf16.mxu0 0
    %1166 = vmatpush1.bf16.msra.mxu0 0
    %1167 = vmatprep.subr.bf16.mxu0 0
    %1168 = vmatpush1.bf16.msra.mxu0 0
    %1169 = vmatprep.subr.bf16.mxu0 0
    %1170 = vmatpush1.bf16.msra.mxu0 0
    %1171 = vmatprep.subr.bf16.mxu0 0
    %1172 = vmatpush1.bf16.msra.mxu0 0
    %1173 = vmatprep.subr.bf16.mxu0 0
    %1174 = vmatpush1.bf16.msra.mxu0 0
    %1175 = vmatprep.subr.bf16.mxu0 0
    %1176 = vmatpush1.bf16.msra.mxu0 0
    %1177 = vmatprep.mubr.bf16.mxu0 0
    %1178 = vmatmul.mubr.bf16.gmra.mrb[0].mxu0 %v1140
    %v1179 = vpop.f32.mrb[0].mxu0
    %v1180 = vadd.f32 0.0, %v1179
    %v1181 = vpop.f32.mrb[0].mxu0
    %v1182 = vpop.f32.mrb[0].mxu0
    %v1183 = vpop.f32.mrb[0].mxu0
    %1184 = vdwg.mxu0
    %v1186 = vsel %vm765, %v861, 0
    %v1189 = vsel %vm865, %v371, 0
    %1191 = vmatprep.subr.bf16.mxu0 0
    %1192 = vmatpush1.bf16.msra.mxu0 %v1189
    %1193 = vmatprep.subr.bf16.mxu0 0
    %1194 = vmatpush1.bf16.msra.mxu0 0
    %1195 = vmatprep.subr.bf16.mxu0 0
    %1196 = vmatpush1.bf16.msra.mxu0 0
    %1197 = vmatprep.subr.bf16.mxu0 0
    %1198 = vmatpush1.bf16.msra.mxu0 0
    %1199 = vmatprep.subr.bf16.mxu0 0
    %1200 = vmatpush1.bf16.msra.mxu0 0
    %1201 = vmatprep.subr.bf16.mxu0 0
    %1202 = vmatpush1.bf16.msra.mxu0 0
    %1203 = vmatprep.subr.bf16.mxu0 0
    %1204 = vmatpush1.bf16.msra.mxu0 0
    %1205 = vmatprep.subr.bf16.mxu0 0
    %1206 = vmatpush1.bf16.msra.mxu0 0
    %1207 = vmatprep.subr.bf16.mxu0 0
    %1208 = vmatpush1.bf16.msra.mxu0 0
    %1209 = vmatprep.subr.bf16.mxu0 0
    %1210 = vmatpush1.bf16.msra.mxu0 0
    %1211 = vmatprep.subr.bf16.mxu0 0
    %1212 = vmatpush1.bf16.msra.mxu0 0
    %1213 = vmatprep.subr.bf16.mxu0 0
    %1214 = vmatpush1.bf16.msra.mxu0 0
    %1215 = vmatprep.subr.bf16.mxu0 0
    %1216 = vmatpush1.bf16.msra.mxu0 0
    %1217 = vmatprep.subr.bf16.mxu0 0
    %1218 = vmatpush1.bf16.msra.mxu0 0
    %1219 = vmatprep.subr.bf16.mxu0 0
    %1220 = vmatpush1.bf16.msra.mxu0 0
    %1221 = vmatprep.subr.bf16.mxu0 0
    %1222 = vmatpush1.bf16.msra.mxu0 0
    %1223 = vmatprep.mubr.bf16.mxu0 0
    %1224 = vmatmul.mubr.bf16.gmra.mrb[0].mxu0 %v1186
    %v1225 = vpop.f32.mrb[0].mxu0
    %v1226 = vadd.f32 0.0, %v1225
    %v1227 = vpop.f32.mrb[0].mxu0
    %v1228 = vpop.f32.mrb[0].mxu0
    %v1229 = vpop.f32.mrb[0].mxu0
    %1230 = vdwg.mxu0
    %1232 = vrot.lane.b32.xlu0 %v348, 112
    %v1233 = vpop.permute.xlu0 %1232
    %1234 = vrot.lane.b32.xlu0 %v356, 48
    %v1235 = vpop.permute.xlu0 %1234
    %v1237 = vsel %vm375, %v1233, 0
    %v1240 = vsel %vm375, %v1235, 0
    %1242 = vmatprep.subr.bf16.mxu0 0
    %1243 = vmatpush1.bf16.xpose.msra.mxu0 %v1240
    %1244 = vmatprep.subr.bf16.mxu0 0
    %1245 = vmatpush1.bf16.xpose.msra.mxu0 0
    %1246 = vmatprep.subr.bf16.mxu0 0
    %1247 = vmatpush1.bf16.xpose.msra.mxu0 0
    %1248 = vmatprep.subr.bf16.mxu0 0
    %1249 = vmatpush1.bf16.xpose.msra.mxu0 0
    %1250 = vmatprep.subr.bf16.mxu0 0
    %1251 = vmatpush1.bf16.xpose.msra.mxu0 0
    %1252 = vmatprep.subr.bf16.mxu0 0
    %1253 = vmatpush1.bf16.xpose.msra.mxu0 0
    %1254 = vmatprep.subr.bf16.mxu0 0
    %1255 = vmatpush1.bf16.xpose.msra.mxu0 0
    %1256 = vmatprep.subr.bf16.mxu0 0
    %1257 = vmatpush1.bf16.xpose.msra.mxu0 0
    %1258 = vmatprep.subr.bf16.mxu0 0
    %1259 = vmatpush1.bf16.xpose.msra.mxu0 0
    %1260 = vmatprep.subr.bf16.mxu0 0
    %1261 = vmatpush1.bf16.xpose.msra.mxu0 0
    %1262 = vmatprep.subr.bf16.mxu0 0
    %1263 = vmatpush1.bf16.xpose.msra.mxu0 0
    %1264 = vmatprep.subr.bf16.mxu0 0
    %1265 = vmatpush1.bf16.xpose.msra.mxu0 0
    %1266 = vmatprep.subr.bf16.mxu0 0
    %1267 = vmatpush1.bf16.xpose.msra.mxu0 0
    %1268 = vmatprep.subr.bf16.mxu0 0
    %1269 = vmatpush1.bf16.xpose.msra.mxu0 0
    %1270 = vmatprep.subr.bf16.mxu0 0
    %1271 = vmatpush1.bf16.xpose.msra.mxu0 0
    %1272 = vmatprep.subr.bf16.mxu0 0
    %1273 = vmatpush1.bf16.xpose.msra.mxu0 0
    %1274 = vmatprep.mubr.bf16.mxu0 0
    %1275 = vmatmul.mubr.bf16.gmra.mrb[0].mxu0 %v1237
    %v1276 = vpop.f32.mrb[0].mxu0
    %v1277 = vadd.f32 0.0, %v1276
    %v1278 = vpop.f32.mrb[0].mxu0
    %v1279 = vpop.f32.mrb[0].mxu0
    %v1280 = vpop.f32.mrb[0].mxu0
    %1281 = vdwg.mxu0
    %1283 = vrot.lane.b32.xlu0 %v349, 112
    %v1284 = vpop.permute.xlu0 %1283
    %1285 = vrot.lane.b32.xlu0 %v357, 48
    %v1286 = vpop.permute.xlu0 %1285
    %v1288 = vsel %vm375, %v1284, 0
    %v1291 = vsel %vm375, %v1286, 0
    %1293 = vmatprep.subr.bf16.mxu0 0
    %1294 = vmatpush1.bf16.xpose.msra.mxu0 %v1291
    %1295 = vmatprep.subr.bf16.mxu0 0
    %1296 = vmatpush1.bf16.xpose.msra.mxu0 0
    %1297 = vmatprep.subr.bf16.mxu0 0
    %1298 = vmatpush1.bf16.xpose.msra.mxu0 0
    %1299 = vmatprep.subr.bf16.mxu0 0
    %1300 = vmatpush1.bf16.xpose.msra.mxu0 0
    %1301 = vmatprep.subr.bf16.mxu0 0
    %1302 = vmatpush1.bf16.xpose.msra.mxu0 0
    %1303 = vmatprep.subr.bf16.mxu0 0
    %1304 = vmatpush1.bf16.xpose.msra.mxu0 0
    %1305 = vmatprep.subr.bf16.mxu0 0
    %1306 = vmatpush1.bf16.xpose.msra.mxu0 0
    %1307 = vmatprep.subr.bf16.mxu0 0
    %1308 = vmatpush1.bf16.xpose.msra.mxu0 0
    %1309 = vmatprep.subr.bf16.mxu0 0
    %1310 = vmatpush1.bf16.xpose.msra.mxu0 0
    %1311 = vmatprep.subr.bf16.mxu0 0
    %1312 = vmatpush1.bf16.xpose.msra.mxu0 0
    %1313 = vmatprep.subr.bf16.mxu0 0
    %1314 = vmatpush1.bf16.xpose.msra.mxu0 0
    %1315 = vmatprep.subr.bf16.mxu0 0
    %1316 = vmatpush1.bf16.xpose.msra.mxu0 0
    %1317 = vmatprep.subr.bf16.mxu0 0
    %1318 = vmatpush1.bf16.xpose.msra.mxu0 0
    %1319 = vmatprep.subr.bf16.mxu0 0
    %1320 = vmatpush1.bf16.xpose.msra.mxu0 0
    %1321 = vmatprep.subr.bf16.mxu0 0
    %1322 = vmatpush1.bf16.xpose.msra.mxu0 0
    %1323 = vmatprep.subr.bf16.mxu0 0
    %1324 = vmatpush1.bf16.xpose.msra.mxu0 0
    %1325 = vmatprep.mubr.bf16.mxu0 0
    %1326 = vmatmul.mubr.bf16.gmra.mrb[0].mxu0 %v1288
    %v1327 = vpop.f32.mrb[0].mxu0
    %v1328 = vadd.f32 0.0, %v1327
    %v1329 = vpop.f32.mrb[0].mxu0
    %v1330 = vpop.f32.mrb[0].mxu0
    %v1331 = vpop.f32.mrb[0].mxu0
    %1332 = vdwg.mxu0
    %1334 = vrot.lane.b32.xlu0 %v350, 112
    %v1335 = vpop.permute.xlu0 %1334
    %1336 = vrot.lane.b32.xlu0 %v358, 48
    %v1337 = vpop.permute.xlu0 %1336
    %v1339 = vsel %vm375, %v1335, 0
    %v1342 = vsel %vm375, %v1337, 0
    %1344 = vmatprep.subr.bf16.mxu0 0
    %1345 = vmatpush1.bf16.xpose.msra.mxu0 %v1342
    %1346 = vmatprep.subr.bf16.mxu0 0
    %1347 = vmatpush1.bf16.xpose.msra.mxu0 0
    %1348 = vmatprep.subr.bf16.mxu0 0
    %1349 = vmatpush1.bf16.xpose.msra.mxu0 0
    %1350 = vmatprep.subr.bf16.mxu0 0
    %1351 = vmatpush1.bf16.xpose.msra.mxu0 0
    %1352 = vmatprep.subr.bf16.mxu0 0
    %1353 = vmatpush1.bf16.xpose.msra.mxu0 0
    %1354 = vmatprep.subr.bf16.mxu0 0
    %1355 = vmatpush1.bf16.xpose.msra.mxu0 0
    %1356 = vmatprep.subr.bf16.mxu0 0
    %1357 = vmatpush1.bf16.xpose.msra.mxu0 0
    %1358 = vmatprep.subr.bf16.mxu0 0
    %1359 = vmatpush1.bf16.xpose.msra.mxu0 0
    %1360 = vmatprep.subr.bf16.mxu0 0
    %1361 = vmatpush1.bf16.xpose.msra.mxu0 0
    %1362 = vmatprep.subr.bf16.mxu0 0
    %1363 = vmatpush1.bf16.xpose.msra.mxu0 0
    %1364 = vmatprep.subr.bf16.mxu0 0
    %1365 = vmatpush1.bf16.xpose.msra.mxu0 0
    %1366 = vmatprep.subr.bf16.mxu0 0
    %1367 = vmatpush1.bf16.xpose.msra.mxu0 0
    %1368 = vmatprep.subr.bf16.mxu0 0
    %1369 = vmatpush1.bf16.xpose.msra.mxu0 0
    %1370 = vmatprep.subr.bf16.mxu0 0
    %1371 = vmatpush1.bf16.xpose.msra.mxu0 0
    %1372 = vmatprep.subr.bf16.mxu0 0
    %1373 = vmatpush1.bf16.xpose.msra.mxu0 0
    %1374 = vmatprep.subr.bf16.mxu0 0
    %1375 = vmatpush1.bf16.xpose.msra.mxu0 0
    %1376 = vmatprep.mubr.bf16.mxu0 0
    %1377 = vmatmul.mubr.bf16.gmra.mrb[0].mxu0 %v1339
    %v1378 = vpop.f32.mrb[0].mxu0
    %v1379 = vadd.f32 0.0, %v1378
    %v1380 = vpop.f32.mrb[0].mxu0
    %v1381 = vpop.f32.mrb[0].mxu0
    %v1382 = vpop.f32.mrb[0].mxu0
    %1383 = vdwg.mxu0
    %1385 = vrot.lane.b32.xlu0 %v351, 112
    %v1386 = vpop.permute.xlu0 %1385
    %1387 = vrot.lane.b32.xlu0 %v359, 48
    %v1388 = vpop.permute.xlu0 %1387
    %v1390 = vsel %vm375, %v1386, 0
    %v1393 = vsel %vm375, %v1388, 0
    %1395 = vmatprep.subr.bf16.mxu0 0
    %1396 = vmatpush1.bf16.xpose.msra.mxu0 %v1393
    %1397 = vmatprep.subr.bf16.mxu0 0
    %1398 = vmatpush1.bf16.xpose.msra.mxu0 0
    %1399 = vmatprep.subr.bf16.mxu0 0
    %1400 = vmatpush1.bf16.xpose.msra.mxu0 0
    %1401 = vmatprep.subr.bf16.mxu0 0
    %1402 = vmatpush1.bf16.xpose.msra.mxu0 0
    %1403 = vmatprep.subr.bf16.mxu0 0
    %1404 = vmatpush1.bf16.xpose.msra.mxu0 0
    %1405 = vmatprep.subr.bf16.mxu0 0
    %1406 = vmatpush1.bf16.xpose.msra.mxu0 0
    %1407 = vmatprep.subr.bf16.mxu0 0
    %1408 = vmatpush1.bf16.xpose.msra.mxu0 0
    %1409 = vmatprep.subr.bf16.mxu0 0
    %1410 = vmatpush1.bf16.xpose.msra.mxu0 0
    %1411 = vmatprep.subr.bf16.mxu0 0
    %1412 = vmatpush1.bf16.xpose.msra.mxu0 0
    %1413 = vmatprep.subr.bf16.mxu0 0
    %1414 = vmatpush1.bf16.xpose.msra.mxu0 0
    %1415 = vmatprep.subr.bf16.mxu0 0
    %1416 = vmatpush1.bf16.xpose.msra.mxu0 0
    %1417 = vmatprep.subr.bf16.mxu0 0
    %1418 = vmatpush1.bf16.xpose.msra.mxu0 0
    %1419 = vmatprep.subr.bf16.mxu0 0
    %1420 = vmatpush1.bf16.xpose.msra.mxu0 0
    %1421 = vmatprep.subr.bf16.mxu0 0
    %1422 = vmatpush1.bf16.xpose.msra.mxu0 0
    %1423 = vmatprep.subr.bf16.mxu0 0
    %1424 = vmatpush1.bf16.xpose.msra.mxu0 0
    %1425 = vmatprep.subr.bf16.mxu0 0
    %1426 = vmatpush1.bf16.xpose.msra.mxu0 0
    %1427 = vmatprep.mubr.bf16.mxu0 0
    %1428 = vmatmul.mubr.bf16.gmra.mrb[0].mxu0 %v1390
    %v1429 = vpop.f32.mrb[0].mxu0
    %v1430 = vadd.f32 0.0, %v1429
    %v1431 = vpop.f32.mrb[0].mxu0
    %v1432 = vpop.f32.mrb[0].mxu0
    %v1433 = vpop.f32.mrb[0].mxu0
    %1434 = vdwg.mxu0
    %1436 = vrot.lane.b32.xlu0 %v352, 112
    %v1437 = vpop.permute.xlu0 %1436
    %1438 = vrot.lane.b32.xlu0 %v360, 48
    %v1439 = vpop.permute.xlu0 %1438
    %v1441 = vsel %vm375, %v1437, 0
    %v1444 = vsel %vm375, %v1439, 0
    %1446 = vmatprep.subr.bf16.mxu0 0
    %1447 = vmatpush1.bf16.xpose.msra.mxu0 %v1444
    %1448 = vmatprep.subr.bf16.mxu0 0
    %1449 = vmatpush1.bf16.xpose.msra.mxu0 0
    %1450 = vmatprep.subr.bf16.mxu0 0
    %1451 = vmatpush1.bf16.xpose.msra.mxu0 0
    %1452 = vmatprep.subr.bf16.mxu0 0
    %1453 = vmatpush1.bf16.xpose.msra.mxu0 0
    %1454 = vmatprep.subr.bf16.mxu0 0
    %1455 = vmatpush1.bf16.xpose.msra.mxu0 0
    %1456 = vmatprep.subr.bf16.mxu0 0
    %1457 = vmatpush1.bf16.xpose.msra.mxu0 0
    %1458 = vmatprep.subr.bf16.mxu0 0
    %1459 = vmatpush1.bf16.xpose.msra.mxu0 0
    %1460 = vmatprep.subr.bf16.mxu0 0
    %1461 = vmatpush1.bf16.xpose.msra.mxu0 0
    %1462 = vmatprep.subr.bf16.mxu0 0
    %1463 = vmatpush1.bf16.xpose.msra.mxu0 0
    %1464 = vmatprep.subr.bf16.mxu0 0
    %1465 = vmatpush1.bf16.xpose.msra.mxu0 0
    %1466 = vmatprep.subr.bf16.mxu0 0
    %1467 = vmatpush1.bf16.xpose.msra.mxu0 0
    %1468 = vmatprep.subr.bf16.mxu0 0
    %1469 = vmatpush1.bf16.xpose.msra.mxu0 0
    %1470 = vmatprep.subr.bf16.mxu0 0
    %1471 = vmatpush1.bf16.xpose.msra.mxu0 0
    %1472 = vmatprep.subr.bf16.mxu0 0
    %1473 = vmatpush1.bf16.xpose.msra.mxu0 0
    %1474 = vmatprep.subr.bf16.mxu0 0
    %1475 = vmatpush1.bf16.xpose.msra.mxu0 0
    %1476 = vmatprep.subr.bf16.mxu0 0
    %1477 = vmatpush1.bf16.xpose.msra.mxu0 0
    %1478 = vmatprep.mubr.bf16.mxu0 0
    %1479 = vmatmul.mubr.bf16.gmra.mrb[0].mxu0 %v1441
    %v1480 = vpop.f32.mrb[0].mxu0
    %v1481 = vadd.f32 0.0, %v1480
    %v1482 = vpop.f32.mrb[0].mxu0
    %v1483 = vpop.f32.mrb[0].mxu0
    %v1484 = vpop.f32.mrb[0].mxu0
    %1485 = vdwg.mxu0
    %1487 = vrot.lane.b32.xlu0 %v353, 112
    %v1488 = vpop.permute.xlu0 %1487
    %1489 = vrot.lane.b32.xlu0 %v361, 48
    %v1490 = vpop.permute.xlu0 %1489
    %v1492 = vsel %vm375, %v1488, 0
    %v1495 = vsel %vm375, %v1490, 0
    %1497 = vmatprep.subr.bf16.mxu0 0
    %1498 = vmatpush1.bf16.xpose.msra.mxu0 %v1495
    %1499 = vmatprep.subr.bf16.mxu0 0
    %1500 = vmatpush1.bf16.xpose.msra.mxu0 0
    %1501 = vmatprep.subr.bf16.mxu0 0
    %1502 = vmatpush1.bf16.xpose.msra.mxu0 0
    %1503 = vmatprep.subr.bf16.mxu0 0
    %1504 = vmatpush1.bf16.xpose.msra.mxu0 0
    %1505 = vmatprep.subr.bf16.mxu0 0
    %1506 = vmatpush1.bf16.xpose.msra.mxu0 0
    %1507 = vmatprep.subr.bf16.mxu0 0
    %1508 = vmatpush1.bf16.xpose.msra.mxu0 0
    %1509 = vmatprep.subr.bf16.mxu0 0
    %1510 = vmatpush1.bf16.xpose.msra.mxu0 0
    %1511 = vmatprep.subr.bf16.mxu0 0
    %1512 = vmatpush1.bf16.xpose.msra.mxu0 0
    %1513 = vmatprep.subr.bf16.mxu0 0
    %1514 = vmatpush1.bf16.xpose.msra.mxu0 0
    %1515 = vmatprep.subr.bf16.mxu0 0
    %1516 = vmatpush1.bf16.xpose.msra.mxu0 0
    %1517 = vmatprep.subr.bf16.mxu0 0
    %1518 = vmatpush1.bf16.xpose.msra.mxu0 0
    %1519 = vmatprep.subr.bf16.mxu0 0
    %1520 = vmatpush1.bf16.xpose.msra.mxu0 0
    %1521 = vmatprep.subr.bf16.mxu0 0
    %1522 = vmatpush1.bf16.xpose.msra.mxu0 0
    %1523 = vmatprep.subr.bf16.mxu0 0
    %1524 = vmatpush1.bf16.xpose.msra.mxu0 0
    %1525 = vmatprep.subr.bf16.mxu0 0
    %1526 = vmatpush1.bf16.xpose.msra.mxu0 0
    %1527 = vmatprep.subr.bf16.mxu0 0
    %1528 = vmatpush1.bf16.xpose.msra.mxu0 0
    %1529 = vmatprep.mubr.bf16.mxu0 0
    %1530 = vmatmul.mubr.bf16.gmra.mrb[0].mxu0 %v1492
    %v1531 = vpop.f32.mrb[0].mxu0
    %v1532 = vadd.f32 0.0, %v1531
    %v1533 = vpop.f32.mrb[0].mxu0
    %v1534 = vpop.f32.mrb[0].mxu0
    %v1535 = vpop.f32.mrb[0].mxu0
    %1536 = vdwg.mxu0
    %1538 = vrot.lane.b32.xlu0 %v354, 112
    %v1539 = vpop.permute.xlu0 %1538
    %1540 = vrot.lane.b32.xlu0 %v362, 48
    %v1541 = vpop.permute.xlu0 %1540
    %v1543 = vsel %vm375, %v1539, 0
    %v1546 = vsel %vm375, %v1541, 0
    %1548 = vmatprep.subr.bf16.mxu0 0
    %1549 = vmatpush1.bf16.xpose.msra.mxu0 %v1546
    %1550 = vmatprep.subr.bf16.mxu0 0
    %1551 = vmatpush1.bf16.xpose.msra.mxu0 0
    %1552 = vmatprep.subr.bf16.mxu0 0
    %1553 = vmatpush1.bf16.xpose.msra.mxu0 0
    %1554 = vmatprep.subr.bf16.mxu0 0
    %1555 = vmatpush1.bf16.xpose.msra.mxu0 0
    %1556 = vmatprep.subr.bf16.mxu0 0
    %1557 = vmatpush1.bf16.xpose.msra.mxu0 0
    %1558 = vmatprep.subr.bf16.mxu0 0
    %1559 = vmatpush1.bf16.xpose.msra.mxu0 0
    %1560 = vmatprep.subr.bf16.mxu0 0
    %1561 = vmatpush1.bf16.xpose.msra.mxu0 0
    %1562 = vmatprep.subr.bf16.mxu0 0
    %1563 = vmatpush1.bf16.xpose.msra.mxu0 0
    %1564 = vmatprep.subr.bf16.mxu0 0
    %1565 = vmatpush1.bf16.xpose.msra.mxu0 0
    %1566 = vmatprep.subr.bf16.mxu0 0
    %1567 = vmatpush1.bf16.xpose.msra.mxu0 0
    %1568 = vmatprep.subr.bf16.mxu0 0
    %1569 = vmatpush1.bf16.xpose.msra.mxu0 0
    %1570 = vmatprep.subr.bf16.mxu0 0
    %1571 = vmatpush1.bf16.xpose.msra.mxu0 0
    %1572 = vmatprep.subr.bf16.mxu0 0
    %1573 = vmatpush1.bf16.xpose.msra.mxu0 0
    %1574 = vmatprep.subr.bf16.mxu0 0
    %1575 = vmatpush1.bf16.xpose.msra.mxu0 0
    %1576 = vmatprep.subr.bf16.mxu0 0
    %1577 = vmatpush1.bf16.xpose.msra.mxu0 0
    %1578 = vmatprep.subr.bf16.mxu0 0
    %1579 = vmatpush1.bf16.xpose.msra.mxu0 0
    %1580 = vmatprep.mubr.bf16.mxu0 0
    %1581 = vmatmul.mubr.bf16.gmra.mrb[0].mxu0 %v1543
    %v1582 = vpop.f32.mrb[0].mxu0
    %v1583 = vadd.f32 0.0, %v1582
    %v1584 = vpop.f32.mrb[0].mxu0
    %v1585 = vpop.f32.mrb[0].mxu0
    %v1586 = vpop.f32.mrb[0].mxu0
    %1587 = vdwg.mxu0
    %1589 = vrot.lane.b32.xlu0 %v355, 112
    %v1590 = vpop.permute.xlu0 %1589
    %1591 = vrot.lane.b32.xlu0 %v363, 48
    %v1592 = vpop.permute.xlu0 %1591
    %v1594 = vsel %vm375, %v1590, 0
    %v1597 = vsel %vm375, %v1592, 0
    %1599 = vmatprep.subr.bf16.mxu0 0
    %1600 = vmatpush1.bf16.xpose.msra.mxu0 %v1597
    %1601 = vmatprep.subr.bf16.mxu0 0
    %1602 = vmatpush1.bf16.xpose.msra.mxu0 0
    %1603 = vmatprep.subr.bf16.mxu0 0
    %1604 = vmatpush1.bf16.xpose.msra.mxu0 0
    %1605 = vmatprep.subr.bf16.mxu0 0
    %1606 = vmatpush1.bf16.xpose.msra.mxu0 0
    %1607 = vmatprep.subr.bf16.mxu0 0
    %1608 = vmatpush1.bf16.xpose.msra.mxu0 0
    %1609 = vmatprep.subr.bf16.mxu0 0
    %1610 = vmatpush1.bf16.xpose.msra.mxu0 0
    %1611 = vmatprep.subr.bf16.mxu0 0
    %1612 = vmatpush1.bf16.xpose.msra.mxu0 0
    %1613 = vmatprep.subr.bf16.mxu0 0
    %1614 = vmatpush1.bf16.xpose.msra.mxu0 0
    %1615 = vmatprep.subr.bf16.mxu0 0
    %1616 = vmatpush1.bf16.xpose.msra.mxu0 0
    %1617 = vmatprep.subr.bf16.mxu0 0
    %1618 = vmatpush1.bf16.xpose.msra.mxu0 0
    %1619 = vmatprep.subr.bf16.mxu0 0
    %1620 = vmatpush1.bf16.xpose.msra.mxu0 0
    %1621 = vmatprep.subr.bf16.mxu0 0
    %1622 = vmatpush1.bf16.xpose.msra.mxu0 0
    %1623 = vmatprep.subr.bf16.mxu0 0
    %1624 = vmatpush1.bf16.xpose.msra.mxu0 0
    %1625 = vmatprep.subr.bf16.mxu0 0
    %1626 = vmatpush1.bf16.xpose.msra.mxu0 0
    %1627 = vmatprep.subr.bf16.mxu0 0
    %1628 = vmatpush1.bf16.xpose.msra.mxu0 0
    %1629 = vmatprep.subr.bf16.mxu0 0
    %1630 = vmatpush1.bf16.xpose.msra.mxu0 0
    %1631 = vmatprep.mubr.bf16.mxu0 0
    %1632 = vmatmul.mubr.bf16.gmra.mrb[0].mxu0 %v1594
    %v1633 = vpop.f32.mrb[0].mxu0
    %v1634 = vadd.f32 0.0, %v1633
    %v1635 = vpop.f32.mrb[0].mxu0
    %v1636 = vpop.f32.mrb[0].mxu0
    %v1637 = vpop.f32.mrb[0].mxu0
    %1638 = vdwg.mxu0
    %v1639 = vsel %vm765, %v1277, -inf
    %1640 = vmax.xlane.f32.xlu0 %v1639
    %v1641 = vpop.xlane.xlu0 %1640
    %v1642 = vsel %vm765, %v1328, -inf
    %1643 = vmax.xlane.f32.xlu0 %v1642
    %v1644 = vpop.xlane.xlu0 %1643
    %v1645 = vsel %vm765, %v1379, -inf
    %1646 = vmax.xlane.f32.xlu0 %v1645
    %v1647 = vpop.xlane.xlu0 %1646
    %v1648 = vsel %vm765, %v1430, -inf
    %1649 = vmax.xlane.f32.xlu0 %v1648
    %v1650 = vpop.xlane.xlu0 %1649
    %v1651 = vsel %vm765, %v1481, -inf
    %1652 = vmax.xlane.f32.xlu0 %v1651
    %v1653 = vpop.xlane.xlu0 %1652
    %v1654 = vsel %vm765, %v1532, -inf
    %1655 = vmax.xlane.f32.xlu0 %v1654
    %v1656 = vpop.xlane.xlu0 %1655
    %v1657 = vsel %vm765, %v1583, -inf
    %1658 = vmax.xlane.f32.xlu0 %v1657
    %v1659 = vpop.xlane.xlu0 %1658
    %v1660 = vsel %vm765, %v1634, -inf
    %1661 = vmax.xlane.f32.xlu0 %v1660
    %v1662 = vpop.xlane.xlu0 %1661
    %v1663 = vsub.f32 %v1277, %v1641
    %v1664 = vsub.f32 %v1328, %v1644
    %v1665 = vsub.f32 %v1379, %v1647
    %v1666 = vsub.f32 %v1430, %v1650
    %v1667 = vsub.f32 %v1481, %v1653
    %v1668 = vsub.f32 %v1532, %v1656
    %v1669 = vsub.f32 %v1583, %v1659
    %v1670 = vsub.f32 %v1634, %v1662
    %v1671 = vmul.f32 %v1663, 1.442695
    %v1672 = vpow.pop %v1671
    %v1673 = vmul.f32 %v1664, 1.442695
    %v1674 = vpow.pop %v1673
    %v1675 = vmul.f32 %v1665, 1.442695
    %v1676 = vpow.pop %v1675
    %v1677 = vmul.f32 %v1666, 1.442695
    %v1678 = vpow.pop %v1677
    %v1679 = vmul.f32 %v1667, 1.442695
    %v1680 = vpow.pop %v1679
    %v1681 = vmul.f32 %v1668, 1.442695
    %v1682 = vpow.pop %v1681
    %v1683 = vmul.f32 %v1669, 1.442695
    %v1684 = vpow.pop %v1683
    %v1685 = vmul.f32 %v1670, 1.442695
    %v1686 = vpow.pop %v1685
    %v1687 = vsel %vm765, %v1672, 0.0
    %1688 = vadd.xlane.f32.xlu0 %v1687
    %v1689 = vpop.xlane.xlu0 %1688
    %v1690 = vsel %vm765, %v1674, 0.0
    %1691 = vadd.xlane.f32.xlu0 %v1690
    %v1692 = vpop.xlane.xlu0 %1691
    %v1693 = vsel %vm765, %v1676, 0.0
    %1694 = vadd.xlane.f32.xlu0 %v1693
    %v1695 = vpop.xlane.xlu0 %1694
    %v1696 = vsel %vm765, %v1678, 0.0
    %1697 = vadd.xlane.f32.xlu0 %v1696
    %v1698 = vpop.xlane.xlu0 %1697
    %v1699 = vsel %vm765, %v1680, 0.0
    %1700 = vadd.xlane.f32.xlu0 %v1699
    %v1701 = vpop.xlane.xlu0 %1700
    %v1702 = vsel %vm765, %v1682, 0.0
    %1703 = vadd.xlane.f32.xlu0 %v1702
    %v1704 = vpop.xlane.xlu0 %1703
    %v1705 = vsel %vm765, %v1684, 0.0
    %1706 = vadd.xlane.f32.xlu0 %v1705
    %v1707 = vpop.xlane.xlu0 %1706
    %v1708 = vsel %vm765, %v1686, 0.0
    %1709 = vadd.xlane.f32.xlu0 %v1708
    %v1710 = vpop.xlane.xlu0 %1709
    %v1711 = vrcp.pop %v1689
    %v1712 = vrcp.pop %v1692
    %v1713 = vrcp.pop %v1695
    %v1714 = vrcp.pop %v1698
    %v1715 = vrcp.pop %v1701
    %v1716 = vrcp.pop %v1704
    %v1717 = vrcp.pop %v1707
    %v1718 = vrcp.pop %v1710
    %v1719 = vmul.f32 %v1672, %v1711
    %v1720 = vmul.f32 %v1674, %v1712
    %v1721 = vmul.f32 %v1676, %v1713
    %v1722 = vmul.f32 %v1678, %v1714
    %v1723 = vmul.f32 %v1680, %v1715
    %v1724 = vmul.f32 %v1682, %v1716
    %v1725 = vmul.f32 %v1684, %v1717
    %v1726 = vmul.f32 %v1686, %v1718
    %v1727 = vpack.c.bf16 %v1719, %v1719
    %v1728 = vpack.c.bf16 %v1720, %v1720
    %v1729 = vpack.c.bf16 %v1721, %v1721
    %v1730 = vpack.c.bf16 %v1722, %v1722
    %v1731 = vpack.c.bf16 %v1723, %v1723
    %v1732 = vpack.c.bf16 %v1724, %v1724
    %v1733 = vpack.c.bf16 %v1725, %v1725
    %v1734 = vpack.c.bf16 %v1726, %v1726
    %1736 = vrot.lane.b32.xlu0 %v364, 112
    %v1737 = vpop.permute.xlu0 %1736
    %v1739 = vsel %vm765, %v1727, 0
    %v1742 = vsel %vm865, %v1737, 0
    %1744 = vmatprep.subr.bf16.mxu0 0
    %1745 = vmatpush1.bf16.msra.mxu0 %v1742
    %1746 = vmatprep.subr.bf16.mxu0 0
    %1747 = vmatpush1.bf16.msra.mxu0 0
    %1748 = vmatprep.subr.bf16.mxu0 0
    %1749 = vmatpush1.bf16.msra.mxu0 0
    %1750 = vmatprep.subr.bf16.mxu0 0
    %1751 = vmatpush1.bf16.msra.mxu0 0
    %1752 = vmatprep.subr.bf16.mxu0 0
    %1753 = vmatpush1.bf16.msra.mxu0 0
    %1754 = vmatprep.subr.bf16.mxu0 0
    %1755 = vmatpush1.bf16.msra.mxu0 0
    %1756 = vmatprep.subr.bf16.mxu0 0
    %1757 = vmatpush1.bf16.msra.mxu0 0
    %1758 = vmatprep.subr.bf16.mxu0 0
    %1759 = vmatpush1.bf16.msra.mxu0 0
    %1760 = vmatprep.subr.bf16.mxu0 0
    %1761 = vmatpush1.bf16.msra.mxu0 0
    %1762 = vmatprep.subr.bf16.mxu0 0
    %1763 = vmatpush1.bf16.msra.mxu0 0
    %1764 = vmatprep.subr.bf16.mxu0 0
    %1765 = vmatpush1.bf16.msra.mxu0 0
    %1766 = vmatprep.subr.bf16.mxu0 0
    %1767 = vmatpush1.bf16.msra.mxu0 0
    %1768 = vmatprep.subr.bf16.mxu0 0
    %1769 = vmatpush1.bf16.msra.mxu0 0
    %1770 = vmatprep.subr.bf16.mxu0 0
    %1771 = vmatpush1.bf16.msra.mxu0 0
    %1772 = vmatprep.subr.bf16.mxu0 0
    %1773 = vmatpush1.bf16.msra.mxu0 0
    %1774 = vmatprep.subr.bf16.mxu0 0
    %1775 = vmatpush1.bf16.msra.mxu0 0
    %1776 = vmatprep.mubr.bf16.mxu0 0
    %1777 = vmatmul.mubr.bf16.gmra.mrb[0].mxu0 %v1739
    %v1778 = vpop.f32.mrb[0].mxu0
    %v1779 = vadd.f32 0.0, %v1778
    %v1780 = vpop.f32.mrb[0].mxu0
    %v1781 = vpop.f32.mrb[0].mxu0
    %v1782 = vpop.f32.mrb[0].mxu0
    %1783 = vdwg.mxu0
    %1785 = vrot.lane.b32.xlu0 %v365, 112
    %v1786 = vpop.permute.xlu0 %1785
    %v1788 = vsel %vm765, %v1728, 0
    %v1791 = vsel %vm865, %v1786, 0
    %1793 = vmatprep.subr.bf16.mxu0 0
    %1794 = vmatpush1.bf16.msra.mxu0 %v1791
    %1795 = vmatprep.subr.bf16.mxu0 0
    %1796 = vmatpush1.bf16.msra.mxu0 0
    %1797 = vmatprep.subr.bf16.mxu0 0
    %1798 = vmatpush1.bf16.msra.mxu0 0
    %1799 = vmatprep.subr.bf16.mxu0 0
    %1800 = vmatpush1.bf16.msra.mxu0 0
    %1801 = vmatprep.subr.bf16.mxu0 0
    %1802 = vmatpush1.bf16.msra.mxu0 0
    %1803 = vmatprep.subr.bf16.mxu0 0
    %1804 = vmatpush1.bf16.msra.mxu0 0
    %1805 = vmatprep.subr.bf16.mxu0 0
    %1806 = vmatpush1.bf16.msra.mxu0 0
    %1807 = vmatprep.subr.bf16.mxu0 0
    %1808 = vmatpush1.bf16.msra.mxu0 0
    %1809 = vmatprep.subr.bf16.mxu0 0
    %1810 = vmatpush1.bf16.msra.mxu0 0
    %1811 = vmatprep.subr.bf16.mxu0 0
    %1812 = vmatpush1.bf16.msra.mxu0 0
    %1813 = vmatprep.subr.bf16.mxu0 0
    %1814 = vmatpush1.bf16.msra.mxu0 0
    %1815 = vmatprep.subr.bf16.mxu0 0
    %1816 = vmatpush1.bf16.msra.mxu0 0
    %1817 = vmatprep.subr.bf16.mxu0 0
    %1818 = vmatpush1.bf16.msra.mxu0 0
    %1819 = vmatprep.subr.bf16.mxu0 0
    %1820 = vmatpush1.bf16.msra.mxu0 0
    %1821 = vmatprep.subr.bf16.mxu0 0
    %1822 = vmatpush1.bf16.msra.mxu0 0
    %1823 = vmatprep.subr.bf16.mxu0 0
    %1824 = vmatpush1.bf16.msra.mxu0 0
    %1825 = vmatprep.mubr.bf16.mxu0 0
    %1826 = vmatmul.mubr.bf16.gmra.mrb[0].mxu0 %v1788
    %v1827 = vpop.f32.mrb[0].mxu0
    %v1828 = vadd.f32 0.0, %v1827
    %v1829 = vpop.f32.mrb[0].mxu0
    %v1830 = vpop.f32.mrb[0].mxu0
    %v1831 = vpop.f32.mrb[0].mxu0
    %1832 = vdwg.mxu0
    %1834 = vrot.lane.b32.xlu0 %v366, 112
    %v1835 = vpop.permute.xlu0 %1834
    %v1837 = vsel %vm765, %v1729, 0
    %v1840 = vsel %vm865, %v1835, 0
    %1842 = vmatprep.subr.bf16.mxu0 0
    %1843 = vmatpush1.bf16.msra.mxu0 %v1840
    %1844 = vmatprep.subr.bf16.mxu0 0
    %1845 = vmatpush1.bf16.msra.mxu0 0
    %1846 = vmatprep.subr.bf16.mxu0 0
    %1847 = vmatpush1.bf16.msra.mxu0 0
    %1848 = vmatprep.subr.bf16.mxu0 0
    %1849 = vmatpush1.bf16.msra.mxu0 0
    %1850 = vmatprep.subr.bf16.mxu0 0
    %1851 = vmatpush1.bf16.msra.mxu0 0
    %1852 = vmatprep.subr.bf16.mxu0 0
    %1853 = vmatpush1.bf16.msra.mxu0 0
    %1854 = vmatprep.subr.bf16.mxu0 0
    %1855 = vmatpush1.bf16.msra.mxu0 0
    %1856 = vmatprep.subr.bf16.mxu0 0
    %1857 = vmatpush1.bf16.msra.mxu0 0
    %1858 = vmatprep.subr.bf16.mxu0 0
    %1859 = vmatpush1.bf16.msra.mxu0 0
    %1860 = vmatprep.subr.bf16.mxu0 0
    %1861 = vmatpush1.bf16.msra.mxu0 0
    %1862 = vmatprep.subr.bf16.mxu0 0
    %1863 = vmatpush1.bf16.msra.mxu0 0
    %1864 = vmatprep.subr.bf16.mxu0 0
    %1865 = vmatpush1.bf16.msra.mxu0 0
    %1866 = vmatprep.subr.bf16.mxu0 0
    %1867 = vmatpush1.bf16.msra.mxu0 0
    %1868 = vmatprep.subr.bf16.mxu0 0
    %1869 = vmatpush1.bf16.msra.mxu0 0
    %1870 = vmatprep.subr.bf16.mxu0 0
    %1871 = vmatpush1.bf16.msra.mxu0 0
    %1872 = vmatprep.subr.bf16.mxu0 0
    %1873 = vmatpush1.bf16.msra.mxu0 0
    %1874 = vmatprep.mubr.bf16.mxu0 0
    %1875 = vmatmul.mubr.bf16.gmra.mrb[0].mxu0 %v1837
    %v1876 = vpop.f32.mrb[0].mxu0
    %v1877 = vadd.f32 0.0, %v1876
    %v1878 = vpop.f32.mrb[0].mxu0
    %v1879 = vpop.f32.mrb[0].mxu0
    %v1880 = vpop.f32.mrb[0].mxu0
    %1881 = vdwg.mxu0
    %1883 = vrot.lane.b32.xlu0 %v367, 112
    %v1884 = vpop.permute.xlu0 %1883
    %v1886 = vsel %vm765, %v1730, 0
    %v1889 = vsel %vm865, %v1884, 0
    %1891 = vmatprep.subr.bf16.mxu0 0
    %1892 = vmatpush1.bf16.msra.mxu0 %v1889
    %1893 = vmatprep.subr.bf16.mxu0 0
    %1894 = vmatpush1.bf16.msra.mxu0 0
    %1895 = vmatprep.subr.bf16.mxu0 0
    %1896 = vmatpush1.bf16.msra.mxu0 0
    %1897 = vmatprep.subr.bf16.mxu0 0
    %1898 = vmatpush1.bf16.msra.mxu0 0
    %1899 = vmatprep.subr.bf16.mxu0 0
    %1900 = vmatpush1.bf16.msra.mxu0 0
    %1901 = vmatprep.subr.bf16.mxu0 0
    %1902 = vmatpush1.bf16.msra.mxu0 0
    %1903 = vmatprep.subr.bf16.mxu0 0
    %1904 = vmatpush1.bf16.msra.mxu0 0
    %1905 = vmatprep.subr.bf16.mxu0 0
    %1906 = vmatpush1.bf16.msra.mxu0 0
    %1907 = vmatprep.subr.bf16.mxu0 0
    %1908 = vmatpush1.bf16.msra.mxu0 0
    %1909 = vmatprep.subr.bf16.mxu0 0
    %1910 = vmatpush1.bf16.msra.mxu0 0
    %1911 = vmatprep.subr.bf16.mxu0 0
    %1912 = vmatpush1.bf16.msra.mxu0 0
    %1913 = vmatprep.subr.bf16.mxu0 0
    %1914 = vmatpush1.bf16.msra.mxu0 0
    %1915 = vmatprep.subr.bf16.mxu0 0
    %1916 = vmatpush1.bf16.msra.mxu0 0
    %1917 = vmatprep.subr.bf16.mxu0 0
    %1918 = vmatpush1.bf16.msra.mxu0 0
    %1919 = vmatprep.subr.bf16.mxu0 0
    %1920 = vmatpush1.bf16.msra.mxu0 0
    %1921 = vmatprep.subr.bf16.mxu0 0
    %1922 = vmatpush1.bf16.msra.mxu0 0
    %1923 = vmatprep.mubr.bf16.mxu0 0
    %1924 = vmatmul.mubr.bf16.gmra.mrb[0].mxu0 %v1886
    %v1925 = vpop.f32.mrb[0].mxu0
    %v1926 = vadd.f32 0.0, %v1925
    %v1927 = vpop.f32.mrb[0].mxu0
    %v1928 = vpop.f32.mrb[0].mxu0
    %v1929 = vpop.f32.mrb[0].mxu0
    %1930 = vdwg.mxu0
    %1932 = vrot.lane.b32.xlu0 %v368, 112
    %v1933 = vpop.permute.xlu0 %1932
    %v1935 = vsel %vm765, %v1731, 0
    %v1938 = vsel %vm865, %v1933, 0
    %1940 = vmatprep.subr.bf16.mxu0 0
    %1941 = vmatpush1.bf16.msra.mxu0 %v1938
    %1942 = vmatprep.subr.bf16.mxu0 0
    %1943 = vmatpush1.bf16.msra.mxu0 0
    %1944 = vmatprep.subr.bf16.mxu0 0
    %1945 = vmatpush1.bf16.msra.mxu0 0
    %1946 = vmatprep.subr.bf16.mxu0 0
    %1947 = vmatpush1.bf16.msra.mxu0 0
    %1948 = vmatprep.subr.bf16.mxu0 0
    %1949 = vmatpush1.bf16.msra.mxu0 0
    %1950 = vmatprep.subr.bf16.mxu0 0
    %1951 = vmatpush1.bf16.msra.mxu0 0
    %1952 = vmatprep.subr.bf16.mxu0 0
    %1953 = vmatpush1.bf16.msra.mxu0 0
    %1954 = vmatprep.subr.bf16.mxu0 0
    %1955 = vmatpush1.bf16.msra.mxu0 0
    %1956 = vmatprep.subr.bf16.mxu0 0
    %1957 = vmatpush1.bf16.msra.mxu0 0
    %1958 = vmatprep.subr.bf16.mxu0 0
    %1959 = vmatpush1.bf16.msra.mxu0 0
    %1960 = vmatprep.subr.bf16.mxu0 0
    %1961 = vmatpush1.bf16.msra.mxu0 0
    %1962 = vmatprep.subr.bf16.mxu0 0
    %1963 = vmatpush1.bf16.msra.mxu0 0
    %1964 = vmatprep.subr.bf16.mxu0 0
    %1965 = vmatpush1.bf16.msra.mxu0 0
    %1966 = vmatprep.subr.bf16.mxu0 0
    %1967 = vmatpush1.bf16.msra.mxu0 0
    %1968 = vmatprep.subr.bf16.mxu0 0
    %1969 = vmatpush1.bf16.msra.mxu0 0
    %1970 = vmatprep.subr.bf16.mxu0 0
    %1971 = vmatpush1.bf16.msra.mxu0 0
    %1972 = vmatprep.mubr.bf16.mxu0 0
    %1973 = vmatmul.mubr.bf16.gmra.mrb[0].mxu0 %v1935
    %v1974 = vpop.f32.mrb[0].mxu0
    %v1975 = vadd.f32 0.0, %v1974
    %v1976 = vpop.f32.mrb[0].mxu0
    %v1977 = vpop.f32.mrb[0].mxu0
    %v1978 = vpop.f32.mrb[0].mxu0
    %1979 = vdwg.mxu0
    %1981 = vrot.lane.b32.xlu0 %v369, 112
    %v1982 = vpop.permute.xlu0 %1981
    %v1984 = vsel %vm765, %v1732, 0
    %v1987 = vsel %vm865, %v1982, 0
    %1989 = vmatprep.subr.bf16.mxu0 0
    %1990 = vmatpush1.bf16.msra.mxu0 %v1987
    %1991 = vmatprep.subr.bf16.mxu0 0
    %1992 = vmatpush1.bf16.msra.mxu0 0
    %1993 = vmatprep.subr.bf16.mxu0 0
    %1994 = vmatpush1.bf16.msra.mxu0 0
    %1995 = vmatprep.subr.bf16.mxu0 0
    %1996 = vmatpush1.bf16.msra.mxu0 0
    %1997 = vmatprep.subr.bf16.mxu0 0
    %1998 = vmatpush1.bf16.msra.mxu0 0
    %1999 = vmatprep.subr.bf16.mxu0 0
    %2000 = vmatpush1.bf16.msra.mxu0 0
    %2001 = vmatprep.subr.bf16.mxu0 0
    %2002 = vmatpush1.bf16.msra.mxu0 0
    %2003 = vmatprep.subr.bf16.mxu0 0
    %2004 = vmatpush1.bf16.msra.mxu0 0
    %2005 = vmatprep.subr.bf16.mxu0 0
    %2006 = vmatpush1.bf16.msra.mxu0 0
    %2007 = vmatprep.subr.bf16.mxu0 0
    %2008 = vmatpush1.bf16.msra.mxu0 0
    %2009 = vmatprep.subr.bf16.mxu0 0
    %2010 = vmatpush1.bf16.msra.mxu0 0
    %2011 = vmatprep.subr.bf16.mxu0 0
    %2012 = vmatpush1.bf16.msra.mxu0 0
    %2013 = vmatprep.subr.bf16.mxu0 0
    %2014 = vmatpush1.bf16.msra.mxu0 0
    %2015 = vmatprep.subr.bf16.mxu0 0
    %2016 = vmatpush1.bf16.msra.mxu0 0
    %2017 = vmatprep.subr.bf16.mxu0 0
    %2018 = vmatpush1.bf16.msra.mxu0 0
    %2019 = vmatprep.subr.bf16.mxu0 0
    %2020 = vmatpush1.bf16.msra.mxu0 0
    %2021 = vmatprep.mubr.bf16.mxu0 0
    %2022 = vmatmul.mubr.bf16.gmra.mrb[0].mxu0 %v1984
    %v2023 = vpop.f32.mrb[0].mxu0
    %v2024 = vadd.f32 0.0, %v2023
    %v2025 = vpop.f32.mrb[0].mxu0
    %v2026 = vpop.f32.mrb[0].mxu0
    %v2027 = vpop.f32.mrb[0].mxu0
    %2028 = vdwg.mxu0
    %2030 = vrot.lane.b32.xlu0 %v370, 112
    %v2031 = vpop.permute.xlu0 %2030
    %v2033 = vsel %vm765, %v1733, 0
    %v2036 = vsel %vm865, %v2031, 0
    %2038 = vmatprep.subr.bf16.mxu0 0
    %2039 = vmatpush1.bf16.msra.mxu0 %v2036
    %2040 = vmatprep.subr.bf16.mxu0 0
    %2041 = vmatpush1.bf16.msra.mxu0 0
    %2042 = vmatprep.subr.bf16.mxu0 0
    %2043 = vmatpush1.bf16.msra.mxu0 0
    %2044 = vmatprep.subr.bf16.mxu0 0
    %2045 = vmatpush1.bf16.msra.mxu0 0
    %2046 = vmatprep.subr.bf16.mxu0 0
    %2047 = vmatpush1.bf16.msra.mxu0 0
    %2048 = vmatprep.subr.bf16.mxu0 0
    %2049 = vmatpush1.bf16.msra.mxu0 0
    %2050 = vmatprep.subr.bf16.mxu0 0
    %2051 = vmatpush1.bf16.msra.mxu0 0
    %2052 = vmatprep.subr.bf16.mxu0 0
    %2053 = vmatpush1.bf16.msra.mxu0 0
    %2054 = vmatprep.subr.bf16.mxu0 0
    %2055 = vmatpush1.bf16.msra.mxu0 0
    %2056 = vmatprep.subr.bf16.mxu0 0
    %2057 = vmatpush1.bf16.msra.mxu0 0
    %2058 = vmatprep.subr.bf16.mxu0 0
    %2059 = vmatpush1.bf16.msra.mxu0 0
    %2060 = vmatprep.subr.bf16.mxu0 0
    %2061 = vmatpush1.bf16.msra.mxu0 0
    %2062 = vmatprep.subr.bf16.mxu0 0
    %2063 = vmatpush1.bf16.msra.mxu0 0
    %2064 = vmatprep.subr.bf16.mxu0 0
    %2065 = vmatpush1.bf16.msra.mxu0 0
    %2066 = vmatprep.subr.bf16.mxu0 0
    %2067 = vmatpush1.bf16.msra.mxu0 0
    %2068 = vmatprep.subr.bf16.mxu0 0
    %2069 = vmatpush1.bf16.msra.mxu0 0
    %2070 = vmatprep.mubr.bf16.mxu0 0
    %2071 = vmatmul.mubr.bf16.gmra.mrb[0].mxu0 %v2033
    %v2072 = vpop.f32.mrb[0].mxu0
    %v2073 = vadd.f32 0.0, %v2072
    %v2074 = vpop.f32.mrb[0].mxu0
    %v2075 = vpop.f32.mrb[0].mxu0
    %v2076 = vpop.f32.mrb[0].mxu0
    %2077 = vdwg.mxu0
    %2079 = vrot.lane.b32.xlu0 %v371, 112
    %v2080 = vpop.permute.xlu0 %2079
    %v2082 = vsel %vm765, %v1734, 0
    %v2085 = vsel %vm865, %v2080, 0
    %2087 = vmatprep.subr.bf16.mxu0 0
    %2088 = vmatpush1.bf16.msra.mxu0 %v2085
    %2089 = vmatprep.subr.bf16.mxu0 0
    %2090 = vmatpush1.bf16.msra.mxu0 0
    %2091 = vmatprep.subr.bf16.mxu0 0
    %2092 = vmatpush1.bf16.msra.mxu0 0
    %2093 = vmatprep.subr.bf16.mxu0 0
    %2094 = vmatpush1.bf16.msra.mxu0 0
    %2095 = vmatprep.subr.bf16.mxu0 0
    %2096 = vmatpush1.bf16.msra.mxu0 0
    %2097 = vmatprep.subr.bf16.mxu0 0
    %2098 = vmatpush1.bf16.msra.mxu0 0
    %2099 = vmatprep.subr.bf16.mxu0 0
    %2100 = vmatpush1.bf16.msra.mxu0 0
    %2101 = vmatprep.subr.bf16.mxu0 0
    %2102 = vmatpush1.bf16.msra.mxu0 0
    %2103 = vmatprep.subr.bf16.mxu0 0
    %2104 = vmatpush1.bf16.msra.mxu0 0
    %2105 = vmatprep.subr.bf16.mxu0 0
    %2106 = vmatpush1.bf16.msra.mxu0 0
    %2107 = vmatprep.subr.bf16.mxu0 0
    %2108 = vmatpush1.bf16.msra.mxu0 0
    %2109 = vmatprep.subr.bf16.mxu0 0
    %2110 = vmatpush1.bf16.msra.mxu0 0
    %2111 = vmatprep.subr.bf16.mxu0 0
    %2112 = vmatpush1.bf16.msra.mxu0 0
    %2113 = vmatprep.subr.bf16.mxu0 0
    %2114 = vmatpush1.bf16.msra.mxu0 0
    %2115 = vmatprep.subr.bf16.mxu0 0
    %2116 = vmatpush1.bf16.msra.mxu0 0
    %2117 = vmatprep.subr.bf16.mxu0 0
    %2118 = vmatpush1.bf16.msra.mxu0 0
    %2119 = vmatprep.mubr.bf16.mxu0 0
    %2120 = vmatmul.mubr.bf16.gmra.mrb[0].mxu0 %v2082
    %v2121 = vpop.f32.mrb[0].mxu0
    %v2122 = vadd.f32 0.0, %v2121
    %v2123 = vpop.f32.mrb[0].mxu0
    %v2124 = vpop.f32.mrb[0].mxu0
    %v2125 = vpop.f32.mrb[0].mxu0
    %2126 = vdwg.mxu0
    %2127 = vrot.lane.b32.xlu0 %v348, 96
    %v2128 = vpop.permute.xlu0 %2127
    %2129 = vrot.lane.b32.xlu0 %v356, 32
    %v2130 = vpop.permute.xlu0 %2129
    %v2132 = vsel %vm375, %v2128, 0
    %v2135 = vsel %vm375, %v2130, 0
    %2137 = vmatprep.subr.bf16.mxu0 0
    %2138 = vmatpush1.bf16.xpose.msra.mxu0 %v2135
    %2139 = vmatprep.subr.bf16.mxu0 0
    %2140 = vmatpush1.bf16.xpose.msra.mxu0 0
    %2141 = vmatprep.subr.bf16.mxu0 0
    %2142 = vmatpush1.bf16.xpose.msra.mxu0 0
    %2143 = vmatprep.subr.bf16.mxu0 0
    %2144 = vmatpush1.bf16.xpose.msra.mxu0 0
    %2145 = vmatprep.subr.bf16.mxu0 0
    %2146 = vmatpush1.bf16.xpose.msra.mxu0 0
    %2147 = vmatprep.subr.bf16.mxu0 0
    %2148 = vmatpush1.bf16.xpose.msra.mxu0 0
    %2149 = vmatprep.subr.bf16.mxu0 0
    %2150 = vmatpush1.bf16.xpose.msra.mxu0 0
    %2151 = vmatprep.subr.bf16.mxu0 0
    %2152 = vmatpush1.bf16.xpose.msra.mxu0 0
    %2153 = vmatprep.subr.bf16.mxu0 0
    %2154 = vmatpush1.bf16.xpose.msra.mxu0 0
    %2155 = vmatprep.subr.bf16.mxu0 0
    %2156 = vmatpush1.bf16.xpose.msra.mxu0 0
    %2157 = vmatprep.subr.bf16.mxu0 0
    %2158 = vmatpush1.bf16.xpose.msra.mxu0 0
    %2159 = vmatprep.subr.bf16.mxu0 0
    %2160 = vmatpush1.bf16.xpose.msra.mxu0 0
    %2161 = vmatprep.subr.bf16.mxu0 0
    %2162 = vmatpush1.bf16.xpose.msra.mxu0 0
    %2163 = vmatprep.subr.bf16.mxu0 0
    %2164 = vmatpush1.bf16.xpose.msra.mxu0 0
    %2165 = vmatprep.subr.bf16.mxu0 0
    %2166 = vmatpush1.bf16.xpose.msra.mxu0 0
    %2167 = vmatprep.subr.bf16.mxu0 0
    %2168 = vmatpush1.bf16.xpose.msra.mxu0 0
    %2169 = vmatprep.mubr.bf16.mxu0 0
    %2170 = vmatmul.mubr.bf16.gmra.mrb[0].mxu0 %v2132
    %v2171 = vpop.f32.mrb[0].mxu0
    %v2172 = vadd.f32 0.0, %v2171
    %v2173 = vpop.f32.mrb[0].mxu0
    %v2174 = vpop.f32.mrb[0].mxu0
    %v2175 = vpop.f32.mrb[0].mxu0
    %2176 = vdwg.mxu0
    %2177 = vrot.lane.b32.xlu0 %v349, 96
    %v2178 = vpop.permute.xlu0 %2177
    %2179 = vrot.lane.b32.xlu0 %v357, 32
    %v2180 = vpop.permute.xlu0 %2179
    %v2182 = vsel %vm375, %v2178, 0
    %v2185 = vsel %vm375, %v2180, 0
    %2187 = vmatprep.subr.bf16.mxu0 0
    %2188 = vmatpush1.bf16.xpose.msra.mxu0 %v2185
    %2189 = vmatprep.subr.bf16.mxu0 0
    %2190 = vmatpush1.bf16.xpose.msra.mxu0 0
    %2191 = vmatprep.subr.bf16.mxu0 0
    %2192 = vmatpush1.bf16.xpose.msra.mxu0 0
    %2193 = vmatprep.subr.bf16.mxu0 0
    %2194 = vmatpush1.bf16.xpose.msra.mxu0 0
    %2195 = vmatprep.subr.bf16.mxu0 0
    %2196 = vmatpush1.bf16.xpose.msra.mxu0 0
    %2197 = vmatprep.subr.bf16.mxu0 0
    %2198 = vmatpush1.bf16.xpose.msra.mxu0 0
    %2199 = vmatprep.subr.bf16.mxu0 0
    %2200 = vmatpush1.bf16.xpose.msra.mxu0 0
    %2201 = vmatprep.subr.bf16.mxu0 0
    %2202 = vmatpush1.bf16.xpose.msra.mxu0 0
    %2203 = vmatprep.subr.bf16.mxu0 0
    %2204 = vmatpush1.bf16.xpose.msra.mxu0 0
    %2205 = vmatprep.subr.bf16.mxu0 0
    %2206 = vmatpush1.bf16.xpose.msra.mxu0 0
    %2207 = vmatprep.subr.bf16.mxu0 0
    %2208 = vmatpush1.bf16.xpose.msra.mxu0 0
    %2209 = vmatprep.subr.bf16.mxu0 0
    %2210 = vmatpush1.bf16.xpose.msra.mxu0 0
    %2211 = vmatprep.subr.bf16.mxu0 0
    %2212 = vmatpush1.bf16.xpose.msra.mxu0 0
    %2213 = vmatprep.subr.bf16.mxu0 0
    %2214 = vmatpush1.bf16.xpose.msra.mxu0 0
    %2215 = vmatprep.subr.bf16.mxu0 0
    %2216 = vmatpush1.bf16.xpose.msra.mxu0 0
    %2217 = vmatprep.subr.bf16.mxu0 0
    %2218 = vmatpush1.bf16.xpose.msra.mxu0 0
    %2219 = vmatprep.mubr.bf16.mxu0 0
    %2220 = vmatmul.mubr.bf16.gmra.mrb[0].mxu0 %v2182
    %v2221 = vpop.f32.mrb[0].mxu0
    %v2222 = vadd.f32 0.0, %v2221
    %v2223 = vpop.f32.mrb[0].mxu0
    %v2224 = vpop.f32.mrb[0].mxu0
    %v2225 = vpop.f32.mrb[0].mxu0
    %2226 = vdwg.mxu0
    %2227 = vrot.lane.b32.xlu0 %v350, 96
    %v2228 = vpop.permute.xlu0 %2227
    %2229 = vrot.lane.b32.xlu0 %v358, 32
    %v2230 = vpop.permute.xlu0 %2229
    %v2232 = vsel %vm375, %v2228, 0
    %v2235 = vsel %vm375, %v2230, 0
    %2237 = vmatprep.subr.bf16.mxu0 0
    %2238 = vmatpush1.bf16.xpose.msra.mxu0 %v2235
    %2239 = vmatprep.subr.bf16.mxu0 0
    %2240 = vmatpush1.bf16.xpose.msra.mxu0 0
    %2241 = vmatprep.subr.bf16.mxu0 0
    %2242 = vmatpush1.bf16.xpose.msra.mxu0 0
    %2243 = vmatprep.subr.bf16.mxu0 0
    %2244 = vmatpush1.bf16.xpose.msra.mxu0 0
    %2245 = vmatprep.subr.bf16.mxu0 0
    %2246 = vmatpush1.bf16.xpose.msra.mxu0 0
    %2247 = vmatprep.subr.bf16.mxu0 0
    %2248 = vmatpush1.bf16.xpose.msra.mxu0 0
    %2249 = vmatprep.subr.bf16.mxu0 0
    %2250 = vmatpush1.bf16.xpose.msra.mxu0 0
    %2251 = vmatprep.subr.bf16.mxu0 0
    %2252 = vmatpush1.bf16.xpose.msra.mxu0 0
    %2253 = vmatprep.subr.bf16.mxu0 0
    %2254 = vmatpush1.bf16.xpose.msra.mxu0 0
    %2255 = vmatprep.subr.bf16.mxu0 0
    %2256 = vmatpush1.bf16.xpose.msra.mxu0 0
    %2257 = vmatprep.subr.bf16.mxu0 0
    %2258 = vmatpush1.bf16.xpose.msra.mxu0 0
    %2259 = vmatprep.subr.bf16.mxu0 0
    %2260 = vmatpush1.bf16.xpose.msra.mxu0 0
    %2261 = vmatprep.subr.bf16.mxu0 0
    %2262 = vmatpush1.bf16.xpose.msra.mxu0 0
    %2263 = vmatprep.subr.bf16.mxu0 0
    %2264 = vmatpush1.bf16.xpose.msra.mxu0 0
    %2265 = vmatprep.subr.bf16.mxu0 0
    %2266 = vmatpush1.bf16.xpose.msra.mxu0 0
    %2267 = vmatprep.subr.bf16.mxu0 0
    %2268 = vmatpush1.bf16.xpose.msra.mxu0 0
    %2269 = vmatprep.mubr.bf16.mxu0 0
    %2270 = vmatmul.mubr.bf16.gmra.mrb[0].mxu0 %v2232
    %v2271 = vpop.f32.mrb[0].mxu0
    %v2272 = vadd.f32 0.0, %v2271
    %v2273 = vpop.f32.mrb[0].mxu0
    %v2274 = vpop.f32.mrb[0].mxu0
    %v2275 = vpop.f32.mrb[0].mxu0
    %2276 = vdwg.mxu0
    %2277 = vrot.lane.b32.xlu0 %v351, 96
    %v2278 = vpop.permute.xlu0 %2277
    %2279 = vrot.lane.b32.xlu0 %v359, 32
    %v2280 = vpop.permute.xlu0 %2279
    %v2282 = vsel %vm375, %v2278, 0
    %v2285 = vsel %vm375, %v2280, 0
    %2287 = vmatprep.subr.bf16.mxu0 0
    %2288 = vmatpush1.bf16.xpose.msra.mxu0 %v2285
    %2289 = vmatprep.subr.bf16.mxu0 0
    %2290 = vmatpush1.bf16.xpose.msra.mxu0 0
    %2291 = vmatprep.subr.bf16.mxu0 0
    %2292 = vmatpush1.bf16.xpose.msra.mxu0 0
    %2293 = vmatprep.subr.bf16.mxu0 0
    %2294 = vmatpush1.bf16.xpose.msra.mxu0 0
    %2295 = vmatprep.subr.bf16.mxu0 0
    %2296 = vmatpush1.bf16.xpose.msra.mxu0 0
    %2297 = vmatprep.subr.bf16.mxu0 0
    %2298 = vmatpush1.bf16.xpose.msra.mxu0 0
    %2299 = vmatprep.subr.bf16.mxu0 0
    %2300 = vmatpush1.bf16.xpose.msra.mxu0 0
    %2301 = vmatprep.subr.bf16.mxu0 0
    %2302 = vmatpush1.bf16.xpose.msra.mxu0 0
    %2303 = vmatprep.subr.bf16.mxu0 0
    %2304 = vmatpush1.bf16.xpose.msra.mxu0 0
    %2305 = vmatprep.subr.bf16.mxu0 0
    %2306 = vmatpush1.bf16.xpose.msra.mxu0 0
    %2307 = vmatprep.subr.bf16.mxu0 0
    %2308 = vmatpush1.bf16.xpose.msra.mxu0 0
    %2309 = vmatprep.subr.bf16.mxu0 0
    %2310 = vmatpush1.bf16.xpose.msra.mxu0 0
    %2311 = vmatprep.subr.bf16.mxu0 0
    %2312 = vmatpush1.bf16.xpose.msra.mxu0 0
    %2313 = vmatprep.subr.bf16.mxu0 0
    %2314 = vmatpush1.bf16.xpose.msra.mxu0 0
    %2315 = vmatprep.subr.bf16.mxu0 0
    %2316 = vmatpush1.bf16.xpose.msra.mxu0 0
    %2317 = vmatprep.subr.bf16.mxu0 0
    %2318 = vmatpush1.bf16.xpose.msra.mxu0 0
    %2319 = vmatprep.mubr.bf16.mxu0 0
    %2320 = vmatmul.mubr.bf16.gmra.mrb[0].mxu0 %v2282
    %v2321 = vpop.f32.mrb[0].mxu0
    %v2322 = vadd.f32 0.0, %v2321
    %v2323 = vpop.f32.mrb[0].mxu0
    %v2324 = vpop.f32.mrb[0].mxu0
    %v2325 = vpop.f32.mrb[0].mxu0
    %2326 = vdwg.mxu0
    %2327 = vrot.lane.b32.xlu0 %v352, 96
    %v2328 = vpop.permute.xlu0 %2327
    %2329 = vrot.lane.b32.xlu0 %v360, 32
    %v2330 = vpop.permute.xlu0 %2329
    %v2332 = vsel %vm375, %v2328, 0
    %v2335 = vsel %vm375, %v2330, 0
    %2337 = vmatprep.subr.bf16.mxu0 0
    %2338 = vmatpush1.bf16.xpose.msra.mxu0 %v2335
    %2339 = vmatprep.subr.bf16.mxu0 0
    %2340 = vmatpush1.bf16.xpose.msra.mxu0 0
    %2341 = vmatprep.subr.bf16.mxu0 0
    %2342 = vmatpush1.bf16.xpose.msra.mxu0 0
    %2343 = vmatprep.subr.bf16.mxu0 0
    %2344 = vmatpush1.bf16.xpose.msra.mxu0 0
    %2345 = vmatprep.subr.bf16.mxu0 0
    %2346 = vmatpush1.bf16.xpose.msra.mxu0 0
    %2347 = vmatprep.subr.bf16.mxu0 0
    %2348 = vmatpush1.bf16.xpose.msra.mxu0 0
    %2349 = vmatprep.subr.bf16.mxu0 0
    %2350 = vmatpush1.bf16.xpose.msra.mxu0 0
    %2351 = vmatprep.subr.bf16.mxu0 0
    %2352 = vmatpush1.bf16.xpose.msra.mxu0 0
    %2353 = vmatprep.subr.bf16.mxu0 0
    %2354 = vmatpush1.bf16.xpose.msra.mxu0 0
    %2355 = vmatprep.subr.bf16.mxu0 0
    %2356 = vmatpush1.bf16.xpose.msra.mxu0 0
    %2357 = vmatprep.subr.bf16.mxu0 0
    %2358 = vmatpush1.bf16.xpose.msra.mxu0 0
    %2359 = vmatprep.subr.bf16.mxu0 0
    %2360 = vmatpush1.bf16.xpose.msra.mxu0 0
    %2361 = vmatprep.subr.bf16.mxu0 0
    %2362 = vmatpush1.bf16.xpose.msra.mxu0 0
    %2363 = vmatprep.subr.bf16.mxu0 0
    %2364 = vmatpush1.bf16.xpose.msra.mxu0 0
    %2365 = vmatprep.subr.bf16.mxu0 0
    %2366 = vmatpush1.bf16.xpose.msra.mxu0 0
    %2367 = vmatprep.subr.bf16.mxu0 0
    %2368 = vmatpush1.bf16.xpose.msra.mxu0 0
    %2369 = vmatprep.mubr.bf16.mxu0 0
    %2370 = vmatmul.mubr.bf16.gmra.mrb[0].mxu0 %v2332
    %v2371 = vpop.f32.mrb[0].mxu0
    %v2372 = vadd.f32 0.0, %v2371
    %v2373 = vpop.f32.mrb[0].mxu0
    %v2374 = vpop.f32.mrb[0].mxu0
    %v2375 = vpop.f32.mrb[0].mxu0
    %2376 = vdwg.mxu0
    %2377 = vrot.lane.b32.xlu0 %v353, 96
    %v2378 = vpop.permute.xlu0 %2377
    %2379 = vrot.lane.b32.xlu0 %v361, 32
    %v2380 = vpop.permute.xlu0 %2379
    %v2382 = vsel %vm375, %v2378, 0
    %v2385 = vsel %vm375, %v2380, 0
    %2387 = vmatprep.subr.bf16.mxu0 0
    %2388 = vmatpush1.bf16.xpose.msra.mxu0 %v2385
    %2389 = vmatprep.subr.bf16.mxu0 0
    %2390 = vmatpush1.bf16.xpose.msra.mxu0 0
    %2391 = vmatprep.subr.bf16.mxu0 0
    %2392 = vmatpush1.bf16.xpose.msra.mxu0 0
    %2393 = vmatprep.subr.bf16.mxu0 0
    %2394 = vmatpush1.bf16.xpose.msra.mxu0 0
    %2395 = vmatprep.subr.bf16.mxu0 0
    %2396 = vmatpush1.bf16.xpose.msra.mxu0 0
    %2397 = vmatprep.subr.bf16.mxu0 0
    %2398 = vmatpush1.bf16.xpose.msra.mxu0 0
    %2399 = vmatprep.subr.bf16.mxu0 0
    %2400 = vmatpush1.bf16.xpose.msra.mxu0 0
    %2401 = vmatprep.subr.bf16.mxu0 0
    %2402 = vmatpush1.bf16.xpose.msra.mxu0 0
    %2403 = vmatprep.subr.bf16.mxu0 0
    %2404 = vmatpush1.bf16.xpose.msra.mxu0 0
    %2405 = vmatprep.subr.bf16.mxu0 0
    %2406 = vmatpush1.bf16.xpose.msra.mxu0 0
    %2407 = vmatprep.subr.bf16.mxu0 0
    %2408 = vmatpush1.bf16.xpose.msra.mxu0 0
    %2409 = vmatprep.subr.bf16.mxu0 0
    %2410 = vmatpush1.bf16.xpose.msra.mxu0 0
    %2411 = vmatprep.subr.bf16.mxu0 0
    %2412 = vmatpush1.bf16.xpose.msra.mxu0 0
    %2413 = vmatprep.subr.bf16.mxu0 0
    %2414 = vmatpush1.bf16.xpose.msra.mxu0 0
    %2415 = vmatprep.subr.bf16.mxu0 0
    %2416 = vmatpush1.bf16.xpose.msra.mxu0 0
    %2417 = vmatprep.subr.bf16.mxu0 0
    %2418 = vmatpush1.bf16.xpose.msra.mxu0 0
    %2419 = vmatprep.mubr.bf16.mxu0 0
    %2420 = vmatmul.mubr.bf16.gmra.mrb[0].mxu0 %v2382
    %v2421 = vpop.f32.mrb[0].mxu0
    %v2422 = vadd.f32 0.0, %v2421
    %v2423 = vpop.f32.mrb[0].mxu0
    %v2424 = vpop.f32.mrb[0].mxu0
    %v2425 = vpop.f32.mrb[0].mxu0
    %2426 = vdwg.mxu0
    %2427 = vrot.lane.b32.xlu0 %v354, 96
    %v2428 = vpop.permute.xlu0 %2427
    %2429 = vrot.lane.b32.xlu0 %v362, 32
    %v2430 = vpop.permute.xlu0 %2429
    %v2432 = vsel %vm375, %v2428, 0
    %v2435 = vsel %vm375, %v2430, 0
    %2437 = vmatprep.subr.bf16.mxu0 0
    %2438 = vmatpush1.bf16.xpose.msra.mxu0 %v2435
    %2439 = vmatprep.subr.bf16.mxu0 0
    %2440 = vmatpush1.bf16.xpose.msra.mxu0 0
    %2441 = vmatprep.subr.bf16.mxu0 0
    %2442 = vmatpush1.bf16.xpose.msra.mxu0 0
    %2443 = vmatprep.subr.bf16.mxu0 0
    %2444 = vmatpush1.bf16.xpose.msra.mxu0 0
    %2445 = vmatprep.subr.bf16.mxu0 0
    %2446 = vmatpush1.bf16.xpose.msra.mxu0 0
    %2447 = vmatprep.subr.bf16.mxu0 0
    %2448 = vmatpush1.bf16.xpose.msra.mxu0 0
    %2449 = vmatprep.subr.bf16.mxu0 0
    %2450 = vmatpush1.bf16.xpose.msra.mxu0 0
    %2451 = vmatprep.subr.bf16.mxu0 0
    %2452 = vmatpush1.bf16.xpose.msra.mxu0 0
    %2453 = vmatprep.subr.bf16.mxu0 0
    %2454 = vmatpush1.bf16.xpose.msra.mxu0 0
    %2455 = vmatprep.subr.bf16.mxu0 0
    %2456 = vmatpush1.bf16.xpose.msra.mxu0 0
    %2457 = vmatprep.subr.bf16.mxu0 0
    %2458 = vmatpush1.bf16.xpose.msra.mxu0 0
    %2459 = vmatprep.subr.bf16.mxu0 0
    %2460 = vmatpush1.bf16.xpose.msra.mxu0 0
    %2461 = vmatprep.subr.bf16.mxu0 0
    %2462 = vmatpush1.bf16.xpose.msra.mxu0 0
    %2463 = vmatprep.subr.bf16.mxu0 0
    %2464 = vmatpush1.bf16.xpose.msra.mxu0 0
    %2465 = vmatprep.subr.bf16.mxu0 0
    %2466 = vmatpush1.bf16.xpose.msra.mxu0 0
    %2467 = vmatprep.subr.bf16.mxu0 0
    %2468 = vmatpush1.bf16.xpose.msra.mxu0 0
    %2469 = vmatprep.mubr.bf16.mxu0 0
    %2470 = vmatmul.mubr.bf16.gmra.mrb[0].mxu0 %v2432
    %v2471 = vpop.f32.mrb[0].mxu0
    %v2472 = vadd.f32 0.0, %v2471
    %v2473 = vpop.f32.mrb[0].mxu0
    %v2474 = vpop.f32.mrb[0].mxu0
    %v2475 = vpop.f32.mrb[0].mxu0
    %2476 = vdwg.mxu0
    %2477 = vrot.lane.b32.xlu0 %v355, 96
    %v2478 = vpop.permute.xlu0 %2477
    %2479 = vrot.lane.b32.xlu0 %v363, 32
    %v2480 = vpop.permute.xlu0 %2479
    %v2482 = vsel %vm375, %v2478, 0
    %v2485 = vsel %vm375, %v2480, 0
    %2487 = vmatprep.subr.bf16.mxu0 0
    %2488 = vmatpush1.bf16.xpose.msra.mxu0 %v2485
    %2489 = vmatprep.subr.bf16.mxu0 0
    %2490 = vmatpush1.bf16.xpose.msra.mxu0 0
    %2491 = vmatprep.subr.bf16.mxu0 0
    %2492 = vmatpush1.bf16.xpose.msra.mxu0 0
    %2493 = vmatprep.subr.bf16.mxu0 0
    %2494 = vmatpush1.bf16.xpose.msra.mxu0 0
    %2495 = vmatprep.subr.bf16.mxu0 0
    %2496 = vmatpush1.bf16.xpose.msra.mxu0 0
    %2497 = vmatprep.subr.bf16.mxu0 0
    %2498 = vmatpush1.bf16.xpose.msra.mxu0 0
    %2499 = vmatprep.subr.bf16.mxu0 0
    %2500 = vmatpush1.bf16.xpose.msra.mxu0 0
    %2501 = vmatprep.subr.bf16.mxu0 0
    %2502 = vmatpush1.bf16.xpose.msra.mxu0 0
    %2503 = vmatprep.subr.bf16.mxu0 0
    %2504 = vmatpush1.bf16.xpose.msra.mxu0 0
    %2505 = vmatprep.subr.bf16.mxu0 0
    %2506 = vmatpush1.bf16.xpose.msra.mxu0 0
    %2507 = vmatprep.subr.bf16.mxu0 0
    %2508 = vmatpush1.bf16.xpose.msra.mxu0 0
    %2509 = vmatprep.subr.bf16.mxu0 0
    %2510 = vmatpush1.bf16.xpose.msra.mxu0 0
    %2511 = vmatprep.subr.bf16.mxu0 0
    %2512 = vmatpush1.bf16.xpose.msra.mxu0 0
    %2513 = vmatprep.subr.bf16.mxu0 0
    %2514 = vmatpush1.bf16.xpose.msra.mxu0 0
    %2515 = vmatprep.subr.bf16.mxu0 0
    %2516 = vmatpush1.bf16.xpose.msra.mxu0 0
    %2517 = vmatprep.subr.bf16.mxu0 0
    %2518 = vmatpush1.bf16.xpose.msra.mxu0 0
    %2519 = vmatprep.mubr.bf16.mxu0 0
    %2520 = vmatmul.mubr.bf16.gmra.mrb[0].mxu0 %v2482
    %v2521 = vpop.f32.mrb[0].mxu0
    %v2522 = vadd.f32 0.0, %v2521
    %v2523 = vpop.f32.mrb[0].mxu0
    %v2524 = vpop.f32.mrb[0].mxu0
    %v2525 = vpop.f32.mrb[0].mxu0
    %2526 = vdwg.mxu0
    %v2527 = vsel %vm765, %v2172, -inf
    %2528 = vmax.xlane.f32.xlu0 %v2527
    %v2529 = vpop.xlane.xlu0 %2528
    %v2530 = vsel %vm765, %v2222, -inf
    %2531 = vmax.xlane.f32.xlu0 %v2530
    %v2532 = vpop.xlane.xlu0 %2531
    %v2533 = vsel %vm765, %v2272, -inf
    %2534 = vmax.xlane.f32.xlu0 %v2533
    %v2535 = vpop.xlane.xlu0 %2534
    %v2536 = vsel %vm765, %v2322, -inf
    %2537 = vmax.xlane.f32.xlu0 %v2536
    %v2538 = vpop.xlane.xlu0 %2537
    %v2539 = vsel %vm765, %v2372, -inf
    %2540 = vmax.xlane.f32.xlu0 %v2539
    %v2541 = vpop.xlane.xlu0 %2540
    %v2542 = vsel %vm765, %v2422, -inf
    %2543 = vmax.xlane.f32.xlu0 %v2542
    %v2544 = vpop.xlane.xlu0 %2543
    %v2545 = vsel %vm765, %v2472, -inf
    %2546 = vmax.xlane.f32.xlu0 %v2545
    %v2547 = vpop.xlane.xlu0 %2546
    %v2548 = vsel %vm765, %v2522, -inf
    %2549 = vmax.xlane.f32.xlu0 %v2548
    %v2550 = vpop.xlane.xlu0 %2549
    %v2551 = vsub.f32 %v2172, %v2529
    %v2552 = vsub.f32 %v2222, %v2532
    %v2553 = vsub.f32 %v2272, %v2535
    %v2554 = vsub.f32 %v2322, %v2538
    %v2555 = vsub.f32 %v2372, %v2541
    %v2556 = vsub.f32 %v2422, %v2544
    %v2557 = vsub.f32 %v2472, %v2547
    %v2558 = vsub.f32 %v2522, %v2550
    %v2559 = vmul.f32 %v2551, 1.442695
    %v2560 = vpow.pop %v2559
    %v2561 = vmul.f32 %v2552, 1.442695
    %v2562 = vpow.pop %v2561
    %v2563 = vmul.f32 %v2553, 1.442695
    %v2564 = vpow.pop %v2563
    %v2565 = vmul.f32 %v2554, 1.442695
    %v2566 = vpow.pop %v2565
    %v2567 = vmul.f32 %v2555, 1.442695
    %v2568 = vpow.pop %v2567
    %v2569 = vmul.f32 %v2556, 1.442695
    %v2570 = vpow.pop %v2569
    %v2571 = vmul.f32 %v2557, 1.442695
    %v2572 = vpow.pop %v2571
    %v2573 = vmul.f32 %v2558, 1.442695
    %v2574 = vpow.pop %v2573
    %v2575 = vsel %vm765, %v2560, 0.0
    %2576 = vadd.xlane.f32.xlu0 %v2575
    %v2577 = vpop.xlane.xlu0 %2576
    %v2578 = vsel %vm765, %v2562, 0.0
    %2579 = vadd.xlane.f32.xlu0 %v2578
    %v2580 = vpop.xlane.xlu0 %2579
    %v2581 = vsel %vm765, %v2564, 0.0
    %2582 = vadd.xlane.f32.xlu0 %v2581
    %v2583 = vpop.xlane.xlu0 %2582
    %v2584 = vsel %vm765, %v2566, 0.0
    %2585 = vadd.xlane.f32.xlu0 %v2584
    %v2586 = vpop.xlane.xlu0 %2585
    %v2587 = vsel %vm765, %v2568, 0.0
    %2588 = vadd.xlane.f32.xlu0 %v2587
    %v2589 = vpop.xlane.xlu0 %2588
    %v2590 = vsel %vm765, %v2570, 0.0
    %2591 = vadd.xlane.f32.xlu0 %v2590
    %v2592 = vpop.xlane.xlu0 %2591
    %v2593 = vsel %vm765, %v2572, 0.0
    %2594 = vadd.xlane.f32.xlu0 %v2593
    %v2595 = vpop.xlane.xlu0 %2594
    %v2596 = vsel %vm765, %v2574, 0.0
    %2597 = vadd.xlane.f32.xlu0 %v2596
    %v2598 = vpop.xlane.xlu0 %2597
    %v2599 = vrcp.pop %v2577
    %v2600 = vrcp.pop %v2580
    %v2601 = vrcp.pop %v2583
    %v2602 = vrcp.pop %v2586
    %v2603 = vrcp.pop %v2589
    %v2604 = vrcp.pop %v2592
    %v2605 = vrcp.pop %v2595
    %v2606 = vrcp.pop %v2598
    %v2607 = vmul.f32 %v2560, %v2599
    %v2608 = vmul.f32 %v2562, %v2600
    %v2609 = vmul.f32 %v2564, %v2601
    %v2610 = vmul.f32 %v2566, %v2602
    %v2611 = vmul.f32 %v2568, %v2603
    %v2612 = vmul.f32 %v2570, %v2604
    %v2613 = vmul.f32 %v2572, %v2605
    %v2614 = vmul.f32 %v2574, %v2606
    %v2615 = vpack.c.bf16 %v2607, %v2607
    %v2616 = vpack.c.bf16 %v2608, %v2608
    %v2617 = vpack.c.bf16 %v2609, %v2609
    %v2618 = vpack.c.bf16 %v2610, %v2610
    %v2619 = vpack.c.bf16 %v2611, %v2611
    %v2620 = vpack.c.bf16 %v2612, %v2612
    %v2621 = vpack.c.bf16 %v2613, %v2613
    %v2622 = vpack.c.bf16 %v2614, %v2614
    %2623 = vrot.lane.b32.xlu0 %v364, 96
    %v2624 = vpop.permute.xlu0 %2623
    %v2626 = vsel %vm765, %v2615, 0
    %v2629 = vsel %vm865, %v2624, 0
    %2631 = vmatprep.subr.bf16.mxu0 0
    %2632 = vmatpush1.bf16.msra.mxu0 %v2629
    %2633 = vmatprep.subr.bf16.mxu0 0
    %2634 = vmatpush1.bf16.msra.mxu0 0
    %2635 = vmatprep.subr.bf16.mxu0 0
    %2636 = vmatpush1.bf16.msra.mxu0 0
    %2637 = vmatprep.subr.bf16.mxu0 0
    %2638 = vmatpush1.bf16.msra.mxu0 0
    %2639 = vmatprep.subr.bf16.mxu0 0
    %2640 = vmatpush1.bf16.msra.mxu0 0
    %2641 = vmatprep.subr.bf16.mxu0 0
    %2642 = vmatpush1.bf16.msra.mxu0 0
    %2643 = vmatprep.subr.bf16.mxu0 0
    %2644 = vmatpush1.bf16.msra.mxu0 0
    %2645 = vmatprep.subr.bf16.mxu0 0
    %2646 = vmatpush1.bf16.msra.mxu0 0
    %2647 = vmatprep.subr.bf16.mxu0 0
    %2648 = vmatpush1.bf16.msra.mxu0 0
    %2649 = vmatprep.subr.bf16.mxu0 0
    %2650 = vmatpush1.bf16.msra.mxu0 0
    %2651 = vmatprep.subr.bf16.mxu0 0
    %2652 = vmatpush1.bf16.msra.mxu0 0
    %2653 = vmatprep.subr.bf16.mxu0 0
    %2654 = vmatpush1.bf16.msra.mxu0 0
    %2655 = vmatprep.subr.bf16.mxu0 0
    %2656 = vmatpush1.bf16.msra.mxu0 0
    %2657 = vmatprep.subr.bf16.mxu0 0
    %2658 = vmatpush1.bf16.msra.mxu0 0
    %2659 = vmatprep.subr.bf16.mxu0 0
    %2660 = vmatpush1.bf16.msra.mxu0 0
    %2661 = vmatprep.subr.bf16.mxu0 0
    %2662 = vmatpush1.bf16.msra.mxu0 0
    %2663 = vmatprep.mubr.bf16.mxu0 0
    %2664 = vmatmul.mubr.bf16.gmra.mrb[0].mxu0 %v2626
    %v2665 = vpop.f32.mrb[0].mxu0
    %v2666 = vadd.f32 0.0, %v2665
    %v2667 = vpop.f32.mrb[0].mxu0
    %v2668 = vpop.f32.mrb[0].mxu0
    %v2669 = vpop.f32.mrb[0].mxu0
    %2670 = vdwg.mxu0
    %2671 = vrot.lane.b32.xlu0 %v365, 96
    %v2672 = vpop.permute.xlu0 %2671
    %v2674 = vsel %vm765, %v2616, 0
    %v2677 = vsel %vm865, %v2672, 0
    %2679 = vmatprep.subr.bf16.mxu0 0
    %2680 = vmatpush1.bf16.msra.mxu0 %v2677
    %2681 = vmatprep.subr.bf16.mxu0 0
    %2682 = vmatpush1.bf16.msra.mxu0 0
    %2683 = vmatprep.subr.bf16.mxu0 0
    %2684 = vmatpush1.bf16.msra.mxu0 0
    %2685 = vmatprep.subr.bf16.mxu0 0
    %2686 = vmatpush1.bf16.msra.mxu0 0
    %2687 = vmatprep.subr.bf16.mxu0 0
    %2688 = vmatpush1.bf16.msra.mxu0 0
    %2689 = vmatprep.subr.bf16.mxu0 0
    %2690 = vmatpush1.bf16.msra.mxu0 0
    %2691 = vmatprep.subr.bf16.mxu0 0
    %2692 = vmatpush1.bf16.msra.mxu0 0
    %2693 = vmatprep.subr.bf16.mxu0 0
    %2694 = vmatpush1.bf16.msra.mxu0 0
    %2695 = vmatprep.subr.bf16.mxu0 0
    %2696 = vmatpush1.bf16.msra.mxu0 0
    %2697 = vmatprep.subr.bf16.mxu0 0
    %2698 = vmatpush1.bf16.msra.mxu0 0
    %2699 = vmatprep.subr.bf16.mxu0 0
    %2700 = vmatpush1.bf16.msra.mxu0 0
    %2701 = vmatprep.subr.bf16.mxu0 0
    %2702 = vmatpush1.bf16.msra.mxu0 0
    %2703 = vmatprep.subr.bf16.mxu0 0
    %2704 = vmatpush1.bf16.msra.mxu0 0
    %2705 = vmatprep.subr.bf16.mxu0 0
    %2706 = vmatpush1.bf16.msra.mxu0 0
    %2707 = vmatprep.subr.bf16.mxu0 0
    %2708 = vmatpush1.bf16.msra.mxu0 0
    %2709 = vmatprep.subr.bf16.mxu0 0
    %2710 = vmatpush1.bf16.msra.mxu0 0
    %2711 = vmatprep.mubr.bf16.mxu0 0
    %2712 = vmatmul.mubr.bf16.gmra.mrb[0].mxu0 %v2674
    %v2713 = vpop.f32.mrb[0].mxu0
    %v2714 = vadd.f32 0.0, %v2713
    %v2715 = vpop.f32.mrb[0].mxu0
    %v2716 = vpop.f32.mrb[0].mxu0
    %v2717 = vpop.f32.mrb[0].mxu0
    %2718 = vdwg.mxu0
    %2719 = vrot.lane.b32.xlu0 %v366, 96
    %v2720 = vpop.permute.xlu0 %2719
    %v2722 = vsel %vm765, %v2617, 0
    %v2725 = vsel %vm865, %v2720, 0
    %2727 = vmatprep.subr.bf16.mxu0 0
    %2728 = vmatpush1.bf16.msra.mxu0 %v2725
    %2729 = vmatprep.subr.bf16.mxu0 0
    %2730 = vmatpush1.bf16.msra.mxu0 0
    %2731 = vmatprep.subr.bf16.mxu0 0
    %2732 = vmatpush1.bf16.msra.mxu0 0
    %2733 = vmatprep.subr.bf16.mxu0 0
    %2734 = vmatpush1.bf16.msra.mxu0 0
    %2735 = vmatprep.subr.bf16.mxu0 0
    %2736 = vmatpush1.bf16.msra.mxu0 0
    %2737 = vmatprep.subr.bf16.mxu0 0
    %2738 = vmatpush1.bf16.msra.mxu0 0
    %2739 = vmatprep.subr.bf16.mxu0 0
    %2740 = vmatpush1.bf16.msra.mxu0 0
    %2741 = vmatprep.subr.bf16.mxu0 0
    %2742 = vmatpush1.bf16.msra.mxu0 0
    %2743 = vmatprep.subr.bf16.mxu0 0
    %2744 = vmatpush1.bf16.msra.mxu0 0
    %2745 = vmatprep.subr.bf16.mxu0 0
    %2746 = vmatpush1.bf16.msra.mxu0 0
    %2747 = vmatprep.subr.bf16.mxu0 0
    %2748 = vmatpush1.bf16.msra.mxu0 0
    %2749 = vmatprep.subr.bf16.mxu0 0
    %2750 = vmatpush1.bf16.msra.mxu0 0
    %2751 = vmatprep.subr.bf16.mxu0 0
    %2752 = vmatpush1.bf16.msra.mxu0 0
    %2753 = vmatprep.subr.bf16.mxu0 0
    %2754 = vmatpush1.bf16.msra.mxu0 0
    %2755 = vmatprep.subr.bf16.mxu0 0
    %2756 = vmatpush1.bf16.msra.mxu0 0
    %2757 = vmatprep.subr.bf16.mxu0 0
    %2758 = vmatpush1.bf16.msra.mxu0 0
    %2759 = vmatprep.mubr.bf16.mxu0 0
    %2760 = vmatmul.mubr.bf16.gmra.mrb[0].mxu0 %v2722
    %v2761 = vpop.f32.mrb[0].mxu0
    %v2762 = vadd.f32 0.0, %v2761
    %v2763 = vpop.f32.mrb[0].mxu0
    %v2764 = vpop.f32.mrb[0].mxu0
    %v2765 = vpop.f32.mrb[0].mxu0
    %2766 = vdwg.mxu0
    %2767 = vrot.lane.b32.xlu0 %v367, 96
    %v2768 = vpop.permute.xlu0 %2767
    %v2770 = vsel %vm765, %v2618, 0
    %v2773 = vsel %vm865, %v2768, 0
    %2775 = vmatprep.subr.bf16.mxu0 0
    %2776 = vmatpush1.bf16.msra.mxu0 %v2773
    %2777 = vmatprep.subr.bf16.mxu0 0
    %2778 = vmatpush1.bf16.msra.mxu0 0
    %2779 = vmatprep.subr.bf16.mxu0 0
    %2780 = vmatpush1.bf16.msra.mxu0 0
    %2781 = vmatprep.subr.bf16.mxu0 0
    %2782 = vmatpush1.bf16.msra.mxu0 0
    %2783 = vmatprep.subr.bf16.mxu0 0
    %2784 = vmatpush1.bf16.msra.mxu0 0
    %2785 = vmatprep.subr.bf16.mxu0 0
    %2786 = vmatpush1.bf16.msra.mxu0 0
    %2787 = vmatprep.subr.bf16.mxu0 0
    %2788 = vmatpush1.bf16.msra.mxu0 0
    %2789 = vmatprep.subr.bf16.mxu0 0
    %2790 = vmatpush1.bf16.msra.mxu0 0
    %2791 = vmatprep.subr.bf16.mxu0 0
    %2792 = vmatpush1.bf16.msra.mxu0 0
    %2793 = vmatprep.subr.bf16.mxu0 0
    %2794 = vmatpush1.bf16.msra.mxu0 0
    %2795 = vmatprep.subr.bf16.mxu0 0
    %2796 = vmatpush1.bf16.msra.mxu0 0
    %2797 = vmatprep.subr.bf16.mxu0 0
    %2798 = vmatpush1.bf16.msra.mxu0 0
    %2799 = vmatprep.subr.bf16.mxu0 0
    %2800 = vmatpush1.bf16.msra.mxu0 0
    %2801 = vmatprep.subr.bf16.mxu0 0
    %2802 = vmatpush1.bf16.msra.mxu0 0
    %2803 = vmatprep.subr.bf16.mxu0 0
    %2804 = vmatpush1.bf16.msra.mxu0 0
    %2805 = vmatprep.subr.bf16.mxu0 0
    %2806 = vmatpush1.bf16.msra.mxu0 0
    %2807 = vmatprep.mubr.bf16.mxu0 0
    %2808 = vmatmul.mubr.bf16.gmra.mrb[0].mxu0 %v2770
    %v2809 = vpop.f32.mrb[0].mxu0
    %v2810 = vadd.f32 0.0, %v2809
    %v2811 = vpop.f32.mrb[0].mxu0
    %v2812 = vpop.f32.mrb[0].mxu0
    %v2813 = vpop.f32.mrb[0].mxu0
    %2814 = vdwg.mxu0
    %2815 = vrot.lane.b32.xlu0 %v368, 96
    %v2816 = vpop.permute.xlu0 %2815
    %v2818 = vsel %vm765, %v2619, 0
    %v2821 = vsel %vm865, %v2816, 0
    %2823 = vmatprep.subr.bf16.mxu0 0
    %2824 = vmatpush1.bf16.msra.mxu0 %v2821
    %2825 = vmatprep.subr.bf16.mxu0 0
    %2826 = vmatpush1.bf16.msra.mxu0 0
    %2827 = vmatprep.subr.bf16.mxu0 0
    %2828 = vmatpush1.bf16.msra.mxu0 0
    %2829 = vmatprep.subr.bf16.mxu0 0
    %2830 = vmatpush1.bf16.msra.mxu0 0
    %2831 = vmatprep.subr.bf16.mxu0 0
    %2832 = vmatpush1.bf16.msra.mxu0 0
    %2833 = vmatprep.subr.bf16.mxu0 0
    %2834 = vmatpush1.bf16.msra.mxu0 0
    %2835 = vmatprep.subr.bf16.mxu0 0
    %2836 = vmatpush1.bf16.msra.mxu0 0
    %2837 = vmatprep.subr.bf16.mxu0 0
    %2838 = vmatpush1.bf16.msra.mxu0 0
    %2839 = vmatprep.subr.bf16.mxu0 0
    %2840 = vmatpush1.bf16.msra.mxu0 0
    %2841 = vmatprep.subr.bf16.mxu0 0
    %2842 = vmatpush1.bf16.msra.mxu0 0
    %2843 = vmatprep.subr.bf16.mxu0 0
    %2844 = vmatpush1.bf16.msra.mxu0 0
    %2845 = vmatprep.subr.bf16.mxu0 0
    %2846 = vmatpush1.bf16.msra.mxu0 0
    %2847 = vmatprep.subr.bf16.mxu0 0
    %2848 = vmatpush1.bf16.msra.mxu0 0
    %2849 = vmatprep.subr.bf16.mxu0 0
    %2850 = vmatpush1.bf16.msra.mxu0 0
    %2851 = vmatprep.subr.bf16.mxu0 0
    %2852 = vmatpush1.bf16.msra.mxu0 0
    %2853 = vmatprep.subr.bf16.mxu0 0
    %2854 = vmatpush1.bf16.msra.mxu0 0
    %2855 = vmatprep.mubr.bf16.mxu0 0
    %2856 = vmatmul.mubr.bf16.gmra.mrb[0].mxu0 %v2818
    %v2857 = vpop.f32.mrb[0].mxu0
    %v2858 = vadd.f32 0.0, %v2857
    %v2859 = vpop.f32.mrb[0].mxu0
    %v2860 = vpop.f32.mrb[0].mxu0
    %v2861 = vpop.f32.mrb[0].mxu0
    %2862 = vdwg.mxu0
    %2863 = vrot.lane.b32.xlu0 %v369, 96
    %v2864 = vpop.permute.xlu0 %2863
    %v2866 = vsel %vm765, %v2620, 0
    %v2869 = vsel %vm865, %v2864, 0
    %2871 = vmatprep.subr.bf16.mxu0 0
    %2872 = vmatpush1.bf16.msra.mxu0 %v2869
    %2873 = vmatprep.subr.bf16.mxu0 0
    %2874 = vmatpush1.bf16.msra.mxu0 0
    %2875 = vmatprep.subr.bf16.mxu0 0
    %2876 = vmatpush1.bf16.msra.mxu0 0
    %2877 = vmatprep.subr.bf16.mxu0 0
    %2878 = vmatpush1.bf16.msra.mxu0 0
    %2879 = vmatprep.subr.bf16.mxu0 0
    %2880 = vmatpush1.bf16.msra.mxu0 0
    %2881 = vmatprep.subr.bf16.mxu0 0
    %2882 = vmatpush1.bf16.msra.mxu0 0
    %2883 = vmatprep.subr.bf16.mxu0 0
    %2884 = vmatpush1.bf16.msra.mxu0 0
    %2885 = vmatprep.subr.bf16.mxu0 0
    %2886 = vmatpush1.bf16.msra.mxu0 0
    %2887 = vmatprep.subr.bf16.mxu0 0
    %2888 = vmatpush1.bf16.msra.mxu0 0
    %2889 = vmatprep.subr.bf16.mxu0 0
    %2890 = vmatpush1.bf16.msra.mxu0 0
    %2891 = vmatprep.subr.bf16.mxu0 0
    %2892 = vmatpush1.bf16.msra.mxu0 0
    %2893 = vmatprep.subr.bf16.mxu0 0
    %2894 = vmatpush1.bf16.msra.mxu0 0
    %2895 = vmatprep.subr.bf16.mxu0 0
    %2896 = vmatpush1.bf16.msra.mxu0 0
    %2897 = vmatprep.subr.bf16.mxu0 0
    %2898 = vmatpush1.bf16.msra.mxu0 0
    %2899 = vmatprep.subr.bf16.mxu0 0
    %2900 = vmatpush1.bf16.msra.mxu0 0
    %2901 = vmatprep.subr.bf16.mxu0 0
    %2902 = vmatpush1.bf16.msra.mxu0 0
    %2903 = vmatprep.mubr.bf16.mxu0 0
    %2904 = vmatmul.mubr.bf16.gmra.mrb[0].mxu0 %v2866
    %v2905 = vpop.f32.mrb[0].mxu0
    %v2906 = vadd.f32 0.0, %v2905
    %v2907 = vpop.f32.mrb[0].mxu0
    %v2908 = vpop.f32.mrb[0].mxu0
    %v2909 = vpop.f32.mrb[0].mxu0
    %2910 = vdwg.mxu0
    %2911 = vrot.lane.b32.xlu0 %v370, 96
    %v2912 = vpop.permute.xlu0 %2911
    %v2914 = vsel %vm765, %v2621, 0
    %v2917 = vsel %vm865, %v2912, 0
    %2919 = vmatprep.subr.bf16.mxu0 0
    %2920 = vmatpush1.bf16.msra.mxu0 %v2917
    %2921 = vmatprep.subr.bf16.mxu0 0
    %2922 = vmatpush1.bf16.msra.mxu0 0
    %2923 = vmatprep.subr.bf16.mxu0 0
    %2924 = vmatpush1.bf16.msra.mxu0 0
    %2925 = vmatprep.subr.bf16.mxu0 0
    %2926 = vmatpush1.bf16.msra.mxu0 0
    %2927 = vmatprep.subr.bf16.mxu0 0
    %2928 = vmatpush1.bf16.msra.mxu0 0
    %2929 = vmatprep.subr.bf16.mxu0 0
    %2930 = vmatpush1.bf16.msra.mxu0 0
    %2931 = vmatprep.subr.bf16.mxu0 0
    %2932 = vmatpush1.bf16.msra.mxu0 0
    %2933 = vmatprep.subr.bf16.mxu0 0
    %2934 = vmatpush1.bf16.msra.mxu0 0
    %2935 = vmatprep.subr.bf16.mxu0 0
    %2936 = vmatpush1.bf16.msra.mxu0 0
    %2937 = vmatprep.subr.bf16.mxu0 0
    %2938 = vmatpush1.bf16.msra.mxu0 0
    %2939 = vmatprep.subr.bf16.mxu0 0
    %2940 = vmatpush1.bf16.msra.mxu0 0
    %2941 = vmatprep.subr.bf16.mxu0 0
    %2942 = vmatpush1.bf16.msra.mxu0 0
    %2943 = vmatprep.subr.bf16.mxu0 0
    %2944 = vmatpush1.bf16.msra.mxu0 0
    %2945 = vmatprep.subr.bf16.mxu0 0
    %2946 = vmatpush1.bf16.msra.mxu0 0
    %2947 = vmatprep.subr.bf16.mxu0 0
    %2948 = vmatpush1.bf16.msra.mxu0 0
    %2949 = vmatprep.subr.bf16.mxu0 0
    %2950 = vmatpush1.bf16.msra.mxu0 0
    %2951 = vmatprep.mubr.bf16.mxu0 0
    %2952 = vmatmul.mubr.bf16.gmra.mrb[0].mxu0 %v2914
    %v2953 = vpop.f32.mrb[0].mxu0
    %v2954 = vadd.f32 0.0, %v2953
    %v2955 = vpop.f32.mrb[0].mxu0
    %v2956 = vpop.f32.mrb[0].mxu0
    %v2957 = vpop.f32.mrb[0].mxu0
    %2958 = vdwg.mxu0
    %2959 = vrot.lane.b32.xlu0 %v371, 96
    %v2960 = vpop.permute.xlu0 %2959
    %v2962 = vsel %vm765, %v2622, 0
    %v2965 = vsel %vm865, %v2960, 0
    %2967 = vmatprep.subr.bf16.mxu0 0
    %2968 = vmatpush1.bf16.msra.mxu0 %v2965
    %2969 = vmatprep.subr.bf16.mxu0 0
    %2970 = vmatpush1.bf16.msra.mxu0 0
    %2971 = vmatprep.subr.bf16.mxu0 0
    %2972 = vmatpush1.bf16.msra.mxu0 0
    %2973 = vmatprep.subr.bf16.mxu0 0
    %2974 = vmatpush1.bf16.msra.mxu0 0
    %2975 = vmatprep.subr.bf16.mxu0 0
    %2976 = vmatpush1.bf16.msra.mxu0 0
    %2977 = vmatprep.subr.bf16.mxu0 0
    %2978 = vmatpush1.bf16.msra.mxu0 0
    %2979 = vmatprep.subr.bf16.mxu0 0
    %2980 = vmatpush1.bf16.msra.mxu0 0
    %2981 = vmatprep.subr.bf16.mxu0 0
    %2982 = vmatpush1.bf16.msra.mxu0 0
    %2983 = vmatprep.subr.bf16.mxu0 0
    %2984 = vmatpush1.bf16.msra.mxu0 0
    %2985 = vmatprep.subr.bf16.mxu0 0
    %2986 = vmatpush1.bf16.msra.mxu0 0
    %2987 = vmatprep.subr.bf16.mxu0 0
    %2988 = vmatpush1.bf16.msra.mxu0 0
    %2989 = vmatprep.subr.bf16.mxu0 0
    %2990 = vmatpush1.bf16.msra.mxu0 0
    %2991 = vmatprep.subr.bf16.mxu0 0
    %2992 = vmatpush1.bf16.msra.mxu0 0
    %2993 = vmatprep.subr.bf16.mxu0 0
    %2994 = vmatpush1.bf16.msra.mxu0 0
    %2995 = vmatprep.subr.bf16.mxu0 0
    %2996 = vmatpush1.bf16.msra.mxu0 0
    %2997 = vmatprep.subr.bf16.mxu0 0
    %2998 = vmatpush1.bf16.msra.mxu0 0
    %2999 = vmatprep.mubr.bf16.mxu0 0
    %3000 = vmatmul.mubr.bf16.gmra.mrb[0].mxu0 %v2962
    %v3001 = vpop.f32.mrb[0].mxu0
    %v3002 = vadd.f32 0.0, %v3001
    %v3003 = vpop.f32.mrb[0].mxu0
    %v3004 = vpop.f32.mrb[0].mxu0
    %v3005 = vpop.f32.mrb[0].mxu0
    %3006 = vdwg.mxu0
    %3007 = vrot.lane.b32.xlu0 %v348, 80
    %v3008 = vpop.permute.xlu0 %3007
    %3009 = vrot.lane.b32.xlu0 %v356, 16
    %v3010 = vpop.permute.xlu0 %3009
    %v3012 = vsel %vm375, %v3008, 0
    %v3015 = vsel %vm375, %v3010, 0
    %3017 = vmatprep.subr.bf16.mxu0 0
    %3018 = vmatpush1.bf16.xpose.msra.mxu0 %v3015
    %3019 = vmatprep.subr.bf16.mxu0 0
    %3020 = vmatpush1.bf16.xpose.msra.mxu0 0
    %3021 = vmatprep.subr.bf16.mxu0 0
    %3022 = vmatpush1.bf16.xpose.msra.mxu0 0
    %3023 = vmatprep.subr.bf16.mxu0 0
    %3024 = vmatpush1.bf16.xpose.msra.mxu0 0
    %3025 = vmatprep.subr.bf16.mxu0 0
    %3026 = vmatpush1.bf16.xpose.msra.mxu0 0
    %3027 = vmatprep.subr.bf16.mxu0 0
    %3028 = vmatpush1.bf16.xpose.msra.mxu0 0
    %3029 = vmatprep.subr.bf16.mxu0 0
    %3030 = vmatpush1.bf16.xpose.msra.mxu0 0
    %3031 = vmatprep.subr.bf16.mxu0 0
    %3032 = vmatpush1.bf16.xpose.msra.mxu0 0
    %3033 = vmatprep.subr.bf16.mxu0 0
    %3034 = vmatpush1.bf16.xpose.msra.mxu0 0
    %3035 = vmatprep.subr.bf16.mxu0 0
    %3036 = vmatpush1.bf16.xpose.msra.mxu0 0
    %3037 = vmatprep.subr.bf16.mxu0 0
    %3038 = vmatpush1.bf16.xpose.msra.mxu0 0
    %3039 = vmatprep.subr.bf16.mxu0 0
    %3040 = vmatpush1.bf16.xpose.msra.mxu0 0
    %3041 = vmatprep.subr.bf16.mxu0 0
    %3042 = vmatpush1.bf16.xpose.msra.mxu0 0
    %3043 = vmatprep.subr.bf16.mxu0 0
    %3044 = vmatpush1.bf16.xpose.msra.mxu0 0
    %3045 = vmatprep.subr.bf16.mxu0 0
    %3046 = vmatpush1.bf16.xpose.msra.mxu0 0
    %3047 = vmatprep.subr.bf16.mxu0 0
    %3048 = vmatpush1.bf16.xpose.msra.mxu0 0
    %3049 = vmatprep.mubr.bf16.mxu0 0
    %3050 = vmatmul.mubr.bf16.gmra.mrb[0].mxu0 %v3012
    %v3051 = vpop.f32.mrb[0].mxu0
    %v3052 = vadd.f32 0.0, %v3051
    %v3053 = vpop.f32.mrb[0].mxu0
    %v3054 = vpop.f32.mrb[0].mxu0
    %v3055 = vpop.f32.mrb[0].mxu0
    %3056 = vdwg.mxu0
    %3057 = vrot.lane.b32.xlu0 %v349, 80
    %v3058 = vpop.permute.xlu0 %3057
    %3059 = vrot.lane.b32.xlu0 %v357, 16
    %v3060 = vpop.permute.xlu0 %3059
    %v3062 = vsel %vm375, %v3058, 0
    %v3065 = vsel %vm375, %v3060, 0
    %3067 = vmatprep.subr.bf16.mxu0 0
    %3068 = vmatpush1.bf16.xpose.msra.mxu0 %v3065
    %3069 = vmatprep.subr.bf16.mxu0 0
    %3070 = vmatpush1.bf16.xpose.msra.mxu0 0
    %3071 = vmatprep.subr.bf16.mxu0 0
    %3072 = vmatpush1.bf16.xpose.msra.mxu0 0
    %3073 = vmatprep.subr.bf16.mxu0 0
    %3074 = vmatpush1.bf16.xpose.msra.mxu0 0
    %3075 = vmatprep.subr.bf16.mxu0 0
    %3076 = vmatpush1.bf16.xpose.msra.mxu0 0
    %3077 = vmatprep.subr.bf16.mxu0 0
    %3078 = vmatpush1.bf16.xpose.msra.mxu0 0
    %3079 = vmatprep.subr.bf16.mxu0 0
    %3080 = vmatpush1.bf16.xpose.msra.mxu0 0
    %3081 = vmatprep.subr.bf16.mxu0 0
    %3082 = vmatpush1.bf16.xpose.msra.mxu0 0
    %3083 = vmatprep.subr.bf16.mxu0 0
    %3084 = vmatpush1.bf16.xpose.msra.mxu0 0
    %3085 = vmatprep.subr.bf16.mxu0 0
    %3086 = vmatpush1.bf16.xpose.msra.mxu0 0
    %3087 = vmatprep.subr.bf16.mxu0 0
    %3088 = vmatpush1.bf16.xpose.msra.mxu0 0
    %3089 = vmatprep.subr.bf16.mxu0 0
    %3090 = vmatpush1.bf16.xpose.msra.mxu0 0
    %3091 = vmatprep.subr.bf16.mxu0 0
    %3092 = vmatpush1.bf16.xpose.msra.mxu0 0
    %3093 = vmatprep.subr.bf16.mxu0 0
    %3094 = vmatpush1.bf16.xpose.msra.mxu0 0
    %3095 = vmatprep.subr.bf16.mxu0 0
    %3096 = vmatpush1.bf16.xpose.msra.mxu0 0
    %3097 = vmatprep.subr.bf16.mxu0 0
    %3098 = vmatpush1.bf16.xpose.msra.mxu0 0
    %3099 = vmatprep.mubr.bf16.mxu0 0
    %3100 = vmatmul.mubr.bf16.gmra.mrb[0].mxu0 %v3062
    %v3101 = vpop.f32.mrb[0].mxu0
    %v3102 = vadd.f32 0.0, %v3101
    %v3103 = vpop.f32.mrb[0].mxu0
    %v3104 = vpop.f32.mrb[0].mxu0
    %v3105 = vpop.f32.mrb[0].mxu0
    %3106 = vdwg.mxu0
    %3107 = vrot.lane.b32.xlu0 %v350, 80
    %v3108 = vpop.permute.xlu0 %3107
    %3109 = vrot.lane.b32.xlu0 %v358, 16
    %v3110 = vpop.permute.xlu0 %3109
    %v3112 = vsel %vm375, %v3108, 0
    %v3115 = vsel %vm375, %v3110, 0
    %3117 = vmatprep.subr.bf16.mxu0 0
    %3118 = vmatpush1.bf16.xpose.msra.mxu0 %v3115
    %3119 = vmatprep.subr.bf16.mxu0 0
    %3120 = vmatpush1.bf16.xpose.msra.mxu0 0
    %3121 = vmatprep.subr.bf16.mxu0 0
    %3122 = vmatpush1.bf16.xpose.msra.mxu0 0
    %3123 = vmatprep.subr.bf16.mxu0 0
    %3124 = vmatpush1.bf16.xpose.msra.mxu0 0
    %3125 = vmatprep.subr.bf16.mxu0 0
    %3126 = vmatpush1.bf16.xpose.msra.mxu0 0
    %3127 = vmatprep.subr.bf16.mxu0 0
    %3128 = vmatpush1.bf16.xpose.msra.mxu0 0
    %3129 = vmatprep.subr.bf16.mxu0 0
    %3130 = vmatpush1.bf16.xpose.msra.mxu0 0
    %3131 = vmatprep.subr.bf16.mxu0 0
    %3132 = vmatpush1.bf16.xpose.msra.mxu0 0
    %3133 = vmatprep.subr.bf16.mxu0 0
    %3134 = vmatpush1.bf16.xpose.msra.mxu0 0
    %3135 = vmatprep.subr.bf16.mxu0 0
    %3136 = vmatpush1.bf16.xpose.msra.mxu0 0
    %3137 = vmatprep.subr.bf16.mxu0 0
    %3138 = vmatpush1.bf16.xpose.msra.mxu0 0
    %3139 = vmatprep.subr.bf16.mxu0 0
    %3140 = vmatpush1.bf16.xpose.msra.mxu0 0
    %3141 = vmatprep.subr.bf16.mxu0 0
    %3142 = vmatpush1.bf16.xpose.msra.mxu0 0
    %3143 = vmatprep.subr.bf16.mxu0 0
    %3144 = vmatpush1.bf16.xpose.msra.mxu0 0
    %3145 = vmatprep.subr.bf16.mxu0 0
    %3146 = vmatpush1.bf16.xpose.msra.mxu0 0
    %3147 = vmatprep.subr.bf16.mxu0 0
    %3148 = vmatpush1.bf16.xpose.msra.mxu0 0
    %3149 = vmatprep.mubr.bf16.mxu0 0
    %3150 = vmatmul.mubr.bf16.gmra.mrb[0].mxu0 %v3112
    %v3151 = vpop.f32.mrb[0].mxu0
    %v3152 = vadd.f32 0.0, %v3151
    %v3153 = vpop.f32.mrb[0].mxu0
    %v3154 = vpop.f32.mrb[0].mxu0
    %v3155 = vpop.f32.mrb[0].mxu0
    %3156 = vdwg.mxu0
    %3157 = vrot.lane.b32.xlu0 %v351, 80
    %v3158 = vpop.permute.xlu0 %3157
    %3159 = vrot.lane.b32.xlu0 %v359, 16
    %v3160 = vpop.permute.xlu0 %3159
    %v3162 = vsel %vm375, %v3158, 0
    %v3165 = vsel %vm375, %v3160, 0
    %3167 = vmatprep.subr.bf16.mxu0 0
    %3168 = vmatpush1.bf16.xpose.msra.mxu0 %v3165
    %3169 = vmatprep.subr.bf16.mxu0 0
    %3170 = vmatpush1.bf16.xpose.msra.mxu0 0
    %3171 = vmatprep.subr.bf16.mxu0 0
    %3172 = vmatpush1.bf16.xpose.msra.mxu0 0
    %3173 = vmatprep.subr.bf16.mxu0 0
    %3174 = vmatpush1.bf16.xpose.msra.mxu0 0
    %3175 = vmatprep.subr.bf16.mxu0 0
    %3176 = vmatpush1.bf16.xpose.msra.mxu0 0
    %3177 = vmatprep.subr.bf16.mxu0 0
    %3178 = vmatpush1.bf16.xpose.msra.mxu0 0
    %3179 = vmatprep.subr.bf16.mxu0 0
    %3180 = vmatpush1.bf16.xpose.msra.mxu0 0
    %3181 = vmatprep.subr.bf16.mxu0 0
    %3182 = vmatpush1.bf16.xpose.msra.mxu0 0
    %3183 = vmatprep.subr.bf16.mxu0 0
    %3184 = vmatpush1.bf16.xpose.msra.mxu0 0
    %3185 = vmatprep.subr.bf16.mxu0 0
    %3186 = vmatpush1.bf16.xpose.msra.mxu0 0
    %3187 = vmatprep.subr.bf16.mxu0 0
    %3188 = vmatpush1.bf16.xpose.msra.mxu0 0
    %3189 = vmatprep.subr.bf16.mxu0 0
    %3190 = vmatpush1.bf16.xpose.msra.mxu0 0
    %3191 = vmatprep.subr.bf16.mxu0 0
    %3192 = vmatpush1.bf16.xpose.msra.mxu0 0
    %3193 = vmatprep.subr.bf16.mxu0 0
    %3194 = vmatpush1.bf16.xpose.msra.mxu0 0
    %3195 = vmatprep.subr.bf16.mxu0 0
    %3196 = vmatpush1.bf16.xpose.msra.mxu0 0
    %3197 = vmatprep.subr.bf16.mxu0 0
    %3198 = vmatpush1.bf16.xpose.msra.mxu0 0
    %3199 = vmatprep.mubr.bf16.mxu0 0
    %3200 = vmatmul.mubr.bf16.gmra.mrb[0].mxu0 %v3162
    %v3201 = vpop.f32.mrb[0].mxu0
    %v3202 = vadd.f32 0.0, %v3201
    %v3203 = vpop.f32.mrb[0].mxu0
    %v3204 = vpop.f32.mrb[0].mxu0
    %v3205 = vpop.f32.mrb[0].mxu0
    %3206 = vdwg.mxu0
    %3207 = vrot.lane.b32.xlu0 %v352, 80
    %v3208 = vpop.permute.xlu0 %3207
    %3209 = vrot.lane.b32.xlu0 %v360, 16
    %v3210 = vpop.permute.xlu0 %3209
    %v3212 = vsel %vm375, %v3208, 0
    %v3215 = vsel %vm375, %v3210, 0
    %3217 = vmatprep.subr.bf16.mxu0 0
    %3218 = vmatpush1.bf16.xpose.msra.mxu0 %v3215
    %3219 = vmatprep.subr.bf16.mxu0 0
    %3220 = vmatpush1.bf16.xpose.msra.mxu0 0
    %3221 = vmatprep.subr.bf16.mxu0 0
    %3222 = vmatpush1.bf16.xpose.msra.mxu0 0
    %3223 = vmatprep.subr.bf16.mxu0 0
    %3224 = vmatpush1.bf16.xpose.msra.mxu0 0
    %3225 = vmatprep.subr.bf16.mxu0 0
    %3226 = vmatpush1.bf16.xpose.msra.mxu0 0
    %3227 = vmatprep.subr.bf16.mxu0 0
    %3228 = vmatpush1.bf16.xpose.msra.mxu0 0
    %3229 = vmatprep.subr.bf16.mxu0 0
    %3230 = vmatpush1.bf16.xpose.msra.mxu0 0
    %3231 = vmatprep.subr.bf16.mxu0 0
    %3232 = vmatpush1.bf16.xpose.msra.mxu0 0
    %3233 = vmatprep.subr.bf16.mxu0 0
    %3234 = vmatpush1.bf16.xpose.msra.mxu0 0
    %3235 = vmatprep.subr.bf16.mxu0 0
    %3236 = vmatpush1.bf16.xpose.msra.mxu0 0
    %3237 = vmatprep.subr.bf16.mxu0 0
    %3238 = vmatpush1.bf16.xpose.msra.mxu0 0
    %3239 = vmatprep.subr.bf16.mxu0 0
    %3240 = vmatpush1.bf16.xpose.msra.mxu0 0
    %3241 = vmatprep.subr.bf16.mxu0 0
    %3242 = vmatpush1.bf16.xpose.msra.mxu0 0
    %3243 = vmatprep.subr.bf16.mxu0 0
    %3244 = vmatpush1.bf16.xpose.msra.mxu0 0
    %3245 = vmatprep.subr.bf16.mxu0 0
    %3246 = vmatpush1.bf16.xpose.msra.mxu0 0
    %3247 = vmatprep.subr.bf16.mxu0 0
    %3248 = vmatpush1.bf16.xpose.msra.mxu0 0
    %3249 = vmatprep.mubr.bf16.mxu0 0
    %3250 = vmatmul.mubr.bf16.gmra.mrb[0].mxu0 %v3212
    %v3251 = vpop.f32.mrb[0].mxu0
    %v3252 = vadd.f32 0.0, %v3251
    %v3253 = vpop.f32.mrb[0].mxu0
    %v3254 = vpop.f32.mrb[0].mxu0
    %v3255 = vpop.f32.mrb[0].mxu0
    %3256 = vdwg.mxu0
    %3257 = vrot.lane.b32.xlu0 %v353, 80
    %v3258 = vpop.permute.xlu0 %3257
    %3259 = vrot.lane.b32.xlu0 %v361, 16
    %v3260 = vpop.permute.xlu0 %3259
    %v3262 = vsel %vm375, %v3258, 0
    %v3265 = vsel %vm375, %v3260, 0
    %3267 = vmatprep.subr.bf16.mxu0 0
    %3268 = vmatpush1.bf16.xpose.msra.mxu0 %v3265
    %3269 = vmatprep.subr.bf16.mxu0 0
    %3270 = vmatpush1.bf16.xpose.msra.mxu0 0
    %3271 = vmatprep.subr.bf16.mxu0 0
    %3272 = vmatpush1.bf16.xpose.msra.mxu0 0
    %3273 = vmatprep.subr.bf16.mxu0 0
    %3274 = vmatpush1.bf16.xpose.msra.mxu0 0
    %3275 = vmatprep.subr.bf16.mxu0 0
    %3276 = vmatpush1.bf16.xpose.msra.mxu0 0
    %3277 = vmatprep.subr.bf16.mxu0 0
    %3278 = vmatpush1.bf16.xpose.msra.mxu0 0
    %3279 = vmatprep.subr.bf16.mxu0 0
    %3280 = vmatpush1.bf16.xpose.msra.mxu0 0
    %3281 = vmatprep.subr.bf16.mxu0 0
    %3282 = vmatpush1.bf16.xpose.msra.mxu0 0
    %3283 = vmatprep.subr.bf16.mxu0 0
    %3284 = vmatpush1.bf16.xpose.msra.mxu0 0
    %3285 = vmatprep.subr.bf16.mxu0 0
    %3286 = vmatpush1.bf16.xpose.msra.mxu0 0
    %3287 = vmatprep.subr.bf16.mxu0 0
    %3288 = vmatpush1.bf16.xpose.msra.mxu0 0
    %3289 = vmatprep.subr.bf16.mxu0 0
    %3290 = vmatpush1.bf16.xpose.msra.mxu0 0
    %3291 = vmatprep.subr.bf16.mxu0 0
    %3292 = vmatpush1.bf16.xpose.msra.mxu0 0
    %3293 = vmatprep.subr.bf16.mxu0 0
    %3294 = vmatpush1.bf16.xpose.msra.mxu0 0
    %3295 = vmatprep.subr.bf16.mxu0 0
    %3296 = vmatpush1.bf16.xpose.msra.mxu0 0
    %3297 = vmatprep.subr.bf16.mxu0 0
    %3298 = vmatpush1.bf16.xpose.msra.mxu0 0
    %3299 = vmatprep.mubr.bf16.mxu0 0
    %3300 = vmatmul.mubr.bf16.gmra.mrb[0].mxu0 %v3262
    %v3301 = vpop.f32.mrb[0].mxu0
    %v3302 = vadd.f32 0.0, %v3301
    %v3303 = vpop.f32.mrb[0].mxu0
    %v3304 = vpop.f32.mrb[0].mxu0
    %v3305 = vpop.f32.mrb[0].mxu0
    %3306 = vdwg.mxu0
    %3307 = vrot.lane.b32.xlu0 %v354, 80
    %v3308 = vpop.permute.xlu0 %3307
    %3309 = vrot.lane.b32.xlu0 %v362, 16
    %v3310 = vpop.permute.xlu0 %3309
    %v3312 = vsel %vm375, %v3308, 0
    %v3315 = vsel %vm375, %v3310, 0
    %3317 = vmatprep.subr.bf16.mxu0 0
    %3318 = vmatpush1.bf16.xpose.msra.mxu0 %v3315
    %3319 = vmatprep.subr.bf16.mxu0 0
    %3320 = vmatpush1.bf16.xpose.msra.mxu0 0
    %3321 = vmatprep.subr.bf16.mxu0 0
    %3322 = vmatpush1.bf16.xpose.msra.mxu0 0
    %3323 = vmatprep.subr.bf16.mxu0 0
    %3324 = vmatpush1.bf16.xpose.msra.mxu0 0
    %3325 = vmatprep.subr.bf16.mxu0 0
    %3326 = vmatpush1.bf16.xpose.msra.mxu0 0
    %3327 = vmatprep.subr.bf16.mxu0 0
    %3328 = vmatpush1.bf16.xpose.msra.mxu0 0
    %3329 = vmatprep.subr.bf16.mxu0 0
    %3330 = vmatpush1.bf16.xpose.msra.mxu0 0
    %3331 = vmatprep.subr.bf16.mxu0 0
    %3332 = vmatpush1.bf16.xpose.msra.mxu0 0
    %3333 = vmatprep.subr.bf16.mxu0 0
    %3334 = vmatpush1.bf16.xpose.msra.mxu0 0
    %3335 = vmatprep.subr.bf16.mxu0 0
    %3336 = vmatpush1.bf16.xpose.msra.mxu0 0
    %3337 = vmatprep.subr.bf16.mxu0 0
    %3338 = vmatpush1.bf16.xpose.msra.mxu0 0
    %3339 = vmatprep.subr.bf16.mxu0 0
    %3340 = vmatpush1.bf16.xpose.msra.mxu0 0
    %3341 = vmatprep.subr.bf16.mxu0 0
    %3342 = vmatpush1.bf16.xpose.msra.mxu0 0
    %3343 = vmatprep.subr.bf16.mxu0 0
    %3344 = vmatpush1.bf16.xpose.msra.mxu0 0
    %3345 = vmatprep.subr.bf16.mxu0 0
    %3346 = vmatpush1.bf16.xpose.msra.mxu0 0
    %3347 = vmatprep.subr.bf16.mxu0 0
    %3348 = vmatpush1.bf16.xpose.msra.mxu0 0
    %3349 = vmatprep.mubr.bf16.mxu0 0
    %3350 = vmatmul.mubr.bf16.gmra.mrb[0].mxu0 %v3312
    %v3351 = vpop.f32.mrb[0].mxu0
    %v3352 = vadd.f32 0.0, %v3351
    %v3353 = vpop.f32.mrb[0].mxu0
    %v3354 = vpop.f32.mrb[0].mxu0
    %v3355 = vpop.f32.mrb[0].mxu0
    %3356 = vdwg.mxu0
    %3357 = vrot.lane.b32.xlu0 %v355, 80
    %v3358 = vpop.permute.xlu0 %3357
    %3359 = vrot.lane.b32.xlu0 %v363, 16
    %v3360 = vpop.permute.xlu0 %3359
    %v3362 = vsel %vm375, %v3358, 0
    %v3365 = vsel %vm375, %v3360, 0
    %3367 = vmatprep.subr.bf16.mxu0 0
    %3368 = vmatpush1.bf16.xpose.msra.mxu0 %v3365
    %3369 = vmatprep.subr.bf16.mxu0 0
    %3370 = vmatpush1.bf16.xpose.msra.mxu0 0
    %3371 = vmatprep.subr.bf16.mxu0 0
    %3372 = vmatpush1.bf16.xpose.msra.mxu0 0
    %3373 = vmatprep.subr.bf16.mxu0 0
    %3374 = vmatpush1.bf16.xpose.msra.mxu0 0
    %3375 = vmatprep.subr.bf16.mxu0 0
    %3376 = vmatpush1.bf16.xpose.msra.mxu0 0
    %3377 = vmatprep.subr.bf16.mxu0 0
    %3378 = vmatpush1.bf16.xpose.msra.mxu0 0
    %3379 = vmatprep.subr.bf16.mxu0 0
    %3380 = vmatpush1.bf16.xpose.msra.mxu0 0
    %3381 = vmatprep.subr.bf16.mxu0 0
    %3382 = vmatpush1.bf16.xpose.msra.mxu0 0
    %3383 = vmatprep.subr.bf16.mxu0 0
    %3384 = vmatpush1.bf16.xpose.msra.mxu0 0
    %3385 = vmatprep.subr.bf16.mxu0 0
    %3386 = vmatpush1.bf16.xpose.msra.mxu0 0
    %3387 = vmatprep.subr.bf16.mxu0 0
    %3388 = vmatpush1.bf16.xpose.msra.mxu0 0
    %3389 = vmatprep.subr.bf16.mxu0 0
    %3390 = vmatpush1.bf16.xpose.msra.mxu0 0
    %3391 = vmatprep.subr.bf16.mxu0 0
    %3392 = vmatpush1.bf16.xpose.msra.mxu0 0
    %3393 = vmatprep.subr.bf16.mxu0 0
    %3394 = vmatpush1.bf16.xpose.msra.mxu0 0
    %3395 = vmatprep.subr.bf16.mxu0 0
    %3396 = vmatpush1.bf16.xpose.msra.mxu0 0
    %3397 = vmatprep.subr.bf16.mxu0 0
    %3398 = vmatpush1.bf16.xpose.msra.mxu0 0
    %3399 = vmatprep.mubr.bf16.mxu0 0
    %3400 = vmatmul.mubr.bf16.gmra.mrb[0].mxu0 %v3362
    %v3401 = vpop.f32.mrb[0].mxu0
    %v3402 = vadd.f32 0.0, %v3401
    %v3403 = vpop.f32.mrb[0].mxu0
    %v3404 = vpop.f32.mrb[0].mxu0
    %v3405 = vpop.f32.mrb[0].mxu0
    %3406 = vdwg.mxu0
    %v3407 = vsel %vm765, %v3052, -inf
    %3408 = vmax.xlane.f32.xlu0 %v3407
    %v3409 = vpop.xlane.xlu0 %3408
    %v3410 = vsel %vm765, %v3102, -inf
    %3411 = vmax.xlane.f32.xlu0 %v3410
    %v3412 = vpop.xlane.xlu0 %3411
    %v3413 = vsel %vm765, %v3152, -inf
    %3414 = vmax.xlane.f32.xlu0 %v3413
    %v3415 = vpop.xlane.xlu0 %3414
    %v3416 = vsel %vm765, %v3202, -inf
    %3417 = vmax.xlane.f32.xlu0 %v3416
    %v3418 = vpop.xlane.xlu0 %3417
    %v3419 = vsel %vm765, %v3252, -inf
    %3420 = vmax.xlane.f32.xlu0 %v3419
    %v3421 = vpop.xlane.xlu0 %3420
    %v3422 = vsel %vm765, %v3302, -inf
    %3423 = vmax.xlane.f32.xlu0 %v3422
    %v3424 = vpop.xlane.xlu0 %3423
    %v3425 = vsel %vm765, %v3352, -inf
    %3426 = vmax.xlane.f32.xlu0 %v3425
    %v3427 = vpop.xlane.xlu0 %3426
    %v3428 = vsel %vm765, %v3402, -inf
    %3429 = vmax.xlane.f32.xlu0 %v3428
    %v3430 = vpop.xlane.xlu0 %3429
    %v3431 = vsub.f32 %v3052, %v3409
    %v3432 = vsub.f32 %v3102, %v3412
    %v3433 = vsub.f32 %v3152, %v3415
    %v3434 = vsub.f32 %v3202, %v3418
    %v3435 = vsub.f32 %v3252, %v3421
    %v3436 = vsub.f32 %v3302, %v3424
    %v3437 = vsub.f32 %v3352, %v3427
    %v3438 = vsub.f32 %v3402, %v3430
    %v3439 = vmul.f32 %v3431, 1.442695
    %v3440 = vpow.pop %v3439
    %v3441 = vmul.f32 %v3432, 1.442695
    %v3442 = vpow.pop %v3441
    %v3443 = vmul.f32 %v3433, 1.442695
    %v3444 = vpow.pop %v3443
    %v3445 = vmul.f32 %v3434, 1.442695
    %v3446 = vpow.pop %v3445
    %v3447 = vmul.f32 %v3435, 1.442695
    %v3448 = vpow.pop %v3447
    %v3449 = vmul.f32 %v3436, 1.442695
    %v3450 = vpow.pop %v3449
    %v3451 = vmul.f32 %v3437, 1.442695
    %v3452 = vpow.pop %v3451
    %v3453 = vmul.f32 %v3438, 1.442695
    %v3454 = vpow.pop %v3453
    %v3455 = vsel %vm765, %v3440, 0.0
    %3456 = vadd.xlane.f32.xlu0 %v3455
    %v3457 = vpop.xlane.xlu0 %3456
    %v3458 = vsel %vm765, %v3442, 0.0
    %3459 = vadd.xlane.f32.xlu0 %v3458
    %v3460 = vpop.xlane.xlu0 %3459
    %v3461 = vsel %vm765, %v3444, 0.0
    %3462 = vadd.xlane.f32.xlu0 %v3461
    %v3463 = vpop.xlane.xlu0 %3462
    %v3464 = vsel %vm765, %v3446, 0.0
    %3465 = vadd.xlane.f32.xlu0 %v3464
    %v3466 = vpop.xlane.xlu0 %3465
    %v3467 = vsel %vm765, %v3448, 0.0
    %3468 = vadd.xlane.f32.xlu0 %v3467
    %v3469 = vpop.xlane.xlu0 %3468
    %v3470 = vsel %vm765, %v3450, 0.0
    %3471 = vadd.xlane.f32.xlu0 %v3470
    %v3472 = vpop.xlane.xlu0 %3471
    %v3473 = vsel %vm765, %v3452, 0.0
    %3474 = vadd.xlane.f32.xlu0 %v3473
    %v3475 = vpop.xlane.xlu0 %3474
    %v3476 = vsel %vm765, %v3454, 0.0
    %3477 = vadd.xlane.f32.xlu0 %v3476
    %v3478 = vpop.xlane.xlu0 %3477
    %v3479 = vrcp.pop %v3457
    %v3480 = vrcp.pop %v3460
    %v3481 = vrcp.pop %v3463
    %v3482 = vrcp.pop %v3466
    %v3483 = vrcp.pop %v3469
    %v3484 = vrcp.pop %v3472
    %v3485 = vrcp.pop %v3475
    %v3486 = vrcp.pop %v3478
    %v3487 = vmul.f32 %v3440, %v3479
    %v3488 = vmul.f32 %v3442, %v3480
    %v3489 = vmul.f32 %v3444, %v3481
    %v3490 = vmul.f32 %v3446, %v3482
    %v3491 = vmul.f32 %v3448, %v3483
    %v3492 = vmul.f32 %v3450, %v3484
    %v3493 = vmul.f32 %v3452, %v3485
    %v3494 = vmul.f32 %v3454, %v3486
    %v3495 = vpack.c.bf16 %v3487, %v3487
    %v3496 = vpack.c.bf16 %v3488, %v3488
    %v3497 = vpack.c.bf16 %v3489, %v3489
    %v3498 = vpack.c.bf16 %v3490, %v3490
    %v3499 = vpack.c.bf16 %v3491, %v3491
    %v3500 = vpack.c.bf16 %v3492, %v3492
    %v3501 = vpack.c.bf16 %v3493, %v3493
    %v3502 = vpack.c.bf16 %v3494, %v3494
    %3503 = vrot.lane.b32.xlu0 %v364, 80
    %v3504 = vpop.permute.xlu0 %3503
    %v3506 = vsel %vm765, %v3495, 0
    %v3509 = vsel %vm865, %v3504, 0
    %3511 = vmatprep.subr.bf16.mxu0 0
    %3512 = vmatpush1.bf16.msra.mxu0 %v3509
    %3513 = vmatprep.subr.bf16.mxu0 0
    %3514 = vmatpush1.bf16.msra.mxu0 0
    %3515 = vmatprep.subr.bf16.mxu0 0
    %3516 = vmatpush1.bf16.msra.mxu0 0
    %3517 = vmatprep.subr.bf16.mxu0 0
    %3518 = vmatpush1.bf16.msra.mxu0 0
    %3519 = vmatprep.subr.bf16.mxu0 0
    %3520 = vmatpush1.bf16.msra.mxu0 0
    %3521 = vmatprep.subr.bf16.mxu0 0
    %3522 = vmatpush1.bf16.msra.mxu0 0
    %3523 = vmatprep.subr.bf16.mxu0 0
    %3524 = vmatpush1.bf16.msra.mxu0 0
    %3525 = vmatprep.subr.bf16.mxu0 0
    %3526 = vmatpush1.bf16.msra.mxu0 0
    %3527 = vmatprep.subr.bf16.mxu0 0
    %3528 = vmatpush1.bf16.msra.mxu0 0
    %3529 = vmatprep.subr.bf16.mxu0 0
    %3530 = vmatpush1.bf16.msra.mxu0 0
    %3531 = vmatprep.subr.bf16.mxu0 0
    %3532 = vmatpush1.bf16.msra.mxu0 0
    %3533 = vmatprep.subr.bf16.mxu0 0
    %3534 = vmatpush1.bf16.msra.mxu0 0
    %3535 = vmatprep.subr.bf16.mxu0 0
    %3536 = vmatpush1.bf16.msra.mxu0 0
    %3537 = vmatprep.subr.bf16.mxu0 0
    %3538 = vmatpush1.bf16.msra.mxu0 0
    %3539 = vmatprep.subr.bf16.mxu0 0
    %3540 = vmatpush1.bf16.msra.mxu0 0
    %3541 = vmatprep.subr.bf16.mxu0 0
    %3542 = vmatpush1.bf16.msra.mxu0 0
    %3543 = vmatprep.mubr.bf16.mxu0 0
    %3544 = vmatmul.mubr.bf16.gmra.mrb[0].mxu0 %v3506
    %v3545 = vpop.f32.mrb[0].mxu0
    %v3546 = vadd.f32 0.0, %v3545
    %v3547 = vpop.f32.mrb[0].mxu0
    %v3548 = vpop.f32.mrb[0].mxu0
    %v3549 = vpop.f32.mrb[0].mxu0
    %3550 = vdwg.mxu0
    %3551 = vrot.lane.b32.xlu0 %v365, 80
    %v3552 = vpop.permute.xlu0 %3551
    %v3554 = vsel %vm765, %v3496, 0
    %v3557 = vsel %vm865, %v3552, 0
    %3559 = vmatprep.subr.bf16.mxu0 0
    %3560 = vmatpush1.bf16.msra.mxu0 %v3557
    %3561 = vmatprep.subr.bf16.mxu0 0
    %3562 = vmatpush1.bf16.msra.mxu0 0
    %3563 = vmatprep.subr.bf16.mxu0 0
    %3564 = vmatpush1.bf16.msra.mxu0 0
    %3565 = vmatprep.subr.bf16.mxu0 0
    %3566 = vmatpush1.bf16.msra.mxu0 0
    %3567 = vmatprep.subr.bf16.mxu0 0
    %3568 = vmatpush1.bf16.msra.mxu0 0
    %3569 = vmatprep.subr.bf16.mxu0 0
    %3570 = vmatpush1.bf16.msra.mxu0 0
    %3571 = vmatprep.subr.bf16.mxu0 0
    %3572 = vmatpush1.bf16.msra.mxu0 0
    %3573 = vmatprep.subr.bf16.mxu0 0
    %3574 = vmatpush1.bf16.msra.mxu0 0
    %3575 = vmatprep.subr.bf16.mxu0 0
    %3576 = vmatpush1.bf16.msra.mxu0 0
    %3577 = vmatprep.subr.bf16.mxu0 0
    %3578 = vmatpush1.bf16.msra.mxu0 0
    %3579 = vmatprep.subr.bf16.mxu0 0
    %3580 = vmatpush1.bf16.msra.mxu0 0
    %3581 = vmatprep.subr.bf16.mxu0 0
    %3582 = vmatpush1.bf16.msra.mxu0 0
    %3583 = vmatprep.subr.bf16.mxu0 0
    %3584 = vmatpush1.bf16.msra.mxu0 0
    %3585 = vmatprep.subr.bf16.mxu0 0
    %3586 = vmatpush1.bf16.msra.mxu0 0
    %3587 = vmatprep.subr.bf16.mxu0 0
    %3588 = vmatpush1.bf16.msra.mxu0 0
    %3589 = vmatprep.subr.bf16.mxu0 0
    %3590 = vmatpush1.bf16.msra.mxu0 0
    %3591 = vmatprep.mubr.bf16.mxu0 0
    %3592 = vmatmul.mubr.bf16.gmra.mrb[0].mxu0 %v3554
    %v3593 = vpop.f32.mrb[0].mxu0
    %v3594 = vadd.f32 0.0, %v3593
    %v3595 = vpop.f32.mrb[0].mxu0
    %v3596 = vpop.f32.mrb[0].mxu0
    %v3597 = vpop.f32.mrb[0].mxu0
    %3598 = vdwg.mxu0
    %3599 = vrot.lane.b32.xlu0 %v366, 80
    %v3600 = vpop.permute.xlu0 %3599
    %v3602 = vsel %vm765, %v3497, 0
    %v3605 = vsel %vm865, %v3600, 0
    %3607 = vmatprep.subr.bf16.mxu0 0
    %3608 = vmatpush1.bf16.msra.mxu0 %v3605
    %3609 = vmatprep.subr.bf16.mxu0 0
    %3610 = vmatpush1.bf16.msra.mxu0 0
    %3611 = vmatprep.subr.bf16.mxu0 0
    %3612 = vmatpush1.bf16.msra.mxu0 0
    %3613 = vmatprep.subr.bf16.mxu0 0
    %3614 = vmatpush1.bf16.msra.mxu0 0
    %3615 = vmatprep.subr.bf16.mxu0 0
    %3616 = vmatpush1.bf16.msra.mxu0 0
    %3617 = vmatprep.subr.bf16.mxu0 0
    %3618 = vmatpush1.bf16.msra.mxu0 0
    %3619 = vmatprep.subr.bf16.mxu0 0
    %3620 = vmatpush1.bf16.msra.mxu0 0
    %3621 = vmatprep.subr.bf16.mxu0 0
    %3622 = vmatpush1.bf16.msra.mxu0 0
    %3623 = vmatprep.subr.bf16.mxu0 0
    %3624 = vmatpush1.bf16.msra.mxu0 0
    %3625 = vmatprep.subr.bf16.mxu0 0
    %3626 = vmatpush1.bf16.msra.mxu0 0
    %3627 = vmatprep.subr.bf16.mxu0 0
    %3628 = vmatpush1.bf16.msra.mxu0 0
    %3629 = vmatprep.subr.bf16.mxu0 0
    %3630 = vmatpush1.bf16.msra.mxu0 0
    %3631 = vmatprep.subr.bf16.mxu0 0
    %3632 = vmatpush1.bf16.msra.mxu0 0
    %3633 = vmatprep.subr.bf16.mxu0 0
    %3634 = vmatpush1.bf16.msra.mxu0 0
    %3635 = vmatprep.subr.bf16.mxu0 0
    %3636 = vmatpush1.bf16.msra.mxu0 0
    %3637 = vmatprep.subr.bf16.mxu0 0
    %3638 = vmatpush1.bf16.msra.mxu0 0
    %3639 = vmatprep.mubr.bf16.mxu0 0
    %3640 = vmatmul.mubr.bf16.gmra.mrb[0].mxu0 %v3602
    %v3641 = vpop.f32.mrb[0].mxu0
    %v3642 = vadd.f32 0.0, %v3641
    %v3643 = vpop.f32.mrb[0].mxu0
    %v3644 = vpop.f32.mrb[0].mxu0
    %v3645 = vpop.f32.mrb[0].mxu0
    %3646 = vdwg.mxu0
    %3647 = vrot.lane.b32.xlu0 %v367, 80
    %v3648 = vpop.permute.xlu0 %3647
    %v3650 = vsel %vm765, %v3498, 0
    %v3653 = vsel %vm865, %v3648, 0
    %3655 = vmatprep.subr.bf16.mxu0 0
    %3656 = vmatpush1.bf16.msra.mxu0 %v3653
    %3657 = vmatprep.subr.bf16.mxu0 0
    %3658 = vmatpush1.bf16.msra.mxu0 0
    %3659 = vmatprep.subr.bf16.mxu0 0
    %3660 = vmatpush1.bf16.msra.mxu0 0
    %3661 = vmatprep.subr.bf16.mxu0 0
    %3662 = vmatpush1.bf16.msra.mxu0 0
    %3663 = vmatprep.subr.bf16.mxu0 0
    %3664 = vmatpush1.bf16.msra.mxu0 0
    %3665 = vmatprep.subr.bf16.mxu0 0
    %3666 = vmatpush1.bf16.msra.mxu0 0
    %3667 = vmatprep.subr.bf16.mxu0 0
    %3668 = vmatpush1.bf16.msra.mxu0 0
    %3669 = vmatprep.subr.bf16.mxu0 0
    %3670 = vmatpush1.bf16.msra.mxu0 0
    %3671 = vmatprep.subr.bf16.mxu0 0
    %3672 = vmatpush1.bf16.msra.mxu0 0
    %3673 = vmatprep.subr.bf16.mxu0 0
    %3674 = vmatpush1.bf16.msra.mxu0 0
    %3675 = vmatprep.subr.bf16.mxu0 0
    %3676 = vmatpush1.bf16.msra.mxu0 0
    %3677 = vmatprep.subr.bf16.mxu0 0
    %3678 = vmatpush1.bf16.msra.mxu0 0
    %3679 = vmatprep.subr.bf16.mxu0 0
    %3680 = vmatpush1.bf16.msra.mxu0 0
    %3681 = vmatprep.subr.bf16.mxu0 0
    %3682 = vmatpush1.bf16.msra.mxu0 0
    %3683 = vmatprep.subr.bf16.mxu0 0
    %3684 = vmatpush1.bf16.msra.mxu0 0
    %3685 = vmatprep.subr.bf16.mxu0 0
    %3686 = vmatpush1.bf16.msra.mxu0 0
    %3687 = vmatprep.mubr.bf16.mxu0 0
    %3688 = vmatmul.mubr.bf16.gmra.mrb[0].mxu0 %v3650
    %v3689 = vpop.f32.mrb[0].mxu0
    %v3690 = vadd.f32 0.0, %v3689
    %v3691 = vpop.f32.mrb[0].mxu0
    %v3692 = vpop.f32.mrb[0].mxu0
    %v3693 = vpop.f32.mrb[0].mxu0
    %3694 = vdwg.mxu0
    %3695 = vrot.lane.b32.xlu0 %v368, 80
    %v3696 = vpop.permute.xlu0 %3695
    %v3698 = vsel %vm765, %v3499, 0
    %v3701 = vsel %vm865, %v3696, 0
    %3703 = vmatprep.subr.bf16.mxu0 0
    %3704 = vmatpush1.bf16.msra.mxu0 %v3701
    %3705 = vmatprep.subr.bf16.mxu0 0
    %3706 = vmatpush1.bf16.msra.mxu0 0
    %3707 = vmatprep.subr.bf16.mxu0 0
    %3708 = vmatpush1.bf16.msra.mxu0 0
    %3709 = vmatprep.subr.bf16.mxu0 0
    %3710 = vmatpush1.bf16.msra.mxu0 0
    %3711 = vmatprep.subr.bf16.mxu0 0
    %3712 = vmatpush1.bf16.msra.mxu0 0
    %3713 = vmatprep.subr.bf16.mxu0 0
    %3714 = vmatpush1.bf16.msra.mxu0 0
    %3715 = vmatprep.subr.bf16.mxu0 0
    %3716 = vmatpush1.bf16.msra.mxu0 0
    %3717 = vmatprep.subr.bf16.mxu0 0
    %3718 = vmatpush1.bf16.msra.mxu0 0
    %3719 = vmatprep.subr.bf16.mxu0 0
    %3720 = vmatpush1.bf16.msra.mxu0 0
    %3721 = vmatprep.subr.bf16.mxu0 0
    %3722 = vmatpush1.bf16.msra.mxu0 0
    %3723 = vmatprep.subr.bf16.mxu0 0
    %3724 = vmatpush1.bf16.msra.mxu0 0
    %3725 = vmatprep.subr.bf16.mxu0 0
    %3726 = vmatpush1.bf16.msra.mxu0 0
    %3727 = vmatprep.subr.bf16.mxu0 0
    %3728 = vmatpush1.bf16.msra.mxu0 0
    %3729 = vmatprep.subr.bf16.mxu0 0
    %3730 = vmatpush1.bf16.msra.mxu0 0
    %3731 = vmatprep.subr.bf16.mxu0 0
    %3732 = vmatpush1.bf16.msra.mxu0 0
    %3733 = vmatprep.subr.bf16.mxu0 0
    %3734 = vmatpush1.bf16.msra.mxu0 0
    %3735 = vmatprep.mubr.bf16.mxu0 0
    %3736 = vmatmul.mubr.bf16.gmra.mrb[0].mxu0 %v3698
    %v3737 = vpop.f32.mrb[0].mxu0
    %v3738 = vadd.f32 0.0, %v3737
    %v3739 = vpop.f32.mrb[0].mxu0
    %v3740 = vpop.f32.mrb[0].mxu0
    %v3741 = vpop.f32.mrb[0].mxu0
    %3742 = vdwg.mxu0
    %3743 = vrot.lane.b32.xlu0 %v369, 80
    %v3744 = vpop.permute.xlu0 %3743
    %v3746 = vsel %vm765, %v3500, 0
    %v3749 = vsel %vm865, %v3744, 0
    %3751 = vmatprep.subr.bf16.mxu0 0
    %3752 = vmatpush1.bf16.msra.mxu0 %v3749
    %3753 = vmatprep.subr.bf16.mxu0 0
    %3754 = vmatpush1.bf16.msra.mxu0 0
    %3755 = vmatprep.subr.bf16.mxu0 0
    %3756 = vmatpush1.bf16.msra.mxu0 0
    %3757 = vmatprep.subr.bf16.mxu0 0
    %3758 = vmatpush1.bf16.msra.mxu0 0
    %3759 = vmatprep.subr.bf16.mxu0 0
    %3760 = vmatpush1.bf16.msra.mxu0 0
    %3761 = vmatprep.subr.bf16.mxu0 0
    %3762 = vmatpush1.bf16.msra.mxu0 0
    %3763 = vmatprep.subr.bf16.mxu0 0
    %3764 = vmatpush1.bf16.msra.mxu0 0
    %3765 = vmatprep.subr.bf16.mxu0 0
    %3766 = vmatpush1.bf16.msra.mxu0 0
    %3767 = vmatprep.subr.bf16.mxu0 0
    %3768 = vmatpush1.bf16.msra.mxu0 0
    %3769 = vmatprep.subr.bf16.mxu0 0
    %3770 = vmatpush1.bf16.msra.mxu0 0
    %3771 = vmatprep.subr.bf16.mxu0 0
    %3772 = vmatpush1.bf16.msra.mxu0 0
    %3773 = vmatprep.subr.bf16.mxu0 0
    %3774 = vmatpush1.bf16.msra.mxu0 0
    %3775 = vmatprep.subr.bf16.mxu0 0
    %3776 = vmatpush1.bf16.msra.mxu0 0
    %3777 = vmatprep.subr.bf16.mxu0 0
    %3778 = vmatpush1.bf16.msra.mxu0 0
    %3779 = vmatprep.subr.bf16.mxu0 0
    %3780 = vmatpush1.bf16.msra.mxu0 0
    %3781 = vmatprep.subr.bf16.mxu0 0
    %3782 = vmatpush1.bf16.msra.mxu0 0
    %3783 = vmatprep.mubr.bf16.mxu0 0
    %3784 = vmatmul.mubr.bf16.gmra.mrb[0].mxu0 %v3746
    %v3785 = vpop.f32.mrb[0].mxu0
    %v3786 = vadd.f32 0.0, %v3785
    %v3787 = vpop.f32.mrb[0].mxu0
    %v3788 = vpop.f32.mrb[0].mxu0
    %v3789 = vpop.f32.mrb[0].mxu0
    %3790 = vdwg.mxu0
    %3791 = vrot.lane.b32.xlu0 %v370, 80
    %v3792 = vpop.permute.xlu0 %3791
    %v3794 = vsel %vm765, %v3501, 0
    %v3797 = vsel %vm865, %v3792, 0
    %3799 = vmatprep.subr.bf16.mxu0 0
    %3800 = vmatpush1.bf16.msra.mxu0 %v3797
    %3801 = vmatprep.subr.bf16.mxu0 0
    %3802 = vmatpush1.bf16.msra.mxu0 0
    %3803 = vmatprep.subr.bf16.mxu0 0
    %3804 = vmatpush1.bf16.msra.mxu0 0
    %3805 = vmatprep.subr.bf16.mxu0 0
    %3806 = vmatpush1.bf16.msra.mxu0 0
    %3807 = vmatprep.subr.bf16.mxu0 0
    %3808 = vmatpush1.bf16.msra.mxu0 0
    %3809 = vmatprep.subr.bf16.mxu0 0
    %3810 = vmatpush1.bf16.msra.mxu0 0
    %3811 = vmatprep.subr.bf16.mxu0 0
    %3812 = vmatpush1.bf16.msra.mxu0 0
    %3813 = vmatprep.subr.bf16.mxu0 0
    %3814 = vmatpush1.bf16.msra.mxu0 0
    %3815 = vmatprep.subr.bf16.mxu0 0
    %3816 = vmatpush1.bf16.msra.mxu0 0
    %3817 = vmatprep.subr.bf16.mxu0 0
    %3818 = vmatpush1.bf16.msra.mxu0 0
    %3819 = vmatprep.subr.bf16.mxu0 0
    %3820 = vmatpush1.bf16.msra.mxu0 0
    %3821 = vmatprep.subr.bf16.mxu0 0
    %3822 = vmatpush1.bf16.msra.mxu0 0
    %3823 = vmatprep.subr.bf16.mxu0 0
    %3824 = vmatpush1.bf16.msra.mxu0 0
    %3825 = vmatprep.subr.bf16.mxu0 0
    %3826 = vmatpush1.bf16.msra.mxu0 0
    %3827 = vmatprep.subr.bf16.mxu0 0
    %3828 = vmatpush1.bf16.msra.mxu0 0
    %3829 = vmatprep.subr.bf16.mxu0 0
    %3830 = vmatpush1.bf16.msra.mxu0 0
    %3831 = vmatprep.mubr.bf16.mxu0 0
    %3832 = vmatmul.mubr.bf16.gmra.mrb[0].mxu0 %v3794
    %v3833 = vpop.f32.mrb[0].mxu0
    %v3834 = vadd.f32 0.0, %v3833
    %v3835 = vpop.f32.mrb[0].mxu0
    %v3836 = vpop.f32.mrb[0].mxu0
    %v3837 = vpop.f32.mrb[0].mxu0
    %3838 = vdwg.mxu0
    %3839 = vrot.lane.b32.xlu0 %v371, 80
    %v3840 = vpop.permute.xlu0 %3839
    %v3842 = vsel %vm765, %v3502, 0
    %v3845 = vsel %vm865, %v3840, 0
    %3847 = vmatprep.subr.bf16.mxu0 0
    %3848 = vmatpush1.bf16.msra.mxu0 %v3845
    %3849 = vmatprep.subr.bf16.mxu0 0
    %3850 = vmatpush1.bf16.msra.mxu0 0
    %3851 = vmatprep.subr.bf16.mxu0 0
    %3852 = vmatpush1.bf16.msra.mxu0 0
    %3853 = vmatprep.subr.bf16.mxu0 0
    %3854 = vmatpush1.bf16.msra.mxu0 0
    %3855 = vmatprep.subr.bf16.mxu0 0
    %3856 = vmatpush1.bf16.msra.mxu0 0
    %3857 = vmatprep.subr.bf16.mxu0 0
    %3858 = vmatpush1.bf16.msra.mxu0 0
    %3859 = vmatprep.subr.bf16.mxu0 0
    %3860 = vmatpush1.bf16.msra.mxu0 0
    %3861 = vmatprep.subr.bf16.mxu0 0
    %3862 = vmatpush1.bf16.msra.mxu0 0
    %3863 = vmatprep.subr.bf16.mxu0 0
    %3864 = vmatpush1.bf16.msra.mxu0 0
    %3865 = vmatprep.subr.bf16.mxu0 0
    %3866 = vmatpush1.bf16.msra.mxu0 0
    %3867 = vmatprep.subr.bf16.mxu0 0
    %3868 = vmatpush1.bf16.msra.mxu0 0
    %3869 = vmatprep.subr.bf16.mxu0 0
    %3870 = vmatpush1.bf16.msra.mxu0 0
    %3871 = vmatprep.subr.bf16.mxu0 0
    %3872 = vmatpush1.bf16.msra.mxu0 0
    %3873 = vmatprep.subr.bf16.mxu0 0
    %3874 = vmatpush1.bf16.msra.mxu0 0
    %3875 = vmatprep.subr.bf16.mxu0 0
    %3876 = vmatpush1.bf16.msra.mxu0 0
    %3877 = vmatprep.subr.bf16.mxu0 0
    %3878 = vmatpush1.bf16.msra.mxu0 0
    %3879 = vmatprep.mubr.bf16.mxu0 0
    %3880 = vmatmul.mubr.bf16.gmra.mrb[0].mxu0 %v3842
    %v3881 = vpop.f32.mrb[0].mxu0
    %v3882 = vadd.f32 0.0, %v3881
    %v3883 = vpop.f32.mrb[0].mxu0
    %v3884 = vpop.f32.mrb[0].mxu0
    %v3885 = vpop.f32.mrb[0].mxu0
    %3886 = vdwg.mxu0
    %3895 = vrot.lane.b32.xlu0 %v1779, 16
    %v3896 = vpop.permute.xlu0 %3895
    %3897 = vrot.lane.b32.xlu0 %v1828, 16
    %v3898 = vpop.permute.xlu0 %3897
    %3899 = vrot.lane.b32.xlu0 %v1877, 16
    %v3900 = vpop.permute.xlu0 %3899
    %3901 = vrot.lane.b32.xlu0 %v1926, 16
    %v3902 = vpop.permute.xlu0 %3901
    %3903 = vrot.lane.b32.xlu0 %v1975, 16
    %v3904 = vpop.permute.xlu0 %3903
    %3905 = vrot.lane.b32.xlu0 %v2024, 16
    %v3906 = vpop.permute.xlu0 %3905
    %3907 = vrot.lane.b32.xlu0 %v2073, 16
    %v3908 = vpop.permute.xlu0 %3907
    %3909 = vrot.lane.b32.xlu0 %v2122, 16
    %v3910 = vpop.permute.xlu0 %3909
    %3927 = vrot.lane.b32.xlu0 %v2666, 32
    %v3928 = vpop.permute.xlu0 %3927
    %3929 = vrot.lane.b32.xlu0 %v2714, 32
    %v3930 = vpop.permute.xlu0 %3929
    %3931 = vrot.lane.b32.xlu0 %v2762, 32
    %v3932 = vpop.permute.xlu0 %3931
    %3933 = vrot.lane.b32.xlu0 %v2810, 32
    %v3934 = vpop.permute.xlu0 %3933
    %3935 = vrot.lane.b32.xlu0 %v2858, 32
    %v3936 = vpop.permute.xlu0 %3935
    %3937 = vrot.lane.b32.xlu0 %v2906, 32
    %v3938 = vpop.permute.xlu0 %3937
    %3939 = vrot.lane.b32.xlu0 %v2954, 32
    %v3940 = vpop.permute.xlu0 %3939
    %3941 = vrot.lane.b32.xlu0 %v3002, 32
    %v3942 = vpop.permute.xlu0 %3941
    %3959 = vrot.lane.b32.xlu0 %v3546, 48
    %v3960 = vpop.permute.xlu0 %3959
    %3961 = vrot.lane.b32.xlu0 %v3594, 48
    %v3962 = vpop.permute.xlu0 %3961
    %3963 = vrot.lane.b32.xlu0 %v3642, 48
    %v3964 = vpop.permute.xlu0 %3963
    %3965 = vrot.lane.b32.xlu0 %v3690, 48
    %v3966 = vpop.permute.xlu0 %3965
    %3967 = vrot.lane.b32.xlu0 %v3738, 48
    %v3968 = vpop.permute.xlu0 %3967
    %3969 = vrot.lane.b32.xlu0 %v3786, 48
    %v3970 = vpop.permute.xlu0 %3969
    %3971 = vrot.lane.b32.xlu0 %v3834, 48
    %v3972 = vpop.permute.xlu0 %3971
    %3973 = vrot.lane.b32.xlu0 %v3882, 48
    %v3974 = vpop.permute.xlu0 %3973
    %v3983 = vsel %vm375, %v904, %v3896
    %v3984 = vsel %vm375, %v950, %v3898
    %v3985 = vsel %vm375, %v996, %v3900
    %v3986 = vsel %vm375, %v1042, %v3902
    %v3987 = vsel %vm375, %v1088, %v3904
    %v3988 = vsel %vm375, %v1134, %v3906
    %v3989 = vsel %vm375, %v1180, %v3908
    %v3990 = vsel %vm375, %v1226, %v3910
    %vm3991 = vcmask 261120
    %v3992 = vsel %vm3991, %v3983, %v3928
    %v3993 = vsel %vm3991, %v3984, %v3930
    %v3994 = vsel %vm3991, %v3985, %v3932
    %v3995 = vsel %vm3991, %v3986, %v3934
    %v3996 = vsel %vm3991, %v3987, %v3936
    %v3997 = vsel %vm3991, %v3988, %v3938
    %v3998 = vsel %vm3991, %v3989, %v3940
    %v3999 = vsel %vm3991, %v3990, %v3942
    %vm4000 = vcmask 392192
    %v4001 = vsel %vm4000, %v3992, %v3960
    %v4002 = vsel %vm4000, %v3993, %v3962
    %v4003 = vsel %vm4000, %v3994, %v3964
    %v4004 = vsel %vm4000, %v3995, %v3966
    %v4005 = vsel %vm4000, %v3996, %v3968
    %v4006 = vsel %vm4000, %v3997, %v3970
    %v4007 = vsel %vm4000, %v3998, %v3972
    %v4008 = vsel %vm4000, %v3999, %v3974
    %v4009 = vpack.c.bf16 %v4002, %v4001
    %v4010 = vpack.c.bf16 %v4004, %v4003
    %v4011 = vpack.c.bf16 %v4006, %v4005
    %v4012 = vpack.c.bf16 %v4008, %v4007
    %v4013 = vld [vmem:[#allocation8] sm:$0xff]
    %v4014 = vld [vmem:[#allocation8 + $0x8] sm:$0xff]
    %v4015 = vld [vmem:[#allocation8 + $0x10] sm:$0xff]
    %v4016 = vld [vmem:[#allocation8 + $0x18] sm:$0xff]
    %v4017 = vld [vmem:[#allocation8 + $0x20] sm:$0xff]
    %v4018 = vld [vmem:[#allocation8 + $0x28] sm:$0xff]
    %v4019 = vld [vmem:[#allocation8 + $0x30] sm:$0xff]
    %v4020 = vld [vmem:[#allocation8 + $0x38] sm:$0xff]
    %v4021 = vpack.c.bf16 %v4014, %v4013
    %v4022 = vpack.c.bf16 %v4016, %v4015
    %v4023 = vpack.c.bf16 %v4018, %v4017
    %v4024 = vpack.c.bf16 %v4020, %v4019
    %v4025 = vld [vmem:[#allocation10] sm:$0x1]
    %v4027 = vlaneseq
    %v4028 = vshrl.u32 %v4027, 7
    %v4029 = vsub.s32 0, %v4028
    %v4030 = vrot.slane %v4025, %v4029
    %v4033 = vsel %vm254, %v4009, 0
    %v4036 = vsel %vm254, %v4010, 0
    %v4039 = vsel %vm254, %v4011, 0
    %v4042 = vsel %vm254, %v4012, 0
    %4044 = vmatprep.subr.bf16.mxu0 0
    %4045 = vmatpush1.bf16.msra.mxu0 %v4021
    %4046 = vmatprep.subr.bf16.mxu0 0
    %4047 = vmatpush1.bf16.msra.mxu0 %v4022
    %4048 = vmatprep.subr.bf16.mxu0 0
    %4049 = vmatpush1.bf16.msra.mxu0 %v4023
    %4050 = vmatprep.subr.bf16.mxu0 0
    %4051 = vmatpush1.bf16.msra.mxu0 %v4024
    %4052 = vmatprep.subr.bf16.mxu0 0
    %4053 = vmatpush1.bf16.msra.mxu0 0
    %4054 = vmatprep.subr.bf16.mxu0 0
    %4055 = vmatpush1.bf16.msra.mxu0 0
    %4056 = vmatprep.subr.bf16.mxu0 0
    %4057 = vmatpush1.bf16.msra.mxu0 0
    %4058 = vmatprep.subr.bf16.mxu0 0
    %4059 = vmatpush1.bf16.msra.mxu0 0
    %4060 = vmatprep.subr.bf16.mxu0 0
    %4061 = vmatpush1.bf16.msra.mxu0 0
    %4062 = vmatprep.subr.bf16.mxu0 0
    %4063 = vmatpush1.bf16.msra.mxu0 0
    %4064 = vmatprep.subr.bf16.mxu0 0
    %4065 = vmatpush1.bf16.msra.mxu0 0
    %4066 = vmatprep.subr.bf16.mxu0 0
    %4067 = vmatpush1.bf16.msra.mxu0 0
    %4068 = vmatprep.subr.bf16.mxu0 0
    %4069 = vmatpush1.bf16.msra.mxu0 0
    %4070 = vmatprep.subr.bf16.mxu0 0
    %4071 = vmatpush1.bf16.msra.mxu0 0
    %4072 = vmatprep.subr.bf16.mxu0 0
    %4073 = vmatpush1.bf16.msra.mxu0 0
    %4074 = vmatprep.subr.bf16.mxu0 0
    %4075 = vmatpush1.bf16.msra.mxu0 0
    %4076 = vmatprep.mubr.bf16.mxu0 0
    %4077 = vmatmul.mubr.bf16.gmra.mrb[0].mxu0 %v4033
    %v4078 = vpop.f32.mrb[0].mxu0
    %v4079 = vadd.f32 %v4030, %v4078
    %v4080 = vpop.f32.mrb[0].mxu0
    %v4081 = vpop.f32.mrb[0].mxu0
    %v4082 = vadd.f32 %v4030, %v4081
    %v4083 = vpop.f32.mrb[0].mxu0
    %4084 = vmatprep.mubr.bf16.mxu0 0
    %4085 = vmatmul.mubr.bf16.gmra.mrb[0].mxu0 %v4036
    %v4086 = vpop.f32.mrb[0].mxu0
    %v4087 = vadd.f32 %v4030, %v4086
    %v4088 = vpop.f32.mrb[0].mxu0
    %v4089 = vpop.f32.mrb[0].mxu0
    %v4090 = vadd.f32 %v4030, %v4089
    %v4091 = vpop.f32.mrb[0].mxu0
    %4092 = vmatprep.mubr.bf16.mxu0 0
    %4093 = vmatmul.mubr.bf16.gmra.mrb[0].mxu0 %v4039
    %v4094 = vpop.f32.mrb[0].mxu0
    %v4095 = vadd.f32 %v4030, %v4094
    %v4096 = vpop.f32.mrb[0].mxu0
    %v4097 = vpop.f32.mrb[0].mxu0
    %v4098 = vadd.f32 %v4030, %v4097
    %v4099 = vpop.f32.mrb[0].mxu0
    %4100 = vmatprep.mubr.bf16.mxu0 0
    %4101 = vmatmul.mubr.bf16.gmra.mrb[0].mxu0 %v4042
    %v4102 = vpop.f32.mrb[0].mxu0
    %v4103 = vadd.f32 %v4030, %v4102
    %v4104 = vpop.f32.mrb[0].mxu0
    %v4105 = vpop.f32.mrb[0].mxu0
    %v4106 = vadd.f32 %v4030, %v4105
    %v4107 = vpop.f32.mrb[0].mxu0
    %4108 = vdwg.mxu0
    %v4109 = vadd.f32 %v206, %v4079
    %v4110 = vadd.f32 %v207, %v4082
    %v4111 = vadd.f32 %v208, %v4087
    %v4112 = vadd.f32 %v209, %v4090
    %v4113 = vadd.f32 %v210, %v4095
    %v4114 = vadd.f32 %v211, %v4098
    %v4115 = vadd.f32 %v212, %v4103
    %v4116 = vadd.f32 %v213, %v4106
    %v4117 = vld [vmem:[#allocation11] sm:$0x1]
    %v4118 = vld [vmem:[#allocation13] sm:$0x1]
    %v4119 = vsel %vm254, %v4109, 0.0
    %4120 = vadd.xlane.f32.xlu0 %v4119
    %v4121 = vpop.xlane.xlu0 %4120
    %v4122 = vsel %vm254, %v4110, 0.0
    %4123 = vadd.xlane.f32.xlu0 %v4122
    %v4124 = vpop.xlane.xlu0 %4123
    %v4125 = vsel %vm254, %v4111, 0.0
    %4126 = vadd.xlane.f32.xlu0 %v4125
    %v4127 = vpop.xlane.xlu0 %4126
    %v4128 = vsel %vm254, %v4112, 0.0
    %4129 = vadd.xlane.f32.xlu0 %v4128
    %v4130 = vpop.xlane.xlu0 %4129
    %v4131 = vsel %vm254, %v4113, 0.0
    %4132 = vadd.xlane.f32.xlu0 %v4131
    %v4133 = vpop.xlane.xlu0 %4132
    %v4134 = vsel %vm254, %v4114, 0.0
    %4135 = vadd.xlane.f32.xlu0 %v4134
    %v4136 = vpop.xlane.xlu0 %4135
    %v4137 = vsel %vm254, %v4115, 0.0
    %4138 = vadd.xlane.f32.xlu0 %v4137
    %v4139 = vpop.xlane.xlu0 %4138
    %v4140 = vsel %vm254, %v4116, 0.0
    %4141 = vadd.xlane.f32.xlu0 %v4140
    %v4142 = vpop.xlane.xlu0 %4141
    %v4143 = vrcp.pop 64.0
    %v4144 = vmul.f32 %v4121, %v4143
    %v4145 = vmul.f32 %v4124, %v4143
    %v4146 = vmul.f32 %v4127, %v4143
    %v4147 = vmul.f32 %v4130, %v4143
    %v4148 = vmul.f32 %v4133, %v4143
    %v4149 = vmul.f32 %v4136, %v4143
    %v4150 = vmul.f32 %v4139, %v4143
    %v4151 = vmul.f32 %v4142, %v4143
    %v4152 = vsub.f32 %v4109, %v4144
    %v4153 = vsub.f32 %v4110, %v4145
    %v4154 = vsub.f32 %v4111, %v4146
    %v4155 = vsub.f32 %v4112, %v4147
    %v4156 = vsub.f32 %v4113, %v4148
    %v4157 = vsub.f32 %v4114, %v4149
    %v4158 = vsub.f32 %v4115, %v4150
    %v4159 = vsub.f32 %v4116, %v4151
    %v4160 = vmul.f32 %v4152, %v4152
    %v4161 = vmul.f32 %v4153, %v4153
    %v4162 = vmul.f32 %v4154, %v4154
    %v4163 = vmul.f32 %v4155, %v4155
    %v4164 = vmul.f32 %v4156, %v4156
    %v4165 = vmul.f32 %v4157, %v4157
    %v4166 = vmul.f32 %v4158, %v4158
    %v4167 = vmul.f32 %v4159, %v4159
    %v4168 = vsel %vm254, %v4160, 0.0
    %4169 = vadd.xlane.f32.xlu0 %v4168
    %v4170 = vpop.xlane.xlu0 %4169
    %v4171 = vsel %vm254, %v4161, 0.0
    %4172 = vadd.xlane.f32.xlu0 %v4171
    %v4173 = vpop.xlane.xlu0 %4172
    %v4174 = vsel %vm254, %v4162, 0.0
    %4175 = vadd.xlane.f32.xlu0 %v4174
    %v4176 = vpop.xlane.xlu0 %4175
    %v4177 = vsel %vm254, %v4163, 0.0
    %4178 = vadd.xlane.f32.xlu0 %v4177
    %v4179 = vpop.xlane.xlu0 %4178
    %v4180 = vsel %vm254, %v4164, 0.0
    %4181 = vadd.xlane.f32.xlu0 %v4180
    %v4182 = vpop.xlane.xlu0 %4181
    %v4183 = vsel %vm254, %v4165, 0.0
    %4184 = vadd.xlane.f32.xlu0 %v4183
    %v4185 = vpop.xlane.xlu0 %4184
    %v4186 = vsel %vm254, %v4166, 0.0
    %4187 = vadd.xlane.f32.xlu0 %v4186
    %v4188 = vpop.xlane.xlu0 %4187
    %v4189 = vsel %vm254, %v4167, 0.0
    %4190 = vadd.xlane.f32.xlu0 %v4189
    %v4191 = vpop.xlane.xlu0 %4190
    %v4192 = vmul.f32 %v4170, %v4143
    %v4193 = vmul.f32 %v4173, %v4143
    %v4194 = vmul.f32 %v4176, %v4143
    %v4195 = vmul.f32 %v4179, %v4143
    %v4196 = vmul.f32 %v4182, %v4143
    %v4197 = vmul.f32 %v4185, %v4143
    %v4198 = vmul.f32 %v4188, %v4143
    %v4199 = vmul.f32 %v4191, %v4143
    %v4200 = vadd.f32 %v4192, 1e-05
    %v4201 = vadd.f32 %v4193, 1e-05
    %v4202 = vadd.f32 %v4194, 1e-05
    %v4203 = vadd.f32 %v4195, 1e-05
    %v4204 = vadd.f32 %v4196, 1e-05
    %v4205 = vadd.f32 %v4197, 1e-05
    %v4206 = vadd.f32 %v4198, 1e-05
    %v4207 = vadd.f32 %v4199, 1e-05
    %v4208 = vrsqrt.pop %v4200
    %v4209 = vrsqrt.pop %v4201
    %v4210 = vrsqrt.pop %v4202
    %v4211 = vrsqrt.pop %v4203
    %v4212 = vrsqrt.pop %v4204
    %v4213 = vrsqrt.pop %v4205
    %v4214 = vrsqrt.pop %v4206
    %v4215 = vrsqrt.pop %v4207
    %v4216 = vmul.f32 %v4152, %v4208
    %v4217 = vmul.f32 %v4153, %v4209
    %v4218 = vmul.f32 %v4154, %v4210
    %v4219 = vmul.f32 %v4155, %v4211
    %v4220 = vmul.f32 %v4156, %v4212
    %v4221 = vmul.f32 %v4157, %v4213
    %v4222 = vmul.f32 %v4158, %v4214
    %v4223 = vmul.f32 %v4159, %v4215
    %v4225 = vlaneseq
    %v4226 = vshrl.u32 %v4225, 7
    %v4227 = vsub.s32 0, %v4226
    %v4228 = vrot.slane %v4117, %v4227
    %v4230 = vmul.f32 %v4216, %v4228
    %v4231 = vmul.f32 %v4217, %v4228
    %v4232 = vmul.f32 %v4218, %v4228
    %v4233 = vmul.f32 %v4219, %v4228
    %v4234 = vmul.f32 %v4220, %v4228
    %v4235 = vmul.f32 %v4221, %v4228
    %v4236 = vmul.f32 %v4222, %v4228
    %v4237 = vmul.f32 %v4223, %v4228
    %v4239 = vlaneseq
    %v4240 = vshrl.u32 %v4239, 7
    %v4241 = vsub.s32 0, %v4240
    %v4242 = vrot.slane %v4118, %v4241
    %v4244 = vadd.f32 %v4230, %v4242
    %v4245 = vadd.f32 %v4231, %v4242
    %v4246 = vadd.f32 %v4232, %v4242
    %v4247 = vadd.f32 %v4233, %v4242
    %v4248 = vadd.f32 %v4234, %v4242
    %v4249 = vadd.f32 %v4235, %v4242
    %v4250 = vadd.f32 %v4236, %v4242
    %v4251 = vadd.f32 %v4237, %v4242
    %v4252 = vpack.c.bf16 %v4245, %v4244
    %v4253 = vpack.c.bf16 %v4247, %v4246
    %v4254 = vpack.c.bf16 %v4249, %v4248
    %v4255 = vpack.c.bf16 %v4251, %v4250
    %v4256 = vld [vmem:[#allocation14] sm:$0xff]
    %v4257 = vld [vmem:[#allocation14 + $0x8] sm:$0xff]
    %v4258 = vld [vmem:[#allocation14 + $0x10] sm:$0xff]
    %v4259 = vld [vmem:[#allocation14 + $0x18] sm:$0xff]
    %v4260 = vld [vmem:[#allocation14 + $0x20] sm:$0xff]
    %v4261 = vld [vmem:[#allocation14 + $0x28] sm:$0xff]
    %v4262 = vld [vmem:[#allocation14 + $0x30] sm:$0xff]
    %v4263 = vld [vmem:[#allocation14 + $0x38] sm:$0xff]
    %v4264 = vpack.c.bf16 %v4257, %v4256
    %v4265 = vpack.c.bf16 %v4259, %v4258
    %v4266 = vpack.c.bf16 %v4261, %v4260
    %v4267 = vpack.c.bf16 %v4263, %v4262
    %v4268 = vld [vmem:[#allocation16] sm:$0x1]
    %v4270 = vlaneseq
    %v4271 = vshrl.u32 %v4270, 7
    %v4272 = vsub.s32 0, %v4271
    %v4273 = vrot.slane %v4268, %v4272
    %v4276 = vsel %vm254, %v4252, 0
    %v4279 = vsel %vm254, %v4253, 0
    %v4282 = vsel %vm254, %v4254, 0
    %v4285 = vsel %vm254, %v4255, 0
    %4287 = vmatprep.subr.bf16.mxu0 0
    %4288 = vmatpush1.bf16.msra.mxu0 %v4264
    %4289 = vmatprep.subr.bf16.mxu0 0
    %4290 = vmatpush1.bf16.msra.mxu0 %v4265
    %4291 = vmatprep.subr.bf16.mxu0 0
    %4292 = vmatpush1.bf16.msra.mxu0 %v4266
    %4293 = vmatprep.subr.bf16.mxu0 0
    %4294 = vmatpush1.bf16.msra.mxu0 %v4267
    %4295 = vmatprep.subr.bf16.mxu0 0
    %4296 = vmatpush1.bf16.msra.mxu0 0
    %4297 = vmatprep.subr.bf16.mxu0 0
    %4298 = vmatpush1.bf16.msra.mxu0 0
    %4299 = vmatprep.subr.bf16.mxu0 0
    %4300 = vmatpush1.bf16.msra.mxu0 0
    %4301 = vmatprep.subr.bf16.mxu0 0
    %4302 = vmatpush1.bf16.msra.mxu0 0
    %4303 = vmatprep.subr.bf16.mxu0 0
    %4304 = vmatpush1.bf16.msra.mxu0 0
    %4305 = vmatprep.subr.bf16.mxu0 0
    %4306 = vmatpush1.bf16.msra.mxu0 0
    %4307 = vmatprep.subr.bf16.mxu0 0
    %4308 = vmatpush1.bf16.msra.mxu0 0
    %4309 = vmatprep.subr.bf16.mxu0 0
    %4310 = vmatpush1.bf16.msra.mxu0 0
    %4311 = vmatprep.subr.bf16.mxu0 0
    %4312 = vmatpush1.bf16.msra.mxu0 0
    %4313 = vmatprep.subr.bf16.mxu0 0
    %4314 = vmatpush1.bf16.msra.mxu0 0
    %4315 = vmatprep.subr.bf16.mxu0 0
    %4316 = vmatpush1.bf16.msra.mxu0 0
    %4317 = vmatprep.subr.bf16.mxu0 0
    %4318 = vmatpush1.bf16.msra.mxu0 0
    %4319 = vmatprep.mubr.bf16.mxu0 0
    %4320 = vmatmul.mubr.bf16.gmra.mrb[0].mxu0 %v4276
    %v4321 = vpop.f32.mrb[0].mxu0
    %v4322 = vadd.f32 %v4273, %v4321
    %v4323 = vpop.f32.mrb[0].mxu0
    %v4324 = vpop.f32.mrb[0].mxu0
    %v4325 = vadd.f32 %v4273, %v4324
    %v4326 = vpop.f32.mrb[0].mxu0
    %4327 = vmatprep.mubr.bf16.mxu0 0
    %4328 = vmatmul.mubr.bf16.gmra.mrb[0].mxu0 %v4279
    %v4329 = vpop.f32.mrb[0].mxu0
    %v4330 = vadd.f32 %v4273, %v4329
    %v4331 = vpop.f32.mrb[0].mxu0
    %v4332 = vpop.f32.mrb[0].mxu0
    %v4333 = vadd.f32 %v4273, %v4332
    %v4334 = vpop.f32.mrb[0].mxu0
    %4335 = vmatprep.mubr.bf16.mxu0 0
    %4336 = vmatmul.mubr.bf16.gmra.mrb[0].mxu0 %v4282
    %v4337 = vpop.f32.mrb[0].mxu0
    %v4338 = vadd.f32 %v4273, %v4337
    %v4339 = vpop.f32.mrb[0].mxu0
    %v4340 = vpop.f32.mrb[0].mxu0
    %v4341 = vadd.f32 %v4273, %v4340
    %v4342 = vpop.f32.mrb[0].mxu0
    %4343 = vmatprep.mubr.bf16.mxu0 0
    %4344 = vmatmul.mubr.bf16.gmra.mrb[0].mxu0 %v4285
    %v4345 = vpop.f32.mrb[0].mxu0
    %v4346 = vadd.f32 %v4273, %v4345
    %v4347 = vpop.f32.mrb[0].mxu0
    %v4348 = vpop.f32.mrb[0].mxu0
    %v4349 = vadd.f32 %v4273, %v4348
    %v4350 = vpop.f32.mrb[0].mxu0
    %4351 = vdwg.mxu0
    %v4352 = vmax.f32 %v4322, 0.0
    %v4353 = vmax.f32 %v4325, 0.0
    %v4354 = vmax.f32 %v4330, 0.0
    %v4355 = vmax.f32 %v4333, 0.0
    %v4356 = vmax.f32 %v4338, 0.0
    %v4357 = vmax.f32 %v4341, 0.0
    %v4358 = vmax.f32 %v4346, 0.0
    %v4359 = vmax.f32 %v4349, 0.0
    %v4360 = vpack.c.bf16 %v4353, %v4352
    %v4361 = vpack.c.bf16 %v4355, %v4354
    %v4362 = vpack.c.bf16 %v4357, %v4356
    %v4363 = vpack.c.bf16 %v4359, %v4358
    %v4364 = vld [vmem:[#allocation17] sm:$0xff]
    %v4365 = vld [vmem:[#allocation17 + $0x8] sm:$0xff]
    %v4366 = vld [vmem:[#allocation17 + $0x10] sm:$0xff]
    %v4367 = vld [vmem:[#allocation17 + $0x18] sm:$0xff]
    %v4368 = vpack.c.bf16 %v4365, %v4364
    %v4369 = vpack.c.bf16 %v4367, %v4366
    %v4370 = vld [vmem:[#allocation19] sm:$0x1]
    %v4372 = vlaneseq
    %v4373 = vshrl.u32 %v4372, 7
    %v4374 = vsub.s32 0, %v4373
    %v4375 = vrot.slane %v4370, %v4374
    %v4378 = vsel %vm3991, %v4360, 0
    %v4381 = vsel %vm3991, %v4361, 0
    %v4384 = vsel %vm3991, %v4362, 0
    %v4387 = vsel %vm3991, %v4363, 0
    %4389 = vmatprep.subr.bf16.mxu0 0
    %4390 = vmatpush1.bf16.msra.mxu0 %v4368
    %4391 = vmatprep.subr.bf16.mxu0 0
    %4392 = vmatpush1.bf16.msra.mxu0 %v4369
    %4393 = vmatprep.subr.bf16.mxu0 0
    %4394 = vmatpush1.bf16.msra.mxu0 0
    %4395 = vmatprep.subr.bf16.mxu0 0
    %4396 = vmatpush1.bf16.msra.mxu0 0
    %4397 = vmatprep.subr.bf16.mxu0 0
    %4398 = vmatpush1.bf16.msra.mxu0 0
    %4399 = vmatprep.subr.bf16.mxu0 0
    %4400 = vmatpush1.bf16.msra.mxu0 0
    %4401 = vmatprep.subr.bf16.mxu0 0
    %4402 = vmatpush1.bf16.msra.mxu0 0
    %4403 = vmatprep.subr.bf16.mxu0 0
    %4404 = vmatpush1.bf16.msra.mxu0 0
    %4405 = vmatprep.subr.bf16.mxu0 0
    %4406 = vmatpush1.bf16.msra.mxu0 0
    %4407 = vmatprep.subr.bf16.mxu0 0
    %4408 = vmatpush1.bf16.msra.mxu0 0
    %4409 = vmatprep.subr.bf16.mxu0 0
    %4410 = vmatpush1.bf16.msra.mxu0 0
    %4411 = vmatprep.subr.bf16.mxu0 0
    %4412 = vmatpush1.bf16.msra.mxu0 0
    %4413 = vmatprep.subr.bf16.mxu0 0
    %4414 = vmatpush1.bf16.msra.mxu0 0
    %4415 = vmatprep.subr.bf16.mxu0 0
    %4416 = vmatpush1.bf16.msra.mxu0 0
    %4417 = vmatprep.subr.bf16.mxu0 0
    %4418 = vmatpush1.bf16.msra.mxu0 0
    %4419 = vmatprep.subr.bf16.mxu0 0
    %4420 = vmatpush1.bf16.msra.mxu0 0
    %4421 = vmatprep.mubr.bf16.mxu0 0
    %4422 = vmatmul.mubr.bf16.gmra.mrb[0].mxu0 %v4378
    %v4423 = vpop.f32.mrb[0].mxu0
    %v4424 = vadd.f32 %v4375, %v4423
    %v4425 = vpop.f32.mrb[0].mxu0
    %v4426 = vpop.f32.mrb[0].mxu0
    %v4427 = vadd.f32 %v4375, %v4426
    %v4428 = vpop.f32.mrb[0].mxu0
    %4429 = vmatprep.mubr.bf16.mxu0 0
    %4430 = vmatmul.mubr.bf16.gmra.mrb[0].mxu0 %v4381
    %v4431 = vpop.f32.mrb[0].mxu0
    %v4432 = vadd.f32 %v4375, %v4431
    %v4433 = vpop.f32.mrb[0].mxu0
    %v4434 = vpop.f32.mrb[0].mxu0
    %v4435 = vadd.f32 %v4375, %v4434
    %v4436 = vpop.f32.mrb[0].mxu0
    %4437 = vmatprep.mubr.bf16.mxu0 0
    %4438 = vmatmul.mubr.bf16.gmra.mrb[0].mxu0 %v4384
    %v4439 = vpop.f32.mrb[0].mxu0
    %v4440 = vadd.f32 %v4375, %v4439
    %v4441 = vpop.f32.mrb[0].mxu0
    %v4442 = vpop.f32.mrb[0].mxu0
    %v4443 = vadd.f32 %v4375, %v4442
    %v4444 = vpop.f32.mrb[0].mxu0
    %4445 = vmatprep.mubr.bf16.mxu0 0
    %4446 = vmatmul.mubr.bf16.gmra.mrb[0].mxu0 %v4387
    %v4447 = vpop.f32.mrb[0].mxu0
    %v4448 = vadd.f32 %v4375, %v4447
    %v4449 = vpop.f32.mrb[0].mxu0
    %v4450 = vpop.f32.mrb[0].mxu0
    %v4451 = vadd.f32 %v4375, %v4450
    %v4452 = vpop.f32.mrb[0].mxu0
    %4453 = vdwg.mxu0
    %v4454 = vadd.f32 %v4244, %v4424
    %v4455 = vadd.f32 %v4245, %v4427
    %v4456 = vadd.f32 %v4246, %v4432
    %v4457 = vadd.f32 %v4247, %v4435
    %v4458 = vadd.f32 %v4248, %v4440
    %v4459 = vadd.f32 %v4249, %v4443
    %v4460 = vadd.f32 %v4250, %v4448
    %v4461 = vadd.f32 %v4251, %v4451
    %v4462 = vld [vmem:[#allocation20] sm:$0x1]
    %v4463 = vld [vmem:[#allocation22] sm:$0x1]
    %v4464 = vsel %vm254, %v4454, 0.0
    %4465 = vadd.xlane.f32.xlu0 %v4464
    %v4466 = vpop.xlane.xlu0 %4465
    %v4467 = vsel %vm254, %v4455, 0.0
    %4468 = vadd.xlane.f32.xlu0 %v4467
    %v4469 = vpop.xlane.xlu0 %4468
    %v4470 = vsel %vm254, %v4456, 0.0
    %4471 = vadd.xlane.f32.xlu0 %v4470
    %v4472 = vpop.xlane.xlu0 %4471
    %v4473 = vsel %vm254, %v4457, 0.0
    %4474 = vadd.xlane.f32.xlu0 %v4473
    %v4475 = vpop.xlane.xlu0 %4474
    %v4476 = vsel %vm254, %v4458, 0.0
    %4477 = vadd.xlane.f32.xlu0 %v4476
    %v4478 = vpop.xlane.xlu0 %4477
    %v4479 = vsel %vm254, %v4459, 0.0
    %4480 = vadd.xlane.f32.xlu0 %v4479
    %v4481 = vpop.xlane.xlu0 %4480
    %v4482 = vsel %vm254, %v4460, 0.0
    %4483 = vadd.xlane.f32.xlu0 %v4482
    %v4484 = vpop.xlane.xlu0 %4483
    %v4485 = vsel %vm254, %v4461, 0.0
    %4486 = vadd.xlane.f32.xlu0 %v4485
    %v4487 = vpop.xlane.xlu0 %4486
    %v4488 = vmul.f32 %v4466, %v4143
    %v4489 = vmul.f32 %v4469, %v4143
    %v4490 = vmul.f32 %v4472, %v4143
    %v4491 = vmul.f32 %v4475, %v4143
    %v4492 = vmul.f32 %v4478, %v4143
    %v4493 = vmul.f32 %v4481, %v4143
    %v4494 = vmul.f32 %v4484, %v4143
    %v4495 = vmul.f32 %v4487, %v4143
    %v4496 = vsub.f32 %v4454, %v4488
    %v4497 = vsub.f32 %v4455, %v4489
    %v4498 = vsub.f32 %v4456, %v4490
    %v4499 = vsub.f32 %v4457, %v4491
    %v4500 = vsub.f32 %v4458, %v4492
    %v4501 = vsub.f32 %v4459, %v4493
    %v4502 = vsub.f32 %v4460, %v4494
    %v4503 = vsub.f32 %v4461, %v4495
    %v4504 = vmul.f32 %v4496, %v4496
    %v4505 = vmul.f32 %v4497, %v4497
    %v4506 = vmul.f32 %v4498, %v4498
    %v4507 = vmul.f32 %v4499, %v4499
    %v4508 = vmul.f32 %v4500, %v4500
    %v4509 = vmul.f32 %v4501, %v4501
    %v4510 = vmul.f32 %v4502, %v4502
    %v4511 = vmul.f32 %v4503, %v4503
    %v4512 = vsel %vm254, %v4504, 0.0
    %4513 = vadd.xlane.f32.xlu0 %v4512
    %v4514 = vpop.xlane.xlu0 %4513
    %v4515 = vsel %vm254, %v4505, 0.0
    %4516 = vadd.xlane.f32.xlu0 %v4515
    %v4517 = vpop.xlane.xlu0 %4516
    %v4518 = vsel %vm254, %v4506, 0.0
    %4519 = vadd.xlane.f32.xlu0 %v4518
    %v4520 = vpop.xlane.xlu0 %4519
    %v4521 = vsel %vm254, %v4507, 0.0
    %4522 = vadd.xlane.f32.xlu0 %v4521
    %v4523 = vpop.xlane.xlu0 %4522
    %v4524 = vsel %vm254, %v4508, 0.0
    %4525 = vadd.xlane.f32.xlu0 %v4524
    %v4526 = vpop.xlane.xlu0 %4525
    %v4527 = vsel %vm254, %v4509, 0.0
    %4528 = vadd.xlane.f32.xlu0 %v4527
    %v4529 = vpop.xlane.xlu0 %4528
    %v4530 = vsel %vm254, %v4510, 0.0
    %4531 = vadd.xlane.f32.xlu0 %v4530
    %v4532 = vpop.xlane.xlu0 %4531
    %v4533 = vsel %vm254, %v4511, 0.0
    %4534 = vadd.xlane.f32.xlu0 %v4533
    %v4535 = vpop.xlane.xlu0 %4534
    %v4536 = vmul.f32 %v4514, %v4143
    %v4537 = vmul.f32 %v4517, %v4143
    %v4538 = vmul.f32 %v4520, %v4143
    %v4539 = vmul.f32 %v4523, %v4143
    %v4540 = vmul.f32 %v4526, %v4143
    %v4541 = vmul.f32 %v4529, %v4143
    %v4542 = vmul.f32 %v4532, %v4143
    %v4543 = vmul.f32 %v4535, %v4143
    %v4544 = vadd.f32 %v4536, 1e-05
    %v4545 = vadd.f32 %v4537, 1e-05
    %v4546 = vadd.f32 %v4538, 1e-05
    %v4547 = vadd.f32 %v4539, 1e-05
    %v4548 = vadd.f32 %v4540, 1e-05
    %v4549 = vadd.f32 %v4541, 1e-05
    %v4550 = vadd.f32 %v4542, 1e-05
    %v4551 = vadd.f32 %v4543, 1e-05
    %v4552 = vrsqrt.pop %v4544
    %v4553 = vrsqrt.pop %v4545
    %v4554 = vrsqrt.pop %v4546
    %v4555 = vrsqrt.pop %v4547
    %v4556 = vrsqrt.pop %v4548
    %v4557 = vrsqrt.pop %v4549
    %v4558 = vrsqrt.pop %v4550
    %v4559 = vrsqrt.pop %v4551
    %v4560 = vmul.f32 %v4496, %v4552
    %v4561 = vmul.f32 %v4497, %v4553
    %v4562 = vmul.f32 %v4498, %v4554
    %v4563 = vmul.f32 %v4499, %v4555
    %v4564 = vmul.f32 %v4500, %v4556
    %v4565 = vmul.f32 %v4501, %v4557
    %v4566 = vmul.f32 %v4502, %v4558
    %v4567 = vmul.f32 %v4503, %v4559
    %v4569 = vlaneseq
    %v4570 = vshrl.u32 %v4569, 7
    %v4571 = vsub.s32 0, %v4570
    %v4572 = vrot.slane %v4462, %v4571
    %v4574 = vmul.f32 %v4560, %v4572
    %v4575 = vmul.f32 %v4561, %v4572
    %v4576 = vmul.f32 %v4562, %v4572
    %v4577 = vmul.f32 %v4563, %v4572
    %v4578 = vmul.f32 %v4564, %v4572
    %v4579 = vmul.f32 %v4565, %v4572
    %v4580 = vmul.f32 %v4566, %v4572
    %v4581 = vmul.f32 %v4567, %v4572
    %v4583 = vlaneseq
    %v4584 = vshrl.u32 %v4583, 7
    %v4585 = vsub.s32 0, %v4584
    %v4586 = vrot.slane %v4463, %v4585
    %v4588 = vadd.f32 %v4574, %v4586
    %v4589 = vadd.f32 %v4575, %v4586
    %v4590 = vadd.f32 %v4576, %v4586
    %v4591 = vadd.f32 %v4577, %v4586
    %v4592 = vadd.f32 %v4578, %v4586
    %v4593 = vadd.f32 %v4579, %v4586
    %v4594 = vadd.f32 %v4580, %v4586
    %v4595 = vadd.f32 %v4581, %v4586
    %4596 = vst.msk [vmem:[#allocation23] sm:$0xff] %vm254, %v4588
    %4597 = vst.msk [vmem:[#allocation23 + $0x8] sm:$0xff] %vm254, %v4589
    %4598 = vst.msk [vmem:[#allocation23 + $0x10] sm:$0xff] %vm254, %v4590
    %4599 = vst.msk [vmem:[#allocation23 + $0x18] sm:$0xff] %vm254, %v4591
    %4600 = vst.msk [vmem:[#allocation23 + $0x20] sm:$0xff] %vm254, %v4592
    %4601 = vst.msk [vmem:[#allocation23 + $0x28] sm:$0xff] %vm254, %v4593
    %4602 = vst.msk [vmem:[#allocation23 + $0x30] sm:$0xff] %vm254, %v4594
    %4603 = vst.msk [vmem:[#allocation23 + $0x38] sm:$0xff] %vm254, %v4595
    // Predicated region
    $region106: #{bilstm_att_forward.6} parent=1 // pred_check
      _
    $region107: #{bilstm_att_forward.6} parent=1 // pred_check_branch
      %4605 = sbr.rel (0) target = $region109
    $region108: #{bilstm_att_forward.6} parent=1 // pred_region
      %s4607 = ssub.s32 1024, 1024
      %4608 = vsyncadd [#allocation4], %s4607
      %s4609 = sshll.u32 [#allocation23], 4
      %s4610 = int_to_ptr.vmem [resolvable:$true] %s4609
      %4615 = dma.vmem_to_hbm [thread:$0]  %s4610, 1024, %s13, [#allocation4], 128, 128, 8
    $region109: #{bilstm_att_forward.6} parent=1 // pred_fallthru
      _
    // Predicated region
    $region110: #{bilstm_att_forward.6} parent=1 // pred_check
      _
    $region111: #{bilstm_att_forward.6} parent=1 // pred_check_branch
      %4617 = sbr.rel (0) target = $region113
    $region112: #{bilstm_att_forward.6} parent=1 // pred_region
      %4618 = dma.done [#allocation4], 1024
    $region113: #{bilstm_att_forward.6} parent=1 // pred_fallthru
      _
    %4619 = vsyncpa [#allocation3], 1
    %4620 = vsyncpa [#allocation6], 1
    %4621 = vsyncpa [#allocation9], 1
    %4622 = vsyncpa [#allocation12], 1
    %4623 = vsyncpa [#allocation15], 1
    %4624 = vsyncpa [#allocation18], 1
    %4625 = vsyncpa [#allocation21], 1
    %4626 = vsyncpa [#allocation4], 1

</llo_original>
